<compile_context>
chip_gen: v7x
topology: tpu7x:2x2x1
jax: 0.10.0
libtpu: 0.0.40
codegen_flags: <defaults>
</compile_context>

<pallas_src>
import functools

import jax
import jax.numpy as jnp
from jax.experimental import pallas as pl
from jax.experimental.pallas import tpu as pltpu

EPS = 1e-5  # PyTorch GroupNorm default eps


def _full_spec(shape):
    """Whole-array block, same block for the single grid step."""
    nd = len(shape)
    return pl.BlockSpec(shape, lambda *_: (0,) * nd)


# ----------------------------- Pallas kernel -----------------------------

def _up_block_kernel(
        x_ref, xp_ref, trm_ref,
        g1_ref, b1_ref, g1p_ref, b1p_ref, minv_in_ref,
        w1_ref, c1b_ref, w1p_ref, c1pb_ref,
        wtrm_ref, btrm_ref,
        g2_ref, b2_ref, minv_out_ref,
        w2_ref, c2b_ref, ws_ref, sb_ref,
        *rest,
        B, H, W, pad, eps, scale, compute_prev, change_prev, has_attn):
    """Whole UpBlock forward (residual block + attention + x_prev 1x1 conv)."""
    idx = 0
    if has_attn:
        (wq_ref, wk_ref, wv_ref, bq_ref, bk_ref, bv_ref,
         wo_ref, bo_ref) = rest[idx:idx + 8]
        idx += 8
    if change_prev:
        wxp_ref, bxp_ref = rest[idx:idx + 2]
        idx += 2
    o_ref = rest[idx]
    idx += 1
    if change_prev:
        xpo_ref = rest[idx]
        idx += 1
    pad1_ref, pad2_ref = rest[idx:idx + 2]

    f32, bf16 = jnp.float32, jnp.bfloat16
    HW = H * W
    L = HW + 2 * pad          # per-image extent in the padded conv scratch
    TOT = B * L
    M = TOT - 2 * pad         # conv-matmul M (all interiors + inter-image halo)

    # x-edge keep masks for the packed-dx bands (built in-kernel, no DMA).
    col = jax.lax.broadcasted_iota(jnp.int32, (B * HW, 1), 0) % W
    lkeep = col != 0          # output pixel has a valid x-1 neighbour
    rkeep = col != (W - 1)    # output pixel has a valid x+1 neighbour

    def gn_swish(xf, g_ref, b_ref, minv_ref):
        # Two-pass GroupNorm (mean, then E[(x-mean)^2]) in f32, then Swish.
        c = xf.shape[-1]
        xg = xf.reshape(B, HW, c)
        gmean = jnp.dot(jnp.sum(xg, axis=1) * (1.0 / HW), minv_ref[...],
                        preferred_element_type=f32)               # (B, C) group means
        d = xg - gmean[:, None, :]
        gvar = jnp.dot(jnp.sum(d * d, axis=1) * (1.0 / HW), minv_ref[...],
                       preferred_element_type=f32)
        y = d * jax.lax.rsqrt(gvar + eps)[:, None, :] * g_ref[...] + b_ref[...]
        y = y * jax.nn.sigmoid(y)                                  # Swish
        return y.reshape(B * HW, c)

    def conv3x3(y, pad_ref, w_ref, b_ref, zero_halo=True):
        # y: (B*HW, Cin) f32.  pad_ref: (TOT, 3*Cin) bf16 scratch whose interior
        # holds the [x-1 | x | x+1] shifted & edge-masked bands; the 3x3 conv is
        # then 3 row-shifted (-W, 0, +W) matmuls with K = 3*Cin.
        cin = y.shape[-1]
        cout = w_ref.shape[-1]
        yb = y.astype(bf16)
        zrow = jnp.zeros((1, cin), bf16)
        band_l = jnp.where(lkeep, jnp.concatenate([zrow, yb[:-1]], axis=0),
                           jnp.zeros_like(yb))                     # tap x-1 (kx=0)
        band_r = jnp.where(rkeep, jnp.concatenate([yb[1:], zrow], axis=0),
                           jnp.zeros_like(yb))                     # tap x+1 (kx=2)
        packed = jnp.concatenate([band_l, yb, band_r], axis=1)     # (B*HW, 3*cin)
        for b in range(B):
            base = b * L
            if zero_halo:                      # halo rows only; interior overwritten
                pad_ref[base:base + pad, :] = jnp.zeros((pad, 3 * cin), bf16)
                pad_ref[base + pad + HW:base + L, :] = jnp.zeros((pad, 3 * cin), bf16)
            pad_ref[base + pad:base + pad + HW, :] = packed[b * HW:(b + 1) * HW, :]
        acc = jnp.zeros((M, cout), f32)
        for ky in range(3):                                        # dy taps
            start = pad + (ky - 1) * W
            acc += jnp.dot(pad_ref[start:start + M, :],
                           w_ref[ky * 3 * cin:(ky + 1) * 3 * cin, :],
                           preferred_element_type=f32)
        acc = acc + b_ref[...]
        # drop the inter-image halo rows -> (B*HW, cout)
        return jnp.concatenate([acc[b * L:b * L + HW, :] for b in range(B)], axis=0)

    cin_full = x_ref.shape[-1]
    xb = x_ref[...].reshape(B * HW, cin_full)       # bf16
    xpb = xp_ref[...].reshape(B * HW, cin_full)     # bf16

    h = conv3x3(gn_swish(xb.astype(f32), g1_ref, b1_ref, minv_in_ref),
                pad1_ref, w1_ref, c1b_ref)
    if compute_prev:
        # zero-initialized "prev" branch in __init__, kept for semantic fidelity
        h = h + conv3x3(gn_swish(xpb.astype(f32), g1p_ref, b1p_ref, minv_in_ref),
                        pad1_ref, w1p_ref, c1pb_ref, zero_halo=False)

    # fused time/r/minmax embedding: Swish then one (B, 3*TC) x (3*TC, Cout) dot
    trm = trm_ref[...]
    trm = trm * jax.nn.sigmoid(trm)
    emb = jnp.dot(trm.astype(bf16), wtrm_ref[...],
                  preferred_element_type=f32) + btrm_ref[...]       # (B, Cout)
    cout_full = emb.shape[-1]
    h = (h.reshape(B, HW, cout_full) + emb[:, None, :]).reshape(B * HW, cout_full)

    # TODO(synk): nn.Dropout(0.1) treated as identity (inference / eval mode).
    out = conv3x3(gn_swish(h, g2_ref, b2_ref, minv_out_ref),
                  pad2_ref, w2_ref, c2b_ref)
    out = out + jnp.dot(xb, ws_ref[...], preferred_element_type=f32) + sb_ref[...]

    if has_attn:
        # single-head self-attention over HW with residual add (matches
        # AttentionBlock.forward; note its self.norm is never applied there).
        res = out.reshape(B, HW, cout_full)
        rb = res.astype(bf16)
        q = jnp.einsum('bsc,cd->bsd', rb, wq_ref[...],
                       preferred_element_type=f32) + bq_ref[...]
        k = jnp.einsum('bsc,cd->bsd', rb, wk_ref[...],
                       preferred_element_type=f32) + bk_ref[...]
        v = jnp.einsum('bsc,cd->bsd', rb, wv_ref[...],
                       preferred_element_type=f32) + bv_ref[...]
        s = jnp.einsum('bid,bjd->bij', q.astype(bf16), k.astype(bf16),
                       preferred_element_type=f32) * scale
        s = s - jnp.max(s, axis=-1, keepdims=True)
        p = jnp.exp(s)
        p = p * pl.reciprocal(jnp.sum(p, axis=-1, keepdims=True), approx=True)
        ctx = jnp.einsum('bij,bjd->bid', p.astype(bf16), v.astype(bf16),
                         preferred_element_type=f32)
        att = jnp.einsum('bsd,dc->bsc', ctx.astype(bf16), wo_ref[...],
                         preferred_element_type=f32) + bo_ref[...]
        o_ref[...] = (att + res).astype(o_ref.dtype)
    else:
        o_ref[...] = out.reshape(B, HW, cout_full).astype(o_ref.dtype)

    if change_prev:
        # UpBlock.x_prev_channel 1x1 conv, fused here to avoid another launch.
        xpo = jnp.dot(xpb, wxp_ref[...], preferred_element_type=f32) + bxp_ref[...]
        xpo_ref[...] = xpo.reshape(B, HW, cout_full).astype(xpo_ref.dtype)


# ----------------------------- wrapper -----------------------------

def up_block_forward(p, x, x_prev, x_minmax, r, t, *,
                     out_channels, n_groups=32, has_attn=True,
                     compute_prev_branch=True):
    """x, x_prev: (B, in+out channels, H, W) NCHW; t, r, x_minmax: (B, time_channels)."""
    B, Cin, H, W = x.shape
    HW = H * W
    Cout = out_channels
    TC = t.shape[1]
    f32, bf16 = jnp.float32, jnp.bfloat16

    # activations cross the kernel boundary in bf16 (halves DMA + pipeline VMEM)
    x_seq = jnp.transpose(x, (0, 2, 3, 1)).reshape(B, HW, Cin).astype(bf16)
    xp_seq = jnp.transpose(x_prev, (0, 2, 3, 1)).reshape(B, HW, Cin).astype(bf16)

    # t / r / x_minmax embeddings fused into a single matmul (Swish in-kernel).
    trm = jnp.concatenate([t, r, x_minmax], axis=1).astype(f32)          # (B, 3*TC)
    wtrm = jnp.concatenate([p['time_w'], p['r_w'], p['mm_w']], axis=0).astype(bf16)
    btrm = (p['time_b'] + p['r_b'] + p['mm_b']).reshape(1, Cout).astype(f32)

    def group_avg(C):
        cg = C // n_groups
        gid = jnp.arange(C) // cg
        return (gid[:, None] == gid[None, :]).astype(f32) / cg

    # conv weights flattened to (9*C, Cout), row order (ky, kx, cin); bf16 once.
    w1 = p['conv1_w'].reshape(9 * Cin, Cout).astype(bf16)
    w1p = p['conv1p_w'].reshape(9 * Cin, Cout).astype(bf16)
    w2 = p['conv2_w'].reshape(9 * Cout, Cout).astype(bf16)
    ws = p['short_w'].astype(bf16)

    change_prev = (Cin != Cout)

    # per-image halo in the conv scratch: >= W rows and 16-row aligned (bf16)
    pad = max(16, ((W + 15) // 16) * 16)
    TOT = B * (HW + 2 * pad)

    args = [x_seq, xp_seq, trm,
            p['norm1_g'].reshape(1, Cin), p['norm1_b'].reshape(1, Cin),
            p['norm1p_g'].reshape(1, Cin), p['norm1p_b'].reshape(1, Cin),
            group_avg(Cin),
            w1, p['conv1_b'].reshape(1, Cout),
            w1p, p['conv1p_b'].reshape(1, Cout),
            wtrm, btrm,
            p['norm2_g'].reshape(1, Cout), p['norm2_b'].reshape(1, Cout),
            group_avg(Cout),
            w2, p['conv2_b'].reshape(1, Cout),
            ws, p['short_b'].reshape(1, Cout)]
    if has_attn:
        args += [p['wq'].astype(bf16), p['wk'].astype(bf16), p['wv'].astype(bf16),
                 p['bq'].reshape(1, Cout), p['bk'].reshape(1, Cout),
                 p['bv'].reshape(1, Cout),
                 p['wo'].astype(bf16), p['bo'].reshape(1, Cout)]
    if change_prev:
        args += [p['xprevch_w'].astype(bf16), p['xprevch_b'].reshape(1, Cout)]

    in_specs = [_full_spec(a.shape) for a in args]

    if change_prev:
        out_shape = (jax.ShapeDtypeStruct((B, HW, Cout), f32),
                     jax.ShapeDtypeStruct((B, HW, Cout), f32))
        out_specs = (_full_spec((B, HW, Cout)), _full_spec((B, HW, Cout)))
    else:
        out_shape = jax.ShapeDtypeStruct((B, HW, Cout), f32)
        out_specs = _full_spec((B, HW, Cout))

    kern = functools.partial(
        _up_block_kernel, B=B, H=H, W=W, pad=pad, eps=EPS,
        scale=Cout ** (-0.5), compute_prev=compute_prev_branch,
        change_prev=change_prev, has_attn=has_attn)

    res = pl.pallas_call(
        kern,
        out_shape=out_shape,
        grid=(1,),
        in_specs=in_specs,
        out_specs=out_specs,
        scratch_shapes=[pltpu.VMEM((TOT, 3 * Cin), bf16),
                        pltpu.VMEM((TOT, 3 * Cout), bf16)],
        compiler_params=pltpu.CompilerParams(dimension_semantics=("arbitrary",)),
    )(*args)

    if change_prev:
        h_seq, xp_out_seq = res
        out_xp = jnp.transpose(xp_out_seq.reshape(B, H, W, Cout), (0, 3, 1, 2))
    else:
        h_seq = res
        out_xp = x_prev.astype(f32)          # identity path
    out_x = jnp.transpose(h_seq.reshape(B, H, W, Cout), (0, 3, 1, 2))
    return out_x, out_xp


# ----------------------------- plain-JAX reference (for checking) -----------------------------

def _ref_swish(x):
    return x * jax.nn.sigmoid(x)


def _ref_group_norm(x, gamma, beta, n_groups, eps=EPS):
    B, H, W, C = x.shape
    cg = C // n_groups
    xg = x.reshape(B, H * W, n_groups, cg)
    mean = xg.mean(axis=(1, 3), keepdims=True)
    var = ((xg - mean) ** 2).mean(axis=(1, 3), keepdims=True)
    y = ((xg - mean) / jnp.sqrt(var + eps)).reshape(B, H, W, C)
    return y * gamma + beta


def _ref_conv3x3(x, w_hwio, b):
    y = jax.lax.conv_general_dilated(x, w_hwio, (1, 1), 'SAME',
                                     dimension_numbers=('NHWC', 'HWIO', 'NHWC'))
    return y + b


def _ref_forward(p, x, x_prev, x_minmax, r, t, *, out_channels, n_groups=32, has_attn=True):
    xn = jnp.transpose(x, (0, 2, 3, 1)).astype(jnp.float32)
    xpn = jnp.transpose(x_prev, (0, 2, 3, 1)).astype(jnp.float32)
    B, H, W, Cin = xn.shape
    C = out_channels
    h = _ref_conv3x3(_ref_swish(_ref_group_norm(xn, p['norm1_g'], p['norm1_b'], n_groups)),
                     p['conv1_w'], p['conv1_b'])
    h = h + _ref_conv3x3(_ref_swish(_ref_group_norm(xpn, p['norm1p_g'], p['norm1p_b'], n_groups)),
                         p['conv1p_w'], p['conv1p_b'])
    emb = (_ref_swish(t) @ p['time_w'] + p['time_b']
           + _ref_swish(r) @ p['r_w'] + p['r_b']
           + _ref_swish(x_minmax) @ p['mm_w'] + p['mm_b'])
    h = h + emb[:, None, None, :]
    h = _ref_conv3x3(_ref_swish(_ref_group_norm(h, p['norm2_g'], p['norm2_b'], n_groups)),
                     p['conv2_w'], p['conv2_b'])
    res = h + (xn @ p['short_w'] + p['short_b'])
    if has_attn:
        s = res.reshape(B, H * W, C)
        q = s @ p['wq'] + p['bq']
        k = s @ p['wk'] + p['bk']
        v = s @ p['wv'] + p['bv']
        attn = jax.nn.softmax(jnp.einsum('bid,bjd->bij', q, k) * (C ** -0.5), axis=2)
        o = jnp.einsum('bij,bjd->bid', attn, v) @ p['wo'] + p['bo']
        res = (o + s).reshape(B, H, W, C)
    if Cin != C:
        xp_out = xpn @ p['xprevch_w'] + p['xprevch_b']
    else:
        xp_out = xpn
    return jnp.transpose(res, (0, 3, 1, 2)), jnp.transpose(xp_out, (0, 3, 1, 2))


# ----------------------------- param init -----------------------------

def init_params(key, in_channels, out_channels, time_channels):
    res_in = in_channels + out_channels
    ks = jax.random.split(key, 16)

    def rand(k, shape, scale=0.1):
        return scale * jax.random.normal(k, shape, dtype=jnp.float32)

    p = {}
    # ResidualBlock
    p['norm1_g'] = jnp.ones((res_in,), jnp.float32)
    p['norm1_b'] = jnp.zeros((res_in,), jnp.float32)
    p['conv1_w'] = rand(ks[0], (3, 3, res_in, out_channels))   # HWIO
    p['conv1_b'] = rand(ks[1], (out_channels,))
    # explicitly zero-filled in the PyTorch __init__
    p['norm1p_g'] = jnp.zeros((res_in,), jnp.float32)
    p['norm1p_b'] = jnp.zeros((res_in,), jnp.float32)
    p['conv1p_w'] = jnp.zeros((3, 3, res_in, out_channels), jnp.float32)
    p['conv1p_b'] = jnp.zeros((out_channels,), jnp.float32)
    p['norm2_g'] = jnp.ones((out_channels,), jnp.float32)
    p['norm2_b'] = jnp.zeros((out_channels,), jnp.float32)
    p['conv2_w'] = rand(ks[2], (3, 3, out_channels, out_channels))
    p['conv2_b'] = rand(ks[3], (out_channels,))
    p['short_w'] = rand(ks[4], (res_in, out_channels))          # 1x1 shortcut conv
    p['short_b'] = rand(ks[5], (out_channels,))
    p['time_w'] = rand(ks[6], (time_channels, out_channels))
    p['time_b'] = rand(ks[7], (out_channels,))
    p['r_w'] = rand(ks[8], (time_channels, out_channels))
    p['r_b'] = rand(ks[9], (out_channels,))
    p['mm_w'] = rand(ks[10], (time_channels, out_channels))
    p['mm_b'] = rand(ks[11], (out_channels,))
    # AttentionBlock (n_heads=1, d_k=out_channels); projection split into q/k/v
    p['wq'] = rand(ks[12], (out_channels, out_channels))
    p['wk'] = rand(ks[13], (out_channels, out_channels))
    p['wv'] = rand(ks[14], (out_channels, out_channels))
    p['bq'] = jnp.zeros((out_channels,), jnp.float32)
    p['bk'] = jnp.zeros((out_channels,), jnp.float32)
    p['bv'] = jnp.zeros((out_channels,), jnp.float32)
    p['wo'] = rand(ks[15], (out_channels, out_channels))
    p['bo'] = jnp.zeros((out_channels,), jnp.float32)
    # UpBlock.x_prev_channel — zero-filled 1x1 conv (weight + bias = 0)
    p['xprevch_w'] = jnp.zeros((res_in, out_channels), jnp.float32)
    p['xprevch_b'] = jnp.zeros((out_channels,), jnp.float32)
    return p


# ----------------------------- main -----------------------------

if __name__ == "__main__":
    in_channels, out_channels, time_channels = 32, 32, 32   # divisible by n_groups=32
    B, H, W = 2, 8, 8
    res_in = in_channels + out_channels                     # UpBlock input channel count

    key = jax.random.PRNGKey(0)
    kp, k1, k2, k3, k4, k5 = jax.random.split(key, 6)
    params = init_params(kp, in_channels, out_channels, time_channels)

    x = jax.random.normal(k1, (B, res_in, H, W), jnp.float32)
    x_prev = jax.random.normal(k2, (B, res_in, H, W), jnp.float32)
    x_minmax = jax.random.normal(k3, (B, time_channels), jnp.float32)
    r = jax.random.normal(k4, (B, time_channels), jnp.float32)
    t = jax.random.normal(k5, (B, time_channels), jnp.float32)

    fwd = jax.jit(functools.partial(up_block_forward,
                                    out_channels=out_channels,
                                    n_groups=32,
                                    has_attn=True,
                                    compute_prev_branch=True))
    out_x, out_xprev = fwd(params, x, x_prev, x_minmax, r, t)
    jax.block_until_ready((out_x, out_xprev))

    assert out_x.shape == (B, out_channels, H, W)
    assert out_xprev.shape == (B, out_channels, H, W)
    assert bool(jnp.all(jnp.isfinite(out_x))) and bool(jnp.all(jnp.isfinite(out_xprev)))

    # numerical check against a plain-JAX f32 reference (kernel uses bf16 MXU operands)
    ref_x, ref_xp = _ref_forward(params, x, x_prev, x_minmax, r, t,
                                 out_channels=out_channels, n_groups=32, has_attn=True)
    scale_ref = max(1.0, float(jnp.max(jnp.abs(ref_x))))
    rel_err_x = float(jnp.max(jnp.abs(out_x - ref_x))) / scale_ref
    err_xp = float(jnp.max(jnp.abs(out_xprev - ref_xp)))
    assert rel_err_x < 5e-2, f"attention/residual output mismatch: rel_err={rel_err_x}"
    assert err_xp < 5e-2, f"x_prev output mismatch: err={err_xp}"

    print("KERNEL_OK")
</pallas_src>

<mosaic_0001>
module attributes {stable_mosaic.version = 11 : i64} {
  func.func @_up_block_kernel(%arg0: i32, %arg1: memref<2x64x64xbf16, #tpu.memory_space<vmem>>, %arg2: memref<2x64x64xbf16, #tpu.memory_space<vmem>>, %arg3: memref<2x96xf32, #tpu.memory_space<vmem>>, %arg4: memref<1x64xf32, #tpu.memory_space<vmem>>, %arg5: memref<1x64xf32, #tpu.memory_space<vmem>>, %arg6: memref<1x64xf32, #tpu.memory_space<vmem>>, %arg7: memref<1x64xf32, #tpu.memory_space<vmem>>, %arg8: memref<64x64xf32, #tpu.memory_space<vmem>>, %arg9: memref<576x32xbf16, #tpu.memory_space<vmem>>, %arg10: memref<1x32xf32, #tpu.memory_space<vmem>>, %arg11: memref<576x32xbf16, #tpu.memory_space<vmem>>, %arg12: memref<1x32xf32, #tpu.memory_space<vmem>>, %arg13: memref<96x32xbf16, #tpu.memory_space<vmem>>, %arg14: memref<1x32xf32, #tpu.memory_space<vmem>>, %arg15: memref<1x32xf32, #tpu.memory_space<vmem>>, %arg16: memref<1x32xf32, #tpu.memory_space<vmem>>, %arg17: memref<32x32xf32, #tpu.memory_space<vmem>>, %arg18: memref<288x32xbf16, #tpu.memory_space<vmem>>, %arg19: memref<1x32xf32, #tpu.memory_space<vmem>>, %arg20: memref<64x32xbf16, #tpu.memory_space<vmem>>, %arg21: memref<1x32xf32, #tpu.memory_space<vmem>>, %arg22: memref<32x32xbf16, #tpu.memory_space<vmem>>, %arg23: memref<32x32xbf16, #tpu.memory_space<vmem>>, %arg24: memref<32x32xbf16, #tpu.memory_space<vmem>>, %arg25: memref<1x32xf32, #tpu.memory_space<vmem>>, %arg26: memref<1x32xf32, #tpu.memory_space<vmem>>, %arg27: memref<1x32xf32, #tpu.memory_space<vmem>>, %arg28: memref<32x32xbf16, #tpu.memory_space<vmem>>, %arg29: memref<1x32xf32, #tpu.memory_space<vmem>>, %arg30: memref<64x32xbf16, #tpu.memory_space<vmem>>, %arg31: memref<1x32xf32, #tpu.memory_space<vmem>>, %arg32: memref<2x64x32xf32, #tpu.memory_space<vmem>>, %arg33: memref<2x64x32xf32, #tpu.memory_space<vmem>>, %arg34: memref<192x192xbf16, #tpu.memory_space<vmem>>, %arg35: memref<192x96xbf16, #tpu.memory_space<vmem>>) attributes {dimension_semantics = [#tpu.dimension_semantics<arbitrary>], iteration_bounds = array<i64: 1>, scalar_prefetch = 0 : i64, scratch_operands = 2 : i64, tpu.core_type = #tpu.core_type<tc>, window_params = [{pipeline_mode = #tpu.pipeline_mode<synchronous>, transform_indices = @transform_0, window_bounds = array<i64: 2, 64, 64>}, {pipeline_mode = #tpu.pipeline_mode<synchronous>, transform_indices = @transform_1, window_bounds = array<i64: 2, 64, 64>}, {pipeline_mode = #tpu.pipeline_mode<synchronous>, transform_indices = @transform_2, window_bounds = array<i64: 2, 96>}, {pipeline_mode = #tpu.pipeline_mode<synchronous>, transform_indices = @transform_3, window_bounds = array<i64: 1, 64>}, {pipeline_mode = #tpu.pipeline_mode<synchronous>, transform_indices = @transform_4, window_bounds = array<i64: 1, 64>}, {pipeline_mode = #tpu.pipeline_mode<synchronous>, transform_indices = @transform_5, window_bounds = array<i64: 1, 64>}, {pipeline_mode = #tpu.pipeline_mode<synchronous>, transform_indices = @transform_6, window_bounds = array<i64: 1, 64>}, {pipeline_mode = #tpu.pipeline_mode<synchronous>, transform_indices = @transform_7, window_bounds = array<i64: 64, 64>}, {pipeline_mode = #tpu.pipeline_mode<synchronous>, transform_indices = @transform_8, window_bounds = array<i64: 576, 32>}, {pipeline_mode = #tpu.pipeline_mode<synchronous>, transform_indices = @transform_9, window_bounds = array<i64: 1, 32>}, {pipeline_mode = #tpu.pipeline_mode<synchronous>, transform_indices = @transform_10, window_bounds = array<i64: 576, 32>}, {pipeline_mode = #tpu.pipeline_mode<synchronous>, transform_indices = @transform_11, window_bounds = array<i64: 1, 32>}, {pipeline_mode = #tpu.pipeline_mode<synchronous>, transform_indices = @transform_12, window_bounds = array<i64: 96, 32>}, {pipeline_mode = #tpu.pipeline_mode<synchronous>, transform_indices = @transform_13, window_bounds = array<i64: 1, 32>}, {pipeline_mode = #tpu.pipeline_mode<synchronous>, transform_indices = @transform_14, window_bounds = array<i64: 1, 32>}, {pipeline_mode = #tpu.pipeline_mode<synchronous>, transform_indices = @transform_15, window_bounds = array<i64: 1, 32>}, {pipeline_mode = #tpu.pipeline_mode<synchronous>, transform_indices = @transform_16, window_bounds = array<i64: 32, 32>}, {pipeline_mode = #tpu.pipeline_mode<synchronous>, transform_indices = @transform_17, window_bounds = array<i64: 288, 32>}, {pipeline_mode = #tpu.pipeline_mode<synchronous>, transform_indices = @transform_18, window_bounds = array<i64: 1, 32>}, {pipeline_mode = #tpu.pipeline_mode<synchronous>, transform_indices = @transform_19, window_bounds = array<i64: 64, 32>}, {pipeline_mode = #tpu.pipeline_mode<synchronous>, transform_indices = @transform_20, window_bounds = array<i64: 1, 32>}, {pipeline_mode = #tpu.pipeline_mode<synchronous>, transform_indices = @transform_21, window_bounds = array<i64: 32, 32>}, {pipeline_mode = #tpu.pipeline_mode<synchronous>, transform_indices = @transform_22, window_bounds = array<i64: 32, 32>}, {pipeline_mode = #tpu.pipeline_mode<synchronous>, transform_indices = @transform_23, window_bounds = array<i64: 32, 32>}, {pipeline_mode = #tpu.pipeline_mode<synchronous>, transform_indices = @transform_24, window_bounds = array<i64: 1, 32>}, {pipeline_mode = #tpu.pipeline_mode<synchronous>, transform_indices = @transform_25, window_bounds = array<i64: 1, 32>}, {pipeline_mode = #tpu.pipeline_mode<synchronous>, transform_indices = @transform_26, window_bounds = array<i64: 1, 32>}, {pipeline_mode = #tpu.pipeline_mode<synchronous>, transform_indices = @transform_27, window_bounds = array<i64: 32, 32>}, {pipeline_mode = #tpu.pipeline_mode<synchronous>, transform_indices = @transform_28, window_bounds = array<i64: 1, 32>}, {pipeline_mode = #tpu.pipeline_mode<synchronous>, transform_indices = @transform_29, window_bounds = array<i64: 64, 32>}, {pipeline_mode = #tpu.pipeline_mode<synchronous>, transform_indices = @transform_30, window_bounds = array<i64: 1, 32>}, {pipeline_mode = #tpu.pipeline_mode<synchronous>, transform_indices = @transform_31, window_bounds = array<i64: 2, 64, 32>}, {pipeline_mode = #tpu.pipeline_mode<synchronous>, transform_indices = @transform_32, window_bounds = array<i64: 2, 64, 32>}]} {
    %0 = tpu.iota {dimensions = array<i32: 0>} : vector<128x1xi32>
    %c8_i32 = arith.constant 8 : i32
    %c0_i32 = arith.constant 0 : i32
    %1 = arith.cmpi eq, %c8_i32, %c0_i32 : i32
    %c1_i32 = arith.constant 1 : i32
    %2 = arith.select %1, %c1_i32, %c8_i32 : i32
    %3 = vector.broadcast %2 : i32 to vector<128x1xi32>
    %4 = arith.remsi %0, %3 : vector<128x1xi32>
    %c0_i32_0 = arith.constant 0 : i32
    %5 = vector.broadcast %c0_i32_0 : i32 to vector<128x1xi32>
    %6 = arith.cmpi ne, %4, %5 : vector<128x1xi32>
    %c0_i32_1 = arith.constant 0 : i32
    %7 = vector.broadcast %c0_i32_1 : i32 to vector<128x1xi32>
    %8 = arith.cmpi slt, %4, %7 : vector<128x1xi32>
    %c0_i32_2 = arith.constant 0 : i32
    %9 = arith.cmpi slt, %2, %c0_i32_2 : i32
    %10 = vector.broadcast %9 : i1 to vector<128x1xi1>
    %11 = vector.broadcast %10 : vector<128x1xi1> to vector<128x1xi1>
    %12 = arith.xori %8, %11 : vector<128x1xi1>
    %13 = arith.andi %12, %6 : vector<128x1xi1>
    %14 = vector.broadcast %2 : i32 to vector<128x1xi32>
    %15 = arith.addi %4, %14 : vector<128x1xi32>
    %16 = arith.select %13, %15, %4 : vector<128x1xi1>, vector<128x1xi32>
    %c0_i32_3 = arith.constant 0 : i32
    %17 = vector.broadcast %c0_i32_3 : i32 to vector<128x1xi32>
    %18 = arith.cmpi ne, %16, %17 : vector<128x1xi32>
    %c7_i32 = arith.constant 7 : i32
    %19 = vector.broadcast %c7_i32 : i32 to vector<128x1xi32>
    %20 = arith.cmpi ne, %16, %19 : vector<128x1xi32>
    %c0 = arith.constant 0 : index
    %c0_4 = arith.constant 0 : index
    %c0_5 = arith.constant 0 : index
    %21 = vector.load %arg1[%c0, %c0_4, %c0_5] : memref<2x64x64xbf16, #tpu.memory_space<vmem>>, vector<2x64x64xbf16>
    %22 = vector.shape_cast %21 : vector<2x64x64xbf16> to vector<128x64xbf16>
    %c0_6 = arith.constant 0 : index
    %c0_7 = arith.constant 0 : index
    %c0_8 = arith.constant 0 : index
    %23 = vector.load %arg2[%c0_6, %c0_7, %c0_8] : memref<2x64x64xbf16, #tpu.memory_space<vmem>>, vector<2x64x64xbf16>
    %24 = vector.shape_cast %23 : vector<2x64x64xbf16> to vector<128x64xbf16>
    %25 = arith.extf %22 : vector<128x64xbf16> to vector<128x64xf32>
    %26 = vector.shape_cast %25 : vector<128x64xf32> to vector<2x64x64xf32>
    %cst = arith.constant dense<0.000000e+00> : vector<2x64xf32>
    %27 = vector.multi_reduction <add>, %26, %cst [1] : vector<2x64x64xf32> to vector<2x64xf32>
    %cst_9 = arith.constant 1.562500e-02 : f32
    %28 = vector.broadcast %cst_9 : f32 to vector<2x64xf32>
    %29 = arith.mulf %27, %28 : vector<2x64xf32>
    %c0_10 = arith.constant 0 : index
    %c0_11 = arith.constant 0 : index
    %30 = vector.load %arg8[%c0_10, %c0_11] : memref<64x64xf32, #tpu.memory_space<vmem>>, vector<64x64xf32>
    %cst_12 = arith.constant dense<0.000000e+00> : vector<2x64xf32>
    %31 = tpu.matmul %29, %30, %cst_12 {dimension_numbers = #tpu.dot_dimension_numbers<[1], [0], [0], [1], [0, 0, 1, 1], [], []>} : vector<2x64xf32>, vector<64x64xf32>, vector<2x64xf32> -> vector<2x64xf32>
    %32 = vector.shape_cast %31 : vector<2x64xf32> to vector<2x1x64xf32>
    %33 = vector.broadcast %32 : vector<2x1x64xf32> to vector<2x64x64xf32>
    %34 = arith.subf %26, %33 : vector<2x64x64xf32>
    %35 = arith.mulf %34, %34 : vector<2x64x64xf32>
    %cst_13 = arith.constant dense<0.000000e+00> : vector<2x64xf32>
    %36 = vector.multi_reduction <add>, %35, %cst_13 [1] : vector<2x64x64xf32> to vector<2x64xf32>
    %cst_14 = arith.constant 1.562500e-02 : f32
    %37 = vector.broadcast %cst_14 : f32 to vector<2x64xf32>
    %38 = arith.mulf %36, %37 : vector<2x64xf32>
    %c0_15 = arith.constant 0 : index
    %c0_16 = arith.constant 0 : index
    %39 = vector.load %arg8[%c0_15, %c0_16] : memref<64x64xf32, #tpu.memory_space<vmem>>, vector<64x64xf32>
    %cst_17 = arith.constant dense<0.000000e+00> : vector<2x64xf32>
    %40 = tpu.matmul %38, %39, %cst_17 {dimension_numbers = #tpu.dot_dimension_numbers<[1], [0], [0], [1], [0, 0, 1, 1], [], []>} : vector<2x64xf32>, vector<64x64xf32>, vector<2x64xf32> -> vector<2x64xf32>
    %cst_18 = arith.constant 9.99999974E-6 : f32
    %41 = vector.broadcast %cst_18 : f32 to vector<2x64xf32>
    %42 = arith.addf %40, %41 : vector<2x64xf32>
    %43 = math.rsqrt %42 : vector<2x64xf32>
    %44 = vector.shape_cast %43 : vector<2x64xf32> to vector<2x1x64xf32>
    %45 = vector.broadcast %44 : vector<2x1x64xf32> to vector<2x64x64xf32>
    %46 = arith.mulf %34, %45 : vector<2x64x64xf32>
    %c0_19 = arith.constant 0 : index
    %c0_20 = arith.constant 0 : index
    %47 = vector.load %arg4[%c0_19, %c0_20] : memref<1x64xf32, #tpu.memory_space<vmem>>, vector<1x64xf32>
    %48 = vector.shape_cast %47 : vector<1x64xf32> to vector<1x1x64xf32>
    %49 = vector.broadcast %48 : vector<1x1x64xf32> to vector<2x64x64xf32>
    %50 = arith.mulf %46, %49 : vector<2x64x64xf32>
    %c0_21 = arith.constant 0 : index
    %c0_22 = arith.constant 0 : index
    %51 = vector.load %arg5[%c0_21, %c0_22] : memref<1x64xf32, #tpu.memory_space<vmem>>, vector<1x64xf32>
    %52 = vector.shape_cast %51 : vector<1x64xf32> to vector<1x1x64xf32>
    %53 = vector.broadcast %52 : vector<1x1x64xf32> to vector<2x64x64xf32>
    %54 = arith.addf %50, %53 : vector<2x64x64xf32>
    %55 = arith.negf %54 : vector<2x64x64xf32>
    %56 = math.exp %55 : vector<2x64x64xf32>
    %cst_23 = arith.constant 1.000000e+00 : f32
    %57 = vector.broadcast %cst_23 : f32 to vector<2x64x64xf32>
    %58 = arith.addf %57, %56 : vector<2x64x64xf32>
    %59 = arith.divf %57, %58 : vector<2x64x64xf32>
    %60 = arith.mulf %54, %59 : vector<2x64x64xf32>
    %61 = vector.shape_cast %60 : vector<2x64x64xf32> to vector<128x64xf32>
    %62 = arith.truncf %61 : vector<128x64xf32> to vector<128x64xbf16>
    %cst_24 = arith.constant 0.000000e+00 : bf16
    %63 = vector.broadcast %cst_24 : bf16 to vector<1x64xbf16>
    %64 = vector.extract_strided_slice %62 {offsets = [0, 0], sizes = [127, 64], strides = [1, 1]} : vector<128x64xbf16> to vector<127x64xbf16>
    %65 = tpu.concatenate %63, %64 in 0 : vector<1x64xbf16>, vector<127x64xbf16> -> vector<128x64xbf16>
    %cst_25 = arith.constant 0.000000e+00 : bf16
    %66 = vector.broadcast %cst_25 : bf16 to vector<128x64xbf16>
    %67 = vector.shape_cast %18 : vector<128x1xi1> to vector<128x1xi1>
    %68 = vector.broadcast %67 : vector<128x1xi1> to vector<128x64xi1>
    %69 = arith.select %68, %65, %66 : vector<128x64xi1>, vector<128x64xbf16>
    %70 = vector.extract_strided_slice %62 {offsets = [1, 0], sizes = [127, 64], strides = [1, 1]} : vector<128x64xbf16> to vector<127x64xbf16>
    %71 = tpu.concatenate %70, %63 in 0 : vector<127x64xbf16>, vector<1x64xbf16> -> vector<128x64xbf16>
    %cst_26 = arith.constant 0.000000e+00 : bf16
    %72 = vector.broadcast %cst_26 : bf16 to vector<128x64xbf16>
    %73 = vector.shape_cast %20 : vector<128x1xi1> to vector<128x1xi1>
    %74 = vector.broadcast %73 : vector<128x1xi1> to vector<128x64xi1>
    %75 = arith.select %74, %71, %72 : vector<128x64xi1>, vector<128x64xbf16>
    %76 = tpu.concatenate %69, %62, %75 in 1 : vector<128x64xbf16>, vector<128x64xbf16>, vector<128x64xbf16> -> vector<128x192xbf16>
    %cst_27 = arith.constant 0.000000e+00 : bf16
    %77 = vector.broadcast %cst_27 : bf16 to vector<16x192xbf16>
    %c0_28 = arith.constant 0 : index
    %c0_29 = arith.constant 0 : index
    %78 = vector.load %arg34[%c0_28, %c0_29] : memref<192x192xbf16, #tpu.memory_space<vmem>>, vector<16x192xbf16>
    tpu.vector_store %arg34[%c0_28, %c0_29], %77 {strides = array<i32>} : memref<192x192xbf16, #tpu.memory_space<vmem>>, vector<16x192xbf16>,
    %cst_30 = arith.constant 0.000000e+00 : bf16
    %79 = vector.broadcast %cst_30 : bf16 to vector<16x192xbf16>
    %c80 = arith.constant 80 : index
    %c0_31 = arith.constant 0 : index
    %80 = vector.load %arg34[%c80, %c0_31] : memref<192x192xbf16, #tpu.memory_space<vmem>>, vector<16x192xbf16>
    tpu.vector_store %arg34[%c80, %c0_31], %79 {strides = array<i32>} : memref<192x192xbf16, #tpu.memory_space<vmem>>, vector<16x192xbf16>,
    %81 = vector.extract_strided_slice %76 {offsets = [0, 0], sizes = [64, 192], strides = [1, 1]} : vector<128x192xbf16> to vector<64x192xbf16>
    %c16 = arith.constant 16 : index
    %c0_32 = arith.constant 0 : index
    %82 = vector.load %arg34[%c16, %c0_32] : memref<192x192xbf16, #tpu.memory_space<vmem>>, vector<64x192xbf16>
    tpu.vector_store %arg34[%c16, %c0_32], %81 {strides = array<i32>} : memref<192x192xbf16, #tpu.memory_space<vmem>>, vector<64x192xbf16>,
    %cst_33 = arith.constant 0.000000e+00 : bf16
    %83 = vector.broadcast %cst_33 : bf16 to vector<16x192xbf16>
    %c96 = arith.constant 96 : index
    %c0_34 = arith.constant 0 : index
    %84 = vector.load %arg34[%c96, %c0_34] : memref<192x192xbf16, #tpu.memory_space<vmem>>, vector<16x192xbf16>
    tpu.vector_store %arg34[%c96, %c0_34], %83 {strides = array<i32>} : memref<192x192xbf16, #tpu.memory_space<vmem>>, vector<16x192xbf16>,
    %cst_35 = arith.constant 0.000000e+00 : bf16
    %85 = vector.broadcast %cst_35 : bf16 to vector<16x192xbf16>
    %c176 = arith.constant 176 : index
    %c0_36 = arith.constant 0 : index
    %86 = vector.load %arg34[%c176, %c0_36] : memref<192x192xbf16, #tpu.memory_space<vmem>>, vector<16x192xbf16>
    tpu.vector_store %arg34[%c176, %c0_36], %85 {strides = array<i32>} : memref<192x192xbf16, #tpu.memory_space<vmem>>, vector<16x192xbf16>,
    %87 = vector.extract_strided_slice %76 {offsets = [64, 0], sizes = [64, 192], strides = [1, 1]} : vector<128x192xbf16> to vector<64x192xbf16>
    %c112 = arith.constant 112 : index
    %c0_37 = arith.constant 0 : index
    %88 = vector.load %arg34[%c112, %c0_37] : memref<192x192xbf16, #tpu.memory_space<vmem>>, vector<64x192xbf16>
    tpu.vector_store %arg34[%c112, %c0_37], %87 {strides = array<i32>} : memref<192x192xbf16, #tpu.memory_space<vmem>>, vector<64x192xbf16>,
    %cst_38 = arith.constant 0.000000e+00 : f32
    %89 = vector.broadcast %cst_38 : f32 to vector<160x32xf32>
    %c8 = arith.constant 8 : index
    %c0_39 = arith.constant 0 : index
    %90 = vector.load %arg34[%c8, %c0_39] : memref<192x192xbf16, #tpu.memory_space<vmem>>, vector<160x192xbf16>
    %c0_40 = arith.constant 0 : index
    %c0_41 = arith.constant 0 : index
    %91 = vector.load %arg9[%c0_40, %c0_41] : memref<576x32xbf16, #tpu.memory_space<vmem>>, vector<192x32xbf16>
    %cst_42 = arith.constant dense<0.000000e+00> : vector<160x32xf32>
    %92 = tpu.matmul %90, %91, %cst_42 {dimension_numbers = #tpu.dot_dimension_numbers<[1], [0], [0], [1], [0, 0, 1, 1], [], []>} : vector<160x192xbf16>, vector<192x32xbf16>, vector<160x32xf32> -> vector<160x32xf32>
    %93 = arith.addf %89, %92 : vector<160x32xf32>
    %c16_43 = arith.constant 16 : index
    %c0_44 = arith.constant 0 : index
    %94 = vector.load %arg34[%c16_43, %c0_44] : memref<192x192xbf16, #tpu.memory_space<vmem>>, vector<160x192xbf16>
    %c192 = arith.constant 192 : index
    %c0_45 = arith.constant 0 : index
    %95 = vector.load %arg9[%c192, %c0_45] : memref<576x32xbf16, #tpu.memory_space<vmem>>, vector<192x32xbf16>
    %cst_46 = arith.constant dense<0.000000e+00> : vector<160x32xf32>
    %96 = tpu.matmul %94, %95, %cst_46 {dimension_numbers = #tpu.dot_dimension_numbers<[1], [0], [0], [1], [0, 0, 1, 1], [], []>} : vector<160x192xbf16>, vector<192x32xbf16>, vector<160x32xf32> -> vector<160x32xf32>
    %97 = arith.addf %93, %96 : vector<160x32xf32>
    %c24 = arith.constant 24 : index
    %c0_47 = arith.constant 0 : index
    %98 = vector.load %arg34[%c24, %c0_47] : memref<192x192xbf16, #tpu.memory_space<vmem>>, vector<160x192xbf16>
    %c384 = arith.constant 384 : index
    %c0_48 = arith.constant 0 : index
    %99 = vector.load %arg9[%c384, %c0_48] : memref<576x32xbf16, #tpu.memory_space<vmem>>, vector<192x32xbf16>
    %cst_49 = arith.constant dense<0.000000e+00> : vector<160x32xf32>
    %100 = tpu.matmul %98, %99, %cst_49 {dimension_numbers = #tpu.dot_dimension_numbers<[1], [0], [0], [1], [0, 0, 1, 1], [], []>} : vector<160x192xbf16>, vector<192x32xbf16>, vector<160x32xf32> -> vector<160x32xf32>
    %101 = arith.addf %97, %100 : vector<160x32xf32>
    %c0_50 = arith.constant 0 : index
    %c0_51 = arith.constant 0 : index
    %102 = vector.load %arg10[%c0_50, %c0_51] : memref<1x32xf32, #tpu.memory_space<vmem>>, vector<1x32xf32>
    %103 = vector.broadcast %102 : vector<1x32xf32> to vector<160x32xf32>
    %104 = arith.addf %101, %103 : vector<160x32xf32>
    %105 = vector.extract_strided_slice %104 {offsets = [0, 0], sizes = [64, 32], strides = [1, 1]} : vector<160x32xf32> to vector<64x32xf32>
    %106 = vector.extract_strided_slice %104 {offsets = [96, 0], sizes = [64, 32], strides = [1, 1]} : vector<160x32xf32> to vector<64x32xf32>
    %107 = tpu.concatenate %105, %106 in 0 : vector<64x32xf32>, vector<64x32xf32> -> vector<128x32xf32>
    %108 = arith.extf %24 : vector<128x64xbf16> to vector<128x64xf32>
    %109 = vector.shape_cast %108 : vector<128x64xf32> to vector<2x64x64xf32>
    %cst_52 = arith.constant dense<0.000000e+00> : vector<2x64xf32>
    %110 = vector.multi_reduction <add>, %109, %cst_52 [1] : vector<2x64x64xf32> to vector<2x64xf32>
    %cst_53 = arith.constant 1.562500e-02 : f32
    %111 = vector.broadcast %cst_53 : f32 to vector<2x64xf32>
    %112 = arith.mulf %110, %111 : vector<2x64xf32>
    %c0_54 = arith.constant 0 : index
    %c0_55 = arith.constant 0 : index
    %113 = vector.load %arg8[%c0_54, %c0_55] : memref<64x64xf32, #tpu.memory_space<vmem>>, vector<64x64xf32>
    %cst_56 = arith.constant dense<0.000000e+00> : vector<2x64xf32>
    %114 = tpu.matmul %112, %113, %cst_56 {dimension_numbers = #tpu.dot_dimension_numbers<[1], [0], [0], [1], [0, 0, 1, 1], [], []>} : vector<2x64xf32>, vector<64x64xf32>, vector<2x64xf32> -> vector<2x64xf32>
    %115 = vector.shape_cast %114 : vector<2x64xf32> to vector<2x1x64xf32>
    %116 = vector.broadcast %115 : vector<2x1x64xf32> to vector<2x64x64xf32>
    %117 = arith.subf %109, %116 : vector<2x64x64xf32>
    %118 = arith.mulf %117, %117 : vector<2x64x64xf32>
    %cst_57 = arith.constant dense<0.000000e+00> : vector<2x64xf32>
    %119 = vector.multi_reduction <add>, %118, %cst_57 [1] : vector<2x64x64xf32> to vector<2x64xf32>
    %cst_58 = arith.constant 1.562500e-02 : f32
    %120 = vector.broadcast %cst_58 : f32 to vector<2x64xf32>
    %121 = arith.mulf %119, %120 : vector<2x64xf32>
    %c0_59 = arith.constant 0 : index
    %c0_60 = arith.constant 0 : index
    %122 = vector.load %arg8[%c0_59, %c0_60] : memref<64x64xf32, #tpu.memory_space<vmem>>, vector<64x64xf32>
    %cst_61 = arith.constant dense<0.000000e+00> : vector<2x64xf32>
    %123 = tpu.matmul %121, %122, %cst_61 {dimension_numbers = #tpu.dot_dimension_numbers<[1], [0], [0], [1], [0, 0, 1, 1], [], []>} : vector<2x64xf32>, vector<64x64xf32>, vector<2x64xf32> -> vector<2x64xf32>
    %cst_62 = arith.constant 9.99999974E-6 : f32
    %124 = vector.broadcast %cst_62 : f32 to vector<2x64xf32>
    %125 = arith.addf %123, %124 : vector<2x64xf32>
    %126 = math.rsqrt %125 : vector<2x64xf32>
    %127 = vector.shape_cast %126 : vector<2x64xf32> to vector<2x1x64xf32>
    %128 = vector.broadcast %127 : vector<2x1x64xf32> to vector<2x64x64xf32>
    %129 = arith.mulf %117, %128 : vector<2x64x64xf32>
    %c0_63 = arith.constant 0 : index
    %c0_64 = arith.constant 0 : index
    %130 = vector.load %arg6[%c0_63, %c0_64] : memref<1x64xf32, #tpu.memory_space<vmem>>, vector<1x64xf32>
    %131 = vector.shape_cast %130 : vector<1x64xf32> to vector<1x1x64xf32>
    %132 = vector.broadcast %131 : vector<1x1x64xf32> to vector<2x64x64xf32>
    %133 = arith.mulf %129, %132 : vector<2x64x64xf32>
    %c0_65 = arith.constant 0 : index
    %c0_66 = arith.constant 0 : index
    %134 = vector.load %arg7[%c0_65, %c0_66] : memref<1x64xf32, #tpu.memory_space<vmem>>, vector<1x64xf32>
    %135 = vector.shape_cast %134 : vector<1x64xf32> to vector<1x1x64xf32>
    %136 = vector.broadcast %135 : vector<1x1x64xf32> to vector<2x64x64xf32>
    %137 = arith.addf %133, %136 : vector<2x64x64xf32>
    %138 = arith.negf %137 : vector<2x64x64xf32>
    %139 = math.exp %138 : vector<2x64x64xf32>
    %cst_67 = arith.constant 1.000000e+00 : f32
    %140 = vector.broadcast %cst_67 : f32 to vector<2x64x64xf32>
    %141 = arith.addf %140, %139 : vector<2x64x64xf32>
    %142 = arith.divf %140, %141 : vector<2x64x64xf32>
    %143 = arith.mulf %137, %142 : vector<2x64x64xf32>
    %144 = vector.shape_cast %143 : vector<2x64x64xf32> to vector<128x64xf32>
    %145 = arith.truncf %144 : vector<128x64xf32> to vector<128x64xbf16>
    %cst_68 = arith.constant 0.000000e+00 : bf16
    %146 = vector.broadcast %cst_68 : bf16 to vector<1x64xbf16>
    %147 = vector.extract_strided_slice %145 {offsets = [0, 0], sizes = [127, 64], strides = [1, 1]} : vector<128x64xbf16> to vector<127x64xbf16>
    %148 = tpu.concatenate %146, %147 in 0 : vector<1x64xbf16>, vector<127x64xbf16> -> vector<128x64xbf16>
    %cst_69 = arith.constant 0.000000e+00 : bf16
    %149 = vector.broadcast %cst_69 : bf16 to vector<128x64xbf16>
    %150 = vector.shape_cast %18 : vector<128x1xi1> to vector<128x1xi1>
    %151 = vector.broadcast %150 : vector<128x1xi1> to vector<128x64xi1>
    %152 = arith.select %151, %148, %149 : vector<128x64xi1>, vector<128x64xbf16>
    %153 = vector.extract_strided_slice %145 {offsets = [1, 0], sizes = [127, 64], strides = [1, 1]} : vector<128x64xbf16> to vector<127x64xbf16>
    %154 = tpu.concatenate %153, %146 in 0 : vector<127x64xbf16>, vector<1x64xbf16> -> vector<128x64xbf16>
    %cst_70 = arith.constant 0.000000e+00 : bf16
    %155 = vector.broadcast %cst_70 : bf16 to vector<128x64xbf16>
    %156 = vector.shape_cast %20 : vector<128x1xi1> to vector<128x1xi1>
    %157 = vector.broadcast %156 : vector<128x1xi1> to vector<128x64xi1>
    %158 = arith.select %157, %154, %155 : vector<128x64xi1>, vector<128x64xbf16>
    %159 = tpu.concatenate %152, %145, %158 in 1 : vector<128x64xbf16>, vector<128x64xbf16>, vector<128x64xbf16> -> vector<128x192xbf16>
    %160 = vector.extract_strided_slice %159 {offsets = [0, 0], sizes = [64, 192], strides = [1, 1]} : vector<128x192xbf16> to vector<64x192xbf16>
    %c16_71 = arith.constant 16 : index
    %c0_72 = arith.constant 0 : index
    %161 = vector.load %arg34[%c16_71, %c0_72] : memref<192x192xbf16, #tpu.memory_space<vmem>>, vector<64x192xbf16>
    tpu.vector_store %arg34[%c16_71, %c0_72], %160 {strides = array<i32>} : memref<192x192xbf16, #tpu.memory_space<vmem>>, vector<64x192xbf16>,
    %162 = vector.extract_strided_slice %159 {offsets = [64, 0], sizes = [64, 192], strides = [1, 1]} : vector<128x192xbf16> to vector<64x192xbf16>
    %c112_73 = arith.constant 112 : index
    %c0_74 = arith.constant 0 : index
    %163 = vector.load %arg34[%c112_73, %c0_74] : memref<192x192xbf16, #tpu.memory_space<vmem>>, vector<64x192xbf16>
    tpu.vector_store %arg34[%c112_73, %c0_74], %162 {strides = array<i32>} : memref<192x192xbf16, #tpu.memory_space<vmem>>, vector<64x192xbf16>,
    %cst_75 = arith.constant 0.000000e+00 : f32
    %164 = vector.broadcast %cst_75 : f32 to vector<160x32xf32>
    %c8_76 = arith.constant 8 : index
    %c0_77 = arith.constant 0 : index
    %165 = vector.load %arg34[%c8_76, %c0_77] : memref<192x192xbf16, #tpu.memory_space<vmem>>, vector<160x192xbf16>
    %c0_78 = arith.constant 0 : index
    %c0_79 = arith.constant 0 : index
    %166 = vector.load %arg11[%c0_78, %c0_79] : memref<576x32xbf16, #tpu.memory_space<vmem>>, vector<192x32xbf16>
    %cst_80 = arith.constant dense<0.000000e+00> : vector<160x32xf32>
    %167 = tpu.matmul %165, %166, %cst_80 {dimension_numbers = #tpu.dot_dimension_numbers<[1], [0], [0], [1], [0, 0, 1, 1], [], []>} : vector<160x192xbf16>, vector<192x32xbf16>, vector<160x32xf32> -> vector<160x32xf32>
    %168 = arith.addf %164, %167 : vector<160x32xf32>
    %c16_81 = arith.constant 16 : index
    %c0_82 = arith.constant 0 : index
    %169 = vector.load %arg34[%c16_81, %c0_82] : memref<192x192xbf16, #tpu.memory_space<vmem>>, vector<160x192xbf16>
    %c192_83 = arith.constant 192 : index
    %c0_84 = arith.constant 0 : index
    %170 = vector.load %arg11[%c192_83, %c0_84] : memref<576x32xbf16, #tpu.memory_space<vmem>>, vector<192x32xbf16>
    %cst_85 = arith.constant dense<0.000000e+00> : vector<160x32xf32>
    %171 = tpu.matmul %169, %170, %cst_85 {dimension_numbers = #tpu.dot_dimension_numbers<[1], [0], [0], [1], [0, 0, 1, 1], [], []>} : vector<160x192xbf16>, vector<192x32xbf16>, vector<160x32xf32> -> vector<160x32xf32>
    %172 = arith.addf %168, %171 : vector<160x32xf32>
    %c24_86 = arith.constant 24 : index
    %c0_87 = arith.constant 0 : index
    %173 = vector.load %arg34[%c24_86, %c0_87] : memref<192x192xbf16, #tpu.memory_space<vmem>>, vector<160x192xbf16>
    %c384_88 = arith.constant 384 : index
    %c0_89 = arith.constant 0 : index
    %174 = vector.load %arg11[%c384_88, %c0_89] : memref<576x32xbf16, #tpu.memory_space<vmem>>, vector<192x32xbf16>
    %cst_90 = arith.constant dense<0.000000e+00> : vector<160x32xf32>
    %175 = tpu.matmul %173, %174, %cst_90 {dimension_numbers = #tpu.dot_dimension_numbers<[1], [0], [0], [1], [0, 0, 1, 1], [], []>} : vector<160x192xbf16>, vector<192x32xbf16>, vector<160x32xf32> -> vector<160x32xf32>
    %176 = arith.addf %172, %175 : vector<160x32xf32>
    %c0_91 = arith.constant 0 : index
    %c0_92 = arith.constant 0 : index
    %177 = vector.load %arg12[%c0_91, %c0_92] : memref<1x32xf32, #tpu.memory_space<vmem>>, vector<1x32xf32>
    %178 = vector.broadcast %177 : vector<1x32xf32> to vector<160x32xf32>
    %179 = arith.addf %176, %178 : vector<160x32xf32>
    %180 = vector.extract_strided_slice %179 {offsets = [0, 0], sizes = [64, 32], strides = [1, 1]} : vector<160x32xf32> to vector<64x32xf32>
    %181 = vector.extract_strided_slice %179 {offsets = [96, 0], sizes = [64, 32], strides = [1, 1]} : vector<160x32xf32> to vector<64x32xf32>
    %182 = tpu.concatenate %180, %181 in 0 : vector<64x32xf32>, vector<64x32xf32> -> vector<128x32xf32>
    %183 = arith.addf %107, %182 : vector<128x32xf32>
    %c0_93 = arith.constant 0 : index
    %c0_94 = arith.constant 0 : index
    %184 = vector.load %arg3[%c0_93, %c0_94] : memref<2x96xf32, #tpu.memory_space<vmem>>, vector<2x96xf32>
    %185 = arith.negf %184 : vector<2x96xf32>
    %186 = math.exp %185 : vector<2x96xf32>
    %cst_95 = arith.constant 1.000000e+00 : f32
    %187 = vector.broadcast %cst_95 : f32 to vector<2x96xf32>
    %188 = arith.addf %187, %186 : vector<2x96xf32>
    %189 = arith.divf %187, %188 : vector<2x96xf32>
    %190 = arith.mulf %184, %189 : vector<2x96xf32>
    %191 = arith.truncf %190 : vector<2x96xf32> to vector<2x96xbf16>
    %c0_96 = arith.constant 0 : index
    %c0_97 = arith.constant 0 : index
    %192 = vector.load %arg13[%c0_96, %c0_97] : memref<96x32xbf16, #tpu.memory_space<vmem>>, vector<96x32xbf16>
    %cst_98 = arith.constant dense<0.000000e+00> : vector<2x32xf32>
    %193 = tpu.matmul %191, %192, %cst_98 {dimension_numbers = #tpu.dot_dimension_numbers<[1], [0], [0], [1], [0, 0, 1, 1], [], []>} : vector<2x96xbf16>, vector<96x32xbf16>, vector<2x32xf32> -> vector<2x32xf32>
    %c0_99 = arith.constant 0 : index
    %c0_100 = arith.constant 0 : index
    %194 = vector.load %arg14[%c0_99, %c0_100] : memref<1x32xf32, #tpu.memory_space<vmem>>, vector<1x32xf32>
    %195 = vector.broadcast %194 : vector<1x32xf32> to vector<2x32xf32>
    %196 = arith.addf %193, %195 : vector<2x32xf32>
    %197 = vector.shape_cast %183 : vector<128x32xf32> to vector<2x64x32xf32>
    %198 = vector.shape_cast %196 : vector<2x32xf32> to vector<2x1x32xf32>
    %199 = vector.broadcast %198 : vector<2x1x32xf32> to vector<2x64x32xf32>
    %200 = arith.addf %197, %199 : vector<2x64x32xf32>
    %201 = vector.shape_cast %200 : vector<2x64x32xf32> to vector<128x32xf32>
    %202 = vector.shape_cast %201 : vector<128x32xf32> to vector<2x64x32xf32>
    %cst_101 = arith.constant dense<0.000000e+00> : vector<2x32xf32>
    %203 = vector.multi_reduction <add>, %202, %cst_101 [1] : vector<2x64x32xf32> to vector<2x32xf32>
    %cst_102 = arith.constant 1.562500e-02 : f32
    %204 = vector.broadcast %cst_102 : f32 to vector<2x32xf32>
    %205 = arith.mulf %203, %204 : vector<2x32xf32>
    %c0_103 = arith.constant 0 : index
    %c0_104 = arith.constant 0 : index
    %206 = vector.load %arg17[%c0_103, %c0_104] : memref<32x32xf32, #tpu.memory_space<vmem>>, vector<32x32xf32>
    %cst_105 = arith.constant dense<0.000000e+00> : vector<2x32xf32>
    %207 = tpu.matmul %205, %206, %cst_105 {dimension_numbers = #tpu.dot_dimension_numbers<[1], [0], [0], [1], [0, 0, 1, 1], [], []>} : vector<2x32xf32>, vector<32x32xf32>, vector<2x32xf32> -> vector<2x32xf32>
    %208 = vector.shape_cast %207 : vector<2x32xf32> to vector<2x1x32xf32>
    %209 = vector.broadcast %208 : vector<2x1x32xf32> to vector<2x64x32xf32>
    %210 = arith.subf %202, %209 : vector<2x64x32xf32>
    %211 = arith.mulf %210, %210 : vector<2x64x32xf32>
    %cst_106 = arith.constant dense<0.000000e+00> : vector<2x32xf32>
    %212 = vector.multi_reduction <add>, %211, %cst_106 [1] : vector<2x64x32xf32> to vector<2x32xf32>
    %cst_107 = arith.constant 1.562500e-02 : f32
    %213 = vector.broadcast %cst_107 : f32 to vector<2x32xf32>
    %214 = arith.mulf %212, %213 : vector<2x32xf32>
    %c0_108 = arith.constant 0 : index
    %c0_109 = arith.constant 0 : index
    %215 = vector.load %arg17[%c0_108, %c0_109] : memref<32x32xf32, #tpu.memory_space<vmem>>, vector<32x32xf32>
    %cst_110 = arith.constant dense<0.000000e+00> : vector<2x32xf32>
    %216 = tpu.matmul %214, %215, %cst_110 {dimension_numbers = #tpu.dot_dimension_numbers<[1], [0], [0], [1], [0, 0, 1, 1], [], []>} : vector<2x32xf32>, vector<32x32xf32>, vector<2x32xf32> -> vector<2x32xf32>
    %cst_111 = arith.constant 9.99999974E-6 : f32
    %217 = vector.broadcast %cst_111 : f32 to vector<2x32xf32>
    %218 = arith.addf %216, %217 : vector<2x32xf32>
    %219 = math.rsqrt %218 : vector<2x32xf32>
    %220 = vector.shape_cast %219 : vector<2x32xf32> to vector<2x1x32xf32>
    %221 = vector.broadcast %220 : vector<2x1x32xf32> to vector<2x64x32xf32>
    %222 = arith.mulf %210, %221 : vector<2x64x32xf32>
    %c0_112 = arith.constant 0 : index
    %c0_113 = arith.constant 0 : index
    %223 = vector.load %arg15[%c0_112, %c0_113] : memref<1x32xf32, #tpu.memory_space<vmem>>, vector<1x32xf32>
    %224 = vector.shape_cast %223 : vector<1x32xf32> to vector<1x1x32xf32>
    %225 = vector.broadcast %224 : vector<1x1x32xf32> to vector<2x64x32xf32>
    %226 = arith.mulf %222, %225 : vector<2x64x32xf32>
    %c0_114 = arith.constant 0 : index
    %c0_115 = arith.constant 0 : index
    %227 = vector.load %arg16[%c0_114, %c0_115] : memref<1x32xf32, #tpu.memory_space<vmem>>, vector<1x32xf32>
    %228 = vector.shape_cast %227 : vector<1x32xf32> to vector<1x1x32xf32>
    %229 = vector.broadcast %228 : vector<1x1x32xf32> to vector<2x64x32xf32>
    %230 = arith.addf %226, %229 : vector<2x64x32xf32>
    %231 = arith.negf %230 : vector<2x64x32xf32>
    %232 = math.exp %231 : vector<2x64x32xf32>
    %cst_116 = arith.constant 1.000000e+00 : f32
    %233 = vector.broadcast %cst_116 : f32 to vector<2x64x32xf32>
    %234 = arith.addf %233, %232 : vector<2x64x32xf32>
    %235 = arith.divf %233, %234 : vector<2x64x32xf32>
    %236 = arith.mulf %230, %235 : vector<2x64x32xf32>
    %237 = vector.shape_cast %236 : vector<2x64x32xf32> to vector<128x32xf32>
    %238 = arith.truncf %237 : vector<128x32xf32> to vector<128x32xbf16>
    %cst_117 = arith.constant 0.000000e+00 : bf16
    %239 = vector.broadcast %cst_117 : bf16 to vector<1x32xbf16>
    %240 = vector.extract_strided_slice %238 {offsets = [0, 0], sizes = [127, 32], strides = [1, 1]} : vector<128x32xbf16> to vector<127x32xbf16>
    %241 = tpu.concatenate %239, %240 in 0 : vector<1x32xbf16>, vector<127x32xbf16> -> vector<128x32xbf16>
    %cst_118 = arith.constant 0.000000e+00 : bf16
    %242 = vector.broadcast %cst_118 : bf16 to vector<128x32xbf16>
    %243 = vector.shape_cast %18 : vector<128x1xi1> to vector<128x1xi1>
    %244 = vector.broadcast %243 : vector<128x1xi1> to vector<128x32xi1>
    %245 = arith.select %244, %241, %242 : vector<128x32xi1>, vector<128x32xbf16>
    %246 = vector.extract_strided_slice %238 {offsets = [1, 0], sizes = [127, 32], strides = [1, 1]} : vector<128x32xbf16> to vector<127x32xbf16>
    %247 = tpu.concatenate %246, %239 in 0 : vector<127x32xbf16>, vector<1x32xbf16> -> vector<128x32xbf16>
    %cst_119 = arith.constant 0.000000e+00 : bf16
    %248 = vector.broadcast %cst_119 : bf16 to vector<128x32xbf16>
    %249 = vector.shape_cast %20 : vector<128x1xi1> to vector<128x1xi1>
    %250 = vector.broadcast %249 : vector<128x1xi1> to vector<128x32xi1>
    %251 = arith.select %250, %247, %248 : vector<128x32xi1>, vector<128x32xbf16>
    %252 = tpu.concatenate %245, %238, %251 in 1 : vector<128x32xbf16>, vector<128x32xbf16>, vector<128x32xbf16> -> vector<128x96xbf16>
    %cst_120 = arith.constant 0.000000e+00 : bf16
    %253 = vector.broadcast %cst_120 : bf16 to vector<16x96xbf16>
    %c0_121 = arith.constant 0 : index
    %c0_122 = arith.constant 0 : index
    %254 = vector.load %arg35[%c0_121, %c0_122] : memref<192x96xbf16, #tpu.memory_space<vmem>>, vector<16x96xbf16>
    tpu.vector_store %arg35[%c0_121, %c0_122], %253 {strides = array<i32>} : memref<192x96xbf16, #tpu.memory_space<vmem>>, vector<16x96xbf16>,
    %cst_123 = arith.constant 0.000000e+00 : bf16
    %255 = vector.broadcast %cst_123 : bf16 to vector<16x96xbf16>
    %c80_124 = arith.constant 80 : index
    %c0_125 = arith.constant 0 : index
    %256 = vector.load %arg35[%c80_124, %c0_125] : memref<192x96xbf16, #tpu.memory_space<vmem>>, vector<16x96xbf16>
    tpu.vector_store %arg35[%c80_124, %c0_125], %255 {strides = array<i32>} : memref<192x96xbf16, #tpu.memory_space<vmem>>, vector<16x96xbf16>,
    %257 = vector.extract_strided_slice %252 {offsets = [0, 0], sizes = [64, 96], strides = [1, 1]} : vector<128x96xbf16> to vector<64x96xbf16>
    %c16_126 = arith.constant 16 : index
    %c0_127 = arith.constant 0 : index
    %258 = vector.load %arg35[%c16_126, %c0_127] : memref<192x96xbf16, #tpu.memory_space<vmem>>, vector<64x96xbf16>
    tpu.vector_store %arg35[%c16_126, %c0_127], %257 {strides = array<i32>} : memref<192x96xbf16, #tpu.memory_space<vmem>>, vector<64x96xbf16>,
    %cst_128 = arith.constant 0.000000e+00 : bf16
    %259 = vector.broadcast %cst_128 : bf16 to vector<16x96xbf16>
    %c96_129 = arith.constant 96 : index
    %c0_130 = arith.constant 0 : index
    %260 = vector.load %arg35[%c96_129, %c0_130] : memref<192x96xbf16, #tpu.memory_space<vmem>>, vector<16x96xbf16>
    tpu.vector_store %arg35[%c96_129, %c0_130], %259 {strides = array<i32>} : memref<192x96xbf16, #tpu.memory_space<vmem>>, vector<16x96xbf16>,
    %cst_131 = arith.constant 0.000000e+00 : bf16
    %261 = vector.broadcast %cst_131 : bf16 to vector<16x96xbf16>
    %c176_132 = arith.constant 176 : index
    %c0_133 = arith.constant 0 : index
    %262 = vector.load %arg35[%c176_132, %c0_133] : memref<192x96xbf16, #tpu.memory_space<vmem>>, vector<16x96xbf16>
    tpu.vector_store %arg35[%c176_132, %c0_133], %261 {strides = array<i32>} : memref<192x96xbf16, #tpu.memory_space<vmem>>, vector<16x96xbf16>,
    %263 = vector.extract_strided_slice %252 {offsets = [64, 0], sizes = [64, 96], strides = [1, 1]} : vector<128x96xbf16> to vector<64x96xbf16>
    %c112_134 = arith.constant 112 : index
    %c0_135 = arith.constant 0 : index
    %264 = vector.load %arg35[%c112_134, %c0_135] : memref<192x96xbf16, #tpu.memory_space<vmem>>, vector<64x96xbf16>
    tpu.vector_store %arg35[%c112_134, %c0_135], %263 {strides = array<i32>} : memref<192x96xbf16, #tpu.memory_space<vmem>>, vector<64x96xbf16>,
    %cst_136 = arith.constant 0.000000e+00 : f32
    %265 = vector.broadcast %cst_136 : f32 to vector<160x32xf32>
    %c8_137 = arith.constant 8 : index
    %c0_138 = arith.constant 0 : index
    %266 = vector.load %arg35[%c8_137, %c0_138] : memref<192x96xbf16, #tpu.memory_space<vmem>>, vector<160x96xbf16>
    %c0_139 = arith.constant 0 : index
    %c0_140 = arith.constant 0 : index
    %267 = vector.load %arg18[%c0_139, %c0_140] : memref<288x32xbf16, #tpu.memory_space<vmem>>, vector<96x32xbf16>
    %cst_141 = arith.constant dense<0.000000e+00> : vector<160x32xf32>
    %268 = tpu.matmul %266, %267, %cst_141 {dimension_numbers = #tpu.dot_dimension_numbers<[1], [0], [0], [1], [0, 0, 1, 1], [], []>} : vector<160x96xbf16>, vector<96x32xbf16>, vector<160x32xf32> -> vector<160x32xf32>
    %269 = arith.addf %265, %268 : vector<160x32xf32>
    %c16_142 = arith.constant 16 : index
    %c0_143 = arith.constant 0 : index
    %270 = vector.load %arg35[%c16_142, %c0_143] : memref<192x96xbf16, #tpu.memory_space<vmem>>, vector<160x96xbf16>
    %c96_144 = arith.constant 96 : index
    %c0_145 = arith.constant 0 : index
    %271 = vector.load %arg18[%c96_144, %c0_145] : memref<288x32xbf16, #tpu.memory_space<vmem>>, vector<96x32xbf16>
    %cst_146 = arith.constant dense<0.000000e+00> : vector<160x32xf32>
    %272 = tpu.matmul %270, %271, %cst_146 {dimension_numbers = #tpu.dot_dimension_numbers<[1], [0], [0], [1], [0, 0, 1, 1], [], []>} : vector<160x96xbf16>, vector<96x32xbf16>, vector<160x32xf32> -> vector<160x32xf32>
    %273 = arith.addf %269, %272 : vector<160x32xf32>
    %c24_147 = arith.constant 24 : index
    %c0_148 = arith.constant 0 : index
    %274 = vector.load %arg35[%c24_147, %c0_148] : memref<192x96xbf16, #tpu.memory_space<vmem>>, vector<160x96xbf16>
    %c192_149 = arith.constant 192 : index
    %c0_150 = arith.constant 0 : index
    %275 = vector.load %arg18[%c192_149, %c0_150] : memref<288x32xbf16, #tpu.memory_space<vmem>>, vector<96x32xbf16>
    %cst_151 = arith.constant dense<0.000000e+00> : vector<160x32xf32>
    %276 = tpu.matmul %274, %275, %cst_151 {dimension_numbers = #tpu.dot_dimension_numbers<[1], [0], [0], [1], [0, 0, 1, 1], [], []>} : vector<160x96xbf16>, vector<96x32xbf16>, vector<160x32xf32> -> vector<160x32xf32>
    %277 = arith.addf %273, %276 : vector<160x32xf32>
    %c0_152 = arith.constant 0 : index
    %c0_153 = arith.constant 0 : index
    %278 = vector.load %arg19[%c0_152, %c0_153] : memref<1x32xf32, #tpu.memory_space<vmem>>, vector<1x32xf32>
    %279 = vector.broadcast %278 : vector<1x32xf32> to vector<160x32xf32>
    %280 = arith.addf %277, %279 : vector<160x32xf32>
    %281 = vector.extract_strided_slice %280 {offsets = [0, 0], sizes = [64, 32], strides = [1, 1]} : vector<160x32xf32> to vector<64x32xf32>
    %282 = vector.extract_strided_slice %280 {offsets = [96, 0], sizes = [64, 32], strides = [1, 1]} : vector<160x32xf32> to vector<64x32xf32>
    %283 = tpu.concatenate %281, %282 in 0 : vector<64x32xf32>, vector<64x32xf32> -> vector<128x32xf32>
    %c0_154 = arith.constant 0 : index
    %c0_155 = arith.constant 0 : index
    %284 = vector.load %arg20[%c0_154, %c0_155] : memref<64x32xbf16, #tpu.memory_space<vmem>>, vector<64x32xbf16>
    %cst_156 = arith.constant dense<0.000000e+00> : vector<128x32xf32>
    %285 = tpu.matmul %22, %284, %cst_156 {dimension_numbers = #tpu.dot_dimension_numbers<[1], [0], [0], [1], [0, 0, 1, 1], [], []>} : vector<128x64xbf16>, vector<64x32xbf16>, vector<128x32xf32> -> vector<128x32xf32>
    %286 = arith.addf %283, %285 : vector<128x32xf32>
    %c0_157 = arith.constant 0 : index
    %c0_158 = arith.constant 0 : index
    %287 = vector.load %arg21[%c0_157, %c0_158] : memref<1x32xf32, #tpu.memory_space<vmem>>, vector<1x32xf32>
    %288 = vector.broadcast %287 : vector<1x32xf32> to vector<128x32xf32>
    %289 = arith.addf %286, %288 : vector<128x32xf32>
    %290 = vector.shape_cast %289 : vector<128x32xf32> to vector<2x64x32xf32>
    %291 = arith.truncf %290 : vector<2x64x32xf32> to vector<2x64x32xbf16>
    %c0_159 = arith.constant 0 : index
    %c0_160 = arith.constant 0 : index
    %292 = vector.load %arg22[%c0_159, %c0_160] : memref<32x32xbf16, #tpu.memory_space<vmem>>, vector<32x32xbf16>
    "tpu.trace_start"() <{level = 10 : i32, message = "bsc,cd->bsd"}> : () -> ()
    %cst_161 = arith.constant dense<0.000000e+00> : vector<2x64x32xf32>
    %293 = tpu.matmul %291, %292, %cst_161 {dimension_numbers = #tpu.dot_dimension_numbers<[2], [0], [0, 1], [1], [0, 0, 0, 1, 1, 1], [], []>} : vector<2x64x32xbf16>, vector<32x32xbf16>, vector<2x64x32xf32> -> vector<2x64x32xf32>
    "tpu.trace_stop"() : () -> ()
    %c0_162 = arith.constant 0 : index
    %c0_163 = arith.constant 0 : index
    %294 = vector.load %arg25[%c0_162, %c0_163] : memref<1x32xf32, #tpu.memory_space<vmem>>, vector<1x32xf32>
    %295 = vector.shape_cast %294 : vector<1x32xf32> to vector<1x1x32xf32>
    %296 = vector.broadcast %295 : vector<1x1x32xf32> to vector<2x64x32xf32>
    %297 = arith.addf %293, %296 : vector<2x64x32xf32>
    %c0_164 = arith.constant 0 : index
    %c0_165 = arith.constant 0 : index
    %298 = vector.load %arg23[%c0_164, %c0_165] : memref<32x32xbf16, #tpu.memory_space<vmem>>, vector<32x32xbf16>
    "tpu.trace_start"() <{level = 10 : i32, message = "bsc,cd->bsd"}> : () -> ()
    %cst_166 = arith.constant dense<0.000000e+00> : vector<2x64x32xf32>
    %299 = tpu.matmul %291, %298, %cst_166 {dimension_numbers = #tpu.dot_dimension_numbers<[2], [0], [0, 1], [1], [0, 0, 0, 1, 1, 1], [], []>} : vector<2x64x32xbf16>, vector<32x32xbf16>, vector<2x64x32xf32> -> vector<2x64x32xf32>
    "tpu.trace_stop"() : () -> ()
    %c0_167 = arith.constant 0 : index
    %c0_168 = arith.constant 0 : index
    %300 = vector.load %arg26[%c0_167, %c0_168] : memref<1x32xf32, #tpu.memory_space<vmem>>, vector<1x32xf32>
    %301 = vector.shape_cast %300 : vector<1x32xf32> to vector<1x1x32xf32>
    %302 = vector.broadcast %301 : vector<1x1x32xf32> to vector<2x64x32xf32>
    %303 = arith.addf %299, %302 : vector<2x64x32xf32>
    %c0_169 = arith.constant 0 : index
    %c0_170 = arith.constant 0 : index
    %304 = vector.load %arg24[%c0_169, %c0_170] : memref<32x32xbf16, #tpu.memory_space<vmem>>, vector<32x32xbf16>
    "tpu.trace_start"() <{level = 10 : i32, message = "bsc,cd->bsd"}> : () -> ()
    %cst_171 = arith.constant dense<0.000000e+00> : vector<2x64x32xf32>
    %305 = tpu.matmul %291, %304, %cst_171 {dimension_numbers = #tpu.dot_dimension_numbers<[2], [0], [0, 1], [1], [0, 0, 0, 1, 1, 1], [], []>} : vector<2x64x32xbf16>, vector<32x32xbf16>, vector<2x64x32xf32> -> vector<2x64x32xf32>
    "tpu.trace_stop"() : () -> ()
    %c0_172 = arith.constant 0 : index
    %c0_173 = arith.constant 0 : index
    %306 = vector.load %arg27[%c0_172, %c0_173] : memref<1x32xf32, #tpu.memory_space<vmem>>, vector<1x32xf32>
    %307 = vector.shape_cast %306 : vector<1x32xf32> to vector<1x1x32xf32>
    %308 = vector.broadcast %307 : vector<1x1x32xf32> to vector<2x64x32xf32>
    %309 = arith.addf %305, %308 : vector<2x64x32xf32>
    %310 = arith.truncf %297 : vector<2x64x32xf32> to vector<2x64x32xbf16>
    %311 = arith.truncf %303 : vector<2x64x32xf32> to vector<2x64x32xbf16>
    "tpu.trace_start"() <{level = 10 : i32, message = "bid,bjd->bij"}> : () -> ()
    %cst_174 = arith.constant dense<0.000000e+00> : vector<2x64x64xf32>
    %312 = tpu.matmul %310, %311, %cst_174 {dimension_numbers = #tpu.dot_dimension_numbers<[2], [2], [1], [1], [0, 0, 0, 1, 1, 1], [0], [0]>} : vector<2x64x32xbf16>, vector<2x64x32xbf16>, vector<2x64x64xf32> -> vector<2x64x64xf32>
    "tpu.trace_stop"() : () -> ()
    %cst_175 = arith.constant 0.176776692 : f32
    %313 = vector.broadcast %cst_175 : f32 to vector<2x64x64xf32>
    %314 = arith.mulf %312, %313 : vector<2x64x64xf32>
    %cst_176 = arith.constant dense<0xFF800000> : vector<2x64xf32>
    %315 = vector.multi_reduction <maximumf>, %314, %cst_176 [2] : vector<2x64x64xf32> to vector<2x64xf32>
    %316 = vector.shape_cast %315 : vector<2x64xf32> to vector<2x64x1xf32>
    %317 = vector.broadcast %316 : vector<2x64x1xf32> to vector<2x64x64xf32>
    %318 = arith.subf %314, %317 : vector<2x64x64xf32>
    %319 = math.exp %318 : vector<2x64x64xf32>
    %cst_177 = arith.constant dense<0.000000e+00> : vector<2x64xf32>
    %320 = vector.multi_reduction <add>, %319, %cst_177 [2] : vector<2x64x64xf32> to vector<2x64xf32>
    %321 = vector.shape_cast %320 : vector<2x64xf32> to vector<2x64x1xf32>
    %322 = tpu.reciprocal %321 {approx = true} : vector<2x64x1xf32> -> vector<2x64x1xf32>
    %323 = vector.broadcast %322 : vector<2x64x1xf32> to vector<2x64x64xf32>
    %324 = arith.mulf %319, %323 : vector<2x64x64xf32>
    %325 = arith.truncf %324 : vector<2x64x64xf32> to vector<2x64x64xbf16>
    %326 = arith.truncf %309 : vector<2x64x32xf32> to vector<2x64x32xbf16>
    "tpu.trace_start"() <{level = 10 : i32, message = "bij,bjd->bid"}> : () -> ()
    %cst_178 = arith.constant dense<0.000000e+00> : vector<2x64x32xf32>
    %327 = tpu.matmul %325, %326, %cst_178 {dimension_numbers = #tpu.dot_dimension_numbers<[2], [1], [1], [2], [0, 0, 0, 1, 1, 2], [0], [0]>} : vector<2x64x64xbf16>, vector<2x64x32xbf16>, vector<2x64x32xf32> -> vector<2x64x32xf32>
    "tpu.trace_stop"() : () -> ()
    %328 = arith.truncf %327 : vector<2x64x32xf32> to vector<2x64x32xbf16>
    %c0_179 = arith.constant 0 : index
    %c0_180 = arith.constant 0 : index
    %329 = vector.load %arg28[%c0_179, %c0_180] : memref<32x32xbf16, #tpu.memory_space<vmem>>, vector<32x32xbf16>
    "tpu.trace_start"() <{level = 10 : i32, message = "bsd,dc->bsc"}> : () -> ()
    %cst_181 = arith.constant dense<0.000000e+00> : vector<2x64x32xf32>
    %330 = tpu.matmul %328, %329, %cst_181 {dimension_numbers = #tpu.dot_dimension_numbers<[2], [0], [0, 1], [1], [0, 0, 0, 1, 1, 1], [], []>} : vector<2x64x32xbf16>, vector<32x32xbf16>, vector<2x64x32xf32> -> vector<2x64x32xf32>
    "tpu.trace_stop"() : () -> ()
    %c0_182 = arith.constant 0 : index
    %c0_183 = arith.constant 0 : index
    %331 = vector.load %arg29[%c0_182, %c0_183] : memref<1x32xf32, #tpu.memory_space<vmem>>, vector<1x32xf32>
    %332 = vector.shape_cast %331 : vector<1x32xf32> to vector<1x1x32xf32>
    %333 = vector.broadcast %332 : vector<1x1x32xf32> to vector<2x64x32xf32>
    %334 = arith.addf %330, %333 : vector<2x64x32xf32>
    %335 = arith.addf %334, %290 : vector<2x64x32xf32>
    %c0_184 = arith.constant 0 : index
    %c0_185 = arith.constant 0 : index
    %c0_186 = arith.constant 0 : index
    %336 = vector.load %arg32[%c0_184, %c0_185, %c0_186] : memref<2x64x32xf32, #tpu.memory_space<vmem>>, vector<2x64x32xf32>
    tpu.vector_store %arg32[%c0_184, %c0_185, %c0_186], %335 {strides = array<i32>} : memref<2x64x32xf32, #tpu.memory_space<vmem>>, vector<2x64x32xf32>,
    %c0_187 = arith.constant 0 : index
    %c0_188 = arith.constant 0 : index
    %337 = vector.load %arg30[%c0_187, %c0_188] : memref<64x32xbf16, #tpu.memory_space<vmem>>, vector<64x32xbf16>
    %cst_189 = arith.constant dense<0.000000e+00> : vector<128x32xf32>
    %338 = tpu.matmul %24, %337, %cst_189 {dimension_numbers = #tpu.dot_dimension_numbers<[1], [0], [0], [1], [0, 0, 1, 1], [], []>} : vector<128x64xbf16>, vector<64x32xbf16>, vector<128x32xf32> -> vector<128x32xf32>
    %c0_190 = arith.constant 0 : index
    %c0_191 = arith.constant 0 : index
    %339 = vector.load %arg31[%c0_190, %c0_191] : memref<1x32xf32, #tpu.memory_space<vmem>>, vector<1x32xf32>
    %340 = vector.broadcast %339 : vector<1x32xf32> to vector<128x32xf32>
    %341 = arith.addf %338, %340 : vector<128x32xf32>
    %342 = vector.shape_cast %341 : vector<128x32xf32> to vector<2x64x32xf32>
    %c0_192 = arith.constant 0 : index
    %c0_193 = arith.constant 0 : index
    %c0_194 = arith.constant 0 : index
    %343 = vector.load %arg33[%c0_192, %c0_193, %c0_194] : memref<2x64x32xf32, #tpu.memory_space<vmem>>, vector<2x64x32xf32>
    tpu.vector_store %arg33[%c0_192, %c0_193, %c0_194], %342 {strides = array<i32>} : memref<2x64x32xf32, #tpu.memory_space<vmem>>, vector<2x64x32xf32>,
    return
  }
  func.func @transform_0(%arg0: i32) -> (i32, i32, i32) {
    %c0_i32 = arith.constant 0 : i32
    %c0_i32_0 = arith.constant 0 : i32
    %c0_i32_1 = arith.constant 0 : i32
    %c0_i32_2 = arith.constant 0 : i32
    return %c0_i32, %c0_i32_0, %c0_i32_1 : i32, i32, i32
  }
  func.func @transform_1(%arg0: i32) -> (i32, i32, i32) {
    %c0_i32 = arith.constant 0 : i32
    %c0_i32_0 = arith.constant 0 : i32
    %c0_i32_1 = arith.constant 0 : i32
    %c0_i32_2 = arith.constant 0 : i32
    return %c0_i32, %c0_i32_0, %c0_i32_1 : i32, i32, i32
  }
  func.func @transform_2(%arg0: i32) -> (i32, i32) {
    %c0_i32 = arith.constant 0 : i32
    %c0_i32_0 = arith.constant 0 : i32
    %c0_i32_1 = arith.constant 0 : i32
    return %c0_i32, %c0_i32_0 : i32, i32
  }
  func.func @transform_3(%arg0: i32) -> (i32, i32) {
    %c0_i32 = arith.constant 0 : i32
    %c0_i32_0 = arith.constant 0 : i32
    %c0_i32_1 = arith.constant 0 : i32
    return %c0_i32, %c0_i32_0 : i32, i32
  }
  func.func @transform_4(%arg0: i32) -> (i32, i32) {
    %c0_i32 = arith.constant 0 : i32
    %c0_i32_0 = arith.constant 0 : i32
    %c0_i32_1 = arith.constant 0 : i32
    return %c0_i32, %c0_i32_0 : i32, i32
  }
  func.func @transform_5(%arg0: i32) -> (i32, i32) {
    %c0_i32 = arith.constant 0 : i32
    %c0_i32_0 = arith.constant 0 : i32
    %c0_i32_1 = arith.constant 0 : i32
    return %c0_i32, %c0_i32_0 : i32, i32
  }
  func.func @transform_6(%arg0: i32) -> (i32, i32) {
    %c0_i32 = arith.constant 0 : i32
    %c0_i32_0 = arith.constant 0 : i32
    %c0_i32_1 = arith.constant 0 : i32
    return %c0_i32, %c0_i32_0 : i32, i32
  }
  func.func @transform_7(%arg0: i32) -> (i32, i32) {
    %c0_i32 = arith.constant 0 : i32
    %c0_i32_0 = arith.constant 0 : i32
    %c0_i32_1 = arith.constant 0 : i32
    return %c0_i32, %c0_i32_0 : i32, i32
  }
  func.func @transform_8(%arg0: i32) -> (i32, i32) {
    %c0_i32 = arith.constant 0 : i32
    %c0_i32_0 = arith.constant 0 : i32
    %c0_i32_1 = arith.constant 0 : i32
    return %c0_i32, %c0_i32_0 : i32, i32
  }
  func.func @transform_9(%arg0: i32) -> (i32, i32) {
    %c0_i32 = arith.constant 0 : i32
    %c0_i32_0 = arith.constant 0 : i32
    %c0_i32_1 = arith.constant 0 : i32
    return %c0_i32, %c0_i32_0 : i32, i32
  }
  func.func @transform_10(%arg0: i32) -> (i32, i32) {
    %c0_i32 = arith.constant 0 : i32
    %c0_i32_0 = arith.constant 0 : i32
    %c0_i32_1 = arith.constant 0 : i32
    return %c0_i32, %c0_i32_0 : i32, i32
  }
  func.func @transform_11(%arg0: i32) -> (i32, i32) {
    %c0_i32 = arith.constant 0 : i32
    %c0_i32_0 = arith.constant 0 : i32
    %c0_i32_1 = arith.constant 0 : i32
    return %c0_i32, %c0_i32_0 : i32, i32
  }
  func.func @transform_12(%arg0: i32) -> (i32, i32) {
    %c0_i32 = arith.constant 0 : i32
    %c0_i32_0 = arith.constant 0 : i32
    %c0_i32_1 = arith.constant 0 : i32
    return %c0_i32, %c0_i32_0 : i32, i32
  }
  func.func @transform_13(%arg0: i32) -> (i32, i32) {
    %c0_i32 = arith.constant 0 : i32
    %c0_i32_0 = arith.constant 0 : i32
    %c0_i32_1 = arith.constant 0 : i32
    return %c0_i32, %c0_i32_0 : i32, i32
  }
  func.func @transform_14(%arg0: i32) -> (i32, i32) {
    %c0_i32 = arith.constant 0 : i32
    %c0_i32_0 = arith.constant 0 : i32
    %c0_i32_1 = arith.constant 0 : i32
    return %c0_i32, %c0_i32_0 : i32, i32
  }
  func.func @transform_15(%arg0: i32) -> (i32, i32) {
    %c0_i32 = arith.constant 0 : i32
    %c0_i32_0 = arith.constant 0 : i32
    %c0_i32_1 = arith.constant 0 : i32
    return %c0_i32, %c0_i32_0 : i32, i32
  }
  func.func @transform_16(%arg0: i32) -> (i32, i32) {
    %c0_i32 = arith.constant 0 : i32
    %c0_i32_0 = arith.constant 0 : i32
    %c0_i32_1 = arith.constant 0 : i32
    return %c0_i32, %c0_i32_0 : i32, i32
  }
  func.func @transform_17(%arg0: i32) -> (i32, i32) {
    %c0_i32 = arith.constant 0 : i32
    %c0_i32_0 = arith.constant 0 : i32
    %c0_i32_1 = arith.constant 0 : i32
    return %c0_i32, %c0_i32_0 : i32, i32
  }
  func.func @transform_18(%arg0: i32) -> (i32, i32) {
    %c0_i32 = arith.constant 0 : i32
    %c0_i32_0 = arith.constant 0 : i32
    %c0_i32_1 = arith.constant 0 : i32
    return %c0_i32, %c0_i32_0 : i32, i32
  }
  func.func @transform_19(%arg0: i32) -> (i32, i32) {
    %c0_i32 = arith.constant 0 : i32
    %c0_i32_0 = arith.constant 0 : i32
    %c0_i32_1 = arith.constant 0 : i32
    return %c0_i32, %c0_i32_0 : i32, i32
  }
  func.func @transform_20(%arg0: i32) -> (i32, i32) {
    %c0_i32 = arith.constant 0 : i32
    %c0_i32_0 = arith.constant 0 : i32
    %c0_i32_1 = arith.constant 0 : i32
    return %c0_i32, %c0_i32_0 : i32, i32
  }
  func.func @transform_21(%arg0: i32) -> (i32, i32) {
    %c0_i32 = arith.constant 0 : i32
    %c0_i32_0 = arith.constant 0 : i32
    %c0_i32_1 = arith.constant 0 : i32
    return %c0_i32, %c0_i32_0 : i32, i32
  }
  func.func @transform_22(%arg0: i32) -> (i32, i32) {
    %c0_i32 = arith.constant 0 : i32
    %c0_i32_0 = arith.constant 0 : i32
    %c0_i32_1 = arith.constant 0 : i32
    return %c0_i32, %c0_i32_0 : i32, i32
  }
  func.func @transform_23(%arg0: i32) -> (i32, i32) {
    %c0_i32 = arith.constant 0 : i32
    %c0_i32_0 = arith.constant 0 : i32
    %c0_i32_1 = arith.constant 0 : i32
    return %c0_i32, %c0_i32_0 : i32, i32
  }
  func.func @transform_24(%arg0: i32) -> (i32, i32) {
    %c0_i32 = arith.constant 0 : i32
    %c0_i32_0 = arith.constant 0 : i32
    %c0_i32_1 = arith.constant 0 : i32
    return %c0_i32, %c0_i32_0 : i32, i32
  }
  func.func @transform_25(%arg0: i32) -> (i32, i32) {
    %c0_i32 = arith.constant 0 : i32
    %c0_i32_0 = arith.constant 0 : i32
    %c0_i32_1 = arith.constant 0 : i32
    return %c0_i32, %c0_i32_0 : i32, i32
  }
  func.func @transform_26(%arg0: i32) -> (i32, i32) {
    %c0_i32 = arith.constant 0 : i32
    %c0_i32_0 = arith.constant 0 : i32
    %c0_i32_1 = arith.constant 0 : i32
    return %c0_i32, %c0_i32_0 : i32, i32
  }
  func.func @transform_27(%arg0: i32) -> (i32, i32) {
    %c0_i32 = arith.constant 0 : i32
    %c0_i32_0 = arith.constant 0 : i32
    %c0_i32_1 = arith.constant 0 : i32
    return %c0_i32, %c0_i32_0 : i32, i32
  }
  func.func @transform_28(%arg0: i32) -> (i32, i32) {
    %c0_i32 = arith.constant 0 : i32
    %c0_i32_0 = arith.constant 0 : i32
    %c0_i32_1 = arith.constant 0 : i32
    return %c0_i32, %c0_i32_0 : i32, i32
  }
  func.func @transform_29(%arg0: i32) -> (i32, i32) {
    %c0_i32 = arith.constant 0 : i32
    %c0_i32_0 = arith.constant 0 : i32
    %c0_i32_1 = arith.constant 0 : i32
    return %c0_i32, %c0_i32_0 : i32, i32
  }
  func.func @transform_30(%arg0: i32) -> (i32, i32) {
    %c0_i32 = arith.constant 0 : i32
    %c0_i32_0 = arith.constant 0 : i32
    %c0_i32_1 = arith.constant 0 : i32
    return %c0_i32, %c0_i32_0 : i32, i32
  }
  func.func @transform_31(%arg0: i32) -> (i32, i32, i32) {
    %c0_i32 = arith.constant 0 : i32
    %c0_i32_0 = arith.constant 0 : i32
    %c0_i32_1 = arith.constant 0 : i32
    %c0_i32_2 = arith.constant 0 : i32
    return %c0_i32, %c0_i32_0, %c0_i32_1 : i32, i32, i32
  }
  func.func @transform_32(%arg0: i32) -> (i32, i32, i32) {
    %c0_i32 = arith.constant 0 : i32
    %c0_i32_0 = arith.constant 0 : i32
    %c0_i32_1 = arith.constant 0 : i32
    %c0_i32_2 = arith.constant 0 : i32
    return %c0_i32, %c0_i32_0, %c0_i32_1 : i32, i32, i32
  }
}

</mosaic_0001>

<llo_original>
// kernel: up_block_forward.1
$region0: #{up_block_forward.1}
  #allocation0 [shape = 'u32[]', space=smem, size = 0x4, offset = 0x4, fixed_abs, tag = 'smem constant byte address 0x4 - core index']
  #allocation1 [shape = 'u32[144,128]{1,0:T(1,128)}', space=vmem, size = 0x12000, scoped, tag = 'internal scratch']
  #allocation2 [shape = 'bf16[192,192]{1,0:T(16,128)(2,1)}', space=vmem, size = 0x18000, scoped, tag = 'scratch operand']
  #allocation3 [shape = 'bf16[192,96]{1,0:T(16,128)(2,1)}', space=vmem, size = 0xc000, scoped, tag = 'scratch operand']
  %s0 = inlined_call_operand.smem [shape: u32[33], index: -1, kind: input, shape index: {}]
  %s1 = sld [smem:[%s0]]
  %s2 = scalar_lea.smem %s0, 1
  %s3 = sld [smem:[%s2]]
  %s4 = scalar_lea.smem %s0, 2
  %s5 = sld [smem:[%s4]]
  %s6 = scalar_lea.smem %s0, 3
  %s7 = sld [smem:[%s6]]
  %s8 = scalar_lea.smem %s0, 4
  %s9 = sld [smem:[%s8]]
  %s10 = scalar_lea.smem %s0, 5
  %s11 = sld [smem:[%s10]]
  %s12 = scalar_lea.smem %s0, 6
  %s13 = sld [smem:[%s12]]
  %s14 = scalar_lea.smem %s0, 7
  %s15 = sld [smem:[%s14]]
  %s16 = scalar_lea.smem %s0, 8
  %s17 = sld [smem:[%s16]]
  %s18 = scalar_lea.smem %s0, 9
  %s19 = sld [smem:[%s18]]
  %s20 = scalar_lea.smem %s0, 10
  %s21 = sld [smem:[%s20]]
  %s22 = scalar_lea.smem %s0, 11
  %s23 = sld [smem:[%s22]]
  %s24 = scalar_lea.smem %s0, 12
  %s25 = sld [smem:[%s24]]
  %s26 = scalar_lea.smem %s0, 13
  %s27 = sld [smem:[%s26]]
  %s28 = scalar_lea.smem %s0, 14
  %s29 = sld [smem:[%s28]]
  %s30 = scalar_lea.smem %s0, 15
  %s31 = sld [smem:[%s30]]
  %s32 = scalar_lea.smem %s0, 16
  %s33 = sld [smem:[%s32]]
  %s34 = scalar_lea.smem %s0, 17
  %s35 = sld [smem:[%s34]]
  %s36 = scalar_lea.smem %s0, 18
  %s37 = sld [smem:[%s36]]
  %s38 = scalar_lea.smem %s0, 19
  %s39 = sld [smem:[%s38]]
  %s40 = scalar_lea.smem %s0, 20
  %s41 = sld [smem:[%s40]]
  %s42 = scalar_lea.smem %s0, 21
  %s43 = sld [smem:[%s42]]
  %s44 = scalar_lea.smem %s0, 22
  %s45 = sld [smem:[%s44]]
  %s46 = scalar_lea.smem %s0, 23
  %s47 = sld [smem:[%s46]]
  %s48 = scalar_lea.smem %s0, 24
  %s49 = sld [smem:[%s48]]
  %s50 = scalar_lea.smem %s0, 25
  %s51 = sld [smem:[%s50]]
  %s52 = scalar_lea.smem %s0, 26
  %s53 = sld [smem:[%s52]]
  %s54 = scalar_lea.smem %s0, 27
  %s55 = sld [smem:[%s54]]
  %s56 = scalar_lea.smem %s0, 28
  %s57 = sld [smem:[%s56]]
  %s58 = scalar_lea.smem %s0, 29
  %s59 = sld [smem:[%s58]]
  %s60 = scalar_lea.smem %s0, 30
  %s61 = sld [smem:[%s60]]
  %s62 = scalar_lea.smem %s0, 31
  %s63 = sld [smem:[%s62]]
  %s64 = scalar_lea.smem %s0, 32
  %s65 = sld [smem:[%s64]]
  %66 = xla_tuple %s63, %s65
  %s67 = sld [smem:[#allocation0]]
  $region142: #{up_block_forward.1} parent=0
    _
  %s69 = ssub.s32 1, %s67
  %s70 = scalar_select 0, %s69, %s67
  $region1: #{up_block_forward.1} parent=0
    #allocation4 [shape = 'u8[65536]{0}', space=vmem, size = 0x10000, scoped, tag = 'output window, operand 0, single buffered']
    #allocation5 [shape = 's32[1]{0}', space=sflag, size = 0x4, scoped, tag = 'scoped memory for up_block_forward.1']
    #allocation6 [shape = 'u8[65536]{0}', space=vmem, size = 0x10000, scoped, tag = 'output window, operand 1, single buffered']
    #allocation7 [shape = 's32[1]{0}', space=sflag, size = 0x4, scoped, tag = 'scoped memory for up_block_forward.1']
    %71 = vsyncpa [#allocation5], 0
    %72 = vsyncpa [#allocation7], 0
    // Predicated region
    $region2: #{up_block_forward.1} parent=1 // pred_check
      _
    $region3: #{up_block_forward.1} parent=1 // pred_check_branch
      %74 = sbr.rel (0) target = $region5
    $region4: #{up_block_forward.1} parent=1 // pred_region
      _
    $region5: #{up_block_forward.1} parent=1 // pred_fallthru
      _
    // Predicated region
    $region6: #{up_block_forward.1} parent=1 // pred_check
      _
    $region7: #{up_block_forward.1} parent=1 // pred_check_branch
      %76 = sbr.rel (0) target = $region9
    $region8: #{up_block_forward.1} parent=1 // pred_region
      _
    $region9: #{up_block_forward.1} parent=1 // pred_fallthru
      _
    // Predicated region
    $region10: #{up_block_forward.1} parent=1 // pred_check
      _
    $region11: #{up_block_forward.1} parent=1 // pred_check_branch
      %78 = sbr.rel (0) target = $region13
    $region12: #{up_block_forward.1} parent=1 // pred_region
      _
    $region13: #{up_block_forward.1} parent=1 // pred_fallthru
      _
    // Predicated region
    $region14: #{up_block_forward.1} parent=1 // pred_check
      _
    $region15: #{up_block_forward.1} parent=1 // pred_check_branch
      %80 = sbr.rel (0) target = $region17
    $region16: #{up_block_forward.1} parent=1 // pred_region
      _
    $region17: #{up_block_forward.1} parent=1 // pred_fallthru
      _
    // Predicated region
    $region18: #{up_block_forward.1} parent=1 // pred_check
      _
    $region19: #{up_block_forward.1} parent=1 // pred_check_branch
      %82 = sbr.rel (0) target = $region21
    $region20: #{up_block_forward.1} parent=1 // pred_region
      _
    $region21: #{up_block_forward.1} parent=1 // pred_fallthru
      _
    // Predicated region
    $region22: #{up_block_forward.1} parent=1 // pred_check
      _
    $region23: #{up_block_forward.1} parent=1 // pred_check_branch
      %84 = sbr.rel (0) target = $region25
    $region24: #{up_block_forward.1} parent=1 // pred_region
      _
    $region25: #{up_block_forward.1} parent=1 // pred_fallthru
      _
    // Predicated region
    $region26: #{up_block_forward.1} parent=1 // pred_check
      _
    $region27: #{up_block_forward.1} parent=1 // pred_check_branch
      %86 = sbr.rel (0) target = $region29
    $region28: #{up_block_forward.1} parent=1 // pred_region
      _
    $region29: #{up_block_forward.1} parent=1 // pred_fallthru
      _
    // Predicated region
    $region30: #{up_block_forward.1} parent=1 // pred_check
      _
    $region31: #{up_block_forward.1} parent=1 // pred_check_branch
      %88 = sbr.rel (0) target = $region33
    $region32: #{up_block_forward.1} parent=1 // pred_region
      _
    $region33: #{up_block_forward.1} parent=1 // pred_fallthru
      _
    // Predicated region
    $region34: #{up_block_forward.1} parent=1 // pred_check
      _
    $region35: #{up_block_forward.1} parent=1 // pred_check_branch
      %90 = sbr.rel (0) target = $region37
    $region36: #{up_block_forward.1} parent=1 // pred_region
      _
    $region37: #{up_block_forward.1} parent=1 // pred_fallthru
      _
    // Predicated region
    $region38: #{up_block_forward.1} parent=1 // pred_check
      _
    $region39: #{up_block_forward.1} parent=1 // pred_check_branch
      %92 = sbr.rel (0) target = $region41
    $region40: #{up_block_forward.1} parent=1 // pred_region
      _
    $region41: #{up_block_forward.1} parent=1 // pred_fallthru
      _
    // Predicated region
    $region42: #{up_block_forward.1} parent=1 // pred_check
      _
    $region43: #{up_block_forward.1} parent=1 // pred_check_branch
      %94 = sbr.rel (0) target = $region45
    $region44: #{up_block_forward.1} parent=1 // pred_region
      _
    $region45: #{up_block_forward.1} parent=1 // pred_fallthru
      _
    // Predicated region
    $region46: #{up_block_forward.1} parent=1 // pred_check
      _
    $region47: #{up_block_forward.1} parent=1 // pred_check_branch
      %96 = sbr.rel (0) target = $region49
    $region48: #{up_block_forward.1} parent=1 // pred_region
      _
    $region49: #{up_block_forward.1} parent=1 // pred_fallthru
      _
    // Predicated region
    $region50: #{up_block_forward.1} parent=1 // pred_check
      _
    $region51: #{up_block_forward.1} parent=1 // pred_check_branch
      %98 = sbr.rel (0) target = $region53
    $region52: #{up_block_forward.1} parent=1 // pred_region
      _
    $region53: #{up_block_forward.1} parent=1 // pred_fallthru
      _
    // Predicated region
    $region54: #{up_block_forward.1} parent=1 // pred_check
      _
    $region55: #{up_block_forward.1} parent=1 // pred_check_branch
      %100 = sbr.rel (0) target = $region57
    $region56: #{up_block_forward.1} parent=1 // pred_region
      _
    $region57: #{up_block_forward.1} parent=1 // pred_fallthru
      _
    // Predicated region
    $region58: #{up_block_forward.1} parent=1 // pred_check
      _
    $region59: #{up_block_forward.1} parent=1 // pred_check_branch
      %102 = sbr.rel (0) target = $region61
    $region60: #{up_block_forward.1} parent=1 // pred_region
      _
    $region61: #{up_block_forward.1} parent=1 // pred_fallthru
      _
    // Predicated region
    $region62: #{up_block_forward.1} parent=1 // pred_check
      _
    $region63: #{up_block_forward.1} parent=1 // pred_check_branch
      %104 = sbr.rel (0) target = $region65
    $region64: #{up_block_forward.1} parent=1 // pred_region
      _
    $region65: #{up_block_forward.1} parent=1 // pred_fallthru
      _
    // Predicated region
    $region66: #{up_block_forward.1} parent=1 // pred_check
      _
    $region67: #{up_block_forward.1} parent=1 // pred_check_branch
      %106 = sbr.rel (0) target = $region69
    $region68: #{up_block_forward.1} parent=1 // pred_region
      _
    $region69: #{up_block_forward.1} parent=1 // pred_fallthru
      _
    // Predicated region
    $region70: #{up_block_forward.1} parent=1 // pred_check
      _
    $region71: #{up_block_forward.1} parent=1 // pred_check_branch
      %108 = sbr.rel (0) target = $region73
    $region72: #{up_block_forward.1} parent=1 // pred_region
      _
    $region73: #{up_block_forward.1} parent=1 // pred_fallthru
      _
    // Predicated region
    $region74: #{up_block_forward.1} parent=1 // pred_check
      _
    $region75: #{up_block_forward.1} parent=1 // pred_check_branch
      %110 = sbr.rel (0) target = $region77
    $region76: #{up_block_forward.1} parent=1 // pred_region
      _
    $region77: #{up_block_forward.1} parent=1 // pred_fallthru
      _
    // Predicated region
    $region78: #{up_block_forward.1} parent=1 // pred_check
      _
    $region79: #{up_block_forward.1} parent=1 // pred_check_branch
      %112 = sbr.rel (0) target = $region81
    $region80: #{up_block_forward.1} parent=1 // pred_region
      _
    $region81: #{up_block_forward.1} parent=1 // pred_fallthru
      _
    // Predicated region
    $region82: #{up_block_forward.1} parent=1 // pred_check
      _
    $region83: #{up_block_forward.1} parent=1 // pred_check_branch
      %114 = sbr.rel (0) target = $region85
    $region84: #{up_block_forward.1} parent=1 // pred_region
      _
    $region85: #{up_block_forward.1} parent=1 // pred_fallthru
      _
    // Predicated region
    $region86: #{up_block_forward.1} parent=1 // pred_check
      _
    $region87: #{up_block_forward.1} parent=1 // pred_check_branch
      %116 = sbr.rel (0) target = $region89
    $region88: #{up_block_forward.1} parent=1 // pred_region
      _
    $region89: #{up_block_forward.1} parent=1 // pred_fallthru
      _
    // Predicated region
    $region90: #{up_block_forward.1} parent=1 // pred_check
      _
    $region91: #{up_block_forward.1} parent=1 // pred_check_branch
      %118 = sbr.rel (0) target = $region93
    $region92: #{up_block_forward.1} parent=1 // pred_region
      _
    $region93: #{up_block_forward.1} parent=1 // pred_fallthru
      _
    // Predicated region
    $region94: #{up_block_forward.1} parent=1 // pred_check
      _
    $region95: #{up_block_forward.1} parent=1 // pred_check_branch
      %120 = sbr.rel (0) target = $region97
    $region96: #{up_block_forward.1} parent=1 // pred_region
      _
    $region97: #{up_block_forward.1} parent=1 // pred_fallthru
      _
    // Predicated region
    $region98: #{up_block_forward.1} parent=1 // pred_check
      _
    $region99: #{up_block_forward.1} parent=1 // pred_check_branch
      %122 = sbr.rel (0) target = $region101
    $region100: #{up_block_forward.1} parent=1 // pred_region
      _
    $region101: #{up_block_forward.1} parent=1 // pred_fallthru
      _
    // Predicated region
    $region102: #{up_block_forward.1} parent=1 // pred_check
      _
    $region103: #{up_block_forward.1} parent=1 // pred_check_branch
      %124 = sbr.rel (0) target = $region105
    $region104: #{up_block_forward.1} parent=1 // pred_region
      _
    $region105: #{up_block_forward.1} parent=1 // pred_fallthru
      _
    // Predicated region
    $region106: #{up_block_forward.1} parent=1 // pred_check
      _
    $region107: #{up_block_forward.1} parent=1 // pred_check_branch
      %126 = sbr.rel (0) target = $region109
    $region108: #{up_block_forward.1} parent=1 // pred_region
      _
    $region109: #{up_block_forward.1} parent=1 // pred_fallthru
      _
    // Predicated region
    $region110: #{up_block_forward.1} parent=1 // pred_check
      _
    $region111: #{up_block_forward.1} parent=1 // pred_check_branch
      %128 = sbr.rel (0) target = $region113
    $region112: #{up_block_forward.1} parent=1 // pred_region
      _
    $region113: #{up_block_forward.1} parent=1 // pred_fallthru
      _
    // Predicated region
    $region114: #{up_block_forward.1} parent=1 // pred_check
      _
    $region115: #{up_block_forward.1} parent=1 // pred_check_branch
      %130 = sbr.rel (0) target = $region117
    $region116: #{up_block_forward.1} parent=1 // pred_region
      _
    $region117: #{up_block_forward.1} parent=1 // pred_fallthru
      _
    // Predicated region
    $region118: #{up_block_forward.1} parent=1 // pred_check
      _
    $region119: #{up_block_forward.1} parent=1 // pred_check_branch
      %132 = sbr.rel (0) target = $region121
    $region120: #{up_block_forward.1} parent=1 // pred_region
      _
    $region121: #{up_block_forward.1} parent=1 // pred_fallthru
      _
    // Predicated region
    $region122: #{up_block_forward.1} parent=1 // pred_check
      _
    $region123: #{up_block_forward.1} parent=1 // pred_check_branch
      %134 = sbr.rel (0) target = $region125
    $region124: #{up_block_forward.1} parent=1 // pred_region
      _
    $region125: #{up_block_forward.1} parent=1 // pred_fallthru
      _
    %v138 = vlaneseq
    %v139 = vshrl.u32 %v138, 7
    %v140 = vadd.s32 %v139, 8
    %v141 = vadd.s32 %v139, 16
    %v142 = vadd.s32 %v139, 24
    %v143 = vadd.s32 %v139, 32
    %v144 = vadd.s32 %v139, 40
    %v145 = vadd.s32 %v139, 48
    %v146 = vadd.s32 %v139, 56
    %v147 = vadd.s32 %v139, 64
    %v148 = vadd.s32 %v139, 72
    %v149 = vadd.s32 %v139, 80
    %v150 = vadd.s32 %v139, 88
    %v151 = vadd.s32 %v139, 96
    %v152 = vadd.s32 %v139, 104
    %v153 = vadd.s32 %v139, 112
    %v154 = vadd.s32 %v139, 120
    %vm155 = vcmp.lt.s32.totalorder %v139, 0
    %v156 = vsub.s32 0, %v139
    %v157 = vsel %vm155, %v156, %v139
    %v158 = vshrl.u32 %v157, 3
    %v159 = vand.u32 %v157, 7
    %v160 = vsub.s32 0, %v159
    %v161 = vsel %vm155, %v160, %v159
    %vm162 = vcmp.lt.s32.totalorder %v140, 0
    %v163 = vsub.s32 0, %v140
    %v164 = vsel %vm162, %v163, %v140
    %v165 = vshrl.u32 %v164, 3
    %v166 = vand.u32 %v164, 7
    %v167 = vsub.s32 0, %v166
    %v168 = vsel %vm162, %v167, %v166
    %vm169 = vcmp.lt.s32.totalorder %v141, 0
    %v170 = vsub.s32 0, %v141
    %v171 = vsel %vm169, %v170, %v141
    %v172 = vshrl.u32 %v171, 3
    %v173 = vand.u32 %v171, 7
    %v174 = vsub.s32 0, %v173
    %v175 = vsel %vm169, %v174, %v173
    %vm176 = vcmp.lt.s32.totalorder %v142, 0
    %v177 = vsub.s32 0, %v142
    %v178 = vsel %vm176, %v177, %v142
    %v179 = vshrl.u32 %v178, 3
    %v180 = vand.u32 %v178, 7
    %v181 = vsub.s32 0, %v180
    %v182 = vsel %vm176, %v181, %v180
    %vm183 = vcmp.lt.s32.totalorder %v143, 0
    %v184 = vsub.s32 0, %v143
    %v185 = vsel %vm183, %v184, %v143
    %v186 = vshrl.u32 %v185, 3
    %v187 = vand.u32 %v185, 7
    %v188 = vsub.s32 0, %v187
    %v189 = vsel %vm183, %v188, %v187
    %vm190 = vcmp.lt.s32.totalorder %v144, 0
    %v191 = vsub.s32 0, %v144
    %v192 = vsel %vm190, %v191, %v144
    %v193 = vshrl.u32 %v192, 3
    %v194 = vand.u32 %v192, 7
    %v195 = vsub.s32 0, %v194
    %v196 = vsel %vm190, %v195, %v194
    %vm197 = vcmp.lt.s32.totalorder %v145, 0
    %v198 = vsub.s32 0, %v145
    %v199 = vsel %vm197, %v198, %v145
    %v200 = vshrl.u32 %v199, 3
    %v201 = vand.u32 %v199, 7
    %v202 = vsub.s32 0, %v201
    %v203 = vsel %vm197, %v202, %v201
    %vm204 = vcmp.lt.s32.totalorder %v146, 0
    %v205 = vsub.s32 0, %v146
    %v206 = vsel %vm204, %v205, %v146
    %v207 = vshrl.u32 %v206, 3
    %v208 = vand.u32 %v206, 7
    %v209 = vsub.s32 0, %v208
    %v210 = vsel %vm204, %v209, %v208
    %vm211 = vcmp.lt.s32.totalorder %v147, 0
    %v212 = vsub.s32 0, %v147
    %v213 = vsel %vm211, %v212, %v147
    %v214 = vshrl.u32 %v213, 3
    %v215 = vand.u32 %v213, 7
    %v216 = vsub.s32 0, %v215
    %v217 = vsel %vm211, %v216, %v215
    %vm218 = vcmp.lt.s32.totalorder %v148, 0
    %v219 = vsub.s32 0, %v148
    %v220 = vsel %vm218, %v219, %v148
    %v221 = vshrl.u32 %v220, 3
    %v222 = vand.u32 %v220, 7
    %v223 = vsub.s32 0, %v222
    %v224 = vsel %vm218, %v223, %v222
    %vm225 = vcmp.lt.s32.totalorder %v149, 0
    %v226 = vsub.s32 0, %v149
    %v227 = vsel %vm225, %v226, %v149
    %v228 = vshrl.u32 %v227, 3
    %v229 = vand.u32 %v227, 7
    %v230 = vsub.s32 0, %v229
    %v231 = vsel %vm225, %v230, %v229
    %vm232 = vcmp.lt.s32.totalorder %v150, 0
    %v233 = vsub.s32 0, %v150
    %v234 = vsel %vm232, %v233, %v150
    %v235 = vshrl.u32 %v234, 3
    %v236 = vand.u32 %v234, 7
    %v237 = vsub.s32 0, %v236
    %v238 = vsel %vm232, %v237, %v236
    %vm239 = vcmp.lt.s32.totalorder %v151, 0
    %v240 = vsub.s32 0, %v151
    %v241 = vsel %vm239, %v240, %v151
    %v242 = vshrl.u32 %v241, 3
    %v243 = vand.u32 %v241, 7
    %v244 = vsub.s32 0, %v243
    %v245 = vsel %vm239, %v244, %v243
    %vm246 = vcmp.lt.s32.totalorder %v152, 0
    %v247 = vsub.s32 0, %v152
    %v248 = vsel %vm246, %v247, %v152
    %v249 = vshrl.u32 %v248, 3
    %v250 = vand.u32 %v248, 7
    %v251 = vsub.s32 0, %v250
    %v252 = vsel %vm246, %v251, %v250
    %vm253 = vcmp.lt.s32.totalorder %v153, 0
    %v254 = vsub.s32 0, %v153
    %v255 = vsel %vm253, %v254, %v153
    %v256 = vshrl.u32 %v255, 3
    %v257 = vand.u32 %v255, 7
    %v258 = vsub.s32 0, %v257
    %v259 = vsel %vm253, %v258, %v257
    %vm260 = vcmp.lt.s32.totalorder %v154, 0
    %v261 = vsub.s32 0, %v154
    %v262 = vsel %vm260, %v261, %v154
    %v263 = vshrl.u32 %v262, 3
    %v264 = vand.u32 %v262, 7
    %v265 = vsub.s32 0, %v264
    %v266 = vsel %vm260, %v265, %v264
    %vm267 = vcmp.ne.s32.totalorder %v161, 0
    %vm268 = vcmp.ne.s32.totalorder %v168, 0
    %vm269 = vcmp.ne.s32.totalorder %v175, 0
    %vm270 = vcmp.ne.s32.totalorder %v182, 0
    %vm271 = vcmp.ne.s32.totalorder %v189, 0
    %vm272 = vcmp.ne.s32.totalorder %v196, 0
    %vm273 = vcmp.ne.s32.totalorder %v203, 0
    %vm274 = vcmp.ne.s32.totalorder %v210, 0
    %vm275 = vcmp.ne.s32.totalorder %v217, 0
    %vm276 = vcmp.ne.s32.totalorder %v224, 0
    %vm277 = vcmp.ne.s32.totalorder %v231, 0
    %vm278 = vcmp.ne.s32.totalorder %v238, 0
    %vm279 = vcmp.ne.s32.totalorder %v245, 0
    %vm280 = vcmp.ne.s32.totalorder %v252, 0
    %vm281 = vcmp.ne.s32.totalorder %v259, 0
    %vm282 = vcmp.ne.s32.totalorder %v266, 0
    %vm283 = vcmp.lt.s32.totalorder %v161, 0
    %vm284 = vcmp.lt.s32.totalorder %v168, 0
    %vm285 = vcmp.lt.s32.totalorder %v175, 0
    %vm286 = vcmp.lt.s32.totalorder %v182, 0
    %vm287 = vcmp.lt.s32.totalorder %v189, 0
    %vm288 = vcmp.lt.s32.totalorder %v196, 0
    %vm289 = vcmp.lt.s32.totalorder %v203, 0
    %vm290 = vcmp.lt.s32.totalorder %v210, 0
    %vm291 = vcmp.lt.s32.totalorder %v217, 0
    %vm292 = vcmp.lt.s32.totalorder %v224, 0
    %vm293 = vcmp.lt.s32.totalorder %v231, 0
    %vm294 = vcmp.lt.s32.totalorder %v238, 0
    %vm295 = vcmp.lt.s32.totalorder %v245, 0
    %vm296 = vcmp.lt.s32.totalorder %v252, 0
    %vm297 = vcmp.lt.s32.totalorder %v259, 0
    %vm298 = vcmp.lt.s32.totalorder %v266, 0
    %vm299 = vmand %vm283, %vm267
    %vm300 = vmand %vm284, %vm268
    %vm301 = vmand %vm285, %vm269
    %vm302 = vmand %vm286, %vm270
    %vm303 = vmand %vm287, %vm271
    %vm304 = vmand %vm288, %vm272
    %vm305 = vmand %vm289, %vm273
    %vm306 = vmand %vm290, %vm274
    %vm307 = vmand %vm291, %vm275
    %vm308 = vmand %vm292, %vm276
    %vm309 = vmand %vm293, %vm277
    %vm310 = vmand %vm294, %vm278
    %vm311 = vmand %vm295, %vm279
    %vm312 = vmand %vm296, %vm280
    %vm313 = vmand %vm297, %vm281
    %vm314 = vmand %vm298, %vm282
    %v315 = vadd.s32 %v161, 8
    %v316 = vadd.s32 %v168, 8
    %v317 = vadd.s32 %v175, 8
    %v318 = vadd.s32 %v182, 8
    %v319 = vadd.s32 %v189, 8
    %v320 = vadd.s32 %v196, 8
    %v321 = vadd.s32 %v203, 8
    %v322 = vadd.s32 %v210, 8
    %v323 = vadd.s32 %v217, 8
    %v324 = vadd.s32 %v224, 8
    %v325 = vadd.s32 %v231, 8
    %v326 = vadd.s32 %v238, 8
    %v327 = vadd.s32 %v245, 8
    %v328 = vadd.s32 %v252, 8
    %v329 = vadd.s32 %v259, 8
    %v330 = vadd.s32 %v266, 8
    %v331 = vsel %vm299, %v315, %v161
    %v332 = vsel %vm300, %v316, %v168
    %v333 = vsel %vm301, %v317, %v175
    %v334 = vsel %vm302, %v318, %v182
    %v335 = vsel %vm303, %v319, %v189
    %v336 = vsel %vm304, %v320, %v196
    %v337 = vsel %vm305, %v321, %v203
    %v338 = vsel %vm306, %v322, %v210
    %v339 = vsel %vm307, %v323, %v217
    %v340 = vsel %vm308, %v324, %v224
    %v341 = vsel %vm309, %v325, %v231
    %v342 = vsel %vm310, %v326, %v238
    %v343 = vsel %vm311, %v327, %v245
    %v344 = vsel %vm312, %v328, %v252
    %v345 = vsel %vm313, %v329, %v259
    %v346 = vsel %vm314, %v330, %v266
    %vm347 = vcmp.ne.s32.totalorder %v331, 0
    %vm348 = vcmp.ne.s32.totalorder %v332, 0
    %vm349 = vcmp.ne.s32.totalorder %v333, 0
    %vm350 = vcmp.ne.s32.totalorder %v334, 0
    %vm351 = vcmp.ne.s32.totalorder %v335, 0
    %vm352 = vcmp.ne.s32.totalorder %v336, 0
    %vm353 = vcmp.ne.s32.totalorder %v337, 0
    %vm354 = vcmp.ne.s32.totalorder %v338, 0
    %vm355 = vcmp.ne.s32.totalorder %v339, 0
    %vm356 = vcmp.ne.s32.totalorder %v340, 0
    %vm357 = vcmp.ne.s32.totalorder %v341, 0
    %vm358 = vcmp.ne.s32.totalorder %v342, 0
    %vm359 = vcmp.ne.s32.totalorder %v343, 0
    %vm360 = vcmp.ne.s32.totalorder %v344, 0
    %vm361 = vcmp.ne.s32.totalorder %v345, 0
    %vm362 = vcmp.ne.s32.totalorder %v346, 0
    %vm363 = vcmp.ne.s32.totalorder %v331, 7
    %vm364 = vcmp.ne.s32.totalorder %v332, 7
    %vm365 = vcmp.ne.s32.totalorder %v333, 7
    %vm366 = vcmp.ne.s32.totalorder %v334, 7
    %vm367 = vcmp.ne.s32.totalorder %v335, 7
    %vm368 = vcmp.ne.s32.totalorder %v336, 7
    %vm369 = vcmp.ne.s32.totalorder %v337, 7
    %vm370 = vcmp.ne.s32.totalorder %v338, 7
    %vm371 = vcmp.ne.s32.totalorder %v339, 7
    %vm372 = vcmp.ne.s32.totalorder %v340, 7
    %vm373 = vcmp.ne.s32.totalorder %v341, 7
    %vm374 = vcmp.ne.s32.totalorder %v342, 7
    %vm375 = vcmp.ne.s32.totalorder %v343, 7
    %vm376 = vcmp.ne.s32.totalorder %v344, 7
    %vm377 = vcmp.ne.s32.totalorder %v345, 7
    %vm378 = vcmp.ne.s32.totalorder %v346, 7
    %v379 = vld [vmem:[%s1] sm:$0xf]
    %v380 = vld [vmem:[%s1 + $0x4] sm:$0xf]
    %v381 = vld [vmem:[%s1 + $0x8] sm:$0xf]
    %v382 = vld [vmem:[%s1 + $0xc] sm:$0xf]
    %v383 = vld [vmem:[%s1 + $0x10] sm:$0xf]
    %v384 = vld [vmem:[%s1 + $0x14] sm:$0xf]
    %v385 = vld [vmem:[%s1 + $0x18] sm:$0xf]
    %v386 = vld [vmem:[%s1 + $0x1c] sm:$0xf]
    %v387 = vld [vmem:[%s1 + $0x20] sm:$0xf]
    %v388 = vld [vmem:[%s1 + $0x24] sm:$0xf]
    %v389 = vld [vmem:[%s1 + $0x28] sm:$0xf]
    %v390 = vld [vmem:[%s1 + $0x2c] sm:$0xf]
    %v391 = vld [vmem:[%s1 + $0x30] sm:$0xf]
    %v392 = vld [vmem:[%s1 + $0x34] sm:$0xf]
    %v393 = vld [vmem:[%s1 + $0x38] sm:$0xf]
    %v394 = vld [vmem:[%s1 + $0x3c] sm:$0xf]
    %v395 = vld [vmem:[%s3] sm:$0xf]
    %v396 = vld [vmem:[%s3 + $0x4] sm:$0xf]
    %v397 = vld [vmem:[%s3 + $0x8] sm:$0xf]
    %v398 = vld [vmem:[%s3 + $0xc] sm:$0xf]
    %v399 = vld [vmem:[%s3 + $0x10] sm:$0xf]
    %v400 = vld [vmem:[%s3 + $0x14] sm:$0xf]
    %v401 = vld [vmem:[%s3 + $0x18] sm:$0xf]
    %v402 = vld [vmem:[%s3 + $0x1c] sm:$0xf]
    %v403 = vld [vmem:[%s3 + $0x20] sm:$0xf]
    %v404 = vld [vmem:[%s3 + $0x24] sm:$0xf]
    %v405 = vld [vmem:[%s3 + $0x28] sm:$0xf]
    %v406 = vld [vmem:[%s3 + $0x2c] sm:$0xf]
    %v407 = vld [vmem:[%s3 + $0x30] sm:$0xf]
    %v408 = vld [vmem:[%s3 + $0x34] sm:$0xf]
    %v409 = vld [vmem:[%s3 + $0x38] sm:$0xf]
    %v410 = vld [vmem:[%s3 + $0x3c] sm:$0xf]
    %v411 = vunpack.c.l.bf16 %v379
    %v412 = vunpack.c.l.bf16 %v380
    %v413 = vunpack.c.l.bf16 %v381
    %v414 = vunpack.c.l.bf16 %v382
    %v415 = vunpack.c.l.bf16 %v383
    %v416 = vunpack.c.l.bf16 %v384
    %v417 = vunpack.c.l.bf16 %v385
    %v418 = vunpack.c.l.bf16 %v386
    %v419 = vunpack.c.l.bf16 %v387
    %v420 = vunpack.c.l.bf16 %v388
    %v421 = vunpack.c.l.bf16 %v389
    %v422 = vunpack.c.l.bf16 %v390
    %v423 = vunpack.c.l.bf16 %v391
    %v424 = vunpack.c.l.bf16 %v392
    %v425 = vunpack.c.l.bf16 %v393
    %v426 = vunpack.c.l.bf16 %v394
    %vm427 = vcmask 523264
    %v428 = vsel %vm427, %v411, 0.0
    %v429 = vsel %vm427, %v412, 0.0
    %v430 = vadd.f32 %v428, %v429
    %v431 = vsel %vm427, %v413, 0.0
    %v432 = vadd.f32 %v430, %v431
    %v433 = vsel %vm427, %v414, 0.0
    %v434 = vadd.f32 %v432, %v433
    %v435 = vsel %vm427, %v415, 0.0
    %v436 = vadd.f32 %v434, %v435
    %v437 = vsel %vm427, %v416, 0.0
    %v438 = vadd.f32 %v436, %v437
    %v439 = vsel %vm427, %v417, 0.0
    %v440 = vadd.f32 %v438, %v439
    %v441 = vsel %vm427, %v418, 0.0
    %v442 = vadd.f32 %v440, %v441
    %v443 = vrot.slane %v442, 4
    %v444 = vadd.f32 %v442, %v443
    %v445 = vrot.slane %v444, 2
    %v446 = vadd.f32 %v444, %v445
    %v447 = vrot.slane %v446, 1
    %v448 = vadd.f32 %v446, %v447
    %v449 = vsel %vm427, %v419, 0.0
    %v450 = vsel %vm427, %v420, 0.0
    %v451 = vadd.f32 %v449, %v450
    %v452 = vsel %vm427, %v421, 0.0
    %v453 = vadd.f32 %v451, %v452
    %v454 = vsel %vm427, %v422, 0.0
    %v455 = vadd.f32 %v453, %v454
    %v456 = vsel %vm427, %v423, 0.0
    %v457 = vadd.f32 %v455, %v456
    %v458 = vsel %vm427, %v424, 0.0
    %v459 = vadd.f32 %v457, %v458
    %v460 = vsel %vm427, %v425, 0.0
    %v461 = vadd.f32 %v459, %v460
    %v462 = vsel %vm427, %v426, 0.0
    %v463 = vadd.f32 %v461, %v462
    %v464 = vrot.slane %v463, 4
    %v465 = vadd.f32 %v463, %v464
    %v466 = vrot.slane %v465, 2
    %v467 = vadd.f32 %v465, %v466
    %v468 = vrot.slane %v467, 1
    %v469 = vadd.f32 %v467, %v468
    %v470 = vmul.f32 %v448, 0.015625
    %v471 = vmul.f32 %v469, 0.015625
    %v472 = vld [vmem:[%s15] sm:$0xff]
    %v473 = vld [vmem:[%s15 + $0x8] sm:$0xff]
    %v474 = vld [vmem:[%s15 + $0x10] sm:$0xff]
    %v475 = vld [vmem:[%s15 + $0x18] sm:$0xff]
    %v476 = vld [vmem:[%s15 + $0x20] sm:$0xff]
    %v477 = vld [vmem:[%s15 + $0x28] sm:$0xff]
    %v478 = vld [vmem:[%s15 + $0x30] sm:$0xff]
    %v479 = vld [vmem:[%s15 + $0x38] sm:$0xff]
    %vm482 = vcmask 1041409
    %v483 = vsel %vm482, %v471, %v470
    %v484 = vsel %vm427, %v483, 0
    %486 = vmatprep.subr.mxu0 0.0
    %487 = vmatpush1.msra.mxu0 %v472
    %488 = vmatprep.subr.mxu0 0.0
    %489 = vmatpush1.msra.mxu0 %v473
    %490 = vmatprep.subr.mxu0 0.0
    %491 = vmatpush1.msra.mxu0 %v474
    %492 = vmatprep.subr.mxu0 0.0
    %493 = vmatpush1.msra.mxu0 %v475
    %494 = vmatprep.subr.mxu0 0.0
    %495 = vmatpush1.msra.mxu0 %v476
    %496 = vmatprep.subr.mxu0 0.0
    %497 = vmatpush1.msra.mxu0 %v477
    %498 = vmatprep.subr.mxu0 0.0
    %499 = vmatpush1.msra.mxu0 %v478
    %500 = vmatprep.subr.mxu0 0.0
    %501 = vmatpush1.msra.mxu0 %v479
    %502 = vmatprep.subr.mxu0 0.0
    %503 = vmatpush1.msra.mxu0 0.0
    %504 = vmatprep.subr.mxu0 0.0
    %505 = vmatpush1.msra.mxu0 0.0
    %506 = vmatprep.subr.mxu0 0.0
    %507 = vmatpush1.msra.mxu0 0.0
    %508 = vmatprep.subr.mxu0 0.0
    %509 = vmatpush1.msra.mxu0 0.0
    %510 = vmatprep.subr.mxu0 0.0
    %511 = vmatpush1.msra.mxu0 0.0
    %512 = vmatprep.subr.mxu0 0.0
    %513 = vmatpush1.msra.mxu0 0.0
    %514 = vmatprep.subr.mxu0 0.0
    %515 = vmatpush1.msra.mxu0 0.0
    %516 = vmatprep.subr.mxu0 0.0
    %517 = vmatpush1.msra.mxu0 0.0
    %518 = vmatprep.subr.mxu0 0.0
    %519 = vmatpush1.msra.mxu0 0.0
    %520 = vmatprep.subr.mxu0 0.0
    %521 = vmatpush1.msra.mxu0 0.0
    %522 = vmatprep.subr.mxu0 0.0
    %523 = vmatpush1.msra.mxu0 0.0
    %524 = vmatprep.subr.mxu0 0.0
    %525 = vmatpush1.msra.mxu0 0.0
    %526 = vmatprep.subr.mxu0 0.0
    %527 = vmatpush1.msra.mxu0 0.0
    %528 = vmatprep.subr.mxu0 0.0
    %529 = vmatpush1.msra.mxu0 0.0
    %530 = vmatprep.subr.mxu0 0.0
    %531 = vmatpush1.msra.mxu0 0.0
    %532 = vmatprep.subr.mxu0 0.0
    %533 = vmatpush1.msra.mxu0 0.0
    %534 = vmatprep.subr.mxu0 0.0
    %535 = vmatpush1.msra.mxu0 0.0
    %536 = vmatprep.subr.mxu0 0.0
    %537 = vmatpush1.msra.mxu0 0.0
    %538 = vmatprep.subr.mxu0 0.0
    %539 = vmatpush1.msra.mxu0 0.0
    %540 = vmatprep.subr.mxu0 0.0
    %541 = vmatpush1.msra.mxu0 0.0
    %542 = vmatprep.subr.mxu0 0.0
    %543 = vmatpush1.msra.mxu0 0.0
    %544 = vmatprep.subr.mxu0 0.0
    %545 = vmatpush1.msra.mxu0 0.0
    %546 = vmatprep.subr.mxu0 0.0
    %547 = vmatpush1.msra.mxu0 0.0
    %548 = vmatprep.subr.mxu0 0.0
    %549 = vmatpush1.msra.mxu0 0.0
    %550 = vmatprep.mubr.f32.mxu0 0.0
    %551 = vmatmul.mubr.f32.gmra.mrb[0].mxu0 %v484
    %v552 = vpop.f32.mrb[0].mxu0
    %v553 = vadd.f32 0.0, %v552
    %v554 = vpop.f32.mrb[0].mxu0
    %555 = vdwg.mxu0
    %v558 = vunpack.c.l.s4 1966171168
    %v559 = vunpack.c.0.s8 %v558
    %v560 = vlaneseq
    %v561 = vshrl.u32 %v560, 7
    %v562 = vsub.s32 %v559, %v561
    %v563 = vrot.slane %v553, %v562
    %v564 = vcombine.high %v563, %v563
    %v566 = vunpack.c.l.s4 1966171168
    %v567 = vunpack.c.0.s8 %v566
    %v568 = vlaneseq
    %v569 = vshrl.u32 %v568, 7
    %v570 = vsub.s32 %v567, %v569
    %v571 = vrot.slane %v563, %v570
    %v573 = vunpack.c.l.s4 1966171168
    %v574 = vunpack.c.0.s8 %v573
    %v575 = vlaneseq
    %v576 = vshrl.u32 %v575, 7
    %v577 = vsub.s32 %v574, %v576
    %v578 = vrot.slane %v564, %v577
    %v579 = vlaneseq
    %v580 = vshrl.u32 %v579, 7
    %v581 = vsub.s32 0, %v580
    %v582 = vrot.slane %v571, %v581
    %v583 = vlaneseq
    %v584 = vshrl.u32 %v583, 7
    %v585 = vsub.s32 0, %v584
    %v586 = vrot.slane %v578, %v585
    %v589 = vsub.f32 %v411, %v582
    %v590 = vsub.f32 %v412, %v582
    %v591 = vsub.f32 %v413, %v582
    %v592 = vsub.f32 %v414, %v582
    %v593 = vsub.f32 %v415, %v582
    %v594 = vsub.f32 %v416, %v582
    %v595 = vsub.f32 %v417, %v582
    %v596 = vsub.f32 %v418, %v582
    %v597 = vsub.f32 %v419, %v586
    %v598 = vsub.f32 %v420, %v586
    %v599 = vsub.f32 %v421, %v586
    %v600 = vsub.f32 %v422, %v586
    %v601 = vsub.f32 %v423, %v586
    %v602 = vsub.f32 %v424, %v586
    %v603 = vsub.f32 %v425, %v586
    %v604 = vsub.f32 %v426, %v586
    %v605 = vmul.f32 %v589, %v589
    %v606 = vmul.f32 %v590, %v590
    %v607 = vmul.f32 %v591, %v591
    %v608 = vmul.f32 %v592, %v592
    %v609 = vmul.f32 %v593, %v593
    %v610 = vmul.f32 %v594, %v594
    %v611 = vmul.f32 %v595, %v595
    %v612 = vmul.f32 %v596, %v596
    %v613 = vmul.f32 %v597, %v597
    %v614 = vmul.f32 %v598, %v598
    %v615 = vmul.f32 %v599, %v599
    %v616 = vmul.f32 %v600, %v600
    %v617 = vmul.f32 %v601, %v601
    %v618 = vmul.f32 %v602, %v602
    %v619 = vmul.f32 %v603, %v603
    %v620 = vmul.f32 %v604, %v604
    %v621 = vsel %vm427, %v605, 0.0
    %v622 = vsel %vm427, %v606, 0.0
    %v623 = vadd.f32 %v621, %v622
    %v624 = vsel %vm427, %v607, 0.0
    %v625 = vadd.f32 %v623, %v624
    %v626 = vsel %vm427, %v608, 0.0
    %v627 = vadd.f32 %v625, %v626
    %v628 = vsel %vm427, %v609, 0.0
    %v629 = vadd.f32 %v627, %v628
    %v630 = vsel %vm427, %v610, 0.0
    %v631 = vadd.f32 %v629, %v630
    %v632 = vsel %vm427, %v611, 0.0
    %v633 = vadd.f32 %v631, %v632
    %v634 = vsel %vm427, %v612, 0.0
    %v635 = vadd.f32 %v633, %v634
    %v636 = vrot.slane %v635, 4
    %v637 = vadd.f32 %v635, %v636
    %v638 = vrot.slane %v637, 2
    %v639 = vadd.f32 %v637, %v638
    %v640 = vrot.slane %v639, 1
    %v641 = vadd.f32 %v639, %v640
    %v642 = vsel %vm427, %v613, 0.0
    %v643 = vsel %vm427, %v614, 0.0
    %v644 = vadd.f32 %v642, %v643
    %v645 = vsel %vm427, %v615, 0.0
    %v646 = vadd.f32 %v644, %v645
    %v647 = vsel %vm427, %v616, 0.0
    %v648 = vadd.f32 %v646, %v647
    %v649 = vsel %vm427, %v617, 0.0
    %v650 = vadd.f32 %v648, %v649
    %v651 = vsel %vm427, %v618, 0.0
    %v652 = vadd.f32 %v650, %v651
    %v653 = vsel %vm427, %v619, 0.0
    %v654 = vadd.f32 %v652, %v653
    %v655 = vsel %vm427, %v620, 0.0
    %v656 = vadd.f32 %v654, %v655
    %v657 = vrot.slane %v656, 4
    %v658 = vadd.f32 %v656, %v657
    %v659 = vrot.slane %v658, 2
    %v660 = vadd.f32 %v658, %v659
    %v661 = vrot.slane %v660, 1
    %v662 = vadd.f32 %v660, %v661
    %v663 = vmul.f32 %v641, 0.015625
    %v664 = vmul.f32 %v662, 0.015625
    %v667 = vsel %vm482, %v664, %v663
    %v668 = vsel %vm427, %v667, 0
    %670 = vmatprep.subr.mxu0 0.0
    %671 = vmatpush1.msra.mxu0 %v472
    %672 = vmatprep.subr.mxu0 0.0
    %673 = vmatpush1.msra.mxu0 %v473
    %674 = vmatprep.subr.mxu0 0.0
    %675 = vmatpush1.msra.mxu0 %v474
    %676 = vmatprep.subr.mxu0 0.0
    %677 = vmatpush1.msra.mxu0 %v475
    %678 = vmatprep.subr.mxu0 0.0
    %679 = vmatpush1.msra.mxu0 %v476
    %680 = vmatprep.subr.mxu0 0.0
    %681 = vmatpush1.msra.mxu0 %v477
    %682 = vmatprep.subr.mxu0 0.0
    %683 = vmatpush1.msra.mxu0 %v478
    %684 = vmatprep.subr.mxu0 0.0
    %685 = vmatpush1.msra.mxu0 %v479
    %686 = vmatprep.subr.mxu0 0.0
    %687 = vmatpush1.msra.mxu0 0.0
    %688 = vmatprep.subr.mxu0 0.0
    %689 = vmatpush1.msra.mxu0 0.0
    %690 = vmatprep.subr.mxu0 0.0
    %691 = vmatpush1.msra.mxu0 0.0
    %692 = vmatprep.subr.mxu0 0.0
    %693 = vmatpush1.msra.mxu0 0.0
    %694 = vmatprep.subr.mxu0 0.0
    %695 = vmatpush1.msra.mxu0 0.0
    %696 = vmatprep.subr.mxu0 0.0
    %697 = vmatpush1.msra.mxu0 0.0
    %698 = vmatprep.subr.mxu0 0.0
    %699 = vmatpush1.msra.mxu0 0.0
    %700 = vmatprep.subr.mxu0 0.0
    %701 = vmatpush1.msra.mxu0 0.0
    %702 = vmatprep.subr.mxu0 0.0
    %703 = vmatpush1.msra.mxu0 0.0
    %704 = vmatprep.subr.mxu0 0.0
    %705 = vmatpush1.msra.mxu0 0.0
    %706 = vmatprep.subr.mxu0 0.0
    %707 = vmatpush1.msra.mxu0 0.0
    %708 = vmatprep.subr.mxu0 0.0
    %709 = vmatpush1.msra.mxu0 0.0
    %710 = vmatprep.subr.mxu0 0.0
    %711 = vmatpush1.msra.mxu0 0.0
    %712 = vmatprep.subr.mxu0 0.0
    %713 = vmatpush1.msra.mxu0 0.0
    %714 = vmatprep.subr.mxu0 0.0
    %715 = vmatpush1.msra.mxu0 0.0
    %716 = vmatprep.subr.mxu0 0.0
    %717 = vmatpush1.msra.mxu0 0.0
    %718 = vmatprep.subr.mxu0 0.0
    %719 = vmatpush1.msra.mxu0 0.0
    %720 = vmatprep.subr.mxu0 0.0
    %721 = vmatpush1.msra.mxu0 0.0
    %722 = vmatprep.subr.mxu0 0.0
    %723 = vmatpush1.msra.mxu0 0.0
    %724 = vmatprep.subr.mxu0 0.0
    %725 = vmatpush1.msra.mxu0 0.0
    %726 = vmatprep.subr.mxu0 0.0
    %727 = vmatpush1.msra.mxu0 0.0
    %728 = vmatprep.subr.mxu0 0.0
    %729 = vmatpush1.msra.mxu0 0.0
    %730 = vmatprep.subr.mxu0 0.0
    %731 = vmatpush1.msra.mxu0 0.0
    %732 = vmatprep.subr.mxu0 0.0
    %733 = vmatpush1.msra.mxu0 0.0
    %734 = vmatprep.mubr.f32.mxu0 0.0
    %735 = vmatmul.mubr.f32.gmra.mrb[0].mxu0 %v668
    %v736 = vpop.f32.mrb[0].mxu0
    %v737 = vadd.f32 1e-05, %v736
    %v738 = vpop.f32.mrb[0].mxu0
    %739 = vdwg.mxu0
    %v740 = vrsqrt.pop %v737
    %v743 = vunpack.c.l.s4 1966171168
    %v744 = vunpack.c.0.s8 %v743
    %v745 = vlaneseq
    %v746 = vshrl.u32 %v745, 7
    %v747 = vsub.s32 %v744, %v746
    %v748 = vrot.slane %v740, %v747
    %v749 = vcombine.high %v748, %v748
    %v751 = vunpack.c.l.s4 1966171168
    %v752 = vunpack.c.0.s8 %v751
    %v753 = vlaneseq
    %v754 = vshrl.u32 %v753, 7
    %v755 = vsub.s32 %v752, %v754
    %v756 = vrot.slane %v748, %v755
    %v758 = vunpack.c.l.s4 1966171168
    %v759 = vunpack.c.0.s8 %v758
    %v760 = vlaneseq
    %v761 = vshrl.u32 %v760, 7
    %v762 = vsub.s32 %v759, %v761
    %v763 = vrot.slane %v749, %v762
    %v764 = vlaneseq
    %v765 = vshrl.u32 %v764, 7
    %v766 = vsub.s32 0, %v765
    %v767 = vrot.slane %v756, %v766
    %v768 = vlaneseq
    %v769 = vshrl.u32 %v768, 7
    %v770 = vsub.s32 0, %v769
    %v771 = vrot.slane %v763, %v770
    %v774 = vmul.f32 %v589, %v767
    %v775 = vmul.f32 %v590, %v767
    %v776 = vmul.f32 %v591, %v767
    %v777 = vmul.f32 %v592, %v767
    %v778 = vmul.f32 %v593, %v767
    %v779 = vmul.f32 %v594, %v767
    %v780 = vmul.f32 %v595, %v767
    %v781 = vmul.f32 %v596, %v767
    %v782 = vmul.f32 %v597, %v771
    %v783 = vmul.f32 %v598, %v771
    %v784 = vmul.f32 %v599, %v771
    %v785 = vmul.f32 %v600, %v771
    %v786 = vmul.f32 %v601, %v771
    %v787 = vmul.f32 %v602, %v771
    %v788 = vmul.f32 %v603, %v771
    %v789 = vmul.f32 %v604, %v771
    %v790 = vld [vmem:[%s7] sm:$0x1]
    %v792 = vlaneseq
    %v793 = vshrl.u32 %v792, 7
    %v794 = vsub.s32 0, %v793
    %v795 = vrot.slane %v790, %v794
    %v797 = vmul.f32 %v774, %v795
    %v798 = vmul.f32 %v775, %v795
    %v799 = vmul.f32 %v776, %v795
    %v800 = vmul.f32 %v777, %v795
    %v801 = vmul.f32 %v778, %v795
    %v802 = vmul.f32 %v779, %v795
    %v803 = vmul.f32 %v780, %v795
    %v804 = vmul.f32 %v781, %v795
    %v805 = vmul.f32 %v782, %v795
    %v806 = vmul.f32 %v783, %v795
    %v807 = vmul.f32 %v784, %v795
    %v808 = vmul.f32 %v785, %v795
    %v809 = vmul.f32 %v786, %v795
    %v810 = vmul.f32 %v787, %v795
    %v811 = vmul.f32 %v788, %v795
    %v812 = vmul.f32 %v789, %v795
    %v813 = vld [vmem:[%s9] sm:$0x1]
    %v815 = vlaneseq
    %v816 = vshrl.u32 %v815, 7
    %v817 = vsub.s32 0, %v816
    %v818 = vrot.slane %v813, %v817
    %v820 = vadd.f32 %v797, %v818
    %v821 = vadd.f32 %v798, %v818
    %v822 = vadd.f32 %v799, %v818
    %v823 = vadd.f32 %v800, %v818
    %v824 = vadd.f32 %v801, %v818
    %v825 = vadd.f32 %v802, %v818
    %v826 = vadd.f32 %v803, %v818
    %v827 = vadd.f32 %v804, %v818
    %v828 = vadd.f32 %v805, %v818
    %v829 = vadd.f32 %v806, %v818
    %v830 = vadd.f32 %v807, %v818
    %v831 = vadd.f32 %v808, %v818
    %v832 = vadd.f32 %v809, %v818
    %v833 = vadd.f32 %v810, %v818
    %v834 = vadd.f32 %v811, %v818
    %v835 = vadd.f32 %v812, %v818
    %v836 = vxor.u32 %v820, 2147483648
    %v837 = vxor.u32 %v821, 2147483648
    %v838 = vxor.u32 %v822, 2147483648
    %v839 = vxor.u32 %v823, 2147483648
    %v840 = vxor.u32 %v824, 2147483648
    %v841 = vxor.u32 %v825, 2147483648
    %v842 = vxor.u32 %v826, 2147483648
    %v843 = vxor.u32 %v827, 2147483648
    %v844 = vxor.u32 %v828, 2147483648
    %v845 = vxor.u32 %v829, 2147483648
    %v846 = vxor.u32 %v830, 2147483648
    %v847 = vxor.u32 %v831, 2147483648
    %v848 = vxor.u32 %v832, 2147483648
    %v849 = vxor.u32 %v833, 2147483648
    %v850 = vxor.u32 %v834, 2147483648
    %v851 = vxor.u32 %v835, 2147483648
    %v852 = vmul.f32 %v836, 1.442695
    %v853 = vpow.pop %v852
    %v854 = vmul.f32 %v837, 1.442695
    %v855 = vpow.pop %v854
    %v856 = vmul.f32 %v838, 1.442695
    %v857 = vpow.pop %v856
    %v858 = vmul.f32 %v839, 1.442695
    %v859 = vpow.pop %v858
    %v860 = vmul.f32 %v840, 1.442695
    %v861 = vpow.pop %v860
    %v862 = vmul.f32 %v841, 1.442695
    %v863 = vpow.pop %v862
    %v864 = vmul.f32 %v842, 1.442695
    %v865 = vpow.pop %v864
    %v866 = vmul.f32 %v843, 1.442695
    %v867 = vpow.pop %v866
    %v868 = vmul.f32 %v844, 1.442695
    %v869 = vpow.pop %v868
    %v870 = vmul.f32 %v845, 1.442695
    %v871 = vpow.pop %v870
    %v872 = vmul.f32 %v846, 1.442695
    %v873 = vpow.pop %v872
    %v874 = vmul.f32 %v847, 1.442695
    %v875 = vpow.pop %v874
    %v876 = vmul.f32 %v848, 1.442695
    %v877 = vpow.pop %v876
    %v878 = vmul.f32 %v849, 1.442695
    %v879 = vpow.pop %v878
    %v880 = vmul.f32 %v850, 1.442695
    %v881 = vpow.pop %v880
    %v882 = vmul.f32 %v851, 1.442695
    %v883 = vpow.pop %v882
    %v884 = vadd.f32 %v853, 1.0
    %v885 = vadd.f32 %v855, 1.0
    %v886 = vadd.f32 %v857, 1.0
    %v887 = vadd.f32 %v859, 1.0
    %v888 = vadd.f32 %v861, 1.0
    %v889 = vadd.f32 %v863, 1.0
    %v890 = vadd.f32 %v865, 1.0
    %v891 = vadd.f32 %v867, 1.0
    %v892 = vadd.f32 %v869, 1.0
    %v893 = vadd.f32 %v871, 1.0
    %v894 = vadd.f32 %v873, 1.0
    %v895 = vadd.f32 %v875, 1.0
    %v896 = vadd.f32 %v877, 1.0
    %v897 = vadd.f32 %v879, 1.0
    %v898 = vadd.f32 %v881, 1.0
    %v899 = vadd.f32 %v883, 1.0
    %v900 = vrcp.pop %v884
    %v901 = vmul.f32 1.0, %v900
    %v902 = vrcp.pop %v885
    %v903 = vmul.f32 1.0, %v902
    %v904 = vrcp.pop %v886
    %v905 = vmul.f32 1.0, %v904
    %v906 = vrcp.pop %v887
    %v907 = vmul.f32 1.0, %v906
    %v908 = vrcp.pop %v888
    %v909 = vmul.f32 1.0, %v908
    %v910 = vrcp.pop %v889
    %v911 = vmul.f32 1.0, %v910
    %v912 = vrcp.pop %v890
    %v913 = vmul.f32 1.0, %v912
    %v914 = vrcp.pop %v891
    %v915 = vmul.f32 1.0, %v914
    %v916 = vrcp.pop %v892
    %v917 = vmul.f32 1.0, %v916
    %v918 = vrcp.pop %v893
    %v919 = vmul.f32 1.0, %v918
    %v920 = vrcp.pop %v894
    %v921 = vmul.f32 1.0, %v920
    %v922 = vrcp.pop %v895
    %v923 = vmul.f32 1.0, %v922
    %v924 = vrcp.pop %v896
    %v925 = vmul.f32 1.0, %v924
    %v926 = vrcp.pop %v897
    %v927 = vmul.f32 1.0, %v926
    %v928 = vrcp.pop %v898
    %v929 = vmul.f32 1.0, %v928
    %v930 = vrcp.pop %v899
    %v931 = vmul.f32 1.0, %v930
    %v932 = vmul.f32 %v820, %v901
    %v933 = vmul.f32 %v821, %v903
    %v934 = vmul.f32 %v822, %v905
    %v935 = vmul.f32 %v823, %v907
    %v936 = vmul.f32 %v824, %v909
    %v937 = vmul.f32 %v825, %v911
    %v938 = vmul.f32 %v826, %v913
    %v939 = vmul.f32 %v827, %v915
    %v940 = vmul.f32 %v828, %v917
    %v941 = vmul.f32 %v829, %v919
    %v942 = vmul.f32 %v830, %v921
    %v943 = vmul.f32 %v831, %v923
    %v944 = vmul.f32 %v832, %v925
    %v945 = vmul.f32 %v833, %v927
    %v946 = vmul.f32 %v834, %v929
    %v947 = vmul.f32 %v835, %v931
    %v948 = vpack.c.bf16 %v933, %v932
    %v949 = vpack.c.bf16 %v935, %v934
    %v950 = vpack.c.bf16 %v937, %v936
    %v951 = vpack.c.bf16 %v939, %v938
    %v952 = vpack.c.bf16 %v941, %v940
    %v953 = vpack.c.bf16 %v943, %v942
    %v954 = vpack.c.bf16 %v945, %v944
    %v955 = vpack.c.bf16 %v947, %v946
    %vm956 = vsmask.f32 256
    %v958 = vshrl.u32 %v948, 16
    %v960 = vrot.slane %v958, 7
    %v961 = vshll.u32 %v948, 16
    %v963 = vor.u32 %v960, %v961
    %v965 = vshrl.u32 %v949, 16
    %v967 = vrot.slane %v965, 7
    %v968 = vshll.u32 %v949, 16
    %v970 = vor.u32 %v967, %v968
    %v971 = vsel %vm956, %v960, %v970
    %v973 = vshrl.u32 %v950, 16
    %v975 = vrot.slane %v973, 7
    %v976 = vshll.u32 %v950, 16
    %v978 = vor.u32 %v975, %v976
    %v979 = vsel %vm956, %v967, %v978
    %v981 = vshrl.u32 %v951, 16
    %v983 = vrot.slane %v981, 7
    %v984 = vshll.u32 %v951, 16
    %v986 = vor.u32 %v983, %v984
    %v987 = vsel %vm956, %v975, %v986
    %v989 = vshrl.u32 %v952, 16
    %v991 = vrot.slane %v989, 7
    %v992 = vshll.u32 %v952, 16
    %v994 = vor.u32 %v991, %v992
    %v995 = vsel %vm956, %v983, %v994
    %v997 = vshrl.u32 %v953, 16
    %v999 = vrot.slane %v997, 7
    %v1000 = vshll.u32 %v953, 16
    %v1002 = vor.u32 %v999, %v1000
    %v1003 = vsel %vm956, %v991, %v1002
    %v1005 = vshrl.u32 %v954, 16
    %v1007 = vrot.slane %v1005, 7
    %v1008 = vshll.u32 %v954, 16
    %v1010 = vor.u32 %v1007, %v1008
    %v1011 = vsel %vm956, %v999, %v1010
    %v1013 = vshrl.u32 %v955, 16
    %v1015 = vrot.slane %v1013, 7
    %v1016 = vshll.u32 %v955, 16
    %v1018 = vor.u32 %v1015, %v1016
    %v1019 = vsel %vm956, %v1007, %v1018
    %vm1028 = vcmask 1040384
    %vm1029 = vmand %vm1028, %vm956
    %v1030 = vsel %vm1029, 0, %v963
    %v1031 = vsel %vm347, 1, 0
    %v1032 = vsel %vm348, 1, 0
    %v1033 = vsel %vm349, 1, 0
    %v1034 = vsel %vm350, 1, 0
    %v1035 = vsel %vm351, 1, 0
    %v1036 = vsel %vm352, 1, 0
    %v1037 = vsel %vm353, 1, 0
    %v1038 = vsel %vm354, 1, 0
    %v1039 = vsel %vm355, 1, 0
    %v1040 = vsel %vm356, 1, 0
    %v1041 = vsel %vm357, 1, 0
    %v1042 = vsel %vm358, 1, 0
    %v1043 = vsel %vm359, 1, 0
    %v1044 = vsel %vm360, 1, 0
    %v1045 = vsel %vm361, 1, 0
    %v1046 = vsel %vm362, 1, 0
    %vm1047 = vcmp.eq.s32.totalorder %v1031, 1
    %vm1048 = vcmp.eq.s32.totalorder %v1032, 1
    %vm1049 = vcmp.eq.s32.totalorder %v1033, 1
    %vm1050 = vcmp.eq.s32.totalorder %v1034, 1
    %vm1051 = vcmp.eq.s32.totalorder %v1035, 1
    %vm1052 = vcmp.eq.s32.totalorder %v1036, 1
    %vm1053 = vcmp.eq.s32.totalorder %v1037, 1
    %vm1054 = vcmp.eq.s32.totalorder %v1038, 1
    %vm1055 = vcmp.eq.s32.totalorder %v1039, 1
    %vm1056 = vcmp.eq.s32.totalorder %v1040, 1
    %vm1057 = vcmp.eq.s32.totalorder %v1041, 1
    %vm1058 = vcmp.eq.s32.totalorder %v1042, 1
    %vm1059 = vcmp.eq.s32.totalorder %v1043, 1
    %vm1060 = vcmp.eq.s32.totalorder %v1044, 1
    %vm1061 = vcmp.eq.s32.totalorder %v1045, 1
    %vm1062 = vcmp.eq.s32.totalorder %v1046, 1
    %vm1063 = vmpackc.low %vm1047, %vm1047
    %vm1064 = vmpackc.low %vm1048, %vm1048
    %vm1065 = vmpackc.low %vm1049, %vm1049
    %vm1066 = vmpackc.low %vm1050, %vm1050
    %vm1067 = vmpackc.low %vm1051, %vm1051
    %vm1068 = vmpackc.low %vm1052, %vm1052
    %vm1069 = vmpackc.low %vm1053, %vm1053
    %vm1070 = vmpackc.low %vm1054, %vm1054
    %vm1071 = vmpackc.low %vm1055, %vm1055
    %vm1072 = vmpackc.low %vm1056, %vm1056
    %vm1073 = vmpackc.low %vm1057, %vm1057
    %vm1074 = vmpackc.low %vm1058, %vm1058
    %vm1075 = vmpackc.low %vm1059, %vm1059
    %vm1076 = vmpackc.low %vm1060, %vm1060
    %vm1077 = vmpackc.low %vm1061, %vm1061
    %vm1078 = vmpackc.low %vm1062, %vm1062
    %v1079 = vsel %vm1063, 65537, 0
    %v1080 = vsel %vm1064, 65537, 0
    %v1081 = vsel %vm1065, 65537, 0
    %v1082 = vsel %vm1066, 65537, 0
    %v1083 = vsel %vm1067, 65537, 0
    %v1084 = vsel %vm1068, 65537, 0
    %v1085 = vsel %vm1069, 65537, 0
    %v1086 = vsel %vm1070, 65537, 0
    %v1087 = vsel %vm1071, 65537, 0
    %v1088 = vsel %vm1072, 65537, 0
    %v1089 = vsel %vm1073, 65537, 0
    %v1090 = vsel %vm1074, 65537, 0
    %v1091 = vsel %vm1075, 65537, 0
    %v1092 = vsel %vm1076, 65537, 0
    %v1093 = vsel %vm1077, 65537, 0
    %v1094 = vsel %vm1078, 65537, 0
    %v1095 = vunpack.c.l.b16 %v1079
    %v1096 = vunpack.c.l.b16 %v1080
    %v1097 = vunpack.c.l.b16 %v1081
    %v1098 = vunpack.c.l.b16 %v1082
    %v1099 = vunpack.c.l.b16 %v1083
    %v1100 = vunpack.c.l.b16 %v1084
    %v1101 = vunpack.c.l.b16 %v1085
    %v1102 = vunpack.c.l.b16 %v1086
    %v1103 = vunpack.c.l.b16 %v1087
    %v1104 = vunpack.c.l.b16 %v1088
    %v1105 = vunpack.c.l.b16 %v1089
    %v1106 = vunpack.c.l.b16 %v1090
    %v1107 = vunpack.c.l.b16 %v1091
    %v1108 = vunpack.c.l.b16 %v1092
    %v1109 = vunpack.c.l.b16 %v1093
    %v1110 = vunpack.c.l.b16 %v1094
    %v1111 = vpack.c.b16 %v1096, %v1095
    %v1112 = vpack.c.b16 %v1098, %v1097
    %v1113 = vpack.c.b16 %v1100, %v1099
    %v1114 = vpack.c.b16 %v1102, %v1101
    %v1115 = vpack.c.b16 %v1104, %v1103
    %v1116 = vpack.c.b16 %v1106, %v1105
    %v1117 = vpack.c.b16 %v1108, %v1107
    %v1118 = vpack.c.b16 %v1110, %v1109
    %vm1119 = vcmp.ne.s16.totalorder %v1111, 0
    %vm1120 = vcmp.ne.s16.totalorder %v1112, 0
    %vm1121 = vcmp.ne.s16.totalorder %v1113, 0
    %vm1122 = vcmp.ne.s16.totalorder %v1114, 0
    %vm1123 = vcmp.ne.s16.totalorder %v1115, 0
    %vm1124 = vcmp.ne.s16.totalorder %v1116, 0
    %vm1125 = vcmp.ne.s16.totalorder %v1117, 0
    %vm1126 = vcmp.ne.s16.totalorder %v1118, 0
    %v1127 = vsel %vm1119, %v1030, 0
    %v1128 = vsel %vm1120, %v971, 0
    %v1129 = vsel %vm1121, %v979, 0
    %v1130 = vsel %vm1122, %v987, 0
    %v1131 = vsel %vm1123, %v995, 0
    %v1132 = vsel %vm1124, %v1003, 0
    %v1133 = vsel %vm1125, %v1011, 0
    %v1134 = vsel %vm1126, %v1019, 0
    %vm1135 = vsmask.f32 7424
    %v1136 = vrot.slane %v961, 1
    %v1137 = vor.u32 %v958, %v1136
    %v1138 = vrot.slane %v968, 1
    %v1139 = vsel %vm1135, %v1137, %v1138
    %v1140 = vor.u32 %v965, %v1138
    %v1141 = vrot.slane %v976, 1
    %v1142 = vsel %vm1135, %v1140, %v1141
    %v1143 = vor.u32 %v973, %v1141
    %v1144 = vrot.slane %v984, 1
    %v1145 = vsel %vm1135, %v1143, %v1144
    %v1146 = vor.u32 %v981, %v1144
    %v1147 = vrot.slane %v992, 1
    %v1148 = vsel %vm1135, %v1146, %v1147
    %v1149 = vor.u32 %v989, %v1147
    %v1150 = vrot.slane %v1000, 1
    %v1151 = vsel %vm1135, %v1149, %v1150
    %v1152 = vor.u32 %v997, %v1150
    %v1153 = vrot.slane %v1008, 1
    %v1154 = vsel %vm1135, %v1152, %v1153
    %v1155 = vor.u32 %v1005, %v1153
    %v1156 = vrot.slane %v1016, 1
    %v1157 = vsel %vm1135, %v1155, %v1156
    %v1158 = vor.u32 %v1013, %v1156
    %vm1167 = vcmask 1047552
    %vm1168 = vmand %vm1167, %vm1135
    %v1169 = vsel %vm1168, %v1158, 0
    %v1170 = vsel %vm363, 1, 0
    %v1171 = vsel %vm364, 1, 0
    %v1172 = vsel %vm365, 1, 0
    %v1173 = vsel %vm366, 1, 0
    %v1174 = vsel %vm367, 1, 0
    %v1175 = vsel %vm368, 1, 0
    %v1176 = vsel %vm369, 1, 0
    %v1177 = vsel %vm370, 1, 0
    %v1178 = vsel %vm371, 1, 0
    %v1179 = vsel %vm372, 1, 0
    %v1180 = vsel %vm373, 1, 0
    %v1181 = vsel %vm374, 1, 0
    %v1182 = vsel %vm375, 1, 0
    %v1183 = vsel %vm376, 1, 0
    %v1184 = vsel %vm377, 1, 0
    %v1185 = vsel %vm378, 1, 0
    %vm1186 = vcmp.eq.s32.totalorder %v1170, 1
    %vm1187 = vcmp.eq.s32.totalorder %v1171, 1
    %vm1188 = vcmp.eq.s32.totalorder %v1172, 1
    %vm1189 = vcmp.eq.s32.totalorder %v1173, 1
    %vm1190 = vcmp.eq.s32.totalorder %v1174, 1
    %vm1191 = vcmp.eq.s32.totalorder %v1175, 1
    %vm1192 = vcmp.eq.s32.totalorder %v1176, 1
    %vm1193 = vcmp.eq.s32.totalorder %v1177, 1
    %vm1194 = vcmp.eq.s32.totalorder %v1178, 1
    %vm1195 = vcmp.eq.s32.totalorder %v1179, 1
    %vm1196 = vcmp.eq.s32.totalorder %v1180, 1
    %vm1197 = vcmp.eq.s32.totalorder %v1181, 1
    %vm1198 = vcmp.eq.s32.totalorder %v1182, 1
    %vm1199 = vcmp.eq.s32.totalorder %v1183, 1
    %vm1200 = vcmp.eq.s32.totalorder %v1184, 1
    %vm1201 = vcmp.eq.s32.totalorder %v1185, 1
    %vm1202 = vmpackc.low %vm1186, %vm1186
    %vm1203 = vmpackc.low %vm1187, %vm1187
    %vm1204 = vmpackc.low %vm1188, %vm1188
    %vm1205 = vmpackc.low %vm1189, %vm1189
    %vm1206 = vmpackc.low %vm1190, %vm1190
    %vm1207 = vmpackc.low %vm1191, %vm1191
    %vm1208 = vmpackc.low %vm1192, %vm1192
    %vm1209 = vmpackc.low %vm1193, %vm1193
    %vm1210 = vmpackc.low %vm1194, %vm1194
    %vm1211 = vmpackc.low %vm1195, %vm1195
    %vm1212 = vmpackc.low %vm1196, %vm1196
    %vm1213 = vmpackc.low %vm1197, %vm1197
    %vm1214 = vmpackc.low %vm1198, %vm1198
    %vm1215 = vmpackc.low %vm1199, %vm1199
    %vm1216 = vmpackc.low %vm1200, %vm1200
    %vm1217 = vmpackc.low %vm1201, %vm1201
    %v1218 = vsel %vm1202, 65537, 0
    %v1219 = vsel %vm1203, 65537, 0
    %v1220 = vsel %vm1204, 65537, 0
    %v1221 = vsel %vm1205, 65537, 0
    %v1222 = vsel %vm1206, 65537, 0
    %v1223 = vsel %vm1207, 65537, 0
    %v1224 = vsel %vm1208, 65537, 0
    %v1225 = vsel %vm1209, 65537, 0
    %v1226 = vsel %vm1210, 65537, 0
    %v1227 = vsel %vm1211, 65537, 0
    %v1228 = vsel %vm1212, 65537, 0
    %v1229 = vsel %vm1213, 65537, 0
    %v1230 = vsel %vm1214, 65537, 0
    %v1231 = vsel %vm1215, 65537, 0
    %v1232 = vsel %vm1216, 65537, 0
    %v1233 = vsel %vm1217, 65537, 0
    %v1234 = vunpack.c.l.b16 %v1218
    %v1235 = vunpack.c.l.b16 %v1219
    %v1236 = vunpack.c.l.b16 %v1220
    %v1237 = vunpack.c.l.b16 %v1221
    %v1238 = vunpack.c.l.b16 %v1222
    %v1239 = vunpack.c.l.b16 %v1223
    %v1240 = vunpack.c.l.b16 %v1224
    %v1241 = vunpack.c.l.b16 %v1225
    %v1242 = vunpack.c.l.b16 %v1226
    %v1243 = vunpack.c.l.b16 %v1227
    %v1244 = vunpack.c.l.b16 %v1228
    %v1245 = vunpack.c.l.b16 %v1229
    %v1246 = vunpack.c.l.b16 %v1230
    %v1247 = vunpack.c.l.b16 %v1231
    %v1248 = vunpack.c.l.b16 %v1232
    %v1249 = vunpack.c.l.b16 %v1233
    %v1250 = vpack.c.b16 %v1235, %v1234
    %v1251 = vpack.c.b16 %v1237, %v1236
    %v1252 = vpack.c.b16 %v1239, %v1238
    %v1253 = vpack.c.b16 %v1241, %v1240
    %v1254 = vpack.c.b16 %v1243, %v1242
    %v1255 = vpack.c.b16 %v1245, %v1244
    %v1256 = vpack.c.b16 %v1247, %v1246
    %v1257 = vpack.c.b16 %v1249, %v1248
    %vm1258 = vcmp.ne.s16.totalorder %v1250, 0
    %vm1259 = vcmp.ne.s16.totalorder %v1251, 0
    %vm1260 = vcmp.ne.s16.totalorder %v1252, 0
    %vm1261 = vcmp.ne.s16.totalorder %v1253, 0
    %vm1262 = vcmp.ne.s16.totalorder %v1254, 0
    %vm1263 = vcmp.ne.s16.totalorder %v1255, 0
    %vm1264 = vcmp.ne.s16.totalorder %v1256, 0
    %vm1265 = vcmp.ne.s16.totalorder %v1257, 0
    %v1266 = vsel %vm1258, %v1139, 0
    %v1267 = vsel %vm1259, %v1142, 0
    %v1268 = vsel %vm1260, %v1145, 0
    %v1269 = vsel %vm1261, %v1148, 0
    %v1270 = vsel %vm1262, %v1151, 0
    %v1271 = vsel %vm1263, %v1154, 0
    %v1272 = vsel %vm1264, %v1157, 0
    %v1273 = vsel %vm1265, %v1169, 0
    %1282 = vrot.lane.b32.xlu0 %v948, 64
    %v1283 = vpop.permute.xlu0 %1282
    %1284 = vrot.lane.b32.xlu0 %v949, 64
    %v1285 = vpop.permute.xlu0 %1284
    %1286 = vrot.lane.b32.xlu0 %v950, 64
    %v1287 = vpop.permute.xlu0 %1286
    %1288 = vrot.lane.b32.xlu0 %v951, 64
    %v1289 = vpop.permute.xlu0 %1288
    %1290 = vrot.lane.b32.xlu0 %v952, 64
    %v1291 = vpop.permute.xlu0 %1290
    %1292 = vrot.lane.b32.xlu0 %v953, 64
    %v1293 = vpop.permute.xlu0 %1292
    %1294 = vrot.lane.b32.xlu0 %v954, 64
    %v1295 = vpop.permute.xlu0 %1294
    %1296 = vrot.lane.b32.xlu0 %v955, 64
    %v1297 = vpop.permute.xlu0 %1296
    %v1300 = vsel %vm427, %v1127, %v1283
    %v1304 = vsel %vm427, %v1128, %v1285
    %v1308 = vsel %vm427, %v1129, %v1287
    %v1312 = vsel %vm427, %v1130, %v1289
    %v1316 = vsel %vm427, %v1131, %v1291
    %v1320 = vsel %vm427, %v1132, %v1293
    %v1324 = vsel %vm427, %v1133, %v1295
    %v1328 = vsel %vm427, %v1134, %v1297
    %1330 = vst [vmem:[#allocation2] sm:$0xff] 0
    %1331 = vst.msk [vmem:[#allocation2 + $0x8] sm:$0xff] %vm427, 0
    %1332 = vst [vmem:[#allocation2 + $0x50] sm:$0xff] 0
    %1333 = vst.msk [vmem:[#allocation2 + $0x58] sm:$0xff] %vm427, 0
    %1334 = vst [vmem:[#allocation2 + $0x10] sm:$0xff] %v1300
    %1335 = vst.msk [vmem:[#allocation2 + $0x18] sm:$0xff] %vm427, %v1266
    %1336 = vst [vmem:[#allocation2 + $0x20] sm:$0xff] %v1304
    %1337 = vst.msk [vmem:[#allocation2 + $0x28] sm:$0xff] %vm427, %v1267
    %1338 = vst [vmem:[#allocation2 + $0x30] sm:$0xff] %v1308
    %1339 = vst.msk [vmem:[#allocation2 + $0x38] sm:$0xff] %vm427, %v1268
    %1340 = vst [vmem:[#allocation2 + $0x40] sm:$0xff] %v1312
    %1341 = vst.msk [vmem:[#allocation2 + $0x48] sm:$0xff] %vm427, %v1269
    %1342 = vst [vmem:[#allocation2 + $0x60] sm:$0xff] 0
    %1343 = vst.msk [vmem:[#allocation2 + $0x68] sm:$0xff] %vm427, 0
    %1344 = vst [vmem:[#allocation2 + $0xb0] sm:$0xff] 0
    %1345 = vst.msk [vmem:[#allocation2 + $0xb8] sm:$0xff] %vm427, 0
    %1346 = vst [vmem:[#allocation2 + $0x70] sm:$0xff] %v1316
    %1347 = vst.msk [vmem:[#allocation2 + $0x78] sm:$0xff] %vm427, %v1270
    %1348 = vst [vmem:[#allocation2 + $0x80] sm:$0xff] %v1320
    %1349 = vst.msk [vmem:[#allocation2 + $0x88] sm:$0xff] %vm427, %v1271
    %1350 = vst [vmem:[#allocation2 + $0x90] sm:$0xff] %v1324
    %1351 = vst.msk [vmem:[#allocation2 + $0x98] sm:$0xff] %vm427, %v1272
    %1352 = vst [vmem:[#allocation2 + $0xa0] sm:$0xff] %v1328
    %1353 = vst.msk [vmem:[#allocation2 + $0xa8] sm:$0xff] %vm427, %v1273
    %v1354 = vld [vmem:[#allocation2] sm:$0xf0]
    %v1355 = vld [vmem:[#allocation2 + $0x8] sm:$0xf0]
    %v1356 = vld [vmem:[#allocation2 + $0x10] sm:$0xff]
    %v1357 = vld [vmem:[#allocation2 + $0x18] sm:$0xff]
    %v1358 = vld [vmem:[#allocation2 + $0x20] sm:$0xff]
    %v1359 = vld [vmem:[#allocation2 + $0x28] sm:$0xff]
    %v1360 = vld [vmem:[#allocation2 + $0x30] sm:$0xff]
    %v1361 = vld [vmem:[#allocation2 + $0x38] sm:$0xff]
    %v1362 = vld [vmem:[#allocation2 + $0x40] sm:$0xff]
    %v1363 = vld [vmem:[#allocation2 + $0x48] sm:$0xff]
    %v1364 = vld [vmem:[#allocation2 + $0x50] sm:$0xff]
    %v1365 = vld [vmem:[#allocation2 + $0x58] sm:$0xff]
    %v1366 = vld [vmem:[#allocation2 + $0x60] sm:$0xff]
    %v1367 = vld [vmem:[#allocation2 + $0x68] sm:$0xff]
    %v1368 = vld [vmem:[#allocation2 + $0x70] sm:$0xff]
    %v1369 = vld [vmem:[#allocation2 + $0x78] sm:$0xff]
    %v1370 = vld [vmem:[#allocation2 + $0x80] sm:$0xff]
    %v1371 = vld [vmem:[#allocation2 + $0x88] sm:$0xff]
    %v1372 = vld [vmem:[#allocation2 + $0x90] sm:$0xff]
    %v1373 = vld [vmem:[#allocation2 + $0x98] sm:$0xff]
    %v1374 = vld [vmem:[#allocation2 + $0xa0] sm:$0xf]
    %v1375 = vld [vmem:[#allocation2 + $0xa8] sm:$0xf]
    %v1376 = vld [vmem:[%s17] sm:$0xf]
    %v1377 = vld [vmem:[%s17 + $0x4] sm:$0xf]
    %v1378 = vld [vmem:[%s17 + $0x8] sm:$0xf]
    %v1379 = vld [vmem:[%s17 + $0xc] sm:$0xf]
    %v1380 = vld [vmem:[%s17 + $0x10] sm:$0xf]
    %v1381 = vld [vmem:[%s17 + $0x14] sm:$0xf]
    %v1382 = vld [vmem:[%s17 + $0x18] sm:$0xf]
    %v1383 = vld [vmem:[%s17 + $0x1c] sm:$0xf]
    %v1384 = vld [vmem:[%s17 + $0x20] sm:$0xf]
    %v1385 = vld [vmem:[%s17 + $0x24] sm:$0xf]
    %v1386 = vld [vmem:[%s17 + $0x28] sm:$0xf]
    %v1387 = vld [vmem:[%s17 + $0x2c] sm:$0xf]
    %v1388 = vld [vmem:[%s17 + $0x30] sm:$0xf]
    %v1389 = vld [vmem:[%s17 + $0x34] sm:$0xf]
    %v1390 = vld [vmem:[%s17 + $0x38] sm:$0xf]
    %v1391 = vld [vmem:[%s17 + $0x3c] sm:$0xf]
    %v1392 = vld [vmem:[%s17 + $0x40] sm:$0xf]
    %v1393 = vld [vmem:[%s17 + $0x44] sm:$0xf]
    %v1394 = vld [vmem:[%s17 + $0x48] sm:$0xf]
    %v1395 = vld [vmem:[%s17 + $0x4c] sm:$0xf]
    %v1396 = vld [vmem:[%s17 + $0x50] sm:$0xf]
    %v1397 = vld [vmem:[%s17 + $0x54] sm:$0xf]
    %v1398 = vld [vmem:[%s17 + $0x58] sm:$0xf]
    %v1399 = vld [vmem:[%s17 + $0x5c] sm:$0xf]
    %v1400 = vld [vmem:[#allocation2 + $0xa0] sm:$0xff]
    %v1401 = vld [vmem:[#allocation2 + $0xa8] sm:$0xff]
    %v1402 = vld [vmem:[%s17 + $0x60] sm:$0xf]
    %v1403 = vld [vmem:[%s17 + $0x64] sm:$0xf]
    %v1404 = vld [vmem:[%s17 + $0x68] sm:$0xf]
    %v1405 = vld [vmem:[%s17 + $0x6c] sm:$0xf]
    %v1406 = vld [vmem:[%s17 + $0x70] sm:$0xf]
    %v1407 = vld [vmem:[%s17 + $0x74] sm:$0xf]
    %v1408 = vld [vmem:[%s17 + $0x78] sm:$0xf]
    %v1409 = vld [vmem:[%s17 + $0x7c] sm:$0xf]
    %v1410 = vld [vmem:[%s17 + $0x80] sm:$0xf]
    %v1411 = vld [vmem:[%s17 + $0x84] sm:$0xf]
    %v1412 = vld [vmem:[%s17 + $0x88] sm:$0xf]
    %v1413 = vld [vmem:[%s17 + $0x8c] sm:$0xf]
    %v1414 = vld [vmem:[%s17 + $0x90] sm:$0xf]
    %v1415 = vld [vmem:[%s17 + $0x94] sm:$0xf]
    %v1416 = vld [vmem:[%s17 + $0x98] sm:$0xf]
    %v1417 = vld [vmem:[%s17 + $0x9c] sm:$0xf]
    %v1418 = vld [vmem:[%s17 + $0xa0] sm:$0xf]
    %v1419 = vld [vmem:[%s17 + $0xa4] sm:$0xf]
    %v1420 = vld [vmem:[%s17 + $0xa8] sm:$0xf]
    %v1421 = vld [vmem:[%s17 + $0xac] sm:$0xf]
    %v1422 = vld [vmem:[%s17 + $0xb0] sm:$0xf]
    %v1423 = vld [vmem:[%s17 + $0xb4] sm:$0xf]
    %v1424 = vld [vmem:[%s17 + $0xb8] sm:$0xf]
    %v1425 = vld [vmem:[%s17 + $0xbc] sm:$0xf]
    %v1450 = vunpack.c.l.b16 %v1402
    %v1451 = vunpack.c.l.b16 %v1403
    %v1452 = vunpack.c.l.b16 %v1404
    %v1453 = vunpack.c.l.b16 %v1405
    %v1454 = vunpack.c.l.b16 %v1406
    %v1455 = vunpack.c.l.b16 %v1407
    %v1456 = vunpack.c.l.b16 %v1408
    %v1457 = vunpack.c.l.b16 %v1409
    %v1458 = vunpack.c.l.b16 %v1410
    %v1459 = vunpack.c.l.b16 %v1411
    %v1460 = vunpack.c.l.b16 %v1412
    %v1461 = vunpack.c.l.b16 %v1413
    %v1462 = vunpack.c.l.b16 %v1414
    %v1463 = vunpack.c.l.b16 %v1415
    %v1464 = vunpack.c.l.b16 %v1416
    %v1465 = vunpack.c.l.b16 %v1417
    %v1466 = vunpack.c.l.b16 %v1418
    %v1467 = vunpack.c.l.b16 %v1419
    %v1468 = vunpack.c.l.b16 %v1420
    %v1469 = vunpack.c.l.b16 %v1421
    %v1470 = vunpack.c.l.b16 %v1422
    %v1471 = vunpack.c.l.b16 %v1423
    %v1472 = vunpack.c.l.b16 %v1424
    %v1473 = vunpack.c.l.b16 %v1425
    %v1474 = vpack.c.b16 %v1451, %v1450
    %v1475 = vpack.c.b16 %v1453, %v1452
    %v1476 = vpack.c.b16 %v1455, %v1454
    %v1477 = vpack.c.b16 %v1457, %v1456
    %v1478 = vpack.c.b16 %v1459, %v1458
    %v1479 = vpack.c.b16 %v1461, %v1460
    %v1480 = vpack.c.b16 %v1463, %v1462
    %v1481 = vpack.c.b16 %v1465, %v1464
    %v1482 = vpack.c.b16 %v1467, %v1466
    %v1483 = vpack.c.b16 %v1469, %v1468
    %v1484 = vpack.c.b16 %v1471, %v1470
    %v1485 = vpack.c.b16 %v1473, %v1472
    %v1499 = vsel %vm427, %v1357, 0
    %v1502 = vsel %vm427, %v1359, 0
    %v1505 = vsel %vm427, %v1361, 0
    %v1508 = vsel %vm427, %v1363, 0
    %v1511 = vsel %vm427, %v1365, 0
    %v1514 = vsel %vm427, %v1367, 0
    %v1517 = vsel %vm427, %v1369, 0
    %v1520 = vsel %vm427, %v1371, 0
    %v1523 = vsel %vm427, %v1373, 0
    %v1526 = vsel %vm427, %v1401, 0
    %1528 = vmatprep.subr.bf16.mxu0 0
    %1529 = vmatpush1.bf16.msra.mxu0 %v1474
    %1530 = vmatprep.subr.bf16.mxu0 0
    %1531 = vmatpush1.bf16.msra.mxu0 %v1475
    %1532 = vmatprep.subr.bf16.mxu0 0
    %1533 = vmatpush1.bf16.msra.mxu0 %v1476
    %1534 = vmatprep.subr.bf16.mxu0 0
    %1535 = vmatpush1.bf16.msra.mxu0 %v1477
    %1536 = vmatprep.subr.bf16.mxu0 0
    %1537 = vmatpush1.bf16.msra.mxu0 %v1478
    %1538 = vmatprep.subr.bf16.mxu0 0
    %1539 = vmatpush1.bf16.msra.mxu0 %v1479
    %1540 = vmatprep.subr.bf16.mxu0 0
    %1541 = vmatpush1.bf16.msra.mxu0 %v1480
    %1542 = vmatprep.subr.bf16.mxu0 0
    %1543 = vmatpush1.bf16.msra.mxu0 %v1481
    %1544 = vmatprep.subr.bf16.mxu0 0
    %1545 = vmatpush1.bf16.msra.mxu0 %v1482
    %1546 = vmatprep.subr.bf16.mxu0 0
    %1547 = vmatpush1.bf16.msra.mxu0 %v1483
    %1548 = vmatprep.subr.bf16.mxu0 0
    %1549 = vmatpush1.bf16.msra.mxu0 %v1484
    %1550 = vmatprep.subr.bf16.mxu0 0
    %1551 = vmatpush1.bf16.msra.mxu0 %v1485
    %1552 = vmatprep.subr.bf16.mxu0 0
    %1553 = vmatpush1.bf16.msra.mxu0 0
    %1554 = vmatprep.subr.bf16.mxu0 0
    %1555 = vmatpush1.bf16.msra.mxu0 0
    %1556 = vmatprep.subr.bf16.mxu0 0
    %1557 = vmatpush1.bf16.msra.mxu0 0
    %1558 = vmatprep.subr.bf16.mxu0 0
    %1559 = vmatpush1.bf16.msra.mxu0 0
    %1560 = vmatprep.mubr.bf16.mxu0 %v1499
    %1561 = vmatmul.mubr.bf16.gmra.mrb[0].mxu0 %v1356
    %v1562 = vpop.f32.mrb[0].mxu0
    %v1563 = vadd.f32 0.0, %v1562
    %v1564 = vpop.f32.mrb[0].mxu0
    %v1565 = vpop.f32.mrb[0].mxu0
    %v1566 = vadd.f32 0.0, %v1565
    %v1567 = vpop.f32.mrb[0].mxu0
    %1568 = vmatprep.mubr.bf16.mxu0 %v1502
    %1569 = vmatmul.mubr.bf16.gmra.mrb[0].mxu0 %v1358
    %v1570 = vpop.f32.mrb[0].mxu0
    %v1571 = vadd.f32 0.0, %v1570
    %v1572 = vpop.f32.mrb[0].mxu0
    %v1573 = vpop.f32.mrb[0].mxu0
    %v1574 = vadd.f32 0.0, %v1573
    %v1575 = vpop.f32.mrb[0].mxu0
    %1576 = vmatprep.mubr.bf16.mxu0 %v1505
    %1577 = vmatmul.mubr.bf16.gmra.mrb[0].mxu0 %v1360
    %v1578 = vpop.f32.mrb[0].mxu0
    %v1579 = vadd.f32 0.0, %v1578
    %v1580 = vpop.f32.mrb[0].mxu0
    %v1581 = vpop.f32.mrb[0].mxu0
    %v1582 = vadd.f32 0.0, %v1581
    %v1583 = vpop.f32.mrb[0].mxu0
    %1584 = vmatprep.mubr.bf16.mxu0 %v1508
    %1585 = vmatmul.mubr.bf16.gmra.mrb[0].mxu0 %v1362
    %v1586 = vpop.f32.mrb[0].mxu0
    %v1587 = vadd.f32 0.0, %v1586
    %v1588 = vpop.f32.mrb[0].mxu0
    %v1589 = vpop.f32.mrb[0].mxu0
    %v1590 = vadd.f32 0.0, %v1589
    %v1591 = vpop.f32.mrb[0].mxu0
    %1592 = vmatprep.mubr.bf16.mxu0 %v1511
    %1593 = vmatmul.mubr.bf16.gmra.mrb[0].mxu0 %v1364
    %v1594 = vpop.f32.mrb[0].mxu0
    %v1595 = vpop.f32.mrb[0].mxu0
    %v1596 = vpop.f32.mrb[0].mxu0
    %v1597 = vpop.f32.mrb[0].mxu0
    %1598 = vmatprep.mubr.bf16.mxu0 %v1514
    %1599 = vmatmul.mubr.bf16.gmra.mrb[0].mxu0 %v1366
    %v1600 = vpop.f32.mrb[0].mxu0
    %v1601 = vpop.f32.mrb[0].mxu0
    %v1602 = vpop.f32.mrb[0].mxu0
    %v1603 = vpop.f32.mrb[0].mxu0
    %1604 = vmatprep.mubr.bf16.mxu0 %v1517
    %1605 = vmatmul.mubr.bf16.gmra.mrb[0].mxu0 %v1368
    %v1606 = vpop.f32.mrb[0].mxu0
    %v1607 = vadd.f32 0.0, %v1606
    %v1608 = vpop.f32.mrb[0].mxu0
    %v1609 = vpop.f32.mrb[0].mxu0
    %v1610 = vadd.f32 0.0, %v1609
    %v1611 = vpop.f32.mrb[0].mxu0
    %1612 = vmatprep.mubr.bf16.mxu0 %v1520
    %1613 = vmatmul.mubr.bf16.gmra.mrb[0].mxu0 %v1370
    %v1614 = vpop.f32.mrb[0].mxu0
    %v1615 = vadd.f32 0.0, %v1614
    %v1616 = vpop.f32.mrb[0].mxu0
    %v1617 = vpop.f32.mrb[0].mxu0
    %v1618 = vadd.f32 0.0, %v1617
    %v1619 = vpop.f32.mrb[0].mxu0
    %1620 = vmatprep.mubr.bf16.mxu0 %v1523
    %1621 = vmatmul.mubr.bf16.gmra.mrb[0].mxu0 %v1372
    %v1622 = vpop.f32.mrb[0].mxu0
    %v1623 = vadd.f32 0.0, %v1622
    %v1624 = vpop.f32.mrb[0].mxu0
    %v1625 = vpop.f32.mrb[0].mxu0
    %v1626 = vadd.f32 0.0, %v1625
    %v1627 = vpop.f32.mrb[0].mxu0
    %1628 = vmatprep.mubr.bf16.mxu0 %v1526
    %1629 = vmatmul.mubr.bf16.gmra.mrb[0].mxu0 %v1400
    %v1630 = vpop.f32.mrb[0].mxu0
    %v1631 = vadd.f32 0.0, %v1630
    %v1632 = vpop.f32.mrb[0].mxu0
    %v1633 = vpop.f32.mrb[0].mxu0
    %v1634 = vadd.f32 0.0, %v1633
    %v1635 = vpop.f32.mrb[0].mxu0
    %1636 = vdwg.mxu0
    %vm1659 = vcmask 1043456
    %v1660 = vrot.slane %v1354, 4
    %v1661 = vrot.slane %v1356, 4
    %v1662 = vsel %vm1659, %v1660, %v1661
    %v1663 = vrot.slane %v1355, 4
    %v1664 = vrot.slane %v1357, 4
    %v1665 = vsel %vm1659, %v1663, %v1664
    %v1666 = vrot.slane %v1358, 4
    %v1667 = vsel %vm1659, %v1661, %v1666
    %v1668 = vrot.slane %v1359, 4
    %v1669 = vsel %vm1659, %v1664, %v1668
    %v1670 = vrot.slane %v1360, 4
    %v1671 = vsel %vm1659, %v1666, %v1670
    %v1672 = vrot.slane %v1361, 4
    %v1673 = vsel %vm1659, %v1668, %v1672
    %v1674 = vrot.slane %v1362, 4
    %v1675 = vsel %vm1659, %v1670, %v1674
    %v1676 = vrot.slane %v1363, 4
    %v1677 = vsel %vm1659, %v1672, %v1676
    %v1678 = vrot.slane %v1364, 4
    %v1679 = vsel %vm1659, %v1674, %v1678
    %v1680 = vrot.slane %v1365, 4
    %v1681 = vsel %vm1659, %v1676, %v1680
    %v1682 = vrot.slane %v1366, 4
    %v1683 = vsel %vm1659, %v1678, %v1682
    %v1684 = vrot.slane %v1367, 4
    %v1685 = vsel %vm1659, %v1680, %v1684
    %v1686 = vrot.slane %v1368, 4
    %v1687 = vsel %vm1659, %v1682, %v1686
    %v1688 = vrot.slane %v1369, 4
    %v1689 = vsel %vm1659, %v1684, %v1688
    %v1690 = vrot.slane %v1370, 4
    %v1691 = vsel %vm1659, %v1686, %v1690
    %v1692 = vrot.slane %v1371, 4
    %v1693 = vsel %vm1659, %v1688, %v1692
    %v1694 = vrot.slane %v1372, 4
    %v1695 = vsel %vm1659, %v1690, %v1694
    %v1696 = vrot.slane %v1373, 4
    %v1697 = vsel %vm1659, %v1692, %v1696
    %v1698 = vrot.slane %v1374, 4
    %v1699 = vsel %vm1659, %v1694, %v1698
    %v1700 = vrot.slane %v1375, 4
    %v1701 = vsel %vm1659, %v1696, %v1700
    %v1736 = vunpack.c.l.b16 %v1376
    %v1737 = vunpack.c.l.b16 %v1377
    %v1738 = vunpack.c.l.b16 %v1378
    %v1739 = vunpack.c.l.b16 %v1379
    %v1740 = vunpack.c.l.b16 %v1380
    %v1741 = vunpack.c.l.b16 %v1381
    %v1742 = vunpack.c.l.b16 %v1382
    %v1743 = vunpack.c.l.b16 %v1383
    %v1744 = vunpack.c.l.b16 %v1384
    %v1745 = vunpack.c.l.b16 %v1385
    %v1746 = vunpack.c.l.b16 %v1386
    %v1747 = vunpack.c.l.b16 %v1387
    %v1748 = vunpack.c.l.b16 %v1388
    %v1749 = vunpack.c.l.b16 %v1389
    %v1750 = vunpack.c.l.b16 %v1390
    %v1751 = vunpack.c.l.b16 %v1391
    %v1752 = vunpack.c.l.b16 %v1392
    %v1753 = vunpack.c.l.b16 %v1393
    %v1754 = vunpack.c.l.b16 %v1394
    %v1755 = vunpack.c.l.b16 %v1395
    %v1756 = vunpack.c.l.b16 %v1396
    %v1757 = vunpack.c.l.b16 %v1397
    %v1758 = vunpack.c.l.b16 %v1398
    %v1759 = vunpack.c.l.b16 %v1399
    %v1760 = vpack.c.b16 %v1737, %v1736
    %v1761 = vpack.c.b16 %v1739, %v1738
    %v1762 = vpack.c.b16 %v1741, %v1740
    %v1763 = vpack.c.b16 %v1743, %v1742
    %v1764 = vpack.c.b16 %v1745, %v1744
    %v1765 = vpack.c.b16 %v1747, %v1746
    %v1766 = vpack.c.b16 %v1749, %v1748
    %v1767 = vpack.c.b16 %v1751, %v1750
    %v1768 = vpack.c.b16 %v1753, %v1752
    %v1769 = vpack.c.b16 %v1755, %v1754
    %v1770 = vpack.c.b16 %v1757, %v1756
    %v1771 = vpack.c.b16 %v1759, %v1758
    %v1785 = vsel %vm427, %v1665, 0
    %v1788 = vsel %vm427, %v1669, 0
    %v1791 = vsel %vm427, %v1673, 0
    %v1794 = vsel %vm427, %v1677, 0
    %v1797 = vsel %vm427, %v1681, 0
    %v1800 = vsel %vm427, %v1685, 0
    %v1803 = vsel %vm427, %v1689, 0
    %v1806 = vsel %vm427, %v1693, 0
    %v1809 = vsel %vm427, %v1697, 0
    %v1812 = vsel %vm427, %v1701, 0
    %1814 = vmatprep.subr.bf16.mxu0 0
    %1815 = vmatpush1.bf16.msra.mxu0 %v1760
    %1816 = vmatprep.subr.bf16.mxu0 0
    %1817 = vmatpush1.bf16.msra.mxu0 %v1761
    %1818 = vmatprep.subr.bf16.mxu0 0
    %1819 = vmatpush1.bf16.msra.mxu0 %v1762
    %1820 = vmatprep.subr.bf16.mxu0 0
    %1821 = vmatpush1.bf16.msra.mxu0 %v1763
    %1822 = vmatprep.subr.bf16.mxu0 0
    %1823 = vmatpush1.bf16.msra.mxu0 %v1764
    %1824 = vmatprep.subr.bf16.mxu0 0
    %1825 = vmatpush1.bf16.msra.mxu0 %v1765
    %1826 = vmatprep.subr.bf16.mxu0 0
    %1827 = vmatpush1.bf16.msra.mxu0 %v1766
    %1828 = vmatprep.subr.bf16.mxu0 0
    %1829 = vmatpush1.bf16.msra.mxu0 %v1767
    %1830 = vmatprep.subr.bf16.mxu0 0
    %1831 = vmatpush1.bf16.msra.mxu0 %v1768
    %1832 = vmatprep.subr.bf16.mxu0 0
    %1833 = vmatpush1.bf16.msra.mxu0 %v1769
    %1834 = vmatprep.subr.bf16.mxu0 0
    %1835 = vmatpush1.bf16.msra.mxu0 %v1770
    %1836 = vmatprep.subr.bf16.mxu0 0
    %1837 = vmatpush1.bf16.msra.mxu0 %v1771
    %1838 = vmatprep.subr.bf16.mxu0 0
    %1839 = vmatpush1.bf16.msra.mxu0 0
    %1840 = vmatprep.subr.bf16.mxu0 0
    %1841 = vmatpush1.bf16.msra.mxu0 0
    %1842 = vmatprep.subr.bf16.mxu0 0
    %1843 = vmatpush1.bf16.msra.mxu0 0
    %1844 = vmatprep.subr.bf16.mxu0 0
    %1845 = vmatpush1.bf16.msra.mxu0 0
    %1846 = vmatprep.mubr.bf16.mxu0 %v1785
    %1847 = vmatmul.mubr.bf16.gmra.mrb[0].mxu0 %v1662
    %v1848 = vpop.f32.mrb[0].mxu0
    %v1849 = vadd.f32 %v1563, %v1848
    %v1850 = vpop.f32.mrb[0].mxu0
    %v1851 = vpop.f32.mrb[0].mxu0
    %v1852 = vadd.f32 %v1566, %v1851
    %v1853 = vpop.f32.mrb[0].mxu0
    %1854 = vmatprep.mubr.bf16.mxu0 %v1788
    %1855 = vmatmul.mubr.bf16.gmra.mrb[0].mxu0 %v1667
    %v1856 = vpop.f32.mrb[0].mxu0
    %v1857 = vadd.f32 %v1571, %v1856
    %v1858 = vpop.f32.mrb[0].mxu0
    %v1859 = vpop.f32.mrb[0].mxu0
    %v1860 = vadd.f32 %v1574, %v1859
    %v1861 = vpop.f32.mrb[0].mxu0
    %1862 = vmatprep.mubr.bf16.mxu0 %v1791
    %1863 = vmatmul.mubr.bf16.gmra.mrb[0].mxu0 %v1671
    %v1864 = vpop.f32.mrb[0].mxu0
    %v1865 = vadd.f32 %v1579, %v1864
    %v1866 = vpop.f32.mrb[0].mxu0
    %v1867 = vpop.f32.mrb[0].mxu0
    %v1868 = vadd.f32 %v1582, %v1867
    %v1869 = vpop.f32.mrb[0].mxu0
    %1870 = vmatprep.mubr.bf16.mxu0 %v1794
    %1871 = vmatmul.mubr.bf16.gmra.mrb[0].mxu0 %v1675
    %v1872 = vpop.f32.mrb[0].mxu0
    %v1873 = vadd.f32 %v1587, %v1872
    %v1874 = vpop.f32.mrb[0].mxu0
    %v1875 = vpop.f32.mrb[0].mxu0
    %v1876 = vadd.f32 %v1590, %v1875
    %v1877 = vpop.f32.mrb[0].mxu0
    %1878 = vmatprep.mubr.bf16.mxu0 %v1797
    %1879 = vmatmul.mubr.bf16.gmra.mrb[0].mxu0 %v1679
    %v1880 = vpop.f32.mrb[0].mxu0
    %v1881 = vpop.f32.mrb[0].mxu0
    %v1882 = vpop.f32.mrb[0].mxu0
    %v1883 = vpop.f32.mrb[0].mxu0
    %1884 = vmatprep.mubr.bf16.mxu0 %v1800
    %1885 = vmatmul.mubr.bf16.gmra.mrb[0].mxu0 %v1683
    %v1886 = vpop.f32.mrb[0].mxu0
    %v1887 = vpop.f32.mrb[0].mxu0
    %v1888 = vpop.f32.mrb[0].mxu0
    %v1889 = vpop.f32.mrb[0].mxu0
    %1890 = vmatprep.mubr.bf16.mxu0 %v1803
    %1891 = vmatmul.mubr.bf16.gmra.mrb[0].mxu0 %v1687
    %v1892 = vpop.f32.mrb[0].mxu0
    %v1893 = vadd.f32 %v1607, %v1892
    %v1894 = vpop.f32.mrb[0].mxu0
    %v1895 = vpop.f32.mrb[0].mxu0
    %v1896 = vadd.f32 %v1610, %v1895
    %v1897 = vpop.f32.mrb[0].mxu0
    %1898 = vmatprep.mubr.bf16.mxu0 %v1806
    %1899 = vmatmul.mubr.bf16.gmra.mrb[0].mxu0 %v1691
    %v1900 = vpop.f32.mrb[0].mxu0
    %v1901 = vadd.f32 %v1615, %v1900
    %v1902 = vpop.f32.mrb[0].mxu0
    %v1903 = vpop.f32.mrb[0].mxu0
    %v1904 = vadd.f32 %v1618, %v1903
    %v1905 = vpop.f32.mrb[0].mxu0
    %1906 = vmatprep.mubr.bf16.mxu0 %v1809
    %1907 = vmatmul.mubr.bf16.gmra.mrb[0].mxu0 %v1695
    %v1908 = vpop.f32.mrb[0].mxu0
    %v1909 = vadd.f32 %v1623, %v1908
    %v1910 = vpop.f32.mrb[0].mxu0
    %v1911 = vpop.f32.mrb[0].mxu0
    %v1912 = vadd.f32 %v1626, %v1911
    %v1913 = vpop.f32.mrb[0].mxu0
    %1914 = vmatprep.mubr.bf16.mxu0 %v1812
    %1915 = vmatmul.mubr.bf16.gmra.mrb[0].mxu0 %v1699
    %v1916 = vpop.f32.mrb[0].mxu0
    %v1917 = vadd.f32 %v1631, %v1916
    %v1918 = vpop.f32.mrb[0].mxu0
    %v1919 = vpop.f32.mrb[0].mxu0
    %v1920 = vadd.f32 %v1634, %v1919
    %v1921 = vpop.f32.mrb[0].mxu0
    %1922 = vdwg.mxu0
    %v1923 = vld [vmem:[#allocation2 + $0x10] sm:$0xf0]
    %v1924 = vld [vmem:[#allocation2 + $0x18] sm:$0xf0]
    %v1925 = vld [vmem:[#allocation2 + $0x20] sm:$0xff]
    %v1926 = vld [vmem:[#allocation2 + $0x28] sm:$0xff]
    %v1927 = vld [vmem:[#allocation2 + $0x30] sm:$0xff]
    %v1928 = vld [vmem:[#allocation2 + $0x38] sm:$0xff]
    %v1929 = vld [vmem:[#allocation2 + $0x40] sm:$0xff]
    %v1930 = vld [vmem:[#allocation2 + $0x48] sm:$0xff]
    %v1931 = vld [vmem:[#allocation2 + $0x50] sm:$0xff]
    %v1932 = vld [vmem:[#allocation2 + $0x58] sm:$0xff]
    %v1933 = vld [vmem:[#allocation2 + $0x60] sm:$0xff]
    %v1934 = vld [vmem:[#allocation2 + $0x68] sm:$0xff]
    %v1935 = vld [vmem:[#allocation2 + $0x70] sm:$0xff]
    %v1936 = vld [vmem:[#allocation2 + $0x78] sm:$0xff]
    %v1937 = vld [vmem:[#allocation2 + $0x80] sm:$0xff]
    %v1938 = vld [vmem:[#allocation2 + $0x88] sm:$0xff]
    %v1939 = vld [vmem:[#allocation2 + $0x90] sm:$0xff]
    %v1940 = vld [vmem:[#allocation2 + $0x98] sm:$0xff]
    %v1941 = vld [vmem:[#allocation2 + $0xa0] sm:$0xff]
    %v1942 = vld [vmem:[#allocation2 + $0xa8] sm:$0xff]
    %v1943 = vld [vmem:[#allocation2 + $0xb0] sm:$0xf]
    %v1944 = vld [vmem:[#allocation2 + $0xb8] sm:$0xf]
    %v1945 = vld [vmem:[%s17 + $0xc0] sm:$0xf]
    %v1946 = vld [vmem:[%s17 + $0xc4] sm:$0xf]
    %v1947 = vld [vmem:[%s17 + $0xc8] sm:$0xf]
    %v1948 = vld [vmem:[%s17 + $0xcc] sm:$0xf]
    %v1949 = vld [vmem:[%s17 + $0xd0] sm:$0xf]
    %v1950 = vld [vmem:[%s17 + $0xd4] sm:$0xf]
    %v1951 = vld [vmem:[%s17 + $0xd8] sm:$0xf]
    %v1952 = vld [vmem:[%s17 + $0xdc] sm:$0xf]
    %v1953 = vld [vmem:[%s17 + $0xe0] sm:$0xf]
    %v1954 = vld [vmem:[%s17 + $0xe4] sm:$0xf]
    %v1955 = vld [vmem:[%s17 + $0xe8] sm:$0xf]
    %v1956 = vld [vmem:[%s17 + $0xec] sm:$0xf]
    %v1957 = vld [vmem:[%s17 + $0xf0] sm:$0xf]
    %v1958 = vld [vmem:[%s17 + $0xf4] sm:$0xf]
    %v1959 = vld [vmem:[%s17 + $0xf8] sm:$0xf]
    %v1960 = vld [vmem:[%s17 + $0xfc] sm:$0xf]
    %v1961 = vld [vmem:[%s17 + $0x100] sm:$0xf]
    %v1962 = vld [vmem:[%s17 + $0x104] sm:$0xf]
    %v1963 = vld [vmem:[%s17 + $0x108] sm:$0xf]
    %v1964 = vld [vmem:[%s17 + $0x10c] sm:$0xf]
    %v1965 = vld [vmem:[%s17 + $0x110] sm:$0xf]
    %v1966 = vld [vmem:[%s17 + $0x114] sm:$0xf]
    %v1967 = vld [vmem:[%s17 + $0x118] sm:$0xf]
    %v1968 = vld [vmem:[%s17 + $0x11c] sm:$0xf]
    %v1991 = vrot.slane %v1923, 4
    %v1992 = vrot.slane %v1925, 4
    %v1993 = vsel %vm1659, %v1991, %v1992
    %v1994 = vrot.slane %v1924, 4
    %v1995 = vrot.slane %v1926, 4
    %v1996 = vsel %vm1659, %v1994, %v1995
    %v1997 = vrot.slane %v1927, 4
    %v1998 = vsel %vm1659, %v1992, %v1997
    %v1999 = vrot.slane %v1928, 4
    %v2000 = vsel %vm1659, %v1995, %v1999
    %v2001 = vrot.slane %v1929, 4
    %v2002 = vsel %vm1659, %v1997, %v2001
    %v2003 = vrot.slane %v1930, 4
    %v2004 = vsel %vm1659, %v1999, %v2003
    %v2005 = vrot.slane %v1931, 4
    %v2006 = vsel %vm1659, %v2001, %v2005
    %v2007 = vrot.slane %v1932, 4
    %v2008 = vsel %vm1659, %v2003, %v2007
    %v2009 = vrot.slane %v1933, 4
    %v2010 = vsel %vm1659, %v2005, %v2009
    %v2011 = vrot.slane %v1934, 4
    %v2012 = vsel %vm1659, %v2007, %v2011
    %v2013 = vrot.slane %v1935, 4
    %v2014 = vsel %vm1659, %v2009, %v2013
    %v2015 = vrot.slane %v1936, 4
    %v2016 = vsel %vm1659, %v2011, %v2015
    %v2017 = vrot.slane %v1937, 4
    %v2018 = vsel %vm1659, %v2013, %v2017
    %v2019 = vrot.slane %v1938, 4
    %v2020 = vsel %vm1659, %v2015, %v2019
    %v2021 = vrot.slane %v1939, 4
    %v2022 = vsel %vm1659, %v2017, %v2021
    %v2023 = vrot.slane %v1940, 4
    %v2024 = vsel %vm1659, %v2019, %v2023
    %v2025 = vrot.slane %v1941, 4
    %v2026 = vsel %vm1659, %v2021, %v2025
    %v2027 = vrot.slane %v1942, 4
    %v2028 = vsel %vm1659, %v2023, %v2027
    %v2029 = vrot.slane %v1943, 4
    %v2030 = vsel %vm1659, %v2025, %v2029
    %v2031 = vrot.slane %v1944, 4
    %v2032 = vsel %vm1659, %v2027, %v2031
    %v2067 = vunpack.c.l.b16 %v1945
    %v2068 = vunpack.c.l.b16 %v1946
    %v2069 = vunpack.c.l.b16 %v1947
    %v2070 = vunpack.c.l.b16 %v1948
    %v2071 = vunpack.c.l.b16 %v1949
    %v2072 = vunpack.c.l.b16 %v1950
    %v2073 = vunpack.c.l.b16 %v1951
    %v2074 = vunpack.c.l.b16 %v1952
    %v2075 = vunpack.c.l.b16 %v1953
    %v2076 = vunpack.c.l.b16 %v1954
    %v2077 = vunpack.c.l.b16 %v1955
    %v2078 = vunpack.c.l.b16 %v1956
    %v2079 = vunpack.c.l.b16 %v1957
    %v2080 = vunpack.c.l.b16 %v1958
    %v2081 = vunpack.c.l.b16 %v1959
    %v2082 = vunpack.c.l.b16 %v1960
    %v2083 = vunpack.c.l.b16 %v1961
    %v2084 = vunpack.c.l.b16 %v1962
    %v2085 = vunpack.c.l.b16 %v1963
    %v2086 = vunpack.c.l.b16 %v1964
    %v2087 = vunpack.c.l.b16 %v1965
    %v2088 = vunpack.c.l.b16 %v1966
    %v2089 = vunpack.c.l.b16 %v1967
    %v2090 = vunpack.c.l.b16 %v1968
    %v2091 = vpack.c.b16 %v2068, %v2067
    %v2092 = vpack.c.b16 %v2070, %v2069
    %v2093 = vpack.c.b16 %v2072, %v2071
    %v2094 = vpack.c.b16 %v2074, %v2073
    %v2095 = vpack.c.b16 %v2076, %v2075
    %v2096 = vpack.c.b16 %v2078, %v2077
    %v2097 = vpack.c.b16 %v2080, %v2079
    %v2098 = vpack.c.b16 %v2082, %v2081
    %v2099 = vpack.c.b16 %v2084, %v2083
    %v2100 = vpack.c.b16 %v2086, %v2085
    %v2101 = vpack.c.b16 %v2088, %v2087
    %v2102 = vpack.c.b16 %v2090, %v2089
    %v2116 = vsel %vm427, %v1996, 0
    %v2119 = vsel %vm427, %v2000, 0
    %v2122 = vsel %vm427, %v2004, 0
    %v2125 = vsel %vm427, %v2008, 0
    %v2128 = vsel %vm427, %v2012, 0
    %v2131 = vsel %vm427, %v2016, 0
    %v2134 = vsel %vm427, %v2020, 0
    %v2137 = vsel %vm427, %v2024, 0
    %v2140 = vsel %vm427, %v2028, 0
    %v2143 = vsel %vm427, %v2032, 0
    %2145 = vmatprep.subr.bf16.mxu0 0
    %2146 = vmatpush1.bf16.msra.mxu0 %v2091
    %2147 = vmatprep.subr.bf16.mxu0 0
    %2148 = vmatpush1.bf16.msra.mxu0 %v2092
    %2149 = vmatprep.subr.bf16.mxu0 0
    %2150 = vmatpush1.bf16.msra.mxu0 %v2093
    %2151 = vmatprep.subr.bf16.mxu0 0
    %2152 = vmatpush1.bf16.msra.mxu0 %v2094
    %2153 = vmatprep.subr.bf16.mxu0 0
    %2154 = vmatpush1.bf16.msra.mxu0 %v2095
    %2155 = vmatprep.subr.bf16.mxu0 0
    %2156 = vmatpush1.bf16.msra.mxu0 %v2096
    %2157 = vmatprep.subr.bf16.mxu0 0
    %2158 = vmatpush1.bf16.msra.mxu0 %v2097
    %2159 = vmatprep.subr.bf16.mxu0 0
    %2160 = vmatpush1.bf16.msra.mxu0 %v2098
    %2161 = vmatprep.subr.bf16.mxu0 0
    %2162 = vmatpush1.bf16.msra.mxu0 %v2099
    %2163 = vmatprep.subr.bf16.mxu0 0
    %2164 = vmatpush1.bf16.msra.mxu0 %v2100
    %2165 = vmatprep.subr.bf16.mxu0 0
    %2166 = vmatpush1.bf16.msra.mxu0 %v2101
    %2167 = vmatprep.subr.bf16.mxu0 0
    %2168 = vmatpush1.bf16.msra.mxu0 %v2102
    %2169 = vmatprep.subr.bf16.mxu0 0
    %2170 = vmatpush1.bf16.msra.mxu0 0
    %2171 = vmatprep.subr.bf16.mxu0 0
    %2172 = vmatpush1.bf16.msra.mxu0 0
    %2173 = vmatprep.subr.bf16.mxu0 0
    %2174 = vmatpush1.bf16.msra.mxu0 0
    %2175 = vmatprep.subr.bf16.mxu0 0
    %2176 = vmatpush1.bf16.msra.mxu0 0
    %2177 = vmatprep.mubr.bf16.mxu0 %v2116
    %2178 = vmatmul.mubr.bf16.gmra.mrb[0].mxu0 %v1993
    %v2179 = vpop.f32.mrb[0].mxu0
    %v2180 = vadd.f32 0.0, %v2179
    %v2181 = vpop.f32.mrb[0].mxu0
    %v2182 = vpop.f32.mrb[0].mxu0
    %v2183 = vadd.f32 0.0, %v2182
    %v2184 = vpop.f32.mrb[0].mxu0
    %2185 = vmatprep.mubr.bf16.mxu0 %v2119
    %2186 = vmatmul.mubr.bf16.gmra.mrb[0].mxu0 %v1998
    %v2187 = vpop.f32.mrb[0].mxu0
    %v2188 = vadd.f32 0.0, %v2187
    %v2189 = vpop.f32.mrb[0].mxu0
    %v2190 = vpop.f32.mrb[0].mxu0
    %v2191 = vadd.f32 0.0, %v2190
    %v2192 = vpop.f32.mrb[0].mxu0
    %2193 = vmatprep.mubr.bf16.mxu0 %v2122
    %2194 = vmatmul.mubr.bf16.gmra.mrb[0].mxu0 %v2002
    %v2195 = vpop.f32.mrb[0].mxu0
    %v2196 = vadd.f32 0.0, %v2195
    %v2197 = vpop.f32.mrb[0].mxu0
    %v2198 = vpop.f32.mrb[0].mxu0
    %v2199 = vadd.f32 0.0, %v2198
    %v2200 = vpop.f32.mrb[0].mxu0
    %2201 = vmatprep.mubr.bf16.mxu0 %v2125
    %2202 = vmatmul.mubr.bf16.gmra.mrb[0].mxu0 %v2006
    %v2203 = vpop.f32.mrb[0].mxu0
    %v2204 = vadd.f32 0.0, %v2203
    %v2205 = vpop.f32.mrb[0].mxu0
    %v2206 = vpop.f32.mrb[0].mxu0
    %v2207 = vadd.f32 0.0, %v2206
    %v2208 = vpop.f32.mrb[0].mxu0
    %2209 = vmatprep.mubr.bf16.mxu0 %v2128
    %2210 = vmatmul.mubr.bf16.gmra.mrb[0].mxu0 %v2010
    %v2211 = vpop.f32.mrb[0].mxu0
    %v2212 = vpop.f32.mrb[0].mxu0
    %v2213 = vpop.f32.mrb[0].mxu0
    %v2214 = vpop.f32.mrb[0].mxu0
    %2215 = vmatprep.mubr.bf16.mxu0 %v2131
    %2216 = vmatmul.mubr.bf16.gmra.mrb[0].mxu0 %v2014
    %v2217 = vpop.f32.mrb[0].mxu0
    %v2218 = vpop.f32.mrb[0].mxu0
    %v2219 = vpop.f32.mrb[0].mxu0
    %v2220 = vpop.f32.mrb[0].mxu0
    %2221 = vmatprep.mubr.bf16.mxu0 %v2134
    %2222 = vmatmul.mubr.bf16.gmra.mrb[0].mxu0 %v2018
    %v2223 = vpop.f32.mrb[0].mxu0
    %v2224 = vadd.f32 0.0, %v2223
    %v2225 = vpop.f32.mrb[0].mxu0
    %v2226 = vpop.f32.mrb[0].mxu0
    %v2227 = vadd.f32 0.0, %v2226
    %v2228 = vpop.f32.mrb[0].mxu0
    %2229 = vmatprep.mubr.bf16.mxu0 %v2137
    %2230 = vmatmul.mubr.bf16.gmra.mrb[0].mxu0 %v2022
    %v2231 = vpop.f32.mrb[0].mxu0
    %v2232 = vadd.f32 0.0, %v2231
    %v2233 = vpop.f32.mrb[0].mxu0
    %v2234 = vpop.f32.mrb[0].mxu0
    %v2235 = vadd.f32 0.0, %v2234
    %v2236 = vpop.f32.mrb[0].mxu0
    %2237 = vmatprep.mubr.bf16.mxu0 %v2140
    %2238 = vmatmul.mubr.bf16.gmra.mrb[0].mxu0 %v2026
    %v2239 = vpop.f32.mrb[0].mxu0
    %v2240 = vadd.f32 0.0, %v2239
    %v2241 = vpop.f32.mrb[0].mxu0
    %v2242 = vpop.f32.mrb[0].mxu0
    %v2243 = vadd.f32 0.0, %v2242
    %v2244 = vpop.f32.mrb[0].mxu0
    %2245 = vmatprep.mubr.bf16.mxu0 %v2143
    %2246 = vmatmul.mubr.bf16.gmra.mrb[0].mxu0 %v2030
    %v2247 = vpop.f32.mrb[0].mxu0
    %v2248 = vadd.f32 0.0, %v2247
    %v2249 = vpop.f32.mrb[0].mxu0
    %v2250 = vpop.f32.mrb[0].mxu0
    %v2251 = vadd.f32 0.0, %v2250
    %v2252 = vpop.f32.mrb[0].mxu0
    %2253 = vdwg.mxu0
    %v2254 = vadd.f32 %v1849, %v2180
    %v2255 = vadd.f32 %v1852, %v2183
    %v2256 = vadd.f32 %v1857, %v2188
    %v2257 = vadd.f32 %v1860, %v2191
    %v2258 = vadd.f32 %v1865, %v2196
    %v2259 = vadd.f32 %v1868, %v2199
    %v2260 = vadd.f32 %v1873, %v2204
    %v2261 = vadd.f32 %v1876, %v2207
    %v2262 = vadd.f32 %v1893, %v2224
    %v2263 = vadd.f32 %v1896, %v2227
    %v2264 = vadd.f32 %v1901, %v2232
    %v2265 = vadd.f32 %v1904, %v2235
    %v2266 = vadd.f32 %v1909, %v2240
    %v2267 = vadd.f32 %v1912, %v2243
    %v2268 = vadd.f32 %v1917, %v2248
    %v2269 = vadd.f32 %v1920, %v2251
    %v2270 = vld [vmem:[%s19] sm:$0x1]
    %v2272 = vlaneseq
    %v2273 = vshrl.u32 %v2272, 7
    %v2274 = vsub.s32 0, %v2273
    %v2275 = vrot.slane %v2270, %v2274
    %v2277 = vadd.f32 %v2254, %v2275
    %v2278 = vadd.f32 %v2255, %v2275
    %v2279 = vadd.f32 %v2256, %v2275
    %v2280 = vadd.f32 %v2257, %v2275
    %v2281 = vadd.f32 %v2258, %v2275
    %v2282 = vadd.f32 %v2259, %v2275
    %v2283 = vadd.f32 %v2260, %v2275
    %v2284 = vadd.f32 %v2261, %v2275
    %v2285 = vadd.f32 %v2262, %v2275
    %v2286 = vadd.f32 %v2263, %v2275
    %v2287 = vadd.f32 %v2264, %v2275
    %v2288 = vadd.f32 %v2265, %v2275
    %v2289 = vadd.f32 %v2266, %v2275
    %v2290 = vadd.f32 %v2267, %v2275
    %v2291 = vadd.f32 %v2268, %v2275
    %v2292 = vadd.f32 %v2269, %v2275
    %v2293 = vunpack.c.l.bf16 %v395
    %v2294 = vunpack.c.l.bf16 %v396
    %v2295 = vunpack.c.l.bf16 %v397
    %v2296 = vunpack.c.l.bf16 %v398
    %v2297 = vunpack.c.l.bf16 %v399
    %v2298 = vunpack.c.l.bf16 %v400
    %v2299 = vunpack.c.l.bf16 %v401
    %v2300 = vunpack.c.l.bf16 %v402
    %v2301 = vunpack.c.l.bf16 %v403
    %v2302 = vunpack.c.l.bf16 %v404
    %v2303 = vunpack.c.l.bf16 %v405
    %v2304 = vunpack.c.l.bf16 %v406
    %v2305 = vunpack.c.l.bf16 %v407
    %v2306 = vunpack.c.l.bf16 %v408
    %v2307 = vunpack.c.l.bf16 %v409
    %v2308 = vunpack.c.l.bf16 %v410
    %v2309 = vsel %vm427, %v2293, 0.0
    %v2310 = vsel %vm427, %v2294, 0.0
    %v2311 = vadd.f32 %v2309, %v2310
    %v2312 = vsel %vm427, %v2295, 0.0
    %v2313 = vadd.f32 %v2311, %v2312
    %v2314 = vsel %vm427, %v2296, 0.0
    %v2315 = vadd.f32 %v2313, %v2314
    %v2316 = vsel %vm427, %v2297, 0.0
    %v2317 = vadd.f32 %v2315, %v2316
    %v2318 = vsel %vm427, %v2298, 0.0
    %v2319 = vadd.f32 %v2317, %v2318
    %v2320 = vsel %vm427, %v2299, 0.0
    %v2321 = vadd.f32 %v2319, %v2320
    %v2322 = vsel %vm427, %v2300, 0.0
    %v2323 = vadd.f32 %v2321, %v2322
    %v2324 = vrot.slane %v2323, 4
    %v2325 = vadd.f32 %v2323, %v2324
    %v2326 = vrot.slane %v2325, 2
    %v2327 = vadd.f32 %v2325, %v2326
    %v2328 = vrot.slane %v2327, 1
    %v2329 = vadd.f32 %v2327, %v2328
    %v2330 = vsel %vm427, %v2301, 0.0
    %v2331 = vsel %vm427, %v2302, 0.0
    %v2332 = vadd.f32 %v2330, %v2331
    %v2333 = vsel %vm427, %v2303, 0.0
    %v2334 = vadd.f32 %v2332, %v2333
    %v2335 = vsel %vm427, %v2304, 0.0
    %v2336 = vadd.f32 %v2334, %v2335
    %v2337 = vsel %vm427, %v2305, 0.0
    %v2338 = vadd.f32 %v2336, %v2337
    %v2339 = vsel %vm427, %v2306, 0.0
    %v2340 = vadd.f32 %v2338, %v2339
    %v2341 = vsel %vm427, %v2307, 0.0
    %v2342 = vadd.f32 %v2340, %v2341
    %v2343 = vsel %vm427, %v2308, 0.0
    %v2344 = vadd.f32 %v2342, %v2343
    %v2345 = vrot.slane %v2344, 4
    %v2346 = vadd.f32 %v2344, %v2345
    %v2347 = vrot.slane %v2346, 2
    %v2348 = vadd.f32 %v2346, %v2347
    %v2349 = vrot.slane %v2348, 1
    %v2350 = vadd.f32 %v2348, %v2349
    %v2351 = vmul.f32 %v2329, 0.015625
    %v2352 = vmul.f32 %v2350, 0.015625
    %v2353 = vld [vmem:[%s15] sm:$0xff]
    %v2354 = vld [vmem:[%s15 + $0x8] sm:$0xff]
    %v2355 = vld [vmem:[%s15 + $0x10] sm:$0xff]
    %v2356 = vld [vmem:[%s15 + $0x18] sm:$0xff]
    %v2357 = vld [vmem:[%s15 + $0x20] sm:$0xff]
    %v2358 = vld [vmem:[%s15 + $0x28] sm:$0xff]
    %v2359 = vld [vmem:[%s15 + $0x30] sm:$0xff]
    %v2360 = vld [vmem:[%s15 + $0x38] sm:$0xff]
    %v2363 = vsel %vm482, %v2352, %v2351
    %v2364 = vsel %vm427, %v2363, 0
    %2366 = vmatprep.subr.mxu0 0.0
    %2367 = vmatpush1.msra.mxu0 %v2353
    %2368 = vmatprep.subr.mxu0 0.0
    %2369 = vmatpush1.msra.mxu0 %v2354
    %2370 = vmatprep.subr.mxu0 0.0
    %2371 = vmatpush1.msra.mxu0 %v2355
    %2372 = vmatprep.subr.mxu0 0.0
    %2373 = vmatpush1.msra.mxu0 %v2356
    %2374 = vmatprep.subr.mxu0 0.0
    %2375 = vmatpush1.msra.mxu0 %v2357
    %2376 = vmatprep.subr.mxu0 0.0
    %2377 = vmatpush1.msra.mxu0 %v2358
    %2378 = vmatprep.subr.mxu0 0.0
    %2379 = vmatpush1.msra.mxu0 %v2359
    %2380 = vmatprep.subr.mxu0 0.0
    %2381 = vmatpush1.msra.mxu0 %v2360
    %2382 = vmatprep.subr.mxu0 0.0
    %2383 = vmatpush1.msra.mxu0 0.0
    %2384 = vmatprep.subr.mxu0 0.0
    %2385 = vmatpush1.msra.mxu0 0.0
    %2386 = vmatprep.subr.mxu0 0.0
    %2387 = vmatpush1.msra.mxu0 0.0
    %2388 = vmatprep.subr.mxu0 0.0
    %2389 = vmatpush1.msra.mxu0 0.0
    %2390 = vmatprep.subr.mxu0 0.0
    %2391 = vmatpush1.msra.mxu0 0.0
    %2392 = vmatprep.subr.mxu0 0.0
    %2393 = vmatpush1.msra.mxu0 0.0
    %2394 = vmatprep.subr.mxu0 0.0
    %2395 = vmatpush1.msra.mxu0 0.0
    %2396 = vmatprep.subr.mxu0 0.0
    %2397 = vmatpush1.msra.mxu0 0.0
    %2398 = vmatprep.subr.mxu0 0.0
    %2399 = vmatpush1.msra.mxu0 0.0
    %2400 = vmatprep.subr.mxu0 0.0
    %2401 = vmatpush1.msra.mxu0 0.0
    %2402 = vmatprep.subr.mxu0 0.0
    %2403 = vmatpush1.msra.mxu0 0.0
    %2404 = vmatprep.subr.mxu0 0.0
    %2405 = vmatpush1.msra.mxu0 0.0
    %2406 = vmatprep.subr.mxu0 0.0
    %2407 = vmatpush1.msra.mxu0 0.0
    %2408 = vmatprep.subr.mxu0 0.0
    %2409 = vmatpush1.msra.mxu0 0.0
    %2410 = vmatprep.subr.mxu0 0.0
    %2411 = vmatpush1.msra.mxu0 0.0
    %2412 = vmatprep.subr.mxu0 0.0
    %2413 = vmatpush1.msra.mxu0 0.0
    %2414 = vmatprep.subr.mxu0 0.0
    %2415 = vmatpush1.msra.mxu0 0.0
    %2416 = vmatprep.subr.mxu0 0.0
    %2417 = vmatpush1.msra.mxu0 0.0
    %2418 = vmatprep.subr.mxu0 0.0
    %2419 = vmatpush1.msra.mxu0 0.0
    %2420 = vmatprep.subr.mxu0 0.0
    %2421 = vmatpush1.msra.mxu0 0.0
    %2422 = vmatprep.subr.mxu0 0.0
    %2423 = vmatpush1.msra.mxu0 0.0
    %2424 = vmatprep.subr.mxu0 0.0
    %2425 = vmatpush1.msra.mxu0 0.0
    %2426 = vmatprep.subr.mxu0 0.0
    %2427 = vmatpush1.msra.mxu0 0.0
    %2428 = vmatprep.subr.mxu0 0.0
    %2429 = vmatpush1.msra.mxu0 0.0
    %2430 = vmatprep.mubr.f32.mxu0 0.0
    %2431 = vmatmul.mubr.f32.gmra.mrb[0].mxu0 %v2364
    %v2432 = vpop.f32.mrb[0].mxu0
    %v2433 = vadd.f32 0.0, %v2432
    %v2434 = vpop.f32.mrb[0].mxu0
    %2435 = vdwg.mxu0
    %v2438 = vunpack.c.l.s4 1966171168
    %v2439 = vunpack.c.0.s8 %v2438
    %v2440 = vlaneseq
    %v2441 = vshrl.u32 %v2440, 7
    %v2442 = vsub.s32 %v2439, %v2441
    %v2443 = vrot.slane %v2433, %v2442
    %v2444 = vcombine.high %v2443, %v2443
    %v2446 = vunpack.c.l.s4 1966171168
    %v2447 = vunpack.c.0.s8 %v2446
    %v2448 = vlaneseq
    %v2449 = vshrl.u32 %v2448, 7
    %v2450 = vsub.s32 %v2447, %v2449
    %v2451 = vrot.slane %v2443, %v2450
    %v2453 = vunpack.c.l.s4 1966171168
    %v2454 = vunpack.c.0.s8 %v2453
    %v2455 = vlaneseq
    %v2456 = vshrl.u32 %v2455, 7
    %v2457 = vsub.s32 %v2454, %v2456
    %v2458 = vrot.slane %v2444, %v2457
    %v2459 = vlaneseq
    %v2460 = vshrl.u32 %v2459, 7
    %v2461 = vsub.s32 0, %v2460
    %v2462 = vrot.slane %v2451, %v2461
    %v2463 = vlaneseq
    %v2464 = vshrl.u32 %v2463, 7
    %v2465 = vsub.s32 0, %v2464
    %v2466 = vrot.slane %v2458, %v2465
    %v2469 = vsub.f32 %v2293, %v2462
    %v2470 = vsub.f32 %v2294, %v2462
    %v2471 = vsub.f32 %v2295, %v2462
    %v2472 = vsub.f32 %v2296, %v2462
    %v2473 = vsub.f32 %v2297, %v2462
    %v2474 = vsub.f32 %v2298, %v2462
    %v2475 = vsub.f32 %v2299, %v2462
    %v2476 = vsub.f32 %v2300, %v2462
    %v2477 = vsub.f32 %v2301, %v2466
    %v2478 = vsub.f32 %v2302, %v2466
    %v2479 = vsub.f32 %v2303, %v2466
    %v2480 = vsub.f32 %v2304, %v2466
    %v2481 = vsub.f32 %v2305, %v2466
    %v2482 = vsub.f32 %v2306, %v2466
    %v2483 = vsub.f32 %v2307, %v2466
    %v2484 = vsub.f32 %v2308, %v2466
    %v2485 = vmul.f32 %v2469, %v2469
    %v2486 = vmul.f32 %v2470, %v2470
    %v2487 = vmul.f32 %v2471, %v2471
    %v2488 = vmul.f32 %v2472, %v2472
    %v2489 = vmul.f32 %v2473, %v2473
    %v2490 = vmul.f32 %v2474, %v2474
    %v2491 = vmul.f32 %v2475, %v2475
    %v2492 = vmul.f32 %v2476, %v2476
    %v2493 = vmul.f32 %v2477, %v2477
    %v2494 = vmul.f32 %v2478, %v2478
    %v2495 = vmul.f32 %v2479, %v2479
    %v2496 = vmul.f32 %v2480, %v2480
    %v2497 = vmul.f32 %v2481, %v2481
    %v2498 = vmul.f32 %v2482, %v2482
    %v2499 = vmul.f32 %v2483, %v2483
    %v2500 = vmul.f32 %v2484, %v2484
    %v2501 = vsel %vm427, %v2485, 0.0
    %v2502 = vsel %vm427, %v2486, 0.0
    %v2503 = vadd.f32 %v2501, %v2502
    %v2504 = vsel %vm427, %v2487, 0.0
    %v2505 = vadd.f32 %v2503, %v2504
    %v2506 = vsel %vm427, %v2488, 0.0
    %v2507 = vadd.f32 %v2505, %v2506
    %v2508 = vsel %vm427, %v2489, 0.0
    %v2509 = vadd.f32 %v2507, %v2508
    %v2510 = vsel %vm427, %v2490, 0.0
    %v2511 = vadd.f32 %v2509, %v2510
    %v2512 = vsel %vm427, %v2491, 0.0
    %v2513 = vadd.f32 %v2511, %v2512
    %v2514 = vsel %vm427, %v2492, 0.0
    %v2515 = vadd.f32 %v2513, %v2514
    %v2516 = vrot.slane %v2515, 4
    %v2517 = vadd.f32 %v2515, %v2516
    %v2518 = vrot.slane %v2517, 2
    %v2519 = vadd.f32 %v2517, %v2518
    %v2520 = vrot.slane %v2519, 1
    %v2521 = vadd.f32 %v2519, %v2520
    %v2522 = vsel %vm427, %v2493, 0.0
    %v2523 = vsel %vm427, %v2494, 0.0
    %v2524 = vadd.f32 %v2522, %v2523
    %v2525 = vsel %vm427, %v2495, 0.0
    %v2526 = vadd.f32 %v2524, %v2525
    %v2527 = vsel %vm427, %v2496, 0.0
    %v2528 = vadd.f32 %v2526, %v2527
    %v2529 = vsel %vm427, %v2497, 0.0
    %v2530 = vadd.f32 %v2528, %v2529
    %v2531 = vsel %vm427, %v2498, 0.0
    %v2532 = vadd.f32 %v2530, %v2531
    %v2533 = vsel %vm427, %v2499, 0.0
    %v2534 = vadd.f32 %v2532, %v2533
    %v2535 = vsel %vm427, %v2500, 0.0
    %v2536 = vadd.f32 %v2534, %v2535
    %v2537 = vrot.slane %v2536, 4
    %v2538 = vadd.f32 %v2536, %v2537
    %v2539 = vrot.slane %v2538, 2
    %v2540 = vadd.f32 %v2538, %v2539
    %v2541 = vrot.slane %v2540, 1
    %v2542 = vadd.f32 %v2540, %v2541
    %v2543 = vmul.f32 %v2521, 0.015625
    %v2544 = vmul.f32 %v2542, 0.015625
    %v2547 = vsel %vm482, %v2544, %v2543
    %v2548 = vsel %vm427, %v2547, 0
    %2550 = vmatprep.subr.mxu0 0.0
    %2551 = vmatpush1.msra.mxu0 %v2353
    %2552 = vmatprep.subr.mxu0 0.0
    %2553 = vmatpush1.msra.mxu0 %v2354
    %2554 = vmatprep.subr.mxu0 0.0
    %2555 = vmatpush1.msra.mxu0 %v2355
    %2556 = vmatprep.subr.mxu0 0.0
    %2557 = vmatpush1.msra.mxu0 %v2356
    %2558 = vmatprep.subr.mxu0 0.0
    %2559 = vmatpush1.msra.mxu0 %v2357
    %2560 = vmatprep.subr.mxu0 0.0
    %2561 = vmatpush1.msra.mxu0 %v2358
    %2562 = vmatprep.subr.mxu0 0.0
    %2563 = vmatpush1.msra.mxu0 %v2359
    %2564 = vmatprep.subr.mxu0 0.0
    %2565 = vmatpush1.msra.mxu0 %v2360
    %2566 = vmatprep.subr.mxu0 0.0
    %2567 = vmatpush1.msra.mxu0 0.0
    %2568 = vmatprep.subr.mxu0 0.0
    %2569 = vmatpush1.msra.mxu0 0.0
    %2570 = vmatprep.subr.mxu0 0.0
    %2571 = vmatpush1.msra.mxu0 0.0
    %2572 = vmatprep.subr.mxu0 0.0
    %2573 = vmatpush1.msra.mxu0 0.0
    %2574 = vmatprep.subr.mxu0 0.0
    %2575 = vmatpush1.msra.mxu0 0.0
    %2576 = vmatprep.subr.mxu0 0.0
    %2577 = vmatpush1.msra.mxu0 0.0
    %2578 = vmatprep.subr.mxu0 0.0
    %2579 = vmatpush1.msra.mxu0 0.0
    %2580 = vmatprep.subr.mxu0 0.0
    %2581 = vmatpush1.msra.mxu0 0.0
    %2582 = vmatprep.subr.mxu0 0.0
    %2583 = vmatpush1.msra.mxu0 0.0
    %2584 = vmatprep.subr.mxu0 0.0
    %2585 = vmatpush1.msra.mxu0 0.0
    %2586 = vmatprep.subr.mxu0 0.0
    %2587 = vmatpush1.msra.mxu0 0.0
    %2588 = vmatprep.subr.mxu0 0.0
    %2589 = vmatpush1.msra.mxu0 0.0
    %2590 = vmatprep.subr.mxu0 0.0
    %2591 = vmatpush1.msra.mxu0 0.0
    %2592 = vmatprep.subr.mxu0 0.0
    %2593 = vmatpush1.msra.mxu0 0.0
    %2594 = vmatprep.subr.mxu0 0.0
    %2595 = vmatpush1.msra.mxu0 0.0
    %2596 = vmatprep.subr.mxu0 0.0
    %2597 = vmatpush1.msra.mxu0 0.0
    %2598 = vmatprep.subr.mxu0 0.0
    %2599 = vmatpush1.msra.mxu0 0.0
    %2600 = vmatprep.subr.mxu0 0.0
    %2601 = vmatpush1.msra.mxu0 0.0
    %2602 = vmatprep.subr.mxu0 0.0
    %2603 = vmatpush1.msra.mxu0 0.0
    %2604 = vmatprep.subr.mxu0 0.0
    %2605 = vmatpush1.msra.mxu0 0.0
    %2606 = vmatprep.subr.mxu0 0.0
    %2607 = vmatpush1.msra.mxu0 0.0
    %2608 = vmatprep.subr.mxu0 0.0
    %2609 = vmatpush1.msra.mxu0 0.0
    %2610 = vmatprep.subr.mxu0 0.0
    %2611 = vmatpush1.msra.mxu0 0.0
    %2612 = vmatprep.subr.mxu0 0.0
    %2613 = vmatpush1.msra.mxu0 0.0
    %2614 = vmatprep.mubr.f32.mxu0 0.0
    %2615 = vmatmul.mubr.f32.gmra.mrb[0].mxu0 %v2548
    %v2616 = vpop.f32.mrb[0].mxu0
    %v2617 = vadd.f32 1e-05, %v2616
    %v2618 = vpop.f32.mrb[0].mxu0
    %2619 = vdwg.mxu0
    %v2620 = vrsqrt.pop %v2617
    %v2623 = vunpack.c.l.s4 1966171168
    %v2624 = vunpack.c.0.s8 %v2623
    %v2625 = vlaneseq
    %v2626 = vshrl.u32 %v2625, 7
    %v2627 = vsub.s32 %v2624, %v2626
    %v2628 = vrot.slane %v2620, %v2627
    %v2629 = vcombine.high %v2628, %v2628
    %v2631 = vunpack.c.l.s4 1966171168
    %v2632 = vunpack.c.0.s8 %v2631
    %v2633 = vlaneseq
    %v2634 = vshrl.u32 %v2633, 7
    %v2635 = vsub.s32 %v2632, %v2634
    %v2636 = vrot.slane %v2628, %v2635
    %v2638 = vunpack.c.l.s4 1966171168
    %v2639 = vunpack.c.0.s8 %v2638
    %v2640 = vlaneseq
    %v2641 = vshrl.u32 %v2640, 7
    %v2642 = vsub.s32 %v2639, %v2641
    %v2643 = vrot.slane %v2629, %v2642
    %v2644 = vlaneseq
    %v2645 = vshrl.u32 %v2644, 7
    %v2646 = vsub.s32 0, %v2645
    %v2647 = vrot.slane %v2636, %v2646
    %v2648 = vlaneseq
    %v2649 = vshrl.u32 %v2648, 7
    %v2650 = vsub.s32 0, %v2649
    %v2651 = vrot.slane %v2643, %v2650
    %v2654 = vmul.f32 %v2469, %v2647
    %v2655 = vmul.f32 %v2470, %v2647
    %v2656 = vmul.f32 %v2471, %v2647
    %v2657 = vmul.f32 %v2472, %v2647
    %v2658 = vmul.f32 %v2473, %v2647
    %v2659 = vmul.f32 %v2474, %v2647
    %v2660 = vmul.f32 %v2475, %v2647
    %v2661 = vmul.f32 %v2476, %v2647
    %v2662 = vmul.f32 %v2477, %v2651
    %v2663 = vmul.f32 %v2478, %v2651
    %v2664 = vmul.f32 %v2479, %v2651
    %v2665 = vmul.f32 %v2480, %v2651
    %v2666 = vmul.f32 %v2481, %v2651
    %v2667 = vmul.f32 %v2482, %v2651
    %v2668 = vmul.f32 %v2483, %v2651
    %v2669 = vmul.f32 %v2484, %v2651
    %v2670 = vld [vmem:[%s11] sm:$0x1]
    %v2672 = vlaneseq
    %v2673 = vshrl.u32 %v2672, 7
    %v2674 = vsub.s32 0, %v2673
    %v2675 = vrot.slane %v2670, %v2674
    %v2677 = vmul.f32 %v2654, %v2675
    %v2678 = vmul.f32 %v2655, %v2675
    %v2679 = vmul.f32 %v2656, %v2675
    %v2680 = vmul.f32 %v2657, %v2675
    %v2681 = vmul.f32 %v2658, %v2675
    %v2682 = vmul.f32 %v2659, %v2675
    %v2683 = vmul.f32 %v2660, %v2675
    %v2684 = vmul.f32 %v2661, %v2675
    %v2685 = vmul.f32 %v2662, %v2675
    %v2686 = vmul.f32 %v2663, %v2675
    %v2687 = vmul.f32 %v2664, %v2675
    %v2688 = vmul.f32 %v2665, %v2675
    %v2689 = vmul.f32 %v2666, %v2675
    %v2690 = vmul.f32 %v2667, %v2675
    %v2691 = vmul.f32 %v2668, %v2675
    %v2692 = vmul.f32 %v2669, %v2675
    %v2693 = vld [vmem:[%s13] sm:$0x1]
    %v2695 = vlaneseq
    %v2696 = vshrl.u32 %v2695, 7
    %v2697 = vsub.s32 0, %v2696
    %v2698 = vrot.slane %v2693, %v2697
    %v2700 = vadd.f32 %v2677, %v2698
    %v2701 = vadd.f32 %v2678, %v2698
    %v2702 = vadd.f32 %v2679, %v2698
    %v2703 = vadd.f32 %v2680, %v2698
    %v2704 = vadd.f32 %v2681, %v2698
    %v2705 = vadd.f32 %v2682, %v2698
    %v2706 = vadd.f32 %v2683, %v2698
    %v2707 = vadd.f32 %v2684, %v2698
    %v2708 = vadd.f32 %v2685, %v2698
    %v2709 = vadd.f32 %v2686, %v2698
    %v2710 = vadd.f32 %v2687, %v2698
    %v2711 = vadd.f32 %v2688, %v2698
    %v2712 = vadd.f32 %v2689, %v2698
    %v2713 = vadd.f32 %v2690, %v2698
    %v2714 = vadd.f32 %v2691, %v2698
    %v2715 = vadd.f32 %v2692, %v2698
    %v2716 = vxor.u32 %v2700, 2147483648
    %v2717 = vxor.u32 %v2701, 2147483648
    %v2718 = vxor.u32 %v2702, 2147483648
    %v2719 = vxor.u32 %v2703, 2147483648
    %v2720 = vxor.u32 %v2704, 2147483648
    %v2721 = vxor.u32 %v2705, 2147483648
    %v2722 = vxor.u32 %v2706, 2147483648
    %v2723 = vxor.u32 %v2707, 2147483648
    %v2724 = vxor.u32 %v2708, 2147483648
    %v2725 = vxor.u32 %v2709, 2147483648
    %v2726 = vxor.u32 %v2710, 2147483648
    %v2727 = vxor.u32 %v2711, 2147483648
    %v2728 = vxor.u32 %v2712, 2147483648
    %v2729 = vxor.u32 %v2713, 2147483648
    %v2730 = vxor.u32 %v2714, 2147483648
    %v2731 = vxor.u32 %v2715, 2147483648
    %v2732 = vmul.f32 %v2716, 1.442695
    %v2733 = vpow.pop %v2732
    %v2734 = vmul.f32 %v2717, 1.442695
    %v2735 = vpow.pop %v2734
    %v2736 = vmul.f32 %v2718, 1.442695
    %v2737 = vpow.pop %v2736
    %v2738 = vmul.f32 %v2719, 1.442695
    %v2739 = vpow.pop %v2738
    %v2740 = vmul.f32 %v2720, 1.442695
    %v2741 = vpow.pop %v2740
    %v2742 = vmul.f32 %v2721, 1.442695
    %v2743 = vpow.pop %v2742
    %v2744 = vmul.f32 %v2722, 1.442695
    %v2745 = vpow.pop %v2744
    %v2746 = vmul.f32 %v2723, 1.442695
    %v2747 = vpow.pop %v2746
    %v2748 = vmul.f32 %v2724, 1.442695
    %v2749 = vpow.pop %v2748
    %v2750 = vmul.f32 %v2725, 1.442695
    %v2751 = vpow.pop %v2750
    %v2752 = vmul.f32 %v2726, 1.442695
    %v2753 = vpow.pop %v2752
    %v2754 = vmul.f32 %v2727, 1.442695
    %v2755 = vpow.pop %v2754
    %v2756 = vmul.f32 %v2728, 1.442695
    %v2757 = vpow.pop %v2756
    %v2758 = vmul.f32 %v2729, 1.442695
    %v2759 = vpow.pop %v2758
    %v2760 = vmul.f32 %v2730, 1.442695
    %v2761 = vpow.pop %v2760
    %v2762 = vmul.f32 %v2731, 1.442695
    %v2763 = vpow.pop %v2762
    %v2764 = vadd.f32 %v2733, 1.0
    %v2765 = vadd.f32 %v2735, 1.0
    %v2766 = vadd.f32 %v2737, 1.0
    %v2767 = vadd.f32 %v2739, 1.0
    %v2768 = vadd.f32 %v2741, 1.0
    %v2769 = vadd.f32 %v2743, 1.0
    %v2770 = vadd.f32 %v2745, 1.0
    %v2771 = vadd.f32 %v2747, 1.0
    %v2772 = vadd.f32 %v2749, 1.0
    %v2773 = vadd.f32 %v2751, 1.0
    %v2774 = vadd.f32 %v2753, 1.0
    %v2775 = vadd.f32 %v2755, 1.0
    %v2776 = vadd.f32 %v2757, 1.0
    %v2777 = vadd.f32 %v2759, 1.0
    %v2778 = vadd.f32 %v2761, 1.0
    %v2779 = vadd.f32 %v2763, 1.0
    %v2780 = vrcp.pop %v2764
    %v2781 = vmul.f32 1.0, %v2780
    %v2782 = vrcp.pop %v2765
    %v2783 = vmul.f32 1.0, %v2782
    %v2784 = vrcp.pop %v2766
    %v2785 = vmul.f32 1.0, %v2784
    %v2786 = vrcp.pop %v2767
    %v2787 = vmul.f32 1.0, %v2786
    %v2788 = vrcp.pop %v2768
    %v2789 = vmul.f32 1.0, %v2788
    %v2790 = vrcp.pop %v2769
    %v2791 = vmul.f32 1.0, %v2790
    %v2792 = vrcp.pop %v2770
    %v2793 = vmul.f32 1.0, %v2792
    %v2794 = vrcp.pop %v2771
    %v2795 = vmul.f32 1.0, %v2794
    %v2796 = vrcp.pop %v2772
    %v2797 = vmul.f32 1.0, %v2796
    %v2798 = vrcp.pop %v2773
    %v2799 = vmul.f32 1.0, %v2798
    %v2800 = vrcp.pop %v2774
    %v2801 = vmul.f32 1.0, %v2800
    %v2802 = vrcp.pop %v2775
    %v2803 = vmul.f32 1.0, %v2802
    %v2804 = vrcp.pop %v2776
    %v2805 = vmul.f32 1.0, %v2804
    %v2806 = vrcp.pop %v2777
    %v2807 = vmul.f32 1.0, %v2806
    %v2808 = vrcp.pop %v2778
    %v2809 = vmul.f32 1.0, %v2808
    %v2810 = vrcp.pop %v2779
    %v2811 = vmul.f32 1.0, %v2810
    %v2812 = vmul.f32 %v2700, %v2781
    %v2813 = vmul.f32 %v2701, %v2783
    %v2814 = vmul.f32 %v2702, %v2785
    %v2815 = vmul.f32 %v2703, %v2787
    %v2816 = vmul.f32 %v2704, %v2789
    %v2817 = vmul.f32 %v2705, %v2791
    %v2818 = vmul.f32 %v2706, %v2793
    %v2819 = vmul.f32 %v2707, %v2795
    %v2820 = vmul.f32 %v2708, %v2797
    %v2821 = vmul.f32 %v2709, %v2799
    %v2822 = vmul.f32 %v2710, %v2801
    %v2823 = vmul.f32 %v2711, %v2803
    %v2824 = vmul.f32 %v2712, %v2805
    %v2825 = vmul.f32 %v2713, %v2807
    %v2826 = vmul.f32 %v2714, %v2809
    %v2827 = vmul.f32 %v2715, %v2811
    %v2828 = vpack.c.bf16 %v2813, %v2812
    %v2829 = vpack.c.bf16 %v2815, %v2814
    %v2830 = vpack.c.bf16 %v2817, %v2816
    %v2831 = vpack.c.bf16 %v2819, %v2818
    %v2832 = vpack.c.bf16 %v2821, %v2820
    %v2833 = vpack.c.bf16 %v2823, %v2822
    %v2834 = vpack.c.bf16 %v2825, %v2824
    %v2835 = vpack.c.bf16 %v2827, %v2826
    %v2837 = vshrl.u32 %v2828, 16
    %v2839 = vrot.slane %v2837, 7
    %v2840 = vshll.u32 %v2828, 16
    %v2842 = vor.u32 %v2839, %v2840
    %v2844 = vshrl.u32 %v2829, 16
    %v2846 = vrot.slane %v2844, 7
    %v2847 = vshll.u32 %v2829, 16
    %v2849 = vor.u32 %v2846, %v2847
    %v2850 = vsel %vm956, %v2839, %v2849
    %v2852 = vshrl.u32 %v2830, 16
    %v2854 = vrot.slane %v2852, 7
    %v2855 = vshll.u32 %v2830, 16
    %v2857 = vor.u32 %v2854, %v2855
    %v2858 = vsel %vm956, %v2846, %v2857
    %v2860 = vshrl.u32 %v2831, 16
    %v2862 = vrot.slane %v2860, 7
    %v2863 = vshll.u32 %v2831, 16
    %v2865 = vor.u32 %v2862, %v2863
    %v2866 = vsel %vm956, %v2854, %v2865
    %v2868 = vshrl.u32 %v2832, 16
    %v2870 = vrot.slane %v2868, 7
    %v2871 = vshll.u32 %v2832, 16
    %v2873 = vor.u32 %v2870, %v2871
    %v2874 = vsel %vm956, %v2862, %v2873
    %v2876 = vshrl.u32 %v2833, 16
    %v2878 = vrot.slane %v2876, 7
    %v2879 = vshll.u32 %v2833, 16
    %v2881 = vor.u32 %v2878, %v2879
    %v2882 = vsel %vm956, %v2870, %v2881
    %v2884 = vshrl.u32 %v2834, 16
    %v2886 = vrot.slane %v2884, 7
    %v2887 = vshll.u32 %v2834, 16
    %v2889 = vor.u32 %v2886, %v2887
    %v2890 = vsel %vm956, %v2878, %v2889
    %v2892 = vshrl.u32 %v2835, 16
    %v2894 = vrot.slane %v2892, 7
    %v2895 = vshll.u32 %v2835, 16
    %v2897 = vor.u32 %v2894, %v2895
    %v2898 = vsel %vm956, %v2886, %v2897
    %v2907 = vsel %vm1029, 0, %v2842
    %v2908 = vsel %vm1119, %v2907, 0
    %v2909 = vsel %vm1120, %v2850, 0
    %v2910 = vsel %vm1121, %v2858, 0
    %v2911 = vsel %vm1122, %v2866, 0
    %v2912 = vsel %vm1123, %v2874, 0
    %v2913 = vsel %vm1124, %v2882, 0
    %v2914 = vsel %vm1125, %v2890, 0
    %v2915 = vsel %vm1126, %v2898, 0
    %v2916 = vrot.slane %v2840, 1
    %v2917 = vor.u32 %v2837, %v2916
    %v2918 = vrot.slane %v2847, 1
    %v2919 = vsel %vm1135, %v2917, %v2918
    %v2920 = vor.u32 %v2844, %v2918
    %v2921 = vrot.slane %v2855, 1
    %v2922 = vsel %vm1135, %v2920, %v2921
    %v2923 = vor.u32 %v2852, %v2921
    %v2924 = vrot.slane %v2863, 1
    %v2925 = vsel %vm1135, %v2923, %v2924
    %v2926 = vor.u32 %v2860, %v2924
    %v2927 = vrot.slane %v2871, 1
    %v2928 = vsel %vm1135, %v2926, %v2927
    %v2929 = vor.u32 %v2868, %v2927
    %v2930 = vrot.slane %v2879, 1
    %v2931 = vsel %vm1135, %v2929, %v2930
    %v2932 = vor.u32 %v2876, %v2930
    %v2933 = vrot.slane %v2887, 1
    %v2934 = vsel %vm1135, %v2932, %v2933
    %v2935 = vor.u32 %v2884, %v2933
    %v2936 = vrot.slane %v2895, 1
    %v2937 = vsel %vm1135, %v2935, %v2936
    %v2938 = vor.u32 %v2892, %v2936
    %v2947 = vsel %vm1168, %v2938, 0
    %v2948 = vsel %vm1258, %v2919, 0
    %v2949 = vsel %vm1259, %v2922, 0
    %v2950 = vsel %vm1260, %v2925, 0
    %v2951 = vsel %vm1261, %v2928, 0
    %v2952 = vsel %vm1262, %v2931, 0
    %v2953 = vsel %vm1263, %v2934, 0
    %v2954 = vsel %vm1264, %v2937, 0
    %v2955 = vsel %vm1265, %v2947, 0
    %2964 = vrot.lane.b32.xlu0 %v2828, 64
    %v2965 = vpop.permute.xlu0 %2964
    %2966 = vrot.lane.b32.xlu0 %v2829, 64
    %v2967 = vpop.permute.xlu0 %2966
    %2968 = vrot.lane.b32.xlu0 %v2830, 64
    %v2969 = vpop.permute.xlu0 %2968
    %2970 = vrot.lane.b32.xlu0 %v2831, 64
    %v2971 = vpop.permute.xlu0 %2970
    %2972 = vrot.lane.b32.xlu0 %v2832, 64
    %v2973 = vpop.permute.xlu0 %2972
    %2974 = vrot.lane.b32.xlu0 %v2833, 64
    %v2975 = vpop.permute.xlu0 %2974
    %2976 = vrot.lane.b32.xlu0 %v2834, 64
    %v2977 = vpop.permute.xlu0 %2976
    %2978 = vrot.lane.b32.xlu0 %v2835, 64
    %v2979 = vpop.permute.xlu0 %2978
    %v2982 = vsel %vm427, %v2908, %v2965
    %v2986 = vsel %vm427, %v2909, %v2967
    %v2990 = vsel %vm427, %v2910, %v2969
    %v2994 = vsel %vm427, %v2911, %v2971
    %v2998 = vsel %vm427, %v2912, %v2973
    %v3002 = vsel %vm427, %v2913, %v2975
    %v3006 = vsel %vm427, %v2914, %v2977
    %v3010 = vsel %vm427, %v2915, %v2979
    %3012 = vst [vmem:[#allocation2 + $0x10] sm:$0xff] %v2982
    %3013 = vst.msk [vmem:[#allocation2 + $0x18] sm:$0xff] %vm427, %v2948
    %3014 = vst [vmem:[#allocation2 + $0x20] sm:$0xff] %v2986
    %3015 = vst.msk [vmem:[#allocation2 + $0x28] sm:$0xff] %vm427, %v2949
    %3016 = vst [vmem:[#allocation2 + $0x30] sm:$0xff] %v2990
    %3017 = vst.msk [vmem:[#allocation2 + $0x38] sm:$0xff] %vm427, %v2950
    %3018 = vst [vmem:[#allocation2 + $0x40] sm:$0xff] %v2994
    %3019 = vst.msk [vmem:[#allocation2 + $0x48] sm:$0xff] %vm427, %v2951
    %3020 = vst [vmem:[#allocation2 + $0x70] sm:$0xff] %v2998
    %3021 = vst.msk [vmem:[#allocation2 + $0x78] sm:$0xff] %vm427, %v2952
    %3022 = vst [vmem:[#allocation2 + $0x80] sm:$0xff] %v3002
    %3023 = vst.msk [vmem:[#allocation2 + $0x88] sm:$0xff] %vm427, %v2953
    %3024 = vst [vmem:[#allocation2 + $0x90] sm:$0xff] %v3006
    %3025 = vst.msk [vmem:[#allocation2 + $0x98] sm:$0xff] %vm427, %v2954
    %3026 = vst [vmem:[#allocation2 + $0xa0] sm:$0xff] %v3010
    %3027 = vst.msk [vmem:[#allocation2 + $0xa8] sm:$0xff] %vm427, %v2955
    %v3028 = vld [vmem:[#allocation2] sm:$0xf0]
    %v3029 = vld [vmem:[#allocation2 + $0x8] sm:$0xf0]
    %v3030 = vld [vmem:[#allocation2 + $0x10] sm:$0xff]
    %v3031 = vld [vmem:[#allocation2 + $0x18] sm:$0xff]
    %v3032 = vld [vmem:[#allocation2 + $0x20] sm:$0xff]
    %v3033 = vld [vmem:[#allocation2 + $0x28] sm:$0xff]
    %v3034 = vld [vmem:[#allocation2 + $0x30] sm:$0xff]
    %v3035 = vld [vmem:[#allocation2 + $0x38] sm:$0xff]
    %v3036 = vld [vmem:[#allocation2 + $0x40] sm:$0xff]
    %v3037 = vld [vmem:[#allocation2 + $0x48] sm:$0xff]
    %v3038 = vld [vmem:[#allocation2 + $0x50] sm:$0xff]
    %v3039 = vld [vmem:[#allocation2 + $0x58] sm:$0xff]
    %v3040 = vld [vmem:[#allocation2 + $0x60] sm:$0xff]
    %v3041 = vld [vmem:[#allocation2 + $0x68] sm:$0xff]
    %v3042 = vld [vmem:[#allocation2 + $0x70] sm:$0xff]
    %v3043 = vld [vmem:[#allocation2 + $0x78] sm:$0xff]
    %v3044 = vld [vmem:[#allocation2 + $0x80] sm:$0xff]
    %v3045 = vld [vmem:[#allocation2 + $0x88] sm:$0xff]
    %v3046 = vld [vmem:[#allocation2 + $0x90] sm:$0xff]
    %v3047 = vld [vmem:[#allocation2 + $0x98] sm:$0xff]
    %v3048 = vld [vmem:[#allocation2 + $0xa0] sm:$0xf]
    %v3049 = vld [vmem:[#allocation2 + $0xa8] sm:$0xf]
    %v3050 = vld [vmem:[%s21] sm:$0xf]
    %v3051 = vld [vmem:[%s21 + $0x4] sm:$0xf]
    %v3052 = vld [vmem:[%s21 + $0x8] sm:$0xf]
    %v3053 = vld [vmem:[%s21 + $0xc] sm:$0xf]
    %v3054 = vld [vmem:[%s21 + $0x10] sm:$0xf]
    %v3055 = vld [vmem:[%s21 + $0x14] sm:$0xf]
    %v3056 = vld [vmem:[%s21 + $0x18] sm:$0xf]
    %v3057 = vld [vmem:[%s21 + $0x1c] sm:$0xf]
    %v3058 = vld [vmem:[%s21 + $0x20] sm:$0xf]
    %v3059 = vld [vmem:[%s21 + $0x24] sm:$0xf]
    %v3060 = vld [vmem:[%s21 + $0x28] sm:$0xf]
    %v3061 = vld [vmem:[%s21 + $0x2c] sm:$0xf]
    %v3062 = vld [vmem:[%s21 + $0x30] sm:$0xf]
    %v3063 = vld [vmem:[%s21 + $0x34] sm:$0xf]
    %v3064 = vld [vmem:[%s21 + $0x38] sm:$0xf]
    %v3065 = vld [vmem:[%s21 + $0x3c] sm:$0xf]
    %v3066 = vld [vmem:[%s21 + $0x40] sm:$0xf]
    %v3067 = vld [vmem:[%s21 + $0x44] sm:$0xf]
    %v3068 = vld [vmem:[%s21 + $0x48] sm:$0xf]
    %v3069 = vld [vmem:[%s21 + $0x4c] sm:$0xf]
    %v3070 = vld [vmem:[%s21 + $0x50] sm:$0xf]
    %v3071 = vld [vmem:[%s21 + $0x54] sm:$0xf]
    %v3072 = vld [vmem:[%s21 + $0x58] sm:$0xf]
    %v3073 = vld [vmem:[%s21 + $0x5c] sm:$0xf]
    %v3074 = vld [vmem:[#allocation2 + $0xa0] sm:$0xff]
    %v3075 = vld [vmem:[#allocation2 + $0xa8] sm:$0xff]
    %v3076 = vld [vmem:[%s21 + $0x60] sm:$0xf]
    %v3077 = vld [vmem:[%s21 + $0x64] sm:$0xf]
    %v3078 = vld [vmem:[%s21 + $0x68] sm:$0xf]
    %v3079 = vld [vmem:[%s21 + $0x6c] sm:$0xf]
    %v3080 = vld [vmem:[%s21 + $0x70] sm:$0xf]
    %v3081 = vld [vmem:[%s21 + $0x74] sm:$0xf]
    %v3082 = vld [vmem:[%s21 + $0x78] sm:$0xf]
    %v3083 = vld [vmem:[%s21 + $0x7c] sm:$0xf]
    %v3084 = vld [vmem:[%s21 + $0x80] sm:$0xf]
    %v3085 = vld [vmem:[%s21 + $0x84] sm:$0xf]
    %v3086 = vld [vmem:[%s21 + $0x88] sm:$0xf]
    %v3087 = vld [vmem:[%s21 + $0x8c] sm:$0xf]
    %v3088 = vld [vmem:[%s21 + $0x90] sm:$0xf]
    %v3089 = vld [vmem:[%s21 + $0x94] sm:$0xf]
    %v3090 = vld [vmem:[%s21 + $0x98] sm:$0xf]
    %v3091 = vld [vmem:[%s21 + $0x9c] sm:$0xf]
    %v3092 = vld [vmem:[%s21 + $0xa0] sm:$0xf]
    %v3093 = vld [vmem:[%s21 + $0xa4] sm:$0xf]
    %v3094 = vld [vmem:[%s21 + $0xa8] sm:$0xf]
    %v3095 = vld [vmem:[%s21 + $0xac] sm:$0xf]
    %v3096 = vld [vmem:[%s21 + $0xb0] sm:$0xf]
    %v3097 = vld [vmem:[%s21 + $0xb4] sm:$0xf]
    %v3098 = vld [vmem:[%s21 + $0xb8] sm:$0xf]
    %v3099 = vld [vmem:[%s21 + $0xbc] sm:$0xf]
    %v3124 = vunpack.c.l.b16 %v3076
    %v3125 = vunpack.c.l.b16 %v3077
    %v3126 = vunpack.c.l.b16 %v3078
    %v3127 = vunpack.c.l.b16 %v3079
    %v3128 = vunpack.c.l.b16 %v3080
    %v3129 = vunpack.c.l.b16 %v3081
    %v3130 = vunpack.c.l.b16 %v3082
    %v3131 = vunpack.c.l.b16 %v3083
    %v3132 = vunpack.c.l.b16 %v3084
    %v3133 = vunpack.c.l.b16 %v3085
    %v3134 = vunpack.c.l.b16 %v3086
    %v3135 = vunpack.c.l.b16 %v3087
    %v3136 = vunpack.c.l.b16 %v3088
    %v3137 = vunpack.c.l.b16 %v3089
    %v3138 = vunpack.c.l.b16 %v3090
    %v3139 = vunpack.c.l.b16 %v3091
    %v3140 = vunpack.c.l.b16 %v3092
    %v3141 = vunpack.c.l.b16 %v3093
    %v3142 = vunpack.c.l.b16 %v3094
    %v3143 = vunpack.c.l.b16 %v3095
    %v3144 = vunpack.c.l.b16 %v3096
    %v3145 = vunpack.c.l.b16 %v3097
    %v3146 = vunpack.c.l.b16 %v3098
    %v3147 = vunpack.c.l.b16 %v3099
    %v3148 = vpack.c.b16 %v3125, %v3124
    %v3149 = vpack.c.b16 %v3127, %v3126
    %v3150 = vpack.c.b16 %v3129, %v3128
    %v3151 = vpack.c.b16 %v3131, %v3130
    %v3152 = vpack.c.b16 %v3133, %v3132
    %v3153 = vpack.c.b16 %v3135, %v3134
    %v3154 = vpack.c.b16 %v3137, %v3136
    %v3155 = vpack.c.b16 %v3139, %v3138
    %v3156 = vpack.c.b16 %v3141, %v3140
    %v3157 = vpack.c.b16 %v3143, %v3142
    %v3158 = vpack.c.b16 %v3145, %v3144
    %v3159 = vpack.c.b16 %v3147, %v3146
    %v3173 = vsel %vm427, %v3031, 0
    %v3176 = vsel %vm427, %v3033, 0
    %v3179 = vsel %vm427, %v3035, 0
    %v3182 = vsel %vm427, %v3037, 0
    %v3185 = vsel %vm427, %v3039, 0
    %v3188 = vsel %vm427, %v3041, 0
    %v3191 = vsel %vm427, %v3043, 0
    %v3194 = vsel %vm427, %v3045, 0
    %v3197 = vsel %vm427, %v3047, 0
    %v3200 = vsel %vm427, %v3075, 0
    %3202 = vmatprep.subr.bf16.mxu0 0
    %3203 = vmatpush1.bf16.msra.mxu0 %v3148
    %3204 = vmatprep.subr.bf16.mxu0 0
    %3205 = vmatpush1.bf16.msra.mxu0 %v3149
    %3206 = vmatprep.subr.bf16.mxu0 0
    %3207 = vmatpush1.bf16.msra.mxu0 %v3150
    %3208 = vmatprep.subr.bf16.mxu0 0
    %3209 = vmatpush1.bf16.msra.mxu0 %v3151
    %3210 = vmatprep.subr.bf16.mxu0 0
    %3211 = vmatpush1.bf16.msra.mxu0 %v3152
    %3212 = vmatprep.subr.bf16.mxu0 0
    %3213 = vmatpush1.bf16.msra.mxu0 %v3153
    %3214 = vmatprep.subr.bf16.mxu0 0
    %3215 = vmatpush1.bf16.msra.mxu0 %v3154
    %3216 = vmatprep.subr.bf16.mxu0 0
    %3217 = vmatpush1.bf16.msra.mxu0 %v3155
    %3218 = vmatprep.subr.bf16.mxu0 0
    %3219 = vmatpush1.bf16.msra.mxu0 %v3156
    %3220 = vmatprep.subr.bf16.mxu0 0
    %3221 = vmatpush1.bf16.msra.mxu0 %v3157
    %3222 = vmatprep.subr.bf16.mxu0 0
    %3223 = vmatpush1.bf16.msra.mxu0 %v3158
    %3224 = vmatprep.subr.bf16.mxu0 0
    %3225 = vmatpush1.bf16.msra.mxu0 %v3159
    %3226 = vmatprep.subr.bf16.mxu0 0
    %3227 = vmatpush1.bf16.msra.mxu0 0
    %3228 = vmatprep.subr.bf16.mxu0 0
    %3229 = vmatpush1.bf16.msra.mxu0 0
    %3230 = vmatprep.subr.bf16.mxu0 0
    %3231 = vmatpush1.bf16.msra.mxu0 0
    %3232 = vmatprep.subr.bf16.mxu0 0
    %3233 = vmatpush1.bf16.msra.mxu0 0
    %3234 = vmatprep.mubr.bf16.mxu0 %v3173
    %3235 = vmatmul.mubr.bf16.gmra.mrb[0].mxu0 %v3030
    %v3236 = vpop.f32.mrb[0].mxu0
    %v3237 = vadd.f32 0.0, %v3236
    %v3238 = vpop.f32.mrb[0].mxu0
    %v3239 = vpop.f32.mrb[0].mxu0
    %v3240 = vadd.f32 0.0, %v3239
    %v3241 = vpop.f32.mrb[0].mxu0
    %3242 = vmatprep.mubr.bf16.mxu0 %v3176
    %3243 = vmatmul.mubr.bf16.gmra.mrb[0].mxu0 %v3032
    %v3244 = vpop.f32.mrb[0].mxu0
    %v3245 = vadd.f32 0.0, %v3244
    %v3246 = vpop.f32.mrb[0].mxu0
    %v3247 = vpop.f32.mrb[0].mxu0
    %v3248 = vadd.f32 0.0, %v3247
    %v3249 = vpop.f32.mrb[0].mxu0
    %3250 = vmatprep.mubr.bf16.mxu0 %v3179
    %3251 = vmatmul.mubr.bf16.gmra.mrb[0].mxu0 %v3034
    %v3252 = vpop.f32.mrb[0].mxu0
    %v3253 = vadd.f32 0.0, %v3252
    %v3254 = vpop.f32.mrb[0].mxu0
    %v3255 = vpop.f32.mrb[0].mxu0
    %v3256 = vadd.f32 0.0, %v3255
    %v3257 = vpop.f32.mrb[0].mxu0
    %3258 = vmatprep.mubr.bf16.mxu0 %v3182
    %3259 = vmatmul.mubr.bf16.gmra.mrb[0].mxu0 %v3036
    %v3260 = vpop.f32.mrb[0].mxu0
    %v3261 = vadd.f32 0.0, %v3260
    %v3262 = vpop.f32.mrb[0].mxu0
    %v3263 = vpop.f32.mrb[0].mxu0
    %v3264 = vadd.f32 0.0, %v3263
    %v3265 = vpop.f32.mrb[0].mxu0
    %3266 = vmatprep.mubr.bf16.mxu0 %v3185
    %3267 = vmatmul.mubr.bf16.gmra.mrb[0].mxu0 %v3038
    %v3268 = vpop.f32.mrb[0].mxu0
    %v3269 = vpop.f32.mrb[0].mxu0
    %v3270 = vpop.f32.mrb[0].mxu0
    %v3271 = vpop.f32.mrb[0].mxu0
    %3272 = vmatprep.mubr.bf16.mxu0 %v3188
    %3273 = vmatmul.mubr.bf16.gmra.mrb[0].mxu0 %v3040
    %v3274 = vpop.f32.mrb[0].mxu0
    %v3275 = vpop.f32.mrb[0].mxu0
    %v3276 = vpop.f32.mrb[0].mxu0
    %v3277 = vpop.f32.mrb[0].mxu0
    %3278 = vmatprep.mubr.bf16.mxu0 %v3191
    %3279 = vmatmul.mubr.bf16.gmra.mrb[0].mxu0 %v3042
    %v3280 = vpop.f32.mrb[0].mxu0
    %v3281 = vadd.f32 0.0, %v3280
    %v3282 = vpop.f32.mrb[0].mxu0
    %v3283 = vpop.f32.mrb[0].mxu0
    %v3284 = vadd.f32 0.0, %v3283
    %v3285 = vpop.f32.mrb[0].mxu0
    %3286 = vmatprep.mubr.bf16.mxu0 %v3194
    %3287 = vmatmul.mubr.bf16.gmra.mrb[0].mxu0 %v3044
    %v3288 = vpop.f32.mrb[0].mxu0
    %v3289 = vadd.f32 0.0, %v3288
    %v3290 = vpop.f32.mrb[0].mxu0
    %v3291 = vpop.f32.mrb[0].mxu0
    %v3292 = vadd.f32 0.0, %v3291
    %v3293 = vpop.f32.mrb[0].mxu0
    %3294 = vmatprep.mubr.bf16.mxu0 %v3197
    %3295 = vmatmul.mubr.bf16.gmra.mrb[0].mxu0 %v3046
    %v3296 = vpop.f32.mrb[0].mxu0
    %v3297 = vadd.f32 0.0, %v3296
    %v3298 = vpop.f32.mrb[0].mxu0
    %v3299 = vpop.f32.mrb[0].mxu0
    %v3300 = vadd.f32 0.0, %v3299
    %v3301 = vpop.f32.mrb[0].mxu0
    %3302 = vmatprep.mubr.bf16.mxu0 %v3200
    %3303 = vmatmul.mubr.bf16.gmra.mrb[0].mxu0 %v3074
    %v3304 = vpop.f32.mrb[0].mxu0
    %v3305 = vadd.f32 0.0, %v3304
    %v3306 = vpop.f32.mrb[0].mxu0
    %v3307 = vpop.f32.mrb[0].mxu0
    %v3308 = vadd.f32 0.0, %v3307
    %v3309 = vpop.f32.mrb[0].mxu0
    %3310 = vdwg.mxu0
    %v3333 = vrot.slane %v3028, 4
    %v3334 = vrot.slane %v3030, 4
    %v3335 = vsel %vm1659, %v3333, %v3334
    %v3336 = vrot.slane %v3029, 4
    %v3337 = vrot.slane %v3031, 4
    %v3338 = vsel %vm1659, %v3336, %v3337
    %v3339 = vrot.slane %v3032, 4
    %v3340 = vsel %vm1659, %v3334, %v3339
    %v3341 = vrot.slane %v3033, 4
    %v3342 = vsel %vm1659, %v3337, %v3341
    %v3343 = vrot.slane %v3034, 4
    %v3344 = vsel %vm1659, %v3339, %v3343
    %v3345 = vrot.slane %v3035, 4
    %v3346 = vsel %vm1659, %v3341, %v3345
    %v3347 = vrot.slane %v3036, 4
    %v3348 = vsel %vm1659, %v3343, %v3347
    %v3349 = vrot.slane %v3037, 4
    %v3350 = vsel %vm1659, %v3345, %v3349
    %v3351 = vrot.slane %v3038, 4
    %v3352 = vsel %vm1659, %v3347, %v3351
    %v3353 = vrot.slane %v3039, 4
    %v3354 = vsel %vm1659, %v3349, %v3353
    %v3355 = vrot.slane %v3040, 4
    %v3356 = vsel %vm1659, %v3351, %v3355
    %v3357 = vrot.slane %v3041, 4
    %v3358 = vsel %vm1659, %v3353, %v3357
    %v3359 = vrot.slane %v3042, 4
    %v3360 = vsel %vm1659, %v3355, %v3359
    %v3361 = vrot.slane %v3043, 4
    %v3362 = vsel %vm1659, %v3357, %v3361
    %v3363 = vrot.slane %v3044, 4
    %v3364 = vsel %vm1659, %v3359, %v3363
    %v3365 = vrot.slane %v3045, 4
    %v3366 = vsel %vm1659, %v3361, %v3365
    %v3367 = vrot.slane %v3046, 4
    %v3368 = vsel %vm1659, %v3363, %v3367
    %v3369 = vrot.slane %v3047, 4
    %v3370 = vsel %vm1659, %v3365, %v3369
    %v3371 = vrot.slane %v3048, 4
    %v3372 = vsel %vm1659, %v3367, %v3371
    %v3373 = vrot.slane %v3049, 4
    %v3374 = vsel %vm1659, %v3369, %v3373
    %v3409 = vunpack.c.l.b16 %v3050
    %v3410 = vunpack.c.l.b16 %v3051
    %v3411 = vunpack.c.l.b16 %v3052
    %v3412 = vunpack.c.l.b16 %v3053
    %v3413 = vunpack.c.l.b16 %v3054
    %v3414 = vunpack.c.l.b16 %v3055
    %v3415 = vunpack.c.l.b16 %v3056
    %v3416 = vunpack.c.l.b16 %v3057
    %v3417 = vunpack.c.l.b16 %v3058
    %v3418 = vunpack.c.l.b16 %v3059
    %v3419 = vunpack.c.l.b16 %v3060
    %v3420 = vunpack.c.l.b16 %v3061
    %v3421 = vunpack.c.l.b16 %v3062
    %v3422 = vunpack.c.l.b16 %v3063
    %v3423 = vunpack.c.l.b16 %v3064
    %v3424 = vunpack.c.l.b16 %v3065
    %v3425 = vunpack.c.l.b16 %v3066
    %v3426 = vunpack.c.l.b16 %v3067
    %v3427 = vunpack.c.l.b16 %v3068
    %v3428 = vunpack.c.l.b16 %v3069
    %v3429 = vunpack.c.l.b16 %v3070
    %v3430 = vunpack.c.l.b16 %v3071
    %v3431 = vunpack.c.l.b16 %v3072
    %v3432 = vunpack.c.l.b16 %v3073
    %v3433 = vpack.c.b16 %v3410, %v3409
    %v3434 = vpack.c.b16 %v3412, %v3411
    %v3435 = vpack.c.b16 %v3414, %v3413
    %v3436 = vpack.c.b16 %v3416, %v3415
    %v3437 = vpack.c.b16 %v3418, %v3417
    %v3438 = vpack.c.b16 %v3420, %v3419
    %v3439 = vpack.c.b16 %v3422, %v3421
    %v3440 = vpack.c.b16 %v3424, %v3423
    %v3441 = vpack.c.b16 %v3426, %v3425
    %v3442 = vpack.c.b16 %v3428, %v3427
    %v3443 = vpack.c.b16 %v3430, %v3429
    %v3444 = vpack.c.b16 %v3432, %v3431
    %v3458 = vsel %vm427, %v3338, 0
    %v3461 = vsel %vm427, %v3342, 0
    %v3464 = vsel %vm427, %v3346, 0
    %v3467 = vsel %vm427, %v3350, 0
    %v3470 = vsel %vm427, %v3354, 0
    %v3473 = vsel %vm427, %v3358, 0
    %v3476 = vsel %vm427, %v3362, 0
    %v3479 = vsel %vm427, %v3366, 0
    %v3482 = vsel %vm427, %v3370, 0
    %v3485 = vsel %vm427, %v3374, 0
    %3487 = vmatprep.subr.bf16.mxu0 0
    %3488 = vmatpush1.bf16.msra.mxu0 %v3433
    %3489 = vmatprep.subr.bf16.mxu0 0
    %3490 = vmatpush1.bf16.msra.mxu0 %v3434
    %3491 = vmatprep.subr.bf16.mxu0 0
    %3492 = vmatpush1.bf16.msra.mxu0 %v3435
    %3493 = vmatprep.subr.bf16.mxu0 0
    %3494 = vmatpush1.bf16.msra.mxu0 %v3436
    %3495 = vmatprep.subr.bf16.mxu0 0
    %3496 = vmatpush1.bf16.msra.mxu0 %v3437
    %3497 = vmatprep.subr.bf16.mxu0 0
    %3498 = vmatpush1.bf16.msra.mxu0 %v3438
    %3499 = vmatprep.subr.bf16.mxu0 0
    %3500 = vmatpush1.bf16.msra.mxu0 %v3439
    %3501 = vmatprep.subr.bf16.mxu0 0
    %3502 = vmatpush1.bf16.msra.mxu0 %v3440
    %3503 = vmatprep.subr.bf16.mxu0 0
    %3504 = vmatpush1.bf16.msra.mxu0 %v3441
    %3505 = vmatprep.subr.bf16.mxu0 0
    %3506 = vmatpush1.bf16.msra.mxu0 %v3442
    %3507 = vmatprep.subr.bf16.mxu0 0
    %3508 = vmatpush1.bf16.msra.mxu0 %v3443
    %3509 = vmatprep.subr.bf16.mxu0 0
    %3510 = vmatpush1.bf16.msra.mxu0 %v3444
    %3511 = vmatprep.subr.bf16.mxu0 0
    %3512 = vmatpush1.bf16.msra.mxu0 0
    %3513 = vmatprep.subr.bf16.mxu0 0
    %3514 = vmatpush1.bf16.msra.mxu0 0
    %3515 = vmatprep.subr.bf16.mxu0 0
    %3516 = vmatpush1.bf16.msra.mxu0 0
    %3517 = vmatprep.subr.bf16.mxu0 0
    %3518 = vmatpush1.bf16.msra.mxu0 0
    %3519 = vmatprep.mubr.bf16.mxu0 %v3458
    %3520 = vmatmul.mubr.bf16.gmra.mrb[0].mxu0 %v3335
    %v3521 = vpop.f32.mrb[0].mxu0
    %v3522 = vadd.f32 %v3237, %v3521
    %v3523 = vpop.f32.mrb[0].mxu0
    %v3524 = vpop.f32.mrb[0].mxu0
    %v3525 = vadd.f32 %v3240, %v3524
    %v3526 = vpop.f32.mrb[0].mxu0
    %3527 = vmatprep.mubr.bf16.mxu0 %v3461
    %3528 = vmatmul.mubr.bf16.gmra.mrb[0].mxu0 %v3340
    %v3529 = vpop.f32.mrb[0].mxu0
    %v3530 = vadd.f32 %v3245, %v3529
    %v3531 = vpop.f32.mrb[0].mxu0
    %v3532 = vpop.f32.mrb[0].mxu0
    %v3533 = vadd.f32 %v3248, %v3532
    %v3534 = vpop.f32.mrb[0].mxu0
    %3535 = vmatprep.mubr.bf16.mxu0 %v3464
    %3536 = vmatmul.mubr.bf16.gmra.mrb[0].mxu0 %v3344
    %v3537 = vpop.f32.mrb[0].mxu0
    %v3538 = vadd.f32 %v3253, %v3537
    %v3539 = vpop.f32.mrb[0].mxu0
    %v3540 = vpop.f32.mrb[0].mxu0
    %v3541 = vadd.f32 %v3256, %v3540
    %v3542 = vpop.f32.mrb[0].mxu0
    %3543 = vmatprep.mubr.bf16.mxu0 %v3467
    %3544 = vmatmul.mubr.bf16.gmra.mrb[0].mxu0 %v3348
    %v3545 = vpop.f32.mrb[0].mxu0
    %v3546 = vadd.f32 %v3261, %v3545
    %v3547 = vpop.f32.mrb[0].mxu0
    %v3548 = vpop.f32.mrb[0].mxu0
    %v3549 = vadd.f32 %v3264, %v3548
    %v3550 = vpop.f32.mrb[0].mxu0
    %3551 = vmatprep.mubr.bf16.mxu0 %v3470
    %3552 = vmatmul.mubr.bf16.gmra.mrb[0].mxu0 %v3352
    %v3553 = vpop.f32.mrb[0].mxu0
    %v3554 = vpop.f32.mrb[0].mxu0
    %v3555 = vpop.f32.mrb[0].mxu0
    %v3556 = vpop.f32.mrb[0].mxu0
    %3557 = vmatprep.mubr.bf16.mxu0 %v3473
    %3558 = vmatmul.mubr.bf16.gmra.mrb[0].mxu0 %v3356
    %v3559 = vpop.f32.mrb[0].mxu0
    %v3560 = vpop.f32.mrb[0].mxu0
    %v3561 = vpop.f32.mrb[0].mxu0
    %v3562 = vpop.f32.mrb[0].mxu0
    %3563 = vmatprep.mubr.bf16.mxu0 %v3476
    %3564 = vmatmul.mubr.bf16.gmra.mrb[0].mxu0 %v3360
    %v3565 = vpop.f32.mrb[0].mxu0
    %v3566 = vadd.f32 %v3281, %v3565
    %v3567 = vpop.f32.mrb[0].mxu0
    %v3568 = vpop.f32.mrb[0].mxu0
    %v3569 = vadd.f32 %v3284, %v3568
    %v3570 = vpop.f32.mrb[0].mxu0
    %3571 = vmatprep.mubr.bf16.mxu0 %v3479
    %3572 = vmatmul.mubr.bf16.gmra.mrb[0].mxu0 %v3364
    %v3573 = vpop.f32.mrb[0].mxu0
    %v3574 = vadd.f32 %v3289, %v3573
    %v3575 = vpop.f32.mrb[0].mxu0
    %v3576 = vpop.f32.mrb[0].mxu0
    %v3577 = vadd.f32 %v3292, %v3576
    %v3578 = vpop.f32.mrb[0].mxu0
    %3579 = vmatprep.mubr.bf16.mxu0 %v3482
    %3580 = vmatmul.mubr.bf16.gmra.mrb[0].mxu0 %v3368
    %v3581 = vpop.f32.mrb[0].mxu0
    %v3582 = vadd.f32 %v3297, %v3581
    %v3583 = vpop.f32.mrb[0].mxu0
    %v3584 = vpop.f32.mrb[0].mxu0
    %v3585 = vadd.f32 %v3300, %v3584
    %v3586 = vpop.f32.mrb[0].mxu0
    %3587 = vmatprep.mubr.bf16.mxu0 %v3485
    %3588 = vmatmul.mubr.bf16.gmra.mrb[0].mxu0 %v3372
    %v3589 = vpop.f32.mrb[0].mxu0
    %v3590 = vadd.f32 %v3305, %v3589
    %v3591 = vpop.f32.mrb[0].mxu0
    %v3592 = vpop.f32.mrb[0].mxu0
    %v3593 = vadd.f32 %v3308, %v3592
    %v3594 = vpop.f32.mrb[0].mxu0
    %3595 = vdwg.mxu0
    %v3596 = vld [vmem:[#allocation2 + $0x10] sm:$0xf0]
    %v3597 = vld [vmem:[#allocation2 + $0x18] sm:$0xf0]
    %v3598 = vld [vmem:[#allocation2 + $0x20] sm:$0xff]
    %v3599 = vld [vmem:[#allocation2 + $0x28] sm:$0xff]
    %v3600 = vld [vmem:[#allocation2 + $0x30] sm:$0xff]
    %v3601 = vld [vmem:[#allocation2 + $0x38] sm:$0xff]
    %v3602 = vld [vmem:[#allocation2 + $0x40] sm:$0xff]
    %v3603 = vld [vmem:[#allocation2 + $0x48] sm:$0xff]
    %v3604 = vld [vmem:[#allocation2 + $0x50] sm:$0xff]
    %v3605 = vld [vmem:[#allocation2 + $0x58] sm:$0xff]
    %v3606 = vld [vmem:[#allocation2 + $0x60] sm:$0xff]
    %v3607 = vld [vmem:[#allocation2 + $0x68] sm:$0xff]
    %v3608 = vld [vmem:[#allocation2 + $0x70] sm:$0xff]
    %v3609 = vld [vmem:[#allocation2 + $0x78] sm:$0xff]
    %v3610 = vld [vmem:[#allocation2 + $0x80] sm:$0xff]
    %v3611 = vld [vmem:[#allocation2 + $0x88] sm:$0xff]
    %v3612 = vld [vmem:[#allocation2 + $0x90] sm:$0xff]
    %v3613 = vld [vmem:[#allocation2 + $0x98] sm:$0xff]
    %v3614 = vld [vmem:[#allocation2 + $0xa0] sm:$0xff]
    %v3615 = vld [vmem:[#allocation2 + $0xa8] sm:$0xff]
    %v3616 = vld [vmem:[#allocation2 + $0xb0] sm:$0xf]
    %v3617 = vld [vmem:[#allocation2 + $0xb8] sm:$0xf]
    %v3618 = vld [vmem:[%s21 + $0xc0] sm:$0xf]
    %v3619 = vld [vmem:[%s21 + $0xc4] sm:$0xf]
    %v3620 = vld [vmem:[%s21 + $0xc8] sm:$0xf]
    %v3621 = vld [vmem:[%s21 + $0xcc] sm:$0xf]
    %v3622 = vld [vmem:[%s21 + $0xd0] sm:$0xf]
    %v3623 = vld [vmem:[%s21 + $0xd4] sm:$0xf]
    %v3624 = vld [vmem:[%s21 + $0xd8] sm:$0xf]
    %v3625 = vld [vmem:[%s21 + $0xdc] sm:$0xf]
    %v3626 = vld [vmem:[%s21 + $0xe0] sm:$0xf]
    %v3627 = vld [vmem:[%s21 + $0xe4] sm:$0xf]
    %v3628 = vld [vmem:[%s21 + $0xe8] sm:$0xf]
    %v3629 = vld [vmem:[%s21 + $0xec] sm:$0xf]
    %v3630 = vld [vmem:[%s21 + $0xf0] sm:$0xf]
    %v3631 = vld [vmem:[%s21 + $0xf4] sm:$0xf]
    %v3632 = vld [vmem:[%s21 + $0xf8] sm:$0xf]
    %v3633 = vld [vmem:[%s21 + $0xfc] sm:$0xf]
    %v3634 = vld [vmem:[%s21 + $0x100] sm:$0xf]
    %v3635 = vld [vmem:[%s21 + $0x104] sm:$0xf]
    %v3636 = vld [vmem:[%s21 + $0x108] sm:$0xf]
    %v3637 = vld [vmem:[%s21 + $0x10c] sm:$0xf]
    %v3638 = vld [vmem:[%s21 + $0x110] sm:$0xf]
    %v3639 = vld [vmem:[%s21 + $0x114] sm:$0xf]
    %v3640 = vld [vmem:[%s21 + $0x118] sm:$0xf]
    %v3641 = vld [vmem:[%s21 + $0x11c] sm:$0xf]
    %v3664 = vrot.slane %v3596, 4
    %v3665 = vrot.slane %v3598, 4
    %v3666 = vsel %vm1659, %v3664, %v3665
    %v3667 = vrot.slane %v3597, 4
    %v3668 = vrot.slane %v3599, 4
    %v3669 = vsel %vm1659, %v3667, %v3668
    %v3670 = vrot.slane %v3600, 4
    %v3671 = vsel %vm1659, %v3665, %v3670
    %v3672 = vrot.slane %v3601, 4
    %v3673 = vsel %vm1659, %v3668, %v3672
    %v3674 = vrot.slane %v3602, 4
    %v3675 = vsel %vm1659, %v3670, %v3674
    %v3676 = vrot.slane %v3603, 4
    %v3677 = vsel %vm1659, %v3672, %v3676
    %v3678 = vrot.slane %v3604, 4
    %v3679 = vsel %vm1659, %v3674, %v3678
    %v3680 = vrot.slane %v3605, 4
    %v3681 = vsel %vm1659, %v3676, %v3680
    %v3682 = vrot.slane %v3606, 4
    %v3683 = vsel %vm1659, %v3678, %v3682
    %v3684 = vrot.slane %v3607, 4
    %v3685 = vsel %vm1659, %v3680, %v3684
    %v3686 = vrot.slane %v3608, 4
    %v3687 = vsel %vm1659, %v3682, %v3686
    %v3688 = vrot.slane %v3609, 4
    %v3689 = vsel %vm1659, %v3684, %v3688
    %v3690 = vrot.slane %v3610, 4
    %v3691 = vsel %vm1659, %v3686, %v3690
    %v3692 = vrot.slane %v3611, 4
    %v3693 = vsel %vm1659, %v3688, %v3692
    %v3694 = vrot.slane %v3612, 4
    %v3695 = vsel %vm1659, %v3690, %v3694
    %v3696 = vrot.slane %v3613, 4
    %v3697 = vsel %vm1659, %v3692, %v3696
    %v3698 = vrot.slane %v3614, 4
    %v3699 = vsel %vm1659, %v3694, %v3698
    %v3700 = vrot.slane %v3615, 4
    %v3701 = vsel %vm1659, %v3696, %v3700
    %v3702 = vrot.slane %v3616, 4
    %v3703 = vsel %vm1659, %v3698, %v3702
    %v3704 = vrot.slane %v3617, 4
    %v3705 = vsel %vm1659, %v3700, %v3704
    %v3740 = vunpack.c.l.b16 %v3618
    %v3741 = vunpack.c.l.b16 %v3619
    %v3742 = vunpack.c.l.b16 %v3620
    %v3743 = vunpack.c.l.b16 %v3621
    %v3744 = vunpack.c.l.b16 %v3622
    %v3745 = vunpack.c.l.b16 %v3623
    %v3746 = vunpack.c.l.b16 %v3624
    %v3747 = vunpack.c.l.b16 %v3625
    %v3748 = vunpack.c.l.b16 %v3626
    %v3749 = vunpack.c.l.b16 %v3627
    %v3750 = vunpack.c.l.b16 %v3628
    %v3751 = vunpack.c.l.b16 %v3629
    %v3752 = vunpack.c.l.b16 %v3630
    %v3753 = vunpack.c.l.b16 %v3631
    %v3754 = vunpack.c.l.b16 %v3632
    %v3755 = vunpack.c.l.b16 %v3633
    %v3756 = vunpack.c.l.b16 %v3634
    %v3757 = vunpack.c.l.b16 %v3635
    %v3758 = vunpack.c.l.b16 %v3636
    %v3759 = vunpack.c.l.b16 %v3637
    %v3760 = vunpack.c.l.b16 %v3638
    %v3761 = vunpack.c.l.b16 %v3639
    %v3762 = vunpack.c.l.b16 %v3640
    %v3763 = vunpack.c.l.b16 %v3641
    %v3764 = vpack.c.b16 %v3741, %v3740
    %v3765 = vpack.c.b16 %v3743, %v3742
    %v3766 = vpack.c.b16 %v3745, %v3744
    %v3767 = vpack.c.b16 %v3747, %v3746
    %v3768 = vpack.c.b16 %v3749, %v3748
    %v3769 = vpack.c.b16 %v3751, %v3750
    %v3770 = vpack.c.b16 %v3753, %v3752
    %v3771 = vpack.c.b16 %v3755, %v3754
    %v3772 = vpack.c.b16 %v3757, %v3756
    %v3773 = vpack.c.b16 %v3759, %v3758
    %v3774 = vpack.c.b16 %v3761, %v3760
    %v3775 = vpack.c.b16 %v3763, %v3762
    %v3789 = vsel %vm427, %v3669, 0
    %v3792 = vsel %vm427, %v3673, 0
    %v3795 = vsel %vm427, %v3677, 0
    %v3798 = vsel %vm427, %v3681, 0
    %v3801 = vsel %vm427, %v3685, 0
    %v3804 = vsel %vm427, %v3689, 0
    %v3807 = vsel %vm427, %v3693, 0
    %v3810 = vsel %vm427, %v3697, 0
    %v3813 = vsel %vm427, %v3701, 0
    %v3816 = vsel %vm427, %v3705, 0
    %3818 = vmatprep.subr.bf16.mxu0 0
    %3819 = vmatpush1.bf16.msra.mxu0 %v3764
    %3820 = vmatprep.subr.bf16.mxu0 0
    %3821 = vmatpush1.bf16.msra.mxu0 %v3765
    %3822 = vmatprep.subr.bf16.mxu0 0
    %3823 = vmatpush1.bf16.msra.mxu0 %v3766
    %3824 = vmatprep.subr.bf16.mxu0 0
    %3825 = vmatpush1.bf16.msra.mxu0 %v3767
    %3826 = vmatprep.subr.bf16.mxu0 0
    %3827 = vmatpush1.bf16.msra.mxu0 %v3768
    %3828 = vmatprep.subr.bf16.mxu0 0
    %3829 = vmatpush1.bf16.msra.mxu0 %v3769
    %3830 = vmatprep.subr.bf16.mxu0 0
    %3831 = vmatpush1.bf16.msra.mxu0 %v3770
    %3832 = vmatprep.subr.bf16.mxu0 0
    %3833 = vmatpush1.bf16.msra.mxu0 %v3771
    %3834 = vmatprep.subr.bf16.mxu0 0
    %3835 = vmatpush1.bf16.msra.mxu0 %v3772
    %3836 = vmatprep.subr.bf16.mxu0 0
    %3837 = vmatpush1.bf16.msra.mxu0 %v3773
    %3838 = vmatprep.subr.bf16.mxu0 0
    %3839 = vmatpush1.bf16.msra.mxu0 %v3774
    %3840 = vmatprep.subr.bf16.mxu0 0
    %3841 = vmatpush1.bf16.msra.mxu0 %v3775
    %3842 = vmatprep.subr.bf16.mxu0 0
    %3843 = vmatpush1.bf16.msra.mxu0 0
    %3844 = vmatprep.subr.bf16.mxu0 0
    %3845 = vmatpush1.bf16.msra.mxu0 0
    %3846 = vmatprep.subr.bf16.mxu0 0
    %3847 = vmatpush1.bf16.msra.mxu0 0
    %3848 = vmatprep.subr.bf16.mxu0 0
    %3849 = vmatpush1.bf16.msra.mxu0 0
    %3850 = vmatprep.mubr.bf16.mxu0 %v3789
    %3851 = vmatmul.mubr.bf16.gmra.mrb[0].mxu0 %v3666
    %v3852 = vpop.f32.mrb[0].mxu0
    %v3853 = vadd.f32 0.0, %v3852
    %v3854 = vpop.f32.mrb[0].mxu0
    %v3855 = vpop.f32.mrb[0].mxu0
    %v3856 = vadd.f32 0.0, %v3855
    %v3857 = vpop.f32.mrb[0].mxu0
    %3858 = vmatprep.mubr.bf16.mxu0 %v3792
    %3859 = vmatmul.mubr.bf16.gmra.mrb[0].mxu0 %v3671
    %v3860 = vpop.f32.mrb[0].mxu0
    %v3861 = vadd.f32 0.0, %v3860
    %v3862 = vpop.f32.mrb[0].mxu0
    %v3863 = vpop.f32.mrb[0].mxu0
    %v3864 = vadd.f32 0.0, %v3863
    %v3865 = vpop.f32.mrb[0].mxu0
    %3866 = vmatprep.mubr.bf16.mxu0 %v3795
    %3867 = vmatmul.mubr.bf16.gmra.mrb[0].mxu0 %v3675
    %v3868 = vpop.f32.mrb[0].mxu0
    %v3869 = vadd.f32 0.0, %v3868
    %v3870 = vpop.f32.mrb[0].mxu0
    %v3871 = vpop.f32.mrb[0].mxu0
    %v3872 = vadd.f32 0.0, %v3871
    %v3873 = vpop.f32.mrb[0].mxu0
    %3874 = vmatprep.mubr.bf16.mxu0 %v3798
    %3875 = vmatmul.mubr.bf16.gmra.mrb[0].mxu0 %v3679
    %v3876 = vpop.f32.mrb[0].mxu0
    %v3877 = vadd.f32 0.0, %v3876
    %v3878 = vpop.f32.mrb[0].mxu0
    %v3879 = vpop.f32.mrb[0].mxu0
    %v3880 = vadd.f32 0.0, %v3879
    %v3881 = vpop.f32.mrb[0].mxu0
    %3882 = vmatprep.mubr.bf16.mxu0 %v3801
    %3883 = vmatmul.mubr.bf16.gmra.mrb[0].mxu0 %v3683
    %v3884 = vpop.f32.mrb[0].mxu0
    %v3885 = vpop.f32.mrb[0].mxu0
    %v3886 = vpop.f32.mrb[0].mxu0
    %v3887 = vpop.f32.mrb[0].mxu0
    %3888 = vmatprep.mubr.bf16.mxu0 %v3804
    %3889 = vmatmul.mubr.bf16.gmra.mrb[0].mxu0 %v3687
    %v3890 = vpop.f32.mrb[0].mxu0
    %v3891 = vpop.f32.mrb[0].mxu0
    %v3892 = vpop.f32.mrb[0].mxu0
    %v3893 = vpop.f32.mrb[0].mxu0
    %3894 = vmatprep.mubr.bf16.mxu0 %v3807
    %3895 = vmatmul.mubr.bf16.gmra.mrb[0].mxu0 %v3691
    %v3896 = vpop.f32.mrb[0].mxu0
    %v3897 = vadd.f32 0.0, %v3896
    %v3898 = vpop.f32.mrb[0].mxu0
    %v3899 = vpop.f32.mrb[0].mxu0
    %v3900 = vadd.f32 0.0, %v3899
    %v3901 = vpop.f32.mrb[0].mxu0
    %3902 = vmatprep.mubr.bf16.mxu0 %v3810
    %3903 = vmatmul.mubr.bf16.gmra.mrb[0].mxu0 %v3695
    %v3904 = vpop.f32.mrb[0].mxu0
    %v3905 = vadd.f32 0.0, %v3904
    %v3906 = vpop.f32.mrb[0].mxu0
    %v3907 = vpop.f32.mrb[0].mxu0
    %v3908 = vadd.f32 0.0, %v3907
    %v3909 = vpop.f32.mrb[0].mxu0
    %3910 = vmatprep.mubr.bf16.mxu0 %v3813
    %3911 = vmatmul.mubr.bf16.gmra.mrb[0].mxu0 %v3699
    %v3912 = vpop.f32.mrb[0].mxu0
    %v3913 = vadd.f32 0.0, %v3912
    %v3914 = vpop.f32.mrb[0].mxu0
    %v3915 = vpop.f32.mrb[0].mxu0
    %v3916 = vadd.f32 0.0, %v3915
    %v3917 = vpop.f32.mrb[0].mxu0
    %3918 = vmatprep.mubr.bf16.mxu0 %v3816
    %3919 = vmatmul.mubr.bf16.gmra.mrb[0].mxu0 %v3703
    %v3920 = vpop.f32.mrb[0].mxu0
    %v3921 = vadd.f32 0.0, %v3920
    %v3922 = vpop.f32.mrb[0].mxu0
    %v3923 = vpop.f32.mrb[0].mxu0
    %v3924 = vadd.f32 0.0, %v3923
    %v3925 = vpop.f32.mrb[0].mxu0
    %3926 = vdwg.mxu0
    %v3927 = vadd.f32 %v3522, %v3853
    %v3928 = vadd.f32 %v3525, %v3856
    %v3929 = vadd.f32 %v3530, %v3861
    %v3930 = vadd.f32 %v3533, %v3864
    %v3931 = vadd.f32 %v3538, %v3869
    %v3932 = vadd.f32 %v3541, %v3872
    %v3933 = vadd.f32 %v3546, %v3877
    %v3934 = vadd.f32 %v3549, %v3880
    %v3935 = vadd.f32 %v3566, %v3897
    %v3936 = vadd.f32 %v3569, %v3900
    %v3937 = vadd.f32 %v3574, %v3905
    %v3938 = vadd.f32 %v3577, %v3908
    %v3939 = vadd.f32 %v3582, %v3913
    %v3940 = vadd.f32 %v3585, %v3916
    %v3941 = vadd.f32 %v3590, %v3921
    %v3942 = vadd.f32 %v3593, %v3924
    %v3943 = vld [vmem:[%s23] sm:$0x1]
    %v3945 = vlaneseq
    %v3946 = vshrl.u32 %v3945, 7
    %v3947 = vsub.s32 0, %v3946
    %v3948 = vrot.slane %v3943, %v3947
    %v3950 = vadd.f32 %v3927, %v3948
    %v3951 = vadd.f32 %v3928, %v3948
    %v3952 = vadd.f32 %v3929, %v3948
    %v3953 = vadd.f32 %v3930, %v3948
    %v3954 = vadd.f32 %v3931, %v3948
    %v3955 = vadd.f32 %v3932, %v3948
    %v3956 = vadd.f32 %v3933, %v3948
    %v3957 = vadd.f32 %v3934, %v3948
    %v3958 = vadd.f32 %v3935, %v3948
    %v3959 = vadd.f32 %v3936, %v3948
    %v3960 = vadd.f32 %v3937, %v3948
    %v3961 = vadd.f32 %v3938, %v3948
    %v3962 = vadd.f32 %v3939, %v3948
    %v3963 = vadd.f32 %v3940, %v3948
    %v3964 = vadd.f32 %v3941, %v3948
    %v3965 = vadd.f32 %v3942, %v3948
    %v3966 = vadd.f32 %v2277, %v3950
    %v3967 = vadd.f32 %v2278, %v3951
    %v3968 = vadd.f32 %v2279, %v3952
    %v3969 = vadd.f32 %v2280, %v3953
    %v3970 = vadd.f32 %v2281, %v3954
    %v3971 = vadd.f32 %v2282, %v3955
    %v3972 = vadd.f32 %v2283, %v3956
    %v3973 = vadd.f32 %v2284, %v3957
    %v3974 = vadd.f32 %v2285, %v3958
    %v3975 = vadd.f32 %v2286, %v3959
    %v3976 = vadd.f32 %v2287, %v3960
    %v3977 = vadd.f32 %v2288, %v3961
    %v3978 = vadd.f32 %v2289, %v3962
    %v3979 = vadd.f32 %v2290, %v3963
    %v3980 = vadd.f32 %v2291, %v3964
    %v3981 = vadd.f32 %v2292, %v3965
    %v3982 = vld [vmem:[%s5] sm:$0x3]
    %v3983 = vxor.u32 %v3982, 2147483648
    %v3984 = vmul.f32 %v3983, 1.442695
    %v3985 = vpow.pop %v3984
    %v3986 = vadd.f32 %v3985, 1.0
    %v3987 = vrcp.pop %v3986
    %v3988 = vmul.f32 1.0, %v3987
    %v3989 = vmul.f32 %v3982, %v3988
    %v3990 = vpack.c.bf16 %v3989, %v3989
    %v3991 = vld [vmem:[%s25] sm:$0xf]
    %v3992 = vld [vmem:[%s25 + $0x4] sm:$0xf]
    %v3993 = vld [vmem:[%s25 + $0x8] sm:$0xf]
    %v3994 = vld [vmem:[%s25 + $0xc] sm:$0xf]
    %v3995 = vld [vmem:[%s25 + $0x10] sm:$0xf]
    %v3996 = vld [vmem:[%s25 + $0x14] sm:$0xf]
    %v3997 = vld [vmem:[%s25 + $0x18] sm:$0xf]
    %v3998 = vld [vmem:[%s25 + $0x1c] sm:$0xf]
    %v3999 = vld [vmem:[%s25 + $0x20] sm:$0xf]
    %v4000 = vld [vmem:[%s25 + $0x24] sm:$0xf]
    %v4001 = vld [vmem:[%s25 + $0x28] sm:$0xf]
    %v4002 = vld [vmem:[%s25 + $0x2c] sm:$0xf]
    %v4003 = vld [vmem:[%s27] sm:$0x1]
    %v4005 = vlaneseq
    %v4006 = vshrl.u32 %v4005, 7
    %v4007 = vsub.s32 0, %v4006
    %v4008 = vrot.slane %v4003, %v4007
    %v4022 = vunpack.c.l.b16 %v3991
    %v4023 = vunpack.c.l.b16 %v3992
    %v4024 = vunpack.c.l.b16 %v3993
    %v4025 = vunpack.c.l.b16 %v3994
    %v4026 = vunpack.c.l.b16 %v3995
    %v4027 = vunpack.c.l.b16 %v3996
    %v4028 = vunpack.c.l.b16 %v3997
    %v4029 = vunpack.c.l.b16 %v3998
    %v4030 = vunpack.c.l.b16 %v3999
    %v4031 = vunpack.c.l.b16 %v4000
    %v4032 = vunpack.c.l.b16 %v4001
    %v4033 = vunpack.c.l.b16 %v4002
    %v4034 = vpack.c.b16 %v4023, %v4022
    %v4035 = vpack.c.b16 %v4025, %v4024
    %v4036 = vpack.c.b16 %v4027, %v4026
    %v4037 = vpack.c.b16 %v4029, %v4028
    %v4038 = vpack.c.b16 %v4031, %v4030
    %v4039 = vpack.c.b16 %v4033, %v4032
    %vm4046 = vcmask 785408
    %v4048 = vsel %vm4046, %v3990, 0
    %4050 = vmatprep.subr.bf16.mxu0 0
    %4051 = vmatpush1.bf16.msra.mxu0 %v4034
    %4052 = vmatprep.subr.bf16.mxu0 0
    %4053 = vmatpush1.bf16.msra.mxu0 %v4035
    %4054 = vmatprep.subr.bf16.mxu0 0
    %4055 = vmatpush1.bf16.msra.mxu0 %v4036
    %4056 = vmatprep.subr.bf16.mxu0 0
    %4057 = vmatpush1.bf16.msra.mxu0 %v4037
    %4058 = vmatprep.subr.bf16.mxu0 0
    %4059 = vmatpush1.bf16.msra.mxu0 %v4038
    %4060 = vmatprep.subr.bf16.mxu0 0
    %4061 = vmatpush1.bf16.msra.mxu0 %v4039
    %4062 = vmatprep.subr.bf16.mxu0 0
    %4063 = vmatpush1.bf16.msra.mxu0 0
    %4064 = vmatprep.subr.bf16.mxu0 0
    %4065 = vmatpush1.bf16.msra.mxu0 0
    %4066 = vmatprep.subr.bf16.mxu0 0
    %4067 = vmatpush1.bf16.msra.mxu0 0
    %4068 = vmatprep.subr.bf16.mxu0 0
    %4069 = vmatpush1.bf16.msra.mxu0 0
    %4070 = vmatprep.subr.bf16.mxu0 0
    %4071 = vmatpush1.bf16.msra.mxu0 0
    %4072 = vmatprep.subr.bf16.mxu0 0
    %4073 = vmatpush1.bf16.msra.mxu0 0
    %4074 = vmatprep.subr.bf16.mxu0 0
    %4075 = vmatpush1.bf16.msra.mxu0 0
    %4076 = vmatprep.subr.bf16.mxu0 0
    %4077 = vmatpush1.bf16.msra.mxu0 0
    %4078 = vmatprep.subr.bf16.mxu0 0
    %4079 = vmatpush1.bf16.msra.mxu0 0
    %4080 = vmatprep.subr.bf16.mxu0 0
    %4081 = vmatpush1.bf16.msra.mxu0 0
    %4082 = vmatprep.mubr.bf16.mxu0 0
    %4083 = vmatmul.mubr.bf16.gmra.mrb[0].mxu0 %v4048
    %v4084 = vpop.f32.mrb[0].mxu0
    %v4085 = vadd.f32 %v4008, %v4084
    %v4086 = vpop.f32.mrb[0].mxu0
    %v4087 = vpop.f32.mrb[0].mxu0
    %v4088 = vpop.f32.mrb[0].mxu0
    %4089 = vdwg.mxu0
    %v4092 = vunpack.c.l.s4 1966171168
    %v4093 = vunpack.c.0.s8 %v4092
    %v4094 = vlaneseq
    %v4095 = vshrl.u32 %v4094, 7
    %v4096 = vsub.s32 %v4093, %v4095
    %v4097 = vrot.slane %v4085, %v4096
    %v4098 = vcombine.high %v4097, %v4097
    %v4100 = vunpack.c.l.s4 1966171168
    %v4101 = vunpack.c.0.s8 %v4100
    %v4102 = vlaneseq
    %v4103 = vshrl.u32 %v4102, 7
    %v4104 = vsub.s32 %v4101, %v4103
    %v4105 = vrot.slane %v4097, %v4104
    %v4107 = vunpack.c.l.s4 1966171168
    %v4108 = vunpack.c.0.s8 %v4107
    %v4109 = vlaneseq
    %v4110 = vshrl.u32 %v4109, 7
    %v4111 = vsub.s32 %v4108, %v4110
    %v4112 = vrot.slane %v4098, %v4111
    %v4113 = vlaneseq
    %v4114 = vshrl.u32 %v4113, 7
    %v4115 = vsub.s32 0, %v4114
    %v4116 = vrot.slane %v4105, %v4115
    %v4117 = vlaneseq
    %v4118 = vshrl.u32 %v4117, 7
    %v4119 = vsub.s32 0, %v4118
    %v4120 = vrot.slane %v4112, %v4119
    %v4123 = vadd.f32 %v3966, %v4116
    %v4124 = vadd.f32 %v3967, %v4116
    %v4125 = vadd.f32 %v3968, %v4116
    %v4126 = vadd.f32 %v3969, %v4116
    %v4127 = vadd.f32 %v3970, %v4116
    %v4128 = vadd.f32 %v3971, %v4116
    %v4129 = vadd.f32 %v3972, %v4116
    %v4130 = vadd.f32 %v3973, %v4116
    %v4131 = vadd.f32 %v3974, %v4120
    %v4132 = vadd.f32 %v3975, %v4120
    %v4133 = vadd.f32 %v3976, %v4120
    %v4134 = vadd.f32 %v3977, %v4120
    %v4135 = vadd.f32 %v3978, %v4120
    %v4136 = vadd.f32 %v3979, %v4120
    %v4137 = vadd.f32 %v3980, %v4120
    %v4138 = vadd.f32 %v3981, %v4120
    %vm4139 = vcmask 261120
    %v4140 = vsel %vm4139, %v4123, 0.0
    %v4141 = vsel %vm4139, %v4124, 0.0
    %v4142 = vadd.f32 %v4140, %v4141
    %v4143 = vsel %vm4139, %v4125, 0.0
    %v4144 = vadd.f32 %v4142, %v4143
    %v4145 = vsel %vm4139, %v4126, 0.0
    %v4146 = vadd.f32 %v4144, %v4145
    %v4147 = vsel %vm4139, %v4127, 0.0
    %v4148 = vadd.f32 %v4146, %v4147
    %v4149 = vsel %vm4139, %v4128, 0.0
    %v4150 = vadd.f32 %v4148, %v4149
    %v4151 = vsel %vm4139, %v4129, 0.0
    %v4152 = vadd.f32 %v4150, %v4151
    %v4153 = vsel %vm4139, %v4130, 0.0
    %v4154 = vadd.f32 %v4152, %v4153
    %v4155 = vrot.slane %v4154, 4
    %v4156 = vadd.f32 %v4154, %v4155
    %v4157 = vrot.slane %v4156, 2
    %v4158 = vadd.f32 %v4156, %v4157
    %v4159 = vrot.slane %v4158, 1
    %v4160 = vadd.f32 %v4158, %v4159
    %v4161 = vsel %vm4139, %v4131, 0.0
    %v4162 = vsel %vm4139, %v4132, 0.0
    %v4163 = vadd.f32 %v4161, %v4162
    %v4164 = vsel %vm4139, %v4133, 0.0
    %v4165 = vadd.f32 %v4163, %v4164
    %v4166 = vsel %vm4139, %v4134, 0.0
    %v4167 = vadd.f32 %v4165, %v4166
    %v4168 = vsel %vm4139, %v4135, 0.0
    %v4169 = vadd.f32 %v4167, %v4168
    %v4170 = vsel %vm4139, %v4136, 0.0
    %v4171 = vadd.f32 %v4169, %v4170
    %v4172 = vsel %vm4139, %v4137, 0.0
    %v4173 = vadd.f32 %v4171, %v4172
    %v4174 = vsel %vm4139, %v4138, 0.0
    %v4175 = vadd.f32 %v4173, %v4174
    %v4176 = vrot.slane %v4175, 4
    %v4177 = vadd.f32 %v4175, %v4176
    %v4178 = vrot.slane %v4177, 2
    %v4179 = vadd.f32 %v4177, %v4178
    %v4180 = vrot.slane %v4179, 1
    %v4181 = vadd.f32 %v4179, %v4180
    %v4182 = vmul.f32 %v4160, 0.015625
    %v4183 = vmul.f32 %v4181, 0.015625
    %v4184 = vld [vmem:[%s33] sm:$0xff]
    %v4185 = vld [vmem:[%s33 + $0x8] sm:$0xff]
    %v4186 = vld [vmem:[%s33 + $0x10] sm:$0xff]
    %v4187 = vld [vmem:[%s33 + $0x18] sm:$0xff]
    %v4190 = vsel %vm482, %v4183, %v4182
    %v4191 = vsel %vm4139, %v4190, 0
    %4193 = vmatprep.subr.mxu0 0.0
    %4194 = vmatpush1.msra.mxu0 %v4184
    %4195 = vmatprep.subr.mxu0 0.0
    %4196 = vmatpush1.msra.mxu0 %v4185
    %4197 = vmatprep.subr.mxu0 0.0
    %4198 = vmatpush1.msra.mxu0 %v4186
    %4199 = vmatprep.subr.mxu0 0.0
    %4200 = vmatpush1.msra.mxu0 %v4187
    %4201 = vmatprep.subr.mxu0 0.0
    %4202 = vmatpush1.msra.mxu0 0.0
    %4203 = vmatprep.subr.mxu0 0.0
    %4204 = vmatpush1.msra.mxu0 0.0
    %4205 = vmatprep.subr.mxu0 0.0
    %4206 = vmatpush1.msra.mxu0 0.0
    %4207 = vmatprep.subr.mxu0 0.0
    %4208 = vmatpush1.msra.mxu0 0.0
    %4209 = vmatprep.subr.mxu0 0.0
    %4210 = vmatpush1.msra.mxu0 0.0
    %4211 = vmatprep.subr.mxu0 0.0
    %4212 = vmatpush1.msra.mxu0 0.0
    %4213 = vmatprep.subr.mxu0 0.0
    %4214 = vmatpush1.msra.mxu0 0.0
    %4215 = vmatprep.subr.mxu0 0.0
    %4216 = vmatpush1.msra.mxu0 0.0
    %4217 = vmatprep.subr.mxu0 0.0
    %4218 = vmatpush1.msra.mxu0 0.0
    %4219 = vmatprep.subr.mxu0 0.0
    %4220 = vmatpush1.msra.mxu0 0.0
    %4221 = vmatprep.subr.mxu0 0.0
    %4222 = vmatpush1.msra.mxu0 0.0
    %4223 = vmatprep.subr.mxu0 0.0
    %4224 = vmatpush1.msra.mxu0 0.0
    %4225 = vmatprep.subr.mxu0 0.0
    %4226 = vmatpush1.msra.mxu0 0.0
    %4227 = vmatprep.subr.mxu0 0.0
    %4228 = vmatpush1.msra.mxu0 0.0
    %4229 = vmatprep.subr.mxu0 0.0
    %4230 = vmatpush1.msra.mxu0 0.0
    %4231 = vmatprep.subr.mxu0 0.0
    %4232 = vmatpush1.msra.mxu0 0.0
    %4233 = vmatprep.subr.mxu0 0.0
    %4234 = vmatpush1.msra.mxu0 0.0
    %4235 = vmatprep.subr.mxu0 0.0
    %4236 = vmatpush1.msra.mxu0 0.0
    %4237 = vmatprep.subr.mxu0 0.0
    %4238 = vmatpush1.msra.mxu0 0.0
    %4239 = vmatprep.subr.mxu0 0.0
    %4240 = vmatpush1.msra.mxu0 0.0
    %4241 = vmatprep.subr.mxu0 0.0
    %4242 = vmatpush1.msra.mxu0 0.0
    %4243 = vmatprep.subr.mxu0 0.0
    %4244 = vmatpush1.msra.mxu0 0.0
    %4245 = vmatprep.subr.mxu0 0.0
    %4246 = vmatpush1.msra.mxu0 0.0
    %4247 = vmatprep.subr.mxu0 0.0
    %4248 = vmatpush1.msra.mxu0 0.0
    %4249 = vmatprep.subr.mxu0 0.0
    %4250 = vmatpush1.msra.mxu0 0.0
    %4251 = vmatprep.subr.mxu0 0.0
    %4252 = vmatpush1.msra.mxu0 0.0
    %4253 = vmatprep.subr.mxu0 0.0
    %4254 = vmatpush1.msra.mxu0 0.0
    %4255 = vmatprep.subr.mxu0 0.0
    %4256 = vmatpush1.msra.mxu0 0.0
    %4257 = vmatprep.mubr.f32.mxu0 0.0
    %4258 = vmatmul.mubr.f32.gmra.mrb[0].mxu0 %v4191
    %v4259 = vpop.f32.mrb[0].mxu0
    %v4260 = vadd.f32 0.0, %v4259
    %v4261 = vpop.f32.mrb[0].mxu0
    %4262 = vdwg.mxu0
    %v4265 = vunpack.c.l.s4 1966171168
    %v4266 = vunpack.c.0.s8 %v4265
    %v4267 = vlaneseq
    %v4268 = vshrl.u32 %v4267, 7
    %v4269 = vsub.s32 %v4266, %v4268
    %v4270 = vrot.slane %v4260, %v4269
    %v4271 = vcombine.high %v4270, %v4270
    %v4273 = vunpack.c.l.s4 1966171168
    %v4274 = vunpack.c.0.s8 %v4273
    %v4275 = vlaneseq
    %v4276 = vshrl.u32 %v4275, 7
    %v4277 = vsub.s32 %v4274, %v4276
    %v4278 = vrot.slane %v4270, %v4277
    %v4280 = vunpack.c.l.s4 1966171168
    %v4281 = vunpack.c.0.s8 %v4280
    %v4282 = vlaneseq
    %v4283 = vshrl.u32 %v4282, 7
    %v4284 = vsub.s32 %v4281, %v4283
    %v4285 = vrot.slane %v4271, %v4284
    %v4286 = vlaneseq
    %v4287 = vshrl.u32 %v4286, 7
    %v4288 = vsub.s32 0, %v4287
    %v4289 = vrot.slane %v4278, %v4288
    %v4290 = vlaneseq
    %v4291 = vshrl.u32 %v4290, 7
    %v4292 = vsub.s32 0, %v4291
    %v4293 = vrot.slane %v4285, %v4292
    %v4296 = vsub.f32 %v4123, %v4289
    %v4297 = vsub.f32 %v4124, %v4289
    %v4298 = vsub.f32 %v4125, %v4289
    %v4299 = vsub.f32 %v4126, %v4289
    %v4300 = vsub.f32 %v4127, %v4289
    %v4301 = vsub.f32 %v4128, %v4289
    %v4302 = vsub.f32 %v4129, %v4289
    %v4303 = vsub.f32 %v4130, %v4289
    %v4304 = vsub.f32 %v4131, %v4293
    %v4305 = vsub.f32 %v4132, %v4293
    %v4306 = vsub.f32 %v4133, %v4293
    %v4307 = vsub.f32 %v4134, %v4293
    %v4308 = vsub.f32 %v4135, %v4293
    %v4309 = vsub.f32 %v4136, %v4293
    %v4310 = vsub.f32 %v4137, %v4293
    %v4311 = vsub.f32 %v4138, %v4293
    %v4312 = vmul.f32 %v4296, %v4296
    %v4313 = vmul.f32 %v4297, %v4297
    %v4314 = vmul.f32 %v4298, %v4298
    %v4315 = vmul.f32 %v4299, %v4299
    %v4316 = vmul.f32 %v4300, %v4300
    %v4317 = vmul.f32 %v4301, %v4301
    %v4318 = vmul.f32 %v4302, %v4302
    %v4319 = vmul.f32 %v4303, %v4303
    %v4320 = vmul.f32 %v4304, %v4304
    %v4321 = vmul.f32 %v4305, %v4305
    %v4322 = vmul.f32 %v4306, %v4306
    %v4323 = vmul.f32 %v4307, %v4307
    %v4324 = vmul.f32 %v4308, %v4308
    %v4325 = vmul.f32 %v4309, %v4309
    %v4326 = vmul.f32 %v4310, %v4310
    %v4327 = vmul.f32 %v4311, %v4311
    %v4328 = vsel %vm4139, %v4312, 0.0
    %v4329 = vsel %vm4139, %v4313, 0.0
    %v4330 = vadd.f32 %v4328, %v4329
    %v4331 = vsel %vm4139, %v4314, 0.0
    %v4332 = vadd.f32 %v4330, %v4331
    %v4333 = vsel %vm4139, %v4315, 0.0
    %v4334 = vadd.f32 %v4332, %v4333
    %v4335 = vsel %vm4139, %v4316, 0.0
    %v4336 = vadd.f32 %v4334, %v4335
    %v4337 = vsel %vm4139, %v4317, 0.0
    %v4338 = vadd.f32 %v4336, %v4337
    %v4339 = vsel %vm4139, %v4318, 0.0
    %v4340 = vadd.f32 %v4338, %v4339
    %v4341 = vsel %vm4139, %v4319, 0.0
    %v4342 = vadd.f32 %v4340, %v4341
    %v4343 = vrot.slane %v4342, 4
    %v4344 = vadd.f32 %v4342, %v4343
    %v4345 = vrot.slane %v4344, 2
    %v4346 = vadd.f32 %v4344, %v4345
    %v4347 = vrot.slane %v4346, 1
    %v4348 = vadd.f32 %v4346, %v4347
    %v4349 = vsel %vm4139, %v4320, 0.0
    %v4350 = vsel %vm4139, %v4321, 0.0
    %v4351 = vadd.f32 %v4349, %v4350
    %v4352 = vsel %vm4139, %v4322, 0.0
    %v4353 = vadd.f32 %v4351, %v4352
    %v4354 = vsel %vm4139, %v4323, 0.0
    %v4355 = vadd.f32 %v4353, %v4354
    %v4356 = vsel %vm4139, %v4324, 0.0
    %v4357 = vadd.f32 %v4355, %v4356
    %v4358 = vsel %vm4139, %v4325, 0.0
    %v4359 = vadd.f32 %v4357, %v4358
    %v4360 = vsel %vm4139, %v4326, 0.0
    %v4361 = vadd.f32 %v4359, %v4360
    %v4362 = vsel %vm4139, %v4327, 0.0
    %v4363 = vadd.f32 %v4361, %v4362
    %v4364 = vrot.slane %v4363, 4
    %v4365 = vadd.f32 %v4363, %v4364
    %v4366 = vrot.slane %v4365, 2
    %v4367 = vadd.f32 %v4365, %v4366
    %v4368 = vrot.slane %v4367, 1
    %v4369 = vadd.f32 %v4367, %v4368
    %v4370 = vmul.f32 %v4348, 0.015625
    %v4371 = vmul.f32 %v4369, 0.015625
    %v4374 = vsel %vm482, %v4371, %v4370
    %v4375 = vsel %vm4139, %v4374, 0
    %4377 = vmatprep.subr.mxu0 0.0
    %4378 = vmatpush1.msra.mxu0 %v4184
    %4379 = vmatprep.subr.mxu0 0.0
    %4380 = vmatpush1.msra.mxu0 %v4185
    %4381 = vmatprep.subr.mxu0 0.0
    %4382 = vmatpush1.msra.mxu0 %v4186
    %4383 = vmatprep.subr.mxu0 0.0
    %4384 = vmatpush1.msra.mxu0 %v4187
    %4385 = vmatprep.subr.mxu0 0.0
    %4386 = vmatpush1.msra.mxu0 0.0
    %4387 = vmatprep.subr.mxu0 0.0
    %4388 = vmatpush1.msra.mxu0 0.0
    %4389 = vmatprep.subr.mxu0 0.0
    %4390 = vmatpush1.msra.mxu0 0.0
    %4391 = vmatprep.subr.mxu0 0.0
    %4392 = vmatpush1.msra.mxu0 0.0
    %4393 = vmatprep.subr.mxu0 0.0
    %4394 = vmatpush1.msra.mxu0 0.0
    %4395 = vmatprep.subr.mxu0 0.0
    %4396 = vmatpush1.msra.mxu0 0.0
    %4397 = vmatprep.subr.mxu0 0.0
    %4398 = vmatpush1.msra.mxu0 0.0
    %4399 = vmatprep.subr.mxu0 0.0
    %4400 = vmatpush1.msra.mxu0 0.0
    %4401 = vmatprep.subr.mxu0 0.0
    %4402 = vmatpush1.msra.mxu0 0.0
    %4403 = vmatprep.subr.mxu0 0.0
    %4404 = vmatpush1.msra.mxu0 0.0
    %4405 = vmatprep.subr.mxu0 0.0
    %4406 = vmatpush1.msra.mxu0 0.0
    %4407 = vmatprep.subr.mxu0 0.0
    %4408 = vmatpush1.msra.mxu0 0.0
    %4409 = vmatprep.subr.mxu0 0.0
    %4410 = vmatpush1.msra.mxu0 0.0
    %4411 = vmatprep.subr.mxu0 0.0
    %4412 = vmatpush1.msra.mxu0 0.0
    %4413 = vmatprep.subr.mxu0 0.0
    %4414 = vmatpush1.msra.mxu0 0.0
    %4415 = vmatprep.subr.mxu0 0.0
    %4416 = vmatpush1.msra.mxu0 0.0
    %4417 = vmatprep.subr.mxu0 0.0
    %4418 = vmatpush1.msra.mxu0 0.0
    %4419 = vmatprep.subr.mxu0 0.0
    %4420 = vmatpush1.msra.mxu0 0.0
    %4421 = vmatprep.subr.mxu0 0.0
    %4422 = vmatpush1.msra.mxu0 0.0
    %4423 = vmatprep.subr.mxu0 0.0
    %4424 = vmatpush1.msra.mxu0 0.0
    %4425 = vmatprep.subr.mxu0 0.0
    %4426 = vmatpush1.msra.mxu0 0.0
    %4427 = vmatprep.subr.mxu0 0.0
    %4428 = vmatpush1.msra.mxu0 0.0
    %4429 = vmatprep.subr.mxu0 0.0
    %4430 = vmatpush1.msra.mxu0 0.0
    %4431 = vmatprep.subr.mxu0 0.0
    %4432 = vmatpush1.msra.mxu0 0.0
    %4433 = vmatprep.subr.mxu0 0.0
    %4434 = vmatpush1.msra.mxu0 0.0
    %4435 = vmatprep.subr.mxu0 0.0
    %4436 = vmatpush1.msra.mxu0 0.0
    %4437 = vmatprep.subr.mxu0 0.0
    %4438 = vmatpush1.msra.mxu0 0.0
    %4439 = vmatprep.subr.mxu0 0.0
    %4440 = vmatpush1.msra.mxu0 0.0
    %4441 = vmatprep.mubr.f32.mxu0 0.0
    %4442 = vmatmul.mubr.f32.gmra.mrb[0].mxu0 %v4375
    %v4443 = vpop.f32.mrb[0].mxu0
    %v4444 = vadd.f32 1e-05, %v4443
    %v4445 = vpop.f32.mrb[0].mxu0
    %4446 = vdwg.mxu0
    %v4447 = vrsqrt.pop %v4444
    %v4450 = vunpack.c.l.s4 1966171168
    %v4451 = vunpack.c.0.s8 %v4450
    %v4452 = vlaneseq
    %v4453 = vshrl.u32 %v4452, 7
    %v4454 = vsub.s32 %v4451, %v4453
    %v4455 = vrot.slane %v4447, %v4454
    %v4456 = vcombine.high %v4455, %v4455
    %v4458 = vunpack.c.l.s4 1966171168
    %v4459 = vunpack.c.0.s8 %v4458
    %v4460 = vlaneseq
    %v4461 = vshrl.u32 %v4460, 7
    %v4462 = vsub.s32 %v4459, %v4461
    %v4463 = vrot.slane %v4455, %v4462
    %v4465 = vunpack.c.l.s4 1966171168
    %v4466 = vunpack.c.0.s8 %v4465
    %v4467 = vlaneseq
    %v4468 = vshrl.u32 %v4467, 7
    %v4469 = vsub.s32 %v4466, %v4468
    %v4470 = vrot.slane %v4456, %v4469
    %v4471 = vlaneseq
    %v4472 = vshrl.u32 %v4471, 7
    %v4473 = vsub.s32 0, %v4472
    %v4474 = vrot.slane %v4463, %v4473
    %v4475 = vlaneseq
    %v4476 = vshrl.u32 %v4475, 7
    %v4477 = vsub.s32 0, %v4476
    %v4478 = vrot.slane %v4470, %v4477
    %v4481 = vmul.f32 %v4296, %v4474
    %v4482 = vmul.f32 %v4297, %v4474
    %v4483 = vmul.f32 %v4298, %v4474
    %v4484 = vmul.f32 %v4299, %v4474
    %v4485 = vmul.f32 %v4300, %v4474
    %v4486 = vmul.f32 %v4301, %v4474
    %v4487 = vmul.f32 %v4302, %v4474
    %v4488 = vmul.f32 %v4303, %v4474
    %v4489 = vmul.f32 %v4304, %v4478
    %v4490 = vmul.f32 %v4305, %v4478
    %v4491 = vmul.f32 %v4306, %v4478
    %v4492 = vmul.f32 %v4307, %v4478
    %v4493 = vmul.f32 %v4308, %v4478
    %v4494 = vmul.f32 %v4309, %v4478
    %v4495 = vmul.f32 %v4310, %v4478
    %v4496 = vmul.f32 %v4311, %v4478
    %v4497 = vld [vmem:[%s29] sm:$0x1]
    %v4499 = vlaneseq
    %v4500 = vshrl.u32 %v4499, 7
    %v4501 = vsub.s32 0, %v4500
    %v4502 = vrot.slane %v4497, %v4501
    %v4504 = vmul.f32 %v4481, %v4502
    %v4505 = vmul.f32 %v4482, %v4502
    %v4506 = vmul.f32 %v4483, %v4502
    %v4507 = vmul.f32 %v4484, %v4502
    %v4508 = vmul.f32 %v4485, %v4502
    %v4509 = vmul.f32 %v4486, %v4502
    %v4510 = vmul.f32 %v4487, %v4502
    %v4511 = vmul.f32 %v4488, %v4502
    %v4512 = vmul.f32 %v4489, %v4502
    %v4513 = vmul.f32 %v4490, %v4502
    %v4514 = vmul.f32 %v4491, %v4502
    %v4515 = vmul.f32 %v4492, %v4502
    %v4516 = vmul.f32 %v4493, %v4502
    %v4517 = vmul.f32 %v4494, %v4502
    %v4518 = vmul.f32 %v4495, %v4502
    %v4519 = vmul.f32 %v4496, %v4502
    %v4520 = vld [vmem:[%s31] sm:$0x1]
    %v4522 = vlaneseq
    %v4523 = vshrl.u32 %v4522, 7
    %v4524 = vsub.s32 0, %v4523
    %v4525 = vrot.slane %v4520, %v4524
    %v4527 = vadd.f32 %v4504, %v4525
    %v4528 = vadd.f32 %v4505, %v4525
    %v4529 = vadd.f32 %v4506, %v4525
    %v4530 = vadd.f32 %v4507, %v4525
    %v4531 = vadd.f32 %v4508, %v4525
    %v4532 = vadd.f32 %v4509, %v4525
    %v4533 = vadd.f32 %v4510, %v4525
    %v4534 = vadd.f32 %v4511, %v4525
    %v4535 = vadd.f32 %v4512, %v4525
    %v4536 = vadd.f32 %v4513, %v4525
    %v4537 = vadd.f32 %v4514, %v4525
    %v4538 = vadd.f32 %v4515, %v4525
    %v4539 = vadd.f32 %v4516, %v4525
    %v4540 = vadd.f32 %v4517, %v4525
    %v4541 = vadd.f32 %v4518, %v4525
    %v4542 = vadd.f32 %v4519, %v4525
    %v4543 = vxor.u32 %v4527, 2147483648
    %v4544 = vxor.u32 %v4528, 2147483648
    %v4545 = vxor.u32 %v4529, 2147483648
    %v4546 = vxor.u32 %v4530, 2147483648
    %v4547 = vxor.u32 %v4531, 2147483648
    %v4548 = vxor.u32 %v4532, 2147483648
    %v4549 = vxor.u32 %v4533, 2147483648
    %v4550 = vxor.u32 %v4534, 2147483648
    %v4551 = vxor.u32 %v4535, 2147483648
    %v4552 = vxor.u32 %v4536, 2147483648
    %v4553 = vxor.u32 %v4537, 2147483648
    %v4554 = vxor.u32 %v4538, 2147483648
    %v4555 = vxor.u32 %v4539, 2147483648
    %v4556 = vxor.u32 %v4540, 2147483648
    %v4557 = vxor.u32 %v4541, 2147483648
    %v4558 = vxor.u32 %v4542, 2147483648
    %v4559 = vmul.f32 %v4543, 1.442695
    %v4560 = vpow.pop %v4559
    %v4561 = vmul.f32 %v4544, 1.442695
    %v4562 = vpow.pop %v4561
    %v4563 = vmul.f32 %v4545, 1.442695
    %v4564 = vpow.pop %v4563
    %v4565 = vmul.f32 %v4546, 1.442695
    %v4566 = vpow.pop %v4565
    %v4567 = vmul.f32 %v4547, 1.442695
    %v4568 = vpow.pop %v4567
    %v4569 = vmul.f32 %v4548, 1.442695
    %v4570 = vpow.pop %v4569
    %v4571 = vmul.f32 %v4549, 1.442695
    %v4572 = vpow.pop %v4571
    %v4573 = vmul.f32 %v4550, 1.442695
    %v4574 = vpow.pop %v4573
    %v4575 = vmul.f32 %v4551, 1.442695
    %v4576 = vpow.pop %v4575
    %v4577 = vmul.f32 %v4552, 1.442695
    %v4578 = vpow.pop %v4577
    %v4579 = vmul.f32 %v4553, 1.442695
    %v4580 = vpow.pop %v4579
    %v4581 = vmul.f32 %v4554, 1.442695
    %v4582 = vpow.pop %v4581
    %v4583 = vmul.f32 %v4555, 1.442695
    %v4584 = vpow.pop %v4583
    %v4585 = vmul.f32 %v4556, 1.442695
    %v4586 = vpow.pop %v4585
    %v4587 = vmul.f32 %v4557, 1.442695
    %v4588 = vpow.pop %v4587
    %v4589 = vmul.f32 %v4558, 1.442695
    %v4590 = vpow.pop %v4589
    %v4591 = vadd.f32 %v4560, 1.0
    %v4592 = vadd.f32 %v4562, 1.0
    %v4593 = vadd.f32 %v4564, 1.0
    %v4594 = vadd.f32 %v4566, 1.0
    %v4595 = vadd.f32 %v4568, 1.0
    %v4596 = vadd.f32 %v4570, 1.0
    %v4597 = vadd.f32 %v4572, 1.0
    %v4598 = vadd.f32 %v4574, 1.0
    %v4599 = vadd.f32 %v4576, 1.0
    %v4600 = vadd.f32 %v4578, 1.0
    %v4601 = vadd.f32 %v4580, 1.0
    %v4602 = vadd.f32 %v4582, 1.0
    %v4603 = vadd.f32 %v4584, 1.0
    %v4604 = vadd.f32 %v4586, 1.0
    %v4605 = vadd.f32 %v4588, 1.0
    %v4606 = vadd.f32 %v4590, 1.0
    %v4607 = vrcp.pop %v4591
    %v4608 = vmul.f32 1.0, %v4607
    %v4609 = vrcp.pop %v4592
    %v4610 = vmul.f32 1.0, %v4609
    %v4611 = vrcp.pop %v4593
    %v4612 = vmul.f32 1.0, %v4611
    %v4613 = vrcp.pop %v4594
    %v4614 = vmul.f32 1.0, %v4613
    %v4615 = vrcp.pop %v4595
    %v4616 = vmul.f32 1.0, %v4615
    %v4617 = vrcp.pop %v4596
    %v4618 = vmul.f32 1.0, %v4617
    %v4619 = vrcp.pop %v4597
    %v4620 = vmul.f32 1.0, %v4619
    %v4621 = vrcp.pop %v4598
    %v4622 = vmul.f32 1.0, %v4621
    %v4623 = vrcp.pop %v4599
    %v4624 = vmul.f32 1.0, %v4623
    %v4625 = vrcp.pop %v4600
    %v4626 = vmul.f32 1.0, %v4625
    %v4627 = vrcp.pop %v4601
    %v4628 = vmul.f32 1.0, %v4627
    %v4629 = vrcp.pop %v4602
    %v4630 = vmul.f32 1.0, %v4629
    %v4631 = vrcp.pop %v4603
    %v4632 = vmul.f32 1.0, %v4631
    %v4633 = vrcp.pop %v4604
    %v4634 = vmul.f32 1.0, %v4633
    %v4635 = vrcp.pop %v4605
    %v4636 = vmul.f32 1.0, %v4635
    %v4637 = vrcp.pop %v4606
    %v4638 = vmul.f32 1.0, %v4637
    %v4639 = vmul.f32 %v4527, %v4608
    %v4640 = vmul.f32 %v4528, %v4610
    %v4641 = vmul.f32 %v4529, %v4612
    %v4642 = vmul.f32 %v4530, %v4614
    %v4643 = vmul.f32 %v4531, %v4616
    %v4644 = vmul.f32 %v4532, %v4618
    %v4645 = vmul.f32 %v4533, %v4620
    %v4646 = vmul.f32 %v4534, %v4622
    %v4647 = vmul.f32 %v4535, %v4624
    %v4648 = vmul.f32 %v4536, %v4626
    %v4649 = vmul.f32 %v4537, %v4628
    %v4650 = vmul.f32 %v4538, %v4630
    %v4651 = vmul.f32 %v4539, %v4632
    %v4652 = vmul.f32 %v4540, %v4634
    %v4653 = vmul.f32 %v4541, %v4636
    %v4654 = vmul.f32 %v4542, %v4638
    %v4655 = vpack.c.bf16 %v4640, %v4639
    %v4656 = vpack.c.bf16 %v4642, %v4641
    %v4657 = vpack.c.bf16 %v4644, %v4643
    %v4658 = vpack.c.bf16 %v4646, %v4645
    %v4659 = vpack.c.bf16 %v4648, %v4647
    %v4660 = vpack.c.bf16 %v4650, %v4649
    %v4661 = vpack.c.bf16 %v4652, %v4651
    %v4662 = vpack.c.bf16 %v4654, %v4653
    %v4664 = vshrl.u32 %v4655, 16
    %v4666 = vrot.slane %v4664, 7
    %v4667 = vshll.u32 %v4655, 16
    %v4669 = vor.u32 %v4666, %v4667
    %v4671 = vshrl.u32 %v4656, 16
    %v4673 = vrot.slane %v4671, 7
    %v4674 = vshll.u32 %v4656, 16
    %v4676 = vor.u32 %v4673, %v4674
    %v4677 = vsel %vm956, %v4666, %v4676
    %v4679 = vshrl.u32 %v4657, 16
    %v4681 = vrot.slane %v4679, 7
    %v4682 = vshll.u32 %v4657, 16
    %v4684 = vor.u32 %v4681, %v4682
    %v4685 = vsel %vm956, %v4673, %v4684
    %v4687 = vshrl.u32 %v4658, 16
    %v4689 = vrot.slane %v4687, 7
    %v4690 = vshll.u32 %v4658, 16
    %v4692 = vor.u32 %v4689, %v4690
    %v4693 = vsel %vm956, %v4681, %v4692
    %v4695 = vshrl.u32 %v4659, 16
    %v4697 = vrot.slane %v4695, 7
    %v4698 = vshll.u32 %v4659, 16
    %v4700 = vor.u32 %v4697, %v4698
    %v4701 = vsel %vm956, %v4689, %v4700
    %v4703 = vshrl.u32 %v4660, 16
    %v4705 = vrot.slane %v4703, 7
    %v4706 = vshll.u32 %v4660, 16
    %v4708 = vor.u32 %v4705, %v4706
    %v4709 = vsel %vm956, %v4697, %v4708
    %v4711 = vshrl.u32 %v4661, 16
    %v4713 = vrot.slane %v4711, 7
    %v4714 = vshll.u32 %v4661, 16
    %v4716 = vor.u32 %v4713, %v4714
    %v4717 = vsel %vm956, %v4705, %v4716
    %v4719 = vshrl.u32 %v4662, 16
    %v4721 = vrot.slane %v4719, 7
    %v4722 = vshll.u32 %v4662, 16
    %v4724 = vor.u32 %v4721, %v4722
    %v4725 = vsel %vm956, %v4713, %v4724
    %v4734 = vsel %vm1029, 0, %v4669
    %v4735 = vsel %vm1119, %v4734, 0
    %v4736 = vsel %vm1120, %v4677, 0
    %v4737 = vsel %vm1121, %v4685, 0
    %v4738 = vsel %vm1122, %v4693, 0
    %v4739 = vsel %vm1123, %v4701, 0
    %v4740 = vsel %vm1124, %v4709, 0
    %v4741 = vsel %vm1125, %v4717, 0
    %v4742 = vsel %vm1126, %v4725, 0
    %v4743 = vrot.slane %v4667, 1
    %v4744 = vor.u32 %v4664, %v4743
    %v4745 = vrot.slane %v4674, 1
    %v4746 = vsel %vm1135, %v4744, %v4745
    %v4747 = vor.u32 %v4671, %v4745
    %v4748 = vrot.slane %v4682, 1
    %v4749 = vsel %vm1135, %v4747, %v4748
    %v4750 = vor.u32 %v4679, %v4748
    %v4751 = vrot.slane %v4690, 1
    %v4752 = vsel %vm1135, %v4750, %v4751
    %v4753 = vor.u32 %v4687, %v4751
    %v4754 = vrot.slane %v4698, 1
    %v4755 = vsel %vm1135, %v4753, %v4754
    %v4756 = vor.u32 %v4695, %v4754
    %v4757 = vrot.slane %v4706, 1
    %v4758 = vsel %vm1135, %v4756, %v4757
    %v4759 = vor.u32 %v4703, %v4757
    %v4760 = vrot.slane %v4714, 1
    %v4761 = vsel %vm1135, %v4759, %v4760
    %v4762 = vor.u32 %v4711, %v4760
    %v4763 = vrot.slane %v4722, 1
    %v4764 = vsel %vm1135, %v4762, %v4763
    %v4765 = vor.u32 %v4719, %v4763
    %v4774 = vsel %vm1168, %v4765, 0
    %v4775 = vsel %vm1258, %v4746, 0
    %v4776 = vsel %vm1259, %v4749, 0
    %v4777 = vsel %vm1260, %v4752, 0
    %v4778 = vsel %vm1261, %v4755, 0
    %v4779 = vsel %vm1262, %v4758, 0
    %v4780 = vsel %vm1263, %v4761, 0
    %v4781 = vsel %vm1264, %v4764, 0
    %v4782 = vsel %vm1265, %v4774, 0
    %4791 = vrot.lane.b32.xlu0 %v4655, 32
    %v4792 = vpop.permute.xlu0 %4791
    %4793 = vrot.lane.b32.xlu0 %v4656, 32
    %v4794 = vpop.permute.xlu0 %4793
    %4795 = vrot.lane.b32.xlu0 %v4657, 32
    %v4796 = vpop.permute.xlu0 %4795
    %4797 = vrot.lane.b32.xlu0 %v4658, 32
    %v4798 = vpop.permute.xlu0 %4797
    %4799 = vrot.lane.b32.xlu0 %v4659, 32
    %v4800 = vpop.permute.xlu0 %4799
    %4801 = vrot.lane.b32.xlu0 %v4660, 32
    %v4802 = vpop.permute.xlu0 %4801
    %4803 = vrot.lane.b32.xlu0 %v4661, 32
    %v4804 = vpop.permute.xlu0 %4803
    %4805 = vrot.lane.b32.xlu0 %v4662, 32
    %v4806 = vpop.permute.xlu0 %4805
    %4815 = vrot.lane.b32.xlu0 %v4775, 64
    %v4816 = vpop.permute.xlu0 %4815
    %4817 = vrot.lane.b32.xlu0 %v4776, 64
    %v4818 = vpop.permute.xlu0 %4817
    %4819 = vrot.lane.b32.xlu0 %v4777, 64
    %v4820 = vpop.permute.xlu0 %4819
    %4821 = vrot.lane.b32.xlu0 %v4778, 64
    %v4822 = vpop.permute.xlu0 %4821
    %4823 = vrot.lane.b32.xlu0 %v4779, 64
    %v4824 = vpop.permute.xlu0 %4823
    %4825 = vrot.lane.b32.xlu0 %v4780, 64
    %v4826 = vpop.permute.xlu0 %4825
    %4827 = vrot.lane.b32.xlu0 %v4781, 64
    %v4828 = vpop.permute.xlu0 %4827
    %4829 = vrot.lane.b32.xlu0 %v4782, 64
    %v4830 = vpop.permute.xlu0 %4829
    %v4833 = vsel %vm4139, %v4735, %v4792
    %v4836 = vsel %vm4139, %v4736, %v4794
    %v4839 = vsel %vm4139, %v4737, %v4796
    %v4842 = vsel %vm4139, %v4738, %v4798
    %v4845 = vsel %vm4139, %v4739, %v4800
    %v4848 = vsel %vm4139, %v4740, %v4802
    %v4851 = vsel %vm4139, %v4741, %v4804
    %v4854 = vsel %vm4139, %v4742, %v4806
    %v4856 = vsel %vm427, %v4833, %v4816
    %v4859 = vsel %vm427, %v4836, %v4818
    %v4862 = vsel %vm427, %v4839, %v4820
    %v4865 = vsel %vm427, %v4842, %v4822
    %v4868 = vsel %vm427, %v4845, %v4824
    %v4871 = vsel %vm427, %v4848, %v4826
    %v4874 = vsel %vm427, %v4851, %v4828
    %v4877 = vsel %vm427, %v4854, %v4830
    %4879 = vst.msk [vmem:[#allocation3] sm:$0xff] %vm4046, 0
    %4880 = vst.msk [vmem:[#allocation3 + $0x28] sm:$0xff] %vm4046, 0
    %4881 = vst.msk [vmem:[#allocation3 + $0x8] sm:$0xff] %vm4046, %v4856
    %4882 = vst.msk [vmem:[#allocation3 + $0x10] sm:$0xff] %vm4046, %v4859
    %4883 = vst.msk [vmem:[#allocation3 + $0x18] sm:$0xff] %vm4046, %v4862
    %4884 = vst.msk [vmem:[#allocation3 + $0x20] sm:$0xff] %vm4046, %v4865
    %4885 = vst.msk [vmem:[#allocation3 + $0x30] sm:$0xff] %vm4046, 0
    %4886 = vst.msk [vmem:[#allocation3 + $0x58] sm:$0xff] %vm4046, 0
    %4887 = vst.msk [vmem:[#allocation3 + $0x38] sm:$0xff] %vm4046, %v4868
    %4888 = vst.msk [vmem:[#allocation3 + $0x40] sm:$0xff] %vm4046, %v4871
    %4889 = vst.msk [vmem:[#allocation3 + $0x48] sm:$0xff] %vm4046, %v4874
    %4890 = vst.msk [vmem:[#allocation3 + $0x50] sm:$0xff] %vm4046, %v4877
    %v4891 = vld [vmem:[#allocation3] sm:$0xf0]
    %v4892 = vld [vmem:[#allocation3 + $0x8] sm:$0xff]
    %v4893 = vld [vmem:[#allocation3 + $0x10] sm:$0xff]
    %v4894 = vld [vmem:[#allocation3 + $0x18] sm:$0xff]
    %v4895 = vld [vmem:[#allocation3 + $0x20] sm:$0xff]
    %v4896 = vld [vmem:[#allocation3 + $0x28] sm:$0xff]
    %v4897 = vld [vmem:[#allocation3 + $0x30] sm:$0xff]
    %v4898 = vld [vmem:[#allocation3 + $0x38] sm:$0xff]
    %v4899 = vld [vmem:[#allocation3 + $0x40] sm:$0xff]
    %v4900 = vld [vmem:[#allocation3 + $0x48] sm:$0xff]
    %v4901 = vld [vmem:[#allocation3 + $0x50] sm:$0xf]
    %v4902 = vld [vmem:[%s35] sm:$0xf]
    %v4903 = vld [vmem:[%s35 + $0x4] sm:$0xf]
    %v4904 = vld [vmem:[%s35 + $0x8] sm:$0xf]
    %v4905 = vld [vmem:[%s35 + $0xc] sm:$0xf]
    %v4906 = vld [vmem:[%s35 + $0x10] sm:$0xf]
    %v4907 = vld [vmem:[%s35 + $0x14] sm:$0xf]
    %v4908 = vld [vmem:[%s35 + $0x18] sm:$0xf]
    %v4909 = vld [vmem:[%s35 + $0x1c] sm:$0xf]
    %v4910 = vld [vmem:[%s35 + $0x20] sm:$0xf]
    %v4911 = vld [vmem:[%s35 + $0x24] sm:$0xf]
    %v4912 = vld [vmem:[%s35 + $0x28] sm:$0xf]
    %v4913 = vld [vmem:[%s35 + $0x2c] sm:$0xf]
    %v4914 = vld [vmem:[#allocation3 + $0x50] sm:$0xff]
    %v4915 = vld [vmem:[%s35 + $0x30] sm:$0xf]
    %v4916 = vld [vmem:[%s35 + $0x34] sm:$0xf]
    %v4917 = vld [vmem:[%s35 + $0x38] sm:$0xf]
    %v4918 = vld [vmem:[%s35 + $0x3c] sm:$0xf]
    %v4919 = vld [vmem:[%s35 + $0x40] sm:$0xf]
    %v4920 = vld [vmem:[%s35 + $0x44] sm:$0xf]
    %v4921 = vld [vmem:[%s35 + $0x48] sm:$0xf]
    %v4922 = vld [vmem:[%s35 + $0x4c] sm:$0xf]
    %v4923 = vld [vmem:[%s35 + $0x50] sm:$0xf]
    %v4924 = vld [vmem:[%s35 + $0x54] sm:$0xf]
    %v4925 = vld [vmem:[%s35 + $0x58] sm:$0xf]
    %v4926 = vld [vmem:[%s35 + $0x5c] sm:$0xf]
    %v4939 = vunpack.c.l.b16 %v4915
    %v4940 = vunpack.c.l.b16 %v4916
    %v4941 = vunpack.c.l.b16 %v4917
    %v4942 = vunpack.c.l.b16 %v4918
    %v4943 = vunpack.c.l.b16 %v4919
    %v4944 = vunpack.c.l.b16 %v4920
    %v4945 = vunpack.c.l.b16 %v4921
    %v4946 = vunpack.c.l.b16 %v4922
    %v4947 = vunpack.c.l.b16 %v4923
    %v4948 = vunpack.c.l.b16 %v4924
    %v4949 = vunpack.c.l.b16 %v4925
    %v4950 = vunpack.c.l.b16 %v4926
    %v4951 = vpack.c.b16 %v4940, %v4939
    %v4952 = vpack.c.b16 %v4942, %v4941
    %v4953 = vpack.c.b16 %v4944, %v4943
    %v4954 = vpack.c.b16 %v4946, %v4945
    %v4955 = vpack.c.b16 %v4948, %v4947
    %v4956 = vpack.c.b16 %v4950, %v4949
    %v4964 = vsel %vm4046, %v4892, 0
    %v4967 = vsel %vm4046, %v4893, 0
    %v4970 = vsel %vm4046, %v4894, 0
    %v4973 = vsel %vm4046, %v4895, 0
    %v4976 = vsel %vm4046, %v4896, 0
    %v4979 = vsel %vm4046, %v4897, 0
    %v4982 = vsel %vm4046, %v4898, 0
    %v4985 = vsel %vm4046, %v4899, 0
    %v4988 = vsel %vm4046, %v4900, 0
    %v4991 = vsel %vm4046, %v4914, 0
    %4993 = vmatprep.subr.bf16.mxu0 0
    %4994 = vmatpush1.bf16.msra.mxu0 %v4951
    %4995 = vmatprep.subr.bf16.mxu0 0
    %4996 = vmatpush1.bf16.msra.mxu0 %v4952
    %4997 = vmatprep.subr.bf16.mxu0 0
    %4998 = vmatpush1.bf16.msra.mxu0 %v4953
    %4999 = vmatprep.subr.bf16.mxu0 0
    %5000 = vmatpush1.bf16.msra.mxu0 %v4954
    %5001 = vmatprep.subr.bf16.mxu0 0
    %5002 = vmatpush1.bf16.msra.mxu0 %v4955
    %5003 = vmatprep.subr.bf16.mxu0 0
    %5004 = vmatpush1.bf16.msra.mxu0 %v4956
    %5005 = vmatprep.subr.bf16.mxu0 0
    %5006 = vmatpush1.bf16.msra.mxu0 0
    %5007 = vmatprep.subr.bf16.mxu0 0
    %5008 = vmatpush1.bf16.msra.mxu0 0
    %5009 = vmatprep.subr.bf16.mxu0 0
    %5010 = vmatpush1.bf16.msra.mxu0 0
    %5011 = vmatprep.subr.bf16.mxu0 0
    %5012 = vmatpush1.bf16.msra.mxu0 0
    %5013 = vmatprep.subr.bf16.mxu0 0
    %5014 = vmatpush1.bf16.msra.mxu0 0
    %5015 = vmatprep.subr.bf16.mxu0 0
    %5016 = vmatpush1.bf16.msra.mxu0 0
    %5017 = vmatprep.subr.bf16.mxu0 0
    %5018 = vmatpush1.bf16.msra.mxu0 0
    %5019 = vmatprep.subr.bf16.mxu0 0
    %5020 = vmatpush1.bf16.msra.mxu0 0
    %5021 = vmatprep.subr.bf16.mxu0 0
    %5022 = vmatpush1.bf16.msra.mxu0 0
    %5023 = vmatprep.subr.bf16.mxu0 0
    %5024 = vmatpush1.bf16.msra.mxu0 0
    %5025 = vmatprep.mubr.bf16.mxu0 0
    %5026 = vmatmul.mubr.bf16.gmra.mrb[0].mxu0 %v4964
    %v5027 = vpop.f32.mrb[0].mxu0
    %v5028 = vadd.f32 0.0, %v5027
    %v5029 = vpop.f32.mrb[0].mxu0
    %v5030 = vpop.f32.mrb[0].mxu0
    %v5031 = vadd.f32 0.0, %v5030
    %v5032 = vpop.f32.mrb[0].mxu0
    %5033 = vmatprep.mubr.bf16.mxu0 0
    %5034 = vmatmul.mubr.bf16.gmra.mrb[0].mxu0 %v4967
    %v5035 = vpop.f32.mrb[0].mxu0
    %v5036 = vadd.f32 0.0, %v5035
    %v5037 = vpop.f32.mrb[0].mxu0
    %v5038 = vpop.f32.mrb[0].mxu0
    %v5039 = vadd.f32 0.0, %v5038
    %v5040 = vpop.f32.mrb[0].mxu0
    %5041 = vmatprep.mubr.bf16.mxu0 0
    %5042 = vmatmul.mubr.bf16.gmra.mrb[0].mxu0 %v4970
    %v5043 = vpop.f32.mrb[0].mxu0
    %v5044 = vadd.f32 0.0, %v5043
    %v5045 = vpop.f32.mrb[0].mxu0
    %v5046 = vpop.f32.mrb[0].mxu0
    %v5047 = vadd.f32 0.0, %v5046
    %v5048 = vpop.f32.mrb[0].mxu0
    %5049 = vmatprep.mubr.bf16.mxu0 0
    %5050 = vmatmul.mubr.bf16.gmra.mrb[0].mxu0 %v4973
    %v5051 = vpop.f32.mrb[0].mxu0
    %v5052 = vadd.f32 0.0, %v5051
    %v5053 = vpop.f32.mrb[0].mxu0
    %v5054 = vpop.f32.mrb[0].mxu0
    %v5055 = vadd.f32 0.0, %v5054
    %v5056 = vpop.f32.mrb[0].mxu0
    %5057 = vmatprep.mubr.bf16.mxu0 0
    %5058 = vmatmul.mubr.bf16.gmra.mrb[0].mxu0 %v4976
    %v5059 = vpop.f32.mrb[0].mxu0
    %v5060 = vpop.f32.mrb[0].mxu0
    %v5061 = vpop.f32.mrb[0].mxu0
    %v5062 = vpop.f32.mrb[0].mxu0
    %5063 = vmatprep.mubr.bf16.mxu0 0
    %5064 = vmatmul.mubr.bf16.gmra.mrb[0].mxu0 %v4979
    %v5065 = vpop.f32.mrb[0].mxu0
    %v5066 = vpop.f32.mrb[0].mxu0
    %v5067 = vpop.f32.mrb[0].mxu0
    %v5068 = vpop.f32.mrb[0].mxu0
    %5069 = vmatprep.mubr.bf16.mxu0 0
    %5070 = vmatmul.mubr.bf16.gmra.mrb[0].mxu0 %v4982
    %v5071 = vpop.f32.mrb[0].mxu0
    %v5072 = vadd.f32 0.0, %v5071
    %v5073 = vpop.f32.mrb[0].mxu0
    %v5074 = vpop.f32.mrb[0].mxu0
    %v5075 = vadd.f32 0.0, %v5074
    %v5076 = vpop.f32.mrb[0].mxu0
    %5077 = vmatprep.mubr.bf16.mxu0 0
    %5078 = vmatmul.mubr.bf16.gmra.mrb[0].mxu0 %v4985
    %v5079 = vpop.f32.mrb[0].mxu0
    %v5080 = vadd.f32 0.0, %v5079
    %v5081 = vpop.f32.mrb[0].mxu0
    %v5082 = vpop.f32.mrb[0].mxu0
    %v5083 = vadd.f32 0.0, %v5082
    %v5084 = vpop.f32.mrb[0].mxu0
    %5085 = vmatprep.mubr.bf16.mxu0 0
    %5086 = vmatmul.mubr.bf16.gmra.mrb[0].mxu0 %v4988
    %v5087 = vpop.f32.mrb[0].mxu0
    %v5088 = vadd.f32 0.0, %v5087
    %v5089 = vpop.f32.mrb[0].mxu0
    %v5090 = vpop.f32.mrb[0].mxu0
    %v5091 = vadd.f32 0.0, %v5090
    %v5092 = vpop.f32.mrb[0].mxu0
    %5093 = vmatprep.mubr.bf16.mxu0 0
    %5094 = vmatmul.mubr.bf16.gmra.mrb[0].mxu0 %v4991
    %v5095 = vpop.f32.mrb[0].mxu0
    %v5096 = vadd.f32 0.0, %v5095
    %v5097 = vpop.f32.mrb[0].mxu0
    %v5098 = vpop.f32.mrb[0].mxu0
    %v5099 = vadd.f32 0.0, %v5098
    %v5100 = vpop.f32.mrb[0].mxu0
    %5101 = vdwg.mxu0
    %v5113 = vrot.slane %v4891, 4
    %v5114 = vrot.slane %v4892, 4
    %v5115 = vsel %vm1659, %v5113, %v5114
    %v5116 = vrot.slane %v4893, 4
    %v5117 = vsel %vm1659, %v5114, %v5116
    %v5118 = vrot.slane %v4894, 4
    %v5119 = vsel %vm1659, %v5116, %v5118
    %v5120 = vrot.slane %v4895, 4
    %v5121 = vsel %vm1659, %v5118, %v5120
    %v5122 = vrot.slane %v4896, 4
    %v5123 = vsel %vm1659, %v5120, %v5122
    %v5124 = vrot.slane %v4897, 4
    %v5125 = vsel %vm1659, %v5122, %v5124
    %v5126 = vrot.slane %v4898, 4
    %v5127 = vsel %vm1659, %v5124, %v5126
    %v5128 = vrot.slane %v4899, 4
    %v5129 = vsel %vm1659, %v5126, %v5128
    %v5130 = vrot.slane %v4900, 4
    %v5131 = vsel %vm1659, %v5128, %v5130
    %v5132 = vrot.slane %v4901, 4
    %v5133 = vsel %vm1659, %v5130, %v5132
    %v5146 = vunpack.c.l.b16 %v4902
    %v5147 = vunpack.c.l.b16 %v4903
    %v5148 = vunpack.c.l.b16 %v4904
    %v5149 = vunpack.c.l.b16 %v4905
    %v5150 = vunpack.c.l.b16 %v4906
    %v5151 = vunpack.c.l.b16 %v4907
    %v5152 = vunpack.c.l.b16 %v4908
    %v5153 = vunpack.c.l.b16 %v4909
    %v5154 = vunpack.c.l.b16 %v4910
    %v5155 = vunpack.c.l.b16 %v4911
    %v5156 = vunpack.c.l.b16 %v4912
    %v5157 = vunpack.c.l.b16 %v4913
    %v5158 = vpack.c.b16 %v5147, %v5146
    %v5159 = vpack.c.b16 %v5149, %v5148
    %v5160 = vpack.c.b16 %v5151, %v5150
    %v5161 = vpack.c.b16 %v5153, %v5152
    %v5162 = vpack.c.b16 %v5155, %v5154
    %v5163 = vpack.c.b16 %v5157, %v5156
    %v5171 = vsel %vm4046, %v5115, 0
    %v5174 = vsel %vm4046, %v5117, 0
    %v5177 = vsel %vm4046, %v5119, 0
    %v5180 = vsel %vm4046, %v5121, 0
    %v5183 = vsel %vm4046, %v5123, 0
    %v5186 = vsel %vm4046, %v5125, 0
    %v5189 = vsel %vm4046, %v5127, 0
    %v5192 = vsel %vm4046, %v5129, 0
    %v5195 = vsel %vm4046, %v5131, 0
    %v5198 = vsel %vm4046, %v5133, 0
    %5200 = vmatprep.subr.bf16.mxu0 0
    %5201 = vmatpush1.bf16.msra.mxu0 %v5158
    %5202 = vmatprep.subr.bf16.mxu0 0
    %5203 = vmatpush1.bf16.msra.mxu0 %v5159
    %5204 = vmatprep.subr.bf16.mxu0 0
    %5205 = vmatpush1.bf16.msra.mxu0 %v5160
    %5206 = vmatprep.subr.bf16.mxu0 0
    %5207 = vmatpush1.bf16.msra.mxu0 %v5161
    %5208 = vmatprep.subr.bf16.mxu0 0
    %5209 = vmatpush1.bf16.msra.mxu0 %v5162
    %5210 = vmatprep.subr.bf16.mxu0 0
    %5211 = vmatpush1.bf16.msra.mxu0 %v5163
    %5212 = vmatprep.subr.bf16.mxu0 0
    %5213 = vmatpush1.bf16.msra.mxu0 0
    %5214 = vmatprep.subr.bf16.mxu0 0
    %5215 = vmatpush1.bf16.msra.mxu0 0
    %5216 = vmatprep.subr.bf16.mxu0 0
    %5217 = vmatpush1.bf16.msra.mxu0 0
    %5218 = vmatprep.subr.bf16.mxu0 0
    %5219 = vmatpush1.bf16.msra.mxu0 0
    %5220 = vmatprep.subr.bf16.mxu0 0
    %5221 = vmatpush1.bf16.msra.mxu0 0
    %5222 = vmatprep.subr.bf16.mxu0 0
    %5223 = vmatpush1.bf16.msra.mxu0 0
    %5224 = vmatprep.subr.bf16.mxu0 0
    %5225 = vmatpush1.bf16.msra.mxu0 0
    %5226 = vmatprep.subr.bf16.mxu0 0
    %5227 = vmatpush1.bf16.msra.mxu0 0
    %5228 = vmatprep.subr.bf16.mxu0 0
    %5229 = vmatpush1.bf16.msra.mxu0 0
    %5230 = vmatprep.subr.bf16.mxu0 0
    %5231 = vmatpush1.bf16.msra.mxu0 0
    %5232 = vmatprep.mubr.bf16.mxu0 0
    %5233 = vmatmul.mubr.bf16.gmra.mrb[0].mxu0 %v5171
    %v5234 = vpop.f32.mrb[0].mxu0
    %v5235 = vadd.f32 %v5028, %v5234
    %v5236 = vpop.f32.mrb[0].mxu0
    %v5237 = vpop.f32.mrb[0].mxu0
    %v5238 = vadd.f32 %v5031, %v5237
    %v5239 = vpop.f32.mrb[0].mxu0
    %5240 = vmatprep.mubr.bf16.mxu0 0
    %5241 = vmatmul.mubr.bf16.gmra.mrb[0].mxu0 %v5174
    %v5242 = vpop.f32.mrb[0].mxu0
    %v5243 = vadd.f32 %v5036, %v5242
    %v5244 = vpop.f32.mrb[0].mxu0
    %v5245 = vpop.f32.mrb[0].mxu0
    %v5246 = vadd.f32 %v5039, %v5245
    %v5247 = vpop.f32.mrb[0].mxu0
    %5248 = vmatprep.mubr.bf16.mxu0 0
    %5249 = vmatmul.mubr.bf16.gmra.mrb[0].mxu0 %v5177
    %v5250 = vpop.f32.mrb[0].mxu0
    %v5251 = vadd.f32 %v5044, %v5250
    %v5252 = vpop.f32.mrb[0].mxu0
    %v5253 = vpop.f32.mrb[0].mxu0
    %v5254 = vadd.f32 %v5047, %v5253
    %v5255 = vpop.f32.mrb[0].mxu0
    %5256 = vmatprep.mubr.bf16.mxu0 0
    %5257 = vmatmul.mubr.bf16.gmra.mrb[0].mxu0 %v5180
    %v5258 = vpop.f32.mrb[0].mxu0
    %v5259 = vadd.f32 %v5052, %v5258
    %v5260 = vpop.f32.mrb[0].mxu0
    %v5261 = vpop.f32.mrb[0].mxu0
    %v5262 = vadd.f32 %v5055, %v5261
    %v5263 = vpop.f32.mrb[0].mxu0
    %5264 = vmatprep.mubr.bf16.mxu0 0
    %5265 = vmatmul.mubr.bf16.gmra.mrb[0].mxu0 %v5183
    %v5266 = vpop.f32.mrb[0].mxu0
    %v5267 = vpop.f32.mrb[0].mxu0
    %v5268 = vpop.f32.mrb[0].mxu0
    %v5269 = vpop.f32.mrb[0].mxu0
    %5270 = vmatprep.mubr.bf16.mxu0 0
    %5271 = vmatmul.mubr.bf16.gmra.mrb[0].mxu0 %v5186
    %v5272 = vpop.f32.mrb[0].mxu0
    %v5273 = vpop.f32.mrb[0].mxu0
    %v5274 = vpop.f32.mrb[0].mxu0
    %v5275 = vpop.f32.mrb[0].mxu0
    %5276 = vmatprep.mubr.bf16.mxu0 0
    %5277 = vmatmul.mubr.bf16.gmra.mrb[0].mxu0 %v5189
    %v5278 = vpop.f32.mrb[0].mxu0
    %v5279 = vadd.f32 %v5072, %v5278
    %v5280 = vpop.f32.mrb[0].mxu0
    %v5281 = vpop.f32.mrb[0].mxu0
    %v5282 = vadd.f32 %v5075, %v5281
    %v5283 = vpop.f32.mrb[0].mxu0
    %5284 = vmatprep.mubr.bf16.mxu0 0
    %5285 = vmatmul.mubr.bf16.gmra.mrb[0].mxu0 %v5192
    %v5286 = vpop.f32.mrb[0].mxu0
    %v5287 = vadd.f32 %v5080, %v5286
    %v5288 = vpop.f32.mrb[0].mxu0
    %v5289 = vpop.f32.mrb[0].mxu0
    %v5290 = vadd.f32 %v5083, %v5289
    %v5291 = vpop.f32.mrb[0].mxu0
    %5292 = vmatprep.mubr.bf16.mxu0 0
    %5293 = vmatmul.mubr.bf16.gmra.mrb[0].mxu0 %v5195
    %v5294 = vpop.f32.mrb[0].mxu0
    %v5295 = vadd.f32 %v5088, %v5294
    %v5296 = vpop.f32.mrb[0].mxu0
    %v5297 = vpop.f32.mrb[0].mxu0
    %v5298 = vadd.f32 %v5091, %v5297
    %v5299 = vpop.f32.mrb[0].mxu0
    %5300 = vmatprep.mubr.bf16.mxu0 0
    %5301 = vmatmul.mubr.bf16.gmra.mrb[0].mxu0 %v5198
    %v5302 = vpop.f32.mrb[0].mxu0
    %v5303 = vadd.f32 %v5096, %v5302
    %v5304 = vpop.f32.mrb[0].mxu0
    %v5305 = vpop.f32.mrb[0].mxu0
    %v5306 = vadd.f32 %v5099, %v5305
    %v5307 = vpop.f32.mrb[0].mxu0
    %5308 = vdwg.mxu0
    %v5309 = vld [vmem:[#allocation3 + $0x8] sm:$0xf0]
    %v5310 = vld [vmem:[#allocation3 + $0x10] sm:$0xff]
    %v5311 = vld [vmem:[#allocation3 + $0x18] sm:$0xff]
    %v5312 = vld [vmem:[#allocation3 + $0x20] sm:$0xff]
    %v5313 = vld [vmem:[#allocation3 + $0x28] sm:$0xff]
    %v5314 = vld [vmem:[#allocation3 + $0x30] sm:$0xff]
    %v5315 = vld [vmem:[#allocation3 + $0x38] sm:$0xff]
    %v5316 = vld [vmem:[#allocation3 + $0x40] sm:$0xff]
    %v5317 = vld [vmem:[#allocation3 + $0x48] sm:$0xff]
    %v5318 = vld [vmem:[#allocation3 + $0x50] sm:$0xff]
    %v5319 = vld [vmem:[#allocation3 + $0x58] sm:$0xf]
    %v5320 = vld [vmem:[%s35 + $0x60] sm:$0xf]
    %v5321 = vld [vmem:[%s35 + $0x64] sm:$0xf]
    %v5322 = vld [vmem:[%s35 + $0x68] sm:$0xf]
    %v5323 = vld [vmem:[%s35 + $0x6c] sm:$0xf]
    %v5324 = vld [vmem:[%s35 + $0x70] sm:$0xf]
    %v5325 = vld [vmem:[%s35 + $0x74] sm:$0xf]
    %v5326 = vld [vmem:[%s35 + $0x78] sm:$0xf]
    %v5327 = vld [vmem:[%s35 + $0x7c] sm:$0xf]
    %v5328 = vld [vmem:[%s35 + $0x80] sm:$0xf]
    %v5329 = vld [vmem:[%s35 + $0x84] sm:$0xf]
    %v5330 = vld [vmem:[%s35 + $0x88] sm:$0xf]
    %v5331 = vld [vmem:[%s35 + $0x8c] sm:$0xf]
    %v5343 = vrot.slane %v5309, 4
    %v5344 = vrot.slane %v5310, 4
    %v5345 = vsel %vm1659, %v5343, %v5344
    %v5346 = vrot.slane %v5311, 4
    %v5347 = vsel %vm1659, %v5344, %v5346
    %v5348 = vrot.slane %v5312, 4
    %v5349 = vsel %vm1659, %v5346, %v5348
    %v5350 = vrot.slane %v5313, 4
    %v5351 = vsel %vm1659, %v5348, %v5350
    %v5352 = vrot.slane %v5314, 4
    %v5353 = vsel %vm1659, %v5350, %v5352
    %v5354 = vrot.slane %v5315, 4
    %v5355 = vsel %vm1659, %v5352, %v5354
    %v5356 = vrot.slane %v5316, 4
    %v5357 = vsel %vm1659, %v5354, %v5356
    %v5358 = vrot.slane %v5317, 4
    %v5359 = vsel %vm1659, %v5356, %v5358
    %v5360 = vrot.slane %v5318, 4
    %v5361 = vsel %vm1659, %v5358, %v5360
    %v5362 = vrot.slane %v5319, 4
    %v5363 = vsel %vm1659, %v5360, %v5362
    %v5376 = vunpack.c.l.b16 %v5320
    %v5377 = vunpack.c.l.b16 %v5321
    %v5378 = vunpack.c.l.b16 %v5322
    %v5379 = vunpack.c.l.b16 %v5323
    %v5380 = vunpack.c.l.b16 %v5324
    %v5381 = vunpack.c.l.b16 %v5325
    %v5382 = vunpack.c.l.b16 %v5326
    %v5383 = vunpack.c.l.b16 %v5327
    %v5384 = vunpack.c.l.b16 %v5328
    %v5385 = vunpack.c.l.b16 %v5329
    %v5386 = vunpack.c.l.b16 %v5330
    %v5387 = vunpack.c.l.b16 %v5331
    %v5388 = vpack.c.b16 %v5377, %v5376
    %v5389 = vpack.c.b16 %v5379, %v5378
    %v5390 = vpack.c.b16 %v5381, %v5380
    %v5391 = vpack.c.b16 %v5383, %v5382
    %v5392 = vpack.c.b16 %v5385, %v5384
    %v5393 = vpack.c.b16 %v5387, %v5386
    %v5401 = vsel %vm4046, %v5345, 0
    %v5404 = vsel %vm4046, %v5347, 0
    %v5407 = vsel %vm4046, %v5349, 0
    %v5410 = vsel %vm4046, %v5351, 0
    %v5413 = vsel %vm4046, %v5353, 0
    %v5416 = vsel %vm4046, %v5355, 0
    %v5419 = vsel %vm4046, %v5357, 0
    %v5422 = vsel %vm4046, %v5359, 0
    %v5425 = vsel %vm4046, %v5361, 0
    %v5428 = vsel %vm4046, %v5363, 0
    %5430 = vmatprep.subr.bf16.mxu0 0
    %5431 = vmatpush1.bf16.msra.mxu0 %v5388
    %5432 = vmatprep.subr.bf16.mxu0 0
    %5433 = vmatpush1.bf16.msra.mxu0 %v5389
    %5434 = vmatprep.subr.bf16.mxu0 0
    %5435 = vmatpush1.bf16.msra.mxu0 %v5390
    %5436 = vmatprep.subr.bf16.mxu0 0
    %5437 = vmatpush1.bf16.msra.mxu0 %v5391
    %5438 = vmatprep.subr.bf16.mxu0 0
    %5439 = vmatpush1.bf16.msra.mxu0 %v5392
    %5440 = vmatprep.subr.bf16.mxu0 0
    %5441 = vmatpush1.bf16.msra.mxu0 %v5393
    %5442 = vmatprep.subr.bf16.mxu0 0
    %5443 = vmatpush1.bf16.msra.mxu0 0
    %5444 = vmatprep.subr.bf16.mxu0 0
    %5445 = vmatpush1.bf16.msra.mxu0 0
    %5446 = vmatprep.subr.bf16.mxu0 0
    %5447 = vmatpush1.bf16.msra.mxu0 0
    %5448 = vmatprep.subr.bf16.mxu0 0
    %5449 = vmatpush1.bf16.msra.mxu0 0
    %5450 = vmatprep.subr.bf16.mxu0 0
    %5451 = vmatpush1.bf16.msra.mxu0 0
    %5452 = vmatprep.subr.bf16.mxu0 0
    %5453 = vmatpush1.bf16.msra.mxu0 0
    %5454 = vmatprep.subr.bf16.mxu0 0
    %5455 = vmatpush1.bf16.msra.mxu0 0
    %5456 = vmatprep.subr.bf16.mxu0 0
    %5457 = vmatpush1.bf16.msra.mxu0 0
    %5458 = vmatprep.subr.bf16.mxu0 0
    %5459 = vmatpush1.bf16.msra.mxu0 0
    %5460 = vmatprep.subr.bf16.mxu0 0
    %5461 = vmatpush1.bf16.msra.mxu0 0
    %5462 = vmatprep.mubr.bf16.mxu0 0
    %5463 = vmatmul.mubr.bf16.gmra.mrb[0].mxu0 %v5401
    %v5464 = vpop.f32.mrb[0].mxu0
    %v5465 = vadd.f32 0.0, %v5464
    %v5466 = vpop.f32.mrb[0].mxu0
    %v5467 = vpop.f32.mrb[0].mxu0
    %v5468 = vadd.f32 0.0, %v5467
    %v5469 = vpop.f32.mrb[0].mxu0
    %5470 = vmatprep.mubr.bf16.mxu0 0
    %5471 = vmatmul.mubr.bf16.gmra.mrb[0].mxu0 %v5404
    %v5472 = vpop.f32.mrb[0].mxu0
    %v5473 = vadd.f32 0.0, %v5472
    %v5474 = vpop.f32.mrb[0].mxu0
    %v5475 = vpop.f32.mrb[0].mxu0
    %v5476 = vadd.f32 0.0, %v5475
    %v5477 = vpop.f32.mrb[0].mxu0
    %5478 = vmatprep.mubr.bf16.mxu0 0
    %5479 = vmatmul.mubr.bf16.gmra.mrb[0].mxu0 %v5407
    %v5480 = vpop.f32.mrb[0].mxu0
    %v5481 = vadd.f32 0.0, %v5480
    %v5482 = vpop.f32.mrb[0].mxu0
    %v5483 = vpop.f32.mrb[0].mxu0
    %v5484 = vadd.f32 0.0, %v5483
    %v5485 = vpop.f32.mrb[0].mxu0
    %5486 = vmatprep.mubr.bf16.mxu0 0
    %5487 = vmatmul.mubr.bf16.gmra.mrb[0].mxu0 %v5410
    %v5488 = vpop.f32.mrb[0].mxu0
    %v5489 = vadd.f32 0.0, %v5488
    %v5490 = vpop.f32.mrb[0].mxu0
    %v5491 = vpop.f32.mrb[0].mxu0
    %v5492 = vadd.f32 0.0, %v5491
    %v5493 = vpop.f32.mrb[0].mxu0
    %5494 = vmatprep.mubr.bf16.mxu0 0
    %5495 = vmatmul.mubr.bf16.gmra.mrb[0].mxu0 %v5413
    %v5496 = vpop.f32.mrb[0].mxu0
    %v5497 = vpop.f32.mrb[0].mxu0
    %v5498 = vpop.f32.mrb[0].mxu0
    %v5499 = vpop.f32.mrb[0].mxu0
    %5500 = vmatprep.mubr.bf16.mxu0 0
    %5501 = vmatmul.mubr.bf16.gmra.mrb[0].mxu0 %v5416
    %v5502 = vpop.f32.mrb[0].mxu0
    %v5503 = vpop.f32.mrb[0].mxu0
    %v5504 = vpop.f32.mrb[0].mxu0
    %v5505 = vpop.f32.mrb[0].mxu0
    %5506 = vmatprep.mubr.bf16.mxu0 0
    %5507 = vmatmul.mubr.bf16.gmra.mrb[0].mxu0 %v5419
    %v5508 = vpop.f32.mrb[0].mxu0
    %v5509 = vadd.f32 0.0, %v5508
    %v5510 = vpop.f32.mrb[0].mxu0
    %v5511 = vpop.f32.mrb[0].mxu0
    %v5512 = vadd.f32 0.0, %v5511
    %v5513 = vpop.f32.mrb[0].mxu0
    %5514 = vmatprep.mubr.bf16.mxu0 0
    %5515 = vmatmul.mubr.bf16.gmra.mrb[0].mxu0 %v5422
    %v5516 = vpop.f32.mrb[0].mxu0
    %v5517 = vadd.f32 0.0, %v5516
    %v5518 = vpop.f32.mrb[0].mxu0
    %v5519 = vpop.f32.mrb[0].mxu0
    %v5520 = vadd.f32 0.0, %v5519
    %v5521 = vpop.f32.mrb[0].mxu0
    %5522 = vmatprep.mubr.bf16.mxu0 0
    %5523 = vmatmul.mubr.bf16.gmra.mrb[0].mxu0 %v5425
    %v5524 = vpop.f32.mrb[0].mxu0
    %v5525 = vadd.f32 0.0, %v5524
    %v5526 = vpop.f32.mrb[0].mxu0
    %v5527 = vpop.f32.mrb[0].mxu0
    %v5528 = vadd.f32 0.0, %v5527
    %v5529 = vpop.f32.mrb[0].mxu0
    %5530 = vmatprep.mubr.bf16.mxu0 0
    %5531 = vmatmul.mubr.bf16.gmra.mrb[0].mxu0 %v5428
    %v5532 = vpop.f32.mrb[0].mxu0
    %v5533 = vadd.f32 0.0, %v5532
    %v5534 = vpop.f32.mrb[0].mxu0
    %v5535 = vpop.f32.mrb[0].mxu0
    %v5536 = vadd.f32 0.0, %v5535
    %v5537 = vpop.f32.mrb[0].mxu0
    %5538 = vdwg.mxu0
    %v5539 = vadd.f32 %v5235, %v5465
    %v5540 = vadd.f32 %v5238, %v5468
    %v5541 = vadd.f32 %v5243, %v5473
    %v5542 = vadd.f32 %v5246, %v5476
    %v5543 = vadd.f32 %v5251, %v5481
    %v5544 = vadd.f32 %v5254, %v5484
    %v5545 = vadd.f32 %v5259, %v5489
    %v5546 = vadd.f32 %v5262, %v5492
    %v5547 = vadd.f32 %v5279, %v5509
    %v5548 = vadd.f32 %v5282, %v5512
    %v5549 = vadd.f32 %v5287, %v5517
    %v5550 = vadd.f32 %v5290, %v5520
    %v5551 = vadd.f32 %v5295, %v5525
    %v5552 = vadd.f32 %v5298, %v5528
    %v5553 = vadd.f32 %v5303, %v5533
    %v5554 = vadd.f32 %v5306, %v5536
    %v5555 = vld [vmem:[%s37] sm:$0x1]
    %v5557 = vlaneseq
    %v5558 = vshrl.u32 %v5557, 7
    %v5559 = vsub.s32 0, %v5558
    %v5560 = vrot.slane %v5555, %v5559
    %v5562 = vadd.f32 %v5539, %v5560
    %v5563 = vadd.f32 %v5540, %v5560
    %v5564 = vadd.f32 %v5541, %v5560
    %v5565 = vadd.f32 %v5542, %v5560
    %v5566 = vadd.f32 %v5543, %v5560
    %v5567 = vadd.f32 %v5544, %v5560
    %v5568 = vadd.f32 %v5545, %v5560
    %v5569 = vadd.f32 %v5546, %v5560
    %v5570 = vadd.f32 %v5547, %v5560
    %v5571 = vadd.f32 %v5548, %v5560
    %v5572 = vadd.f32 %v5549, %v5560
    %v5573 = vadd.f32 %v5550, %v5560
    %v5574 = vadd.f32 %v5551, %v5560
    %v5575 = vadd.f32 %v5552, %v5560
    %v5576 = vadd.f32 %v5553, %v5560
    %v5577 = vadd.f32 %v5554, %v5560
    %v5578 = vld [vmem:[%s39] sm:$0xf]
    %v5579 = vld [vmem:[%s39 + $0x4] sm:$0xf]
    %v5580 = vld [vmem:[%s39 + $0x8] sm:$0xf]
    %v5581 = vld [vmem:[%s39 + $0xc] sm:$0xf]
    %v5582 = vld [vmem:[%s39 + $0x10] sm:$0xf]
    %v5583 = vld [vmem:[%s39 + $0x14] sm:$0xf]
    %v5584 = vld [vmem:[%s39 + $0x18] sm:$0xf]
    %v5585 = vld [vmem:[%s39 + $0x1c] sm:$0xf]
    %v5602 = vunpack.c.l.b16 %v379
    %v5603 = vunpack.c.l.b16 %v380
    %v5604 = vunpack.c.l.b16 %v381
    %v5605 = vunpack.c.l.b16 %v382
    %v5606 = vunpack.c.l.b16 %v383
    %v5607 = vunpack.c.l.b16 %v384
    %v5608 = vunpack.c.l.b16 %v385
    %v5609 = vunpack.c.l.b16 %v386
    %v5610 = vunpack.c.l.b16 %v387
    %v5611 = vunpack.c.l.b16 %v388
    %v5612 = vunpack.c.l.b16 %v389
    %v5613 = vunpack.c.l.b16 %v390
    %v5614 = vunpack.c.l.b16 %v391
    %v5615 = vunpack.c.l.b16 %v392
    %v5616 = vunpack.c.l.b16 %v393
    %v5617 = vunpack.c.l.b16 %v394
    %v5618 = vpack.c.b16 %v5603, %v5602
    %v5619 = vpack.c.b16 %v5605, %v5604
    %v5620 = vpack.c.b16 %v5607, %v5606
    %v5621 = vpack.c.b16 %v5609, %v5608
    %v5622 = vpack.c.b16 %v5611, %v5610
    %v5623 = vpack.c.b16 %v5613, %v5612
    %v5624 = vpack.c.b16 %v5615, %v5614
    %v5625 = vpack.c.b16 %v5617, %v5616
    %v5634 = vunpack.c.l.b16 %v5578
    %v5635 = vunpack.c.l.b16 %v5579
    %v5636 = vunpack.c.l.b16 %v5580
    %v5637 = vunpack.c.l.b16 %v5581
    %v5638 = vunpack.c.l.b16 %v5582
    %v5639 = vunpack.c.l.b16 %v5583
    %v5640 = vunpack.c.l.b16 %v5584
    %v5641 = vunpack.c.l.b16 %v5585
    %v5642 = vpack.c.b16 %v5635, %v5634
    %v5643 = vpack.c.b16 %v5637, %v5636
    %v5644 = vpack.c.b16 %v5639, %v5638
    %v5645 = vpack.c.b16 %v5641, %v5640
    %v5651 = vsel %vm427, %v5618, 0
    %v5654 = vsel %vm427, %v5619, 0
    %v5657 = vsel %vm427, %v5620, 0
    %v5660 = vsel %vm427, %v5621, 0
    %v5663 = vsel %vm427, %v5622, 0
    %v5666 = vsel %vm427, %v5623, 0
    %v5669 = vsel %vm427, %v5624, 0
    %v5672 = vsel %vm427, %v5625, 0
    %5674 = vmatprep.subr.bf16.mxu0 0
    %5675 = vmatpush1.bf16.msra.mxu0 %v5642
    %5676 = vmatprep.subr.bf16.mxu0 0
    %5677 = vmatpush1.bf16.msra.mxu0 %v5643
    %5678 = vmatprep.subr.bf16.mxu0 0
    %5679 = vmatpush1.bf16.msra.mxu0 %v5644
    %5680 = vmatprep.subr.bf16.mxu0 0
    %5681 = vmatpush1.bf16.msra.mxu0 %v5645
    %5682 = vmatprep.subr.bf16.mxu0 0
    %5683 = vmatpush1.bf16.msra.mxu0 0
    %5684 = vmatprep.subr.bf16.mxu0 0
    %5685 = vmatpush1.bf16.msra.mxu0 0
    %5686 = vmatprep.subr.bf16.mxu0 0
    %5687 = vmatpush1.bf16.msra.mxu0 0
    %5688 = vmatprep.subr.bf16.mxu0 0
    %5689 = vmatpush1.bf16.msra.mxu0 0
    %5690 = vmatprep.subr.bf16.mxu0 0
    %5691 = vmatpush1.bf16.msra.mxu0 0
    %5692 = vmatprep.subr.bf16.mxu0 0
    %5693 = vmatpush1.bf16.msra.mxu0 0
    %5694 = vmatprep.subr.bf16.mxu0 0
    %5695 = vmatpush1.bf16.msra.mxu0 0
    %5696 = vmatprep.subr.bf16.mxu0 0
    %5697 = vmatpush1.bf16.msra.mxu0 0
    %5698 = vmatprep.subr.bf16.mxu0 0
    %5699 = vmatpush1.bf16.msra.mxu0 0
    %5700 = vmatprep.subr.bf16.mxu0 0
    %5701 = vmatpush1.bf16.msra.mxu0 0
    %5702 = vmatprep.subr.bf16.mxu0 0
    %5703 = vmatpush1.bf16.msra.mxu0 0
    %5704 = vmatprep.subr.bf16.mxu0 0
    %5705 = vmatpush1.bf16.msra.mxu0 0
    %5706 = vmatprep.mubr.bf16.mxu0 0
    %5707 = vmatmul.mubr.bf16.gmra.mrb[0].mxu0 %v5651
    %v5708 = vpop.f32.mrb[0].mxu0
    %v5709 = vadd.f32 0.0, %v5708
    %v5710 = vpop.f32.mrb[0].mxu0
    %v5711 = vpop.f32.mrb[0].mxu0
    %v5712 = vadd.f32 0.0, %v5711
    %v5713 = vpop.f32.mrb[0].mxu0
    %5714 = vmatprep.mubr.bf16.mxu0 0
    %5715 = vmatmul.mubr.bf16.gmra.mrb[0].mxu0 %v5654
    %v5716 = vpop.f32.mrb[0].mxu0
    %v5717 = vadd.f32 0.0, %v5716
    %v5718 = vpop.f32.mrb[0].mxu0
    %v5719 = vpop.f32.mrb[0].mxu0
    %v5720 = vadd.f32 0.0, %v5719
    %v5721 = vpop.f32.mrb[0].mxu0
    %5722 = vmatprep.mubr.bf16.mxu0 0
    %5723 = vmatmul.mubr.bf16.gmra.mrb[0].mxu0 %v5657
    %v5724 = vpop.f32.mrb[0].mxu0
    %v5725 = vadd.f32 0.0, %v5724
    %v5726 = vpop.f32.mrb[0].mxu0
    %v5727 = vpop.f32.mrb[0].mxu0
    %v5728 = vadd.f32 0.0, %v5727
    %v5729 = vpop.f32.mrb[0].mxu0
    %5730 = vmatprep.mubr.bf16.mxu0 0
    %5731 = vmatmul.mubr.bf16.gmra.mrb[0].mxu0 %v5660
    %v5732 = vpop.f32.mrb[0].mxu0
    %v5733 = vadd.f32 0.0, %v5732
    %v5734 = vpop.f32.mrb[0].mxu0
    %v5735 = vpop.f32.mrb[0].mxu0
    %v5736 = vadd.f32 0.0, %v5735
    %v5737 = vpop.f32.mrb[0].mxu0
    %5738 = vmatprep.mubr.bf16.mxu0 0
    %5739 = vmatmul.mubr.bf16.gmra.mrb[0].mxu0 %v5663
    %v5740 = vpop.f32.mrb[0].mxu0
    %v5741 = vadd.f32 0.0, %v5740
    %v5742 = vpop.f32.mrb[0].mxu0
    %v5743 = vpop.f32.mrb[0].mxu0
    %v5744 = vadd.f32 0.0, %v5743
    %v5745 = vpop.f32.mrb[0].mxu0
    %5746 = vmatprep.mubr.bf16.mxu0 0
    %5747 = vmatmul.mubr.bf16.gmra.mrb[0].mxu0 %v5666
    %v5748 = vpop.f32.mrb[0].mxu0
    %v5749 = vadd.f32 0.0, %v5748
    %v5750 = vpop.f32.mrb[0].mxu0
    %v5751 = vpop.f32.mrb[0].mxu0
    %v5752 = vadd.f32 0.0, %v5751
    %v5753 = vpop.f32.mrb[0].mxu0
    %5754 = vmatprep.mubr.bf16.mxu0 0
    %5755 = vmatmul.mubr.bf16.gmra.mrb[0].mxu0 %v5669
    %v5756 = vpop.f32.mrb[0].mxu0
    %v5757 = vadd.f32 0.0, %v5756
    %v5758 = vpop.f32.mrb[0].mxu0
    %v5759 = vpop.f32.mrb[0].mxu0
    %v5760 = vadd.f32 0.0, %v5759
    %v5761 = vpop.f32.mrb[0].mxu0
    %5762 = vmatprep.mubr.bf16.mxu0 0
    %5763 = vmatmul.mubr.bf16.gmra.mrb[0].mxu0 %v5672
    %v5764 = vpop.f32.mrb[0].mxu0
    %v5765 = vadd.f32 0.0, %v5764
    %v5766 = vpop.f32.mrb[0].mxu0
    %v5767 = vpop.f32.mrb[0].mxu0
    %v5768 = vadd.f32 0.0, %v5767
    %v5769 = vpop.f32.mrb[0].mxu0
    %5770 = vdwg.mxu0
    %v5771 = vadd.f32 %v5562, %v5709
    %v5772 = vadd.f32 %v5563, %v5712
    %v5773 = vadd.f32 %v5564, %v5717
    %v5774 = vadd.f32 %v5565, %v5720
    %v5775 = vadd.f32 %v5566, %v5725
    %v5776 = vadd.f32 %v5567, %v5728
    %v5777 = vadd.f32 %v5568, %v5733
    %v5778 = vadd.f32 %v5569, %v5736
    %v5779 = vadd.f32 %v5570, %v5741
    %v5780 = vadd.f32 %v5571, %v5744
    %v5781 = vadd.f32 %v5572, %v5749
    %v5782 = vadd.f32 %v5573, %v5752
    %v5783 = vadd.f32 %v5574, %v5757
    %v5784 = vadd.f32 %v5575, %v5760
    %v5785 = vadd.f32 %v5576, %v5765
    %v5786 = vadd.f32 %v5577, %v5768
    %v5787 = vld [vmem:[%s41] sm:$0x1]
    %v5789 = vlaneseq
    %v5790 = vshrl.u32 %v5789, 7
    %v5791 = vsub.s32 0, %v5790
    %v5792 = vrot.slane %v5787, %v5791
    %v5794 = vadd.f32 %v5771, %v5792
    %v5795 = vadd.f32 %v5772, %v5792
    %v5796 = vadd.f32 %v5773, %v5792
    %v5797 = vadd.f32 %v5774, %v5792
    %v5798 = vadd.f32 %v5775, %v5792
    %v5799 = vadd.f32 %v5776, %v5792
    %v5800 = vadd.f32 %v5777, %v5792
    %v5801 = vadd.f32 %v5778, %v5792
    %v5802 = vadd.f32 %v5779, %v5792
    %v5803 = vadd.f32 %v5780, %v5792
    %v5804 = vadd.f32 %v5781, %v5792
    %v5805 = vadd.f32 %v5782, %v5792
    %v5806 = vadd.f32 %v5783, %v5792
    %v5807 = vadd.f32 %v5784, %v5792
    %v5808 = vadd.f32 %v5785, %v5792
    %v5809 = vadd.f32 %v5786, %v5792
    %v5810 = vpack.c.bf16 %v5795, %v5794
    %v5811 = vpack.c.bf16 %v5797, %v5796
    %v5812 = vpack.c.bf16 %v5799, %v5798
    %v5813 = vpack.c.bf16 %v5801, %v5800
    %v5814 = vpack.c.bf16 %v5803, %v5802
    %v5815 = vpack.c.bf16 %v5805, %v5804
    %v5816 = vpack.c.bf16 %v5807, %v5806
    %v5817 = vpack.c.bf16 %v5809, %v5808
    %v5818 = vld [vmem:[%s43] sm:$0xf]
    %v5819 = vld [vmem:[%s43 + $0x4] sm:$0xf]
    %v5820 = vld [vmem:[%s43 + $0x8] sm:$0xf]
    %v5821 = vld [vmem:[%s43 + $0xc] sm:$0xf]
    %v5822 = vld [vmem:[%s49] sm:$0x1]
    %v5824 = vlaneseq
    %v5825 = vshrl.u32 %v5824, 7
    %v5826 = vsub.s32 0, %v5825
    %v5827 = vrot.slane %v5822, %v5826
    %v5833 = vunpack.c.l.b16 %v5818
    %v5834 = vunpack.c.l.b16 %v5819
    %v5835 = vunpack.c.l.b16 %v5820
    %v5836 = vunpack.c.l.b16 %v5821
    %v5837 = vpack.c.b16 %v5834, %v5833
    %v5838 = vpack.c.b16 %v5836, %v5835
    %v5842 = vsel %vm4139, %v5810, 0
    %v5845 = vsel %vm4139, %v5811, 0
    %v5848 = vsel %vm4139, %v5812, 0
    %v5851 = vsel %vm4139, %v5813, 0
    %v5854 = vsel %vm4139, %v5814, 0
    %v5857 = vsel %vm4139, %v5815, 0
    %v5860 = vsel %vm4139, %v5816, 0
    %v5863 = vsel %vm4139, %v5817, 0
    %5865 = vmatprep.subr.bf16.mxu0 0
    %5866 = vmatpush1.bf16.msra.mxu0 %v5837
    %5867 = vmatprep.subr.bf16.mxu0 0
    %5868 = vmatpush1.bf16.msra.mxu0 %v5838
    %5869 = vmatprep.subr.bf16.mxu0 0
    %5870 = vmatpush1.bf16.msra.mxu0 0
    %5871 = vmatprep.subr.bf16.mxu0 0
    %5872 = vmatpush1.bf16.msra.mxu0 0
    %5873 = vmatprep.subr.bf16.mxu0 0
    %5874 = vmatpush1.bf16.msra.mxu0 0
    %5875 = vmatprep.subr.bf16.mxu0 0
    %5876 = vmatpush1.bf16.msra.mxu0 0
    %5877 = vmatprep.subr.bf16.mxu0 0
    %5878 = vmatpush1.bf16.msra.mxu0 0
    %5879 = vmatprep.subr.bf16.mxu0 0
    %5880 = vmatpush1.bf16.msra.mxu0 0
    %5881 = vmatprep.subr.bf16.mxu0 0
    %5882 = vmatpush1.bf16.msra.mxu0 0
    %5883 = vmatprep.subr.bf16.mxu0 0
    %5884 = vmatpush1.bf16.msra.mxu0 0
    %5885 = vmatprep.subr.bf16.mxu0 0
    %5886 = vmatpush1.bf16.msra.mxu0 0
    %5887 = vmatprep.subr.bf16.mxu0 0
    %5888 = vmatpush1.bf16.msra.mxu0 0
    %5889 = vmatprep.subr.bf16.mxu0 0
    %5890 = vmatpush1.bf16.msra.mxu0 0
    %5891 = vmatprep.subr.bf16.mxu0 0
    %5892 = vmatpush1.bf16.msra.mxu0 0
    %5893 = vmatprep.subr.bf16.mxu0 0
    %5894 = vmatpush1.bf16.msra.mxu0 0
    %5895 = vmatprep.subr.bf16.mxu0 0
    %5896 = vmatpush1.bf16.msra.mxu0 0
    %5897 = vmatprep.mubr.bf16.mxu0 0
    %5898 = vmatmul.mubr.bf16.gmra.mrb[0].mxu0 %v5842
    %v5899 = vpop.f32.mrb[0].mxu0
    %v5900 = vadd.f32 %v5827, %v5899
    %v5901 = vpop.f32.mrb[0].mxu0
    %v5902 = vpop.f32.mrb[0].mxu0
    %v5903 = vadd.f32 %v5827, %v5902
    %v5904 = vpop.f32.mrb[0].mxu0
    %5905 = vmatprep.mubr.bf16.mxu0 0
    %5906 = vmatmul.mubr.bf16.gmra.mrb[0].mxu0 %v5845
    %v5907 = vpop.f32.mrb[0].mxu0
    %v5908 = vadd.f32 %v5827, %v5907
    %v5909 = vpop.f32.mrb[0].mxu0
    %v5910 = vpop.f32.mrb[0].mxu0
    %v5911 = vadd.f32 %v5827, %v5910
    %v5912 = vpop.f32.mrb[0].mxu0
    %5913 = vmatprep.mubr.bf16.mxu0 0
    %5914 = vmatmul.mubr.bf16.gmra.mrb[0].mxu0 %v5848
    %v5915 = vpop.f32.mrb[0].mxu0
    %v5916 = vadd.f32 %v5827, %v5915
    %v5917 = vpop.f32.mrb[0].mxu0
    %v5918 = vpop.f32.mrb[0].mxu0
    %v5919 = vadd.f32 %v5827, %v5918
    %v5920 = vpop.f32.mrb[0].mxu0
    %5921 = vmatprep.mubr.bf16.mxu0 0
    %5922 = vmatmul.mubr.bf16.gmra.mrb[0].mxu0 %v5851
    %v5923 = vpop.f32.mrb[0].mxu0
    %v5924 = vadd.f32 %v5827, %v5923
    %v5925 = vpop.f32.mrb[0].mxu0
    %v5926 = vpop.f32.mrb[0].mxu0
    %v5927 = vadd.f32 %v5827, %v5926
    %v5928 = vpop.f32.mrb[0].mxu0
    %5929 = vmatprep.mubr.bf16.mxu0 0
    %5930 = vmatmul.mubr.bf16.gmra.mrb[0].mxu0 %v5854
    %v5931 = vpop.f32.mrb[0].mxu0
    %v5932 = vadd.f32 %v5827, %v5931
    %v5933 = vpop.f32.mrb[0].mxu0
    %v5934 = vpop.f32.mrb[0].mxu0
    %v5935 = vadd.f32 %v5827, %v5934
    %v5936 = vpop.f32.mrb[0].mxu0
    %5937 = vmatprep.mubr.bf16.mxu0 0
    %5938 = vmatmul.mubr.bf16.gmra.mrb[0].mxu0 %v5857
    %v5939 = vpop.f32.mrb[0].mxu0
    %v5940 = vadd.f32 %v5827, %v5939
    %v5941 = vpop.f32.mrb[0].mxu0
    %v5942 = vpop.f32.mrb[0].mxu0
    %v5943 = vadd.f32 %v5827, %v5942
    %v5944 = vpop.f32.mrb[0].mxu0
    %5945 = vmatprep.mubr.bf16.mxu0 0
    %5946 = vmatmul.mubr.bf16.gmra.mrb[0].mxu0 %v5860
    %v5947 = vpop.f32.mrb[0].mxu0
    %v5948 = vadd.f32 %v5827, %v5947
    %v5949 = vpop.f32.mrb[0].mxu0
    %v5950 = vpop.f32.mrb[0].mxu0
    %v5951 = vadd.f32 %v5827, %v5950
    %v5952 = vpop.f32.mrb[0].mxu0
    %5953 = vmatprep.mubr.bf16.mxu0 0
    %5954 = vmatmul.mubr.bf16.gmra.mrb[0].mxu0 %v5863
    %v5955 = vpop.f32.mrb[0].mxu0
    %v5956 = vadd.f32 %v5827, %v5955
    %v5957 = vpop.f32.mrb[0].mxu0
    %v5958 = vpop.f32.mrb[0].mxu0
    %v5959 = vadd.f32 %v5827, %v5958
    %v5960 = vpop.f32.mrb[0].mxu0
    %5961 = vdwg.mxu0
    %v5962 = vld [vmem:[%s45] sm:$0xf]
    %v5963 = vld [vmem:[%s45 + $0x4] sm:$0xf]
    %v5964 = vld [vmem:[%s45 + $0x8] sm:$0xf]
    %v5965 = vld [vmem:[%s45 + $0xc] sm:$0xf]
    %v5966 = vld [vmem:[%s51] sm:$0x1]
    %v5968 = vlaneseq
    %v5969 = vshrl.u32 %v5968, 7
    %v5970 = vsub.s32 0, %v5969
    %v5971 = vrot.slane %v5966, %v5970
    %v5977 = vunpack.c.l.b16 %v5962
    %v5978 = vunpack.c.l.b16 %v5963
    %v5979 = vunpack.c.l.b16 %v5964
    %v5980 = vunpack.c.l.b16 %v5965
    %v5981 = vpack.c.b16 %v5978, %v5977
    %v5982 = vpack.c.b16 %v5980, %v5979
    %5985 = vmatprep.subr.bf16.mxu0 0
    %5986 = vmatpush1.bf16.msra.mxu0 %v5981
    %5987 = vmatprep.subr.bf16.mxu0 0
    %5988 = vmatpush1.bf16.msra.mxu0 %v5982
    %5989 = vmatprep.subr.bf16.mxu0 0
    %5990 = vmatpush1.bf16.msra.mxu0 0
    %5991 = vmatprep.subr.bf16.mxu0 0
    %5992 = vmatpush1.bf16.msra.mxu0 0
    %5993 = vmatprep.subr.bf16.mxu0 0
    %5994 = vmatpush1.bf16.msra.mxu0 0
    %5995 = vmatprep.subr.bf16.mxu0 0
    %5996 = vmatpush1.bf16.msra.mxu0 0
    %5997 = vmatprep.subr.bf16.mxu0 0
    %5998 = vmatpush1.bf16.msra.mxu0 0
    %5999 = vmatprep.subr.bf16.mxu0 0
    %6000 = vmatpush1.bf16.msra.mxu0 0
    %6001 = vmatprep.subr.bf16.mxu0 0
    %6002 = vmatpush1.bf16.msra.mxu0 0
    %6003 = vmatprep.subr.bf16.mxu0 0
    %6004 = vmatpush1.bf16.msra.mxu0 0
    %6005 = vmatprep.subr.bf16.mxu0 0
    %6006 = vmatpush1.bf16.msra.mxu0 0
    %6007 = vmatprep.subr.bf16.mxu0 0
    %6008 = vmatpush1.bf16.msra.mxu0 0
    %6009 = vmatprep.subr.bf16.mxu0 0
    %6010 = vmatpush1.bf16.msra.mxu0 0
    %6011 = vmatprep.subr.bf16.mxu0 0
    %6012 = vmatpush1.bf16.msra.mxu0 0
    %6013 = vmatprep.subr.bf16.mxu0 0
    %6014 = vmatpush1.bf16.msra.mxu0 0
    %6015 = vmatprep.subr.bf16.mxu0 0
    %6016 = vmatpush1.bf16.msra.mxu0 0
    %6017 = vmatprep.mubr.bf16.mxu0 0
    %6018 = vmatmul.mubr.bf16.gmra.mrb[0].mxu0 %v5842
    %v6019 = vpop.f32.mrb[0].mxu0
    %v6020 = vadd.f32 %v5971, %v6019
    %v6021 = vpop.f32.mrb[0].mxu0
    %v6022 = vpop.f32.mrb[0].mxu0
    %v6023 = vadd.f32 %v5971, %v6022
    %v6024 = vpop.f32.mrb[0].mxu0
    %6025 = vmatprep.mubr.bf16.mxu0 0
    %6026 = vmatmul.mubr.bf16.gmra.mrb[0].mxu0 %v5845
    %v6027 = vpop.f32.mrb[0].mxu0
    %v6028 = vadd.f32 %v5971, %v6027
    %v6029 = vpop.f32.mrb[0].mxu0
    %v6030 = vpop.f32.mrb[0].mxu0
    %v6031 = vadd.f32 %v5971, %v6030
    %v6032 = vpop.f32.mrb[0].mxu0
    %6033 = vmatprep.mubr.bf16.mxu0 0
    %6034 = vmatmul.mubr.bf16.gmra.mrb[0].mxu0 %v5848
    %v6035 = vpop.f32.mrb[0].mxu0
    %v6036 = vadd.f32 %v5971, %v6035
    %v6037 = vpop.f32.mrb[0].mxu0
    %v6038 = vpop.f32.mrb[0].mxu0
    %v6039 = vadd.f32 %v5971, %v6038
    %v6040 = vpop.f32.mrb[0].mxu0
    %6041 = vmatprep.mubr.bf16.mxu0 0
    %6042 = vmatmul.mubr.bf16.gmra.mrb[0].mxu0 %v5851
    %v6043 = vpop.f32.mrb[0].mxu0
    %v6044 = vadd.f32 %v5971, %v6043
    %v6045 = vpop.f32.mrb[0].mxu0
    %v6046 = vpop.f32.mrb[0].mxu0
    %v6047 = vadd.f32 %v5971, %v6046
    %v6048 = vpop.f32.mrb[0].mxu0
    %6049 = vmatprep.mubr.bf16.mxu0 0
    %6050 = vmatmul.mubr.bf16.gmra.mrb[0].mxu0 %v5854
    %v6051 = vpop.f32.mrb[0].mxu0
    %v6052 = vadd.f32 %v5971, %v6051
    %v6053 = vpop.f32.mrb[0].mxu0
    %v6054 = vpop.f32.mrb[0].mxu0
    %v6055 = vadd.f32 %v5971, %v6054
    %v6056 = vpop.f32.mrb[0].mxu0
    %6057 = vmatprep.mubr.bf16.mxu0 0
    %6058 = vmatmul.mubr.bf16.gmra.mrb[0].mxu0 %v5857
    %v6059 = vpop.f32.mrb[0].mxu0
    %v6060 = vadd.f32 %v5971, %v6059
    %v6061 = vpop.f32.mrb[0].mxu0
    %v6062 = vpop.f32.mrb[0].mxu0
    %v6063 = vadd.f32 %v5971, %v6062
    %v6064 = vpop.f32.mrb[0].mxu0
    %6065 = vmatprep.mubr.bf16.mxu0 0
    %6066 = vmatmul.mubr.bf16.gmra.mrb[0].mxu0 %v5860
    %v6067 = vpop.f32.mrb[0].mxu0
    %v6068 = vadd.f32 %v5971, %v6067
    %v6069 = vpop.f32.mrb[0].mxu0
    %v6070 = vpop.f32.mrb[0].mxu0
    %v6071 = vadd.f32 %v5971, %v6070
    %v6072 = vpop.f32.mrb[0].mxu0
    %6073 = vmatprep.mubr.bf16.mxu0 0
    %6074 = vmatmul.mubr.bf16.gmra.mrb[0].mxu0 %v5863
    %v6075 = vpop.f32.mrb[0].mxu0
    %v6076 = vadd.f32 %v5971, %v6075
    %v6077 = vpop.f32.mrb[0].mxu0
    %v6078 = vpop.f32.mrb[0].mxu0
    %v6079 = vadd.f32 %v5971, %v6078
    %v6080 = vpop.f32.mrb[0].mxu0
    %6081 = vdwg.mxu0
    %v6082 = vld [vmem:[%s47] sm:$0xf]
    %v6083 = vld [vmem:[%s47 + $0x4] sm:$0xf]
    %v6084 = vld [vmem:[%s47 + $0x8] sm:$0xf]
    %v6085 = vld [vmem:[%s47 + $0xc] sm:$0xf]
    %v6086 = vld [vmem:[%s53] sm:$0x1]
    %v6088 = vlaneseq
    %v6089 = vshrl.u32 %v6088, 7
    %v6090 = vsub.s32 0, %v6089
    %v6091 = vrot.slane %v6086, %v6090
    %v6097 = vunpack.c.l.b16 %v6082
    %v6098 = vunpack.c.l.b16 %v6083
    %v6099 = vunpack.c.l.b16 %v6084
    %v6100 = vunpack.c.l.b16 %v6085
    %v6101 = vpack.c.b16 %v6098, %v6097
    %v6102 = vpack.c.b16 %v6100, %v6099
    %6105 = vmatprep.subr.bf16.mxu0 0
    %6106 = vmatpush1.bf16.msra.mxu0 %v6101
    %6107 = vmatprep.subr.bf16.mxu0 0
    %6108 = vmatpush1.bf16.msra.mxu0 %v6102
    %6109 = vmatprep.subr.bf16.mxu0 0
    %6110 = vmatpush1.bf16.msra.mxu0 0
    %6111 = vmatprep.subr.bf16.mxu0 0
    %6112 = vmatpush1.bf16.msra.mxu0 0
    %6113 = vmatprep.subr.bf16.mxu0 0
    %6114 = vmatpush1.bf16.msra.mxu0 0
    %6115 = vmatprep.subr.bf16.mxu0 0
    %6116 = vmatpush1.bf16.msra.mxu0 0
    %6117 = vmatprep.subr.bf16.mxu0 0
    %6118 = vmatpush1.bf16.msra.mxu0 0
    %6119 = vmatprep.subr.bf16.mxu0 0
    %6120 = vmatpush1.bf16.msra.mxu0 0
    %6121 = vmatprep.subr.bf16.mxu0 0
    %6122 = vmatpush1.bf16.msra.mxu0 0
    %6123 = vmatprep.subr.bf16.mxu0 0
    %6124 = vmatpush1.bf16.msra.mxu0 0
    %6125 = vmatprep.subr.bf16.mxu0 0
    %6126 = vmatpush1.bf16.msra.mxu0 0
    %6127 = vmatprep.subr.bf16.mxu0 0
    %6128 = vmatpush1.bf16.msra.mxu0 0
    %6129 = vmatprep.subr.bf16.mxu0 0
    %6130 = vmatpush1.bf16.msra.mxu0 0
    %6131 = vmatprep.subr.bf16.mxu0 0
    %6132 = vmatpush1.bf16.msra.mxu0 0
    %6133 = vmatprep.subr.bf16.mxu0 0
    %6134 = vmatpush1.bf16.msra.mxu0 0
    %6135 = vmatprep.subr.bf16.mxu0 0
    %6136 = vmatpush1.bf16.msra.mxu0 0
    %6137 = vmatprep.mubr.bf16.mxu0 0
    %6138 = vmatmul.mubr.bf16.gmra.mrb[0].mxu0 %v5842
    %v6139 = vpop.f32.mrb[0].mxu0
    %v6140 = vadd.f32 %v6091, %v6139
    %v6141 = vpop.f32.mrb[0].mxu0
    %v6142 = vpop.f32.mrb[0].mxu0
    %v6143 = vadd.f32 %v6091, %v6142
    %v6144 = vpop.f32.mrb[0].mxu0
    %6145 = vmatprep.mubr.bf16.mxu0 0
    %6146 = vmatmul.mubr.bf16.gmra.mrb[0].mxu0 %v5845
    %v6147 = vpop.f32.mrb[0].mxu0
    %v6148 = vadd.f32 %v6091, %v6147
    %v6149 = vpop.f32.mrb[0].mxu0
    %v6150 = vpop.f32.mrb[0].mxu0
    %v6151 = vadd.f32 %v6091, %v6150
    %v6152 = vpop.f32.mrb[0].mxu0
    %6153 = vmatprep.mubr.bf16.mxu0 0
    %6154 = vmatmul.mubr.bf16.gmra.mrb[0].mxu0 %v5848
    %v6155 = vpop.f32.mrb[0].mxu0
    %v6156 = vadd.f32 %v6091, %v6155
    %v6157 = vpop.f32.mrb[0].mxu0
    %v6158 = vpop.f32.mrb[0].mxu0
    %v6159 = vadd.f32 %v6091, %v6158
    %v6160 = vpop.f32.mrb[0].mxu0
    %6161 = vmatprep.mubr.bf16.mxu0 0
    %6162 = vmatmul.mubr.bf16.gmra.mrb[0].mxu0 %v5851
    %v6163 = vpop.f32.mrb[0].mxu0
    %v6164 = vadd.f32 %v6091, %v6163
    %v6165 = vpop.f32.mrb[0].mxu0
    %v6166 = vpop.f32.mrb[0].mxu0
    %v6167 = vadd.f32 %v6091, %v6166
    %v6168 = vpop.f32.mrb[0].mxu0
    %6169 = vmatprep.mubr.bf16.mxu0 0
    %6170 = vmatmul.mubr.bf16.gmra.mrb[0].mxu0 %v5854
    %v6171 = vpop.f32.mrb[0].mxu0
    %v6172 = vadd.f32 %v6091, %v6171
    %v6173 = vpop.f32.mrb[0].mxu0
    %v6174 = vpop.f32.mrb[0].mxu0
    %v6175 = vadd.f32 %v6091, %v6174
    %v6176 = vpop.f32.mrb[0].mxu0
    %6177 = vmatprep.mubr.bf16.mxu0 0
    %6178 = vmatmul.mubr.bf16.gmra.mrb[0].mxu0 %v5857
    %v6179 = vpop.f32.mrb[0].mxu0
    %v6180 = vadd.f32 %v6091, %v6179
    %v6181 = vpop.f32.mrb[0].mxu0
    %v6182 = vpop.f32.mrb[0].mxu0
    %v6183 = vadd.f32 %v6091, %v6182
    %v6184 = vpop.f32.mrb[0].mxu0
    %6185 = vmatprep.mubr.bf16.mxu0 0
    %6186 = vmatmul.mubr.bf16.gmra.mrb[0].mxu0 %v5860
    %v6187 = vpop.f32.mrb[0].mxu0
    %v6188 = vadd.f32 %v6091, %v6187
    %v6189 = vpop.f32.mrb[0].mxu0
    %v6190 = vpop.f32.mrb[0].mxu0
    %v6191 = vadd.f32 %v6091, %v6190
    %v6192 = vpop.f32.mrb[0].mxu0
    %6193 = vmatprep.mubr.bf16.mxu0 0
    %6194 = vmatmul.mubr.bf16.gmra.mrb[0].mxu0 %v5863
    %v6195 = vpop.f32.mrb[0].mxu0
    %v6196 = vadd.f32 %v6091, %v6195
    %v6197 = vpop.f32.mrb[0].mxu0
    %v6198 = vpop.f32.mrb[0].mxu0
    %v6199 = vadd.f32 %v6091, %v6198
    %v6200 = vpop.f32.mrb[0].mxu0
    %6201 = vdwg.mxu0
    %v6202 = vpack.c.bf16 %v5903, %v5900
    %v6203 = vpack.c.bf16 %v5911, %v5908
    %v6204 = vpack.c.bf16 %v5919, %v5916
    %v6205 = vpack.c.bf16 %v5927, %v5924
    %v6206 = vpack.c.bf16 %v5935, %v5932
    %v6207 = vpack.c.bf16 %v5943, %v5940
    %v6208 = vpack.c.bf16 %v5951, %v5948
    %v6209 = vpack.c.bf16 %v5959, %v5956
    %v6210 = vpack.c.bf16 %v6023, %v6020
    %v6211 = vpack.c.bf16 %v6031, %v6028
    %v6212 = vpack.c.bf16 %v6039, %v6036
    %v6213 = vpack.c.bf16 %v6047, %v6044
    %v6214 = vpack.c.bf16 %v6055, %v6052
    %v6215 = vpack.c.bf16 %v6063, %v6060
    %v6216 = vpack.c.bf16 %v6071, %v6068
    %v6217 = vpack.c.bf16 %v6079, %v6076
    %v6219 = vsel %vm4139, %v6202, 0
    %v6222 = vsel %vm4139, %v6203, 0
    %v6225 = vsel %vm4139, %v6204, 0
    %v6228 = vsel %vm4139, %v6205, 0
    %v6231 = vsel %vm4139, %v6210, 0
    %v6234 = vsel %vm4139, %v6211, 0
    %v6237 = vsel %vm4139, %v6212, 0
    %v6240 = vsel %vm4139, %v6213, 0
    %6242 = vmatprep.subr.bf16.mxu0 0
    %6243 = vmatpush1.bf16.xpose.msra.mxu0 %v6231
    %6244 = vmatprep.subr.bf16.mxu0 0
    %6245 = vmatpush1.bf16.xpose.msra.mxu0 %v6234
    %6246 = vmatprep.subr.bf16.mxu0 0
    %6247 = vmatpush1.bf16.xpose.msra.mxu0 %v6237
    %6248 = vmatprep.subr.bf16.mxu0 0
    %6249 = vmatpush1.bf16.xpose.msra.mxu0 %v6240
    %6250 = vmatprep.subr.bf16.mxu0 0
    %6251 = vmatpush1.bf16.xpose.msra.mxu0 0
    %6252 = vmatprep.subr.bf16.mxu0 0
    %6253 = vmatpush1.bf16.xpose.msra.mxu0 0
    %6254 = vmatprep.subr.bf16.mxu0 0
    %6255 = vmatpush1.bf16.xpose.msra.mxu0 0
    %6256 = vmatprep.subr.bf16.mxu0 0
    %6257 = vmatpush1.bf16.xpose.msra.mxu0 0
    %6258 = vmatprep.subr.bf16.mxu0 0
    %6259 = vmatpush1.bf16.xpose.msra.mxu0 0
    %6260 = vmatprep.subr.bf16.mxu0 0
    %6261 = vmatpush1.bf16.xpose.msra.mxu0 0
    %6262 = vmatprep.subr.bf16.mxu0 0
    %6263 = vmatpush1.bf16.xpose.msra.mxu0 0
    %6264 = vmatprep.subr.bf16.mxu0 0
    %6265 = vmatpush1.bf16.xpose.msra.mxu0 0
    %6266 = vmatprep.subr.bf16.mxu0 0
    %6267 = vmatpush1.bf16.xpose.msra.mxu0 0
    %6268 = vmatprep.subr.bf16.mxu0 0
    %6269 = vmatpush1.bf16.xpose.msra.mxu0 0
    %6270 = vmatprep.subr.bf16.mxu0 0
    %6271 = vmatpush1.bf16.xpose.msra.mxu0 0
    %6272 = vmatprep.subr.bf16.mxu0 0
    %6273 = vmatpush1.bf16.xpose.msra.mxu0 0
    %6274 = vmatprep.mubr.bf16.mxu0 0
    %6275 = vmatmul.mubr.bf16.gmra.mrb[0].mxu0 %v6219
    %v6276 = vpop.f32.mrb[0].mxu0
    %v6277 = vadd.f32 0.0, %v6276
    %v6278 = vpop.f32.mrb[0].mxu0
    %v6279 = vpop.f32.mrb[0].mxu0
    %v6280 = vadd.f32 0.0, %v6279
    %v6281 = vpop.f32.mrb[0].mxu0
    %6282 = vmatprep.mubr.bf16.mxu0 0
    %6283 = vmatmul.mubr.bf16.gmra.mrb[0].mxu0 %v6222
    %v6284 = vpop.f32.mrb[0].mxu0
    %v6285 = vadd.f32 0.0, %v6284
    %v6286 = vpop.f32.mrb[0].mxu0
    %v6287 = vpop.f32.mrb[0].mxu0
    %v6288 = vadd.f32 0.0, %v6287
    %v6289 = vpop.f32.mrb[0].mxu0
    %6290 = vmatprep.mubr.bf16.mxu0 0
    %6291 = vmatmul.mubr.bf16.gmra.mrb[0].mxu0 %v6225
    %v6292 = vpop.f32.mrb[0].mxu0
    %v6293 = vadd.f32 0.0, %v6292
    %v6294 = vpop.f32.mrb[0].mxu0
    %v6295 = vpop.f32.mrb[0].mxu0
    %v6296 = vadd.f32 0.0, %v6295
    %v6297 = vpop.f32.mrb[0].mxu0
    %6298 = vmatprep.mubr.bf16.mxu0 0
    %6299 = vmatmul.mubr.bf16.gmra.mrb[0].mxu0 %v6228
    %v6300 = vpop.f32.mrb[0].mxu0
    %v6301 = vadd.f32 0.0, %v6300
    %v6302 = vpop.f32.mrb[0].mxu0
    %v6303 = vpop.f32.mrb[0].mxu0
    %v6304 = vadd.f32 0.0, %v6303
    %v6305 = vpop.f32.mrb[0].mxu0
    %6306 = vdwg.mxu0
    %v6308 = vsel %vm4139, %v6206, 0
    %v6311 = vsel %vm4139, %v6207, 0
    %v6314 = vsel %vm4139, %v6208, 0
    %v6317 = vsel %vm4139, %v6209, 0
    %v6320 = vsel %vm4139, %v6214, 0
    %v6323 = vsel %vm4139, %v6215, 0
    %v6326 = vsel %vm4139, %v6216, 0
    %v6329 = vsel %vm4139, %v6217, 0
    %6331 = vmatprep.subr.bf16.mxu0 0
    %6332 = vmatpush1.bf16.xpose.msra.mxu0 %v6320
    %6333 = vmatprep.subr.bf16.mxu0 0
    %6334 = vmatpush1.bf16.xpose.msra.mxu0 %v6323
    %6335 = vmatprep.subr.bf16.mxu0 0
    %6336 = vmatpush1.bf16.xpose.msra.mxu0 %v6326
    %6337 = vmatprep.subr.bf16.mxu0 0
    %6338 = vmatpush1.bf16.xpose.msra.mxu0 %v6329
    %6339 = vmatprep.subr.bf16.mxu0 0
    %6340 = vmatpush1.bf16.xpose.msra.mxu0 0
    %6341 = vmatprep.subr.bf16.mxu0 0
    %6342 = vmatpush1.bf16.xpose.msra.mxu0 0
    %6343 = vmatprep.subr.bf16.mxu0 0
    %6344 = vmatpush1.bf16.xpose.msra.mxu0 0
    %6345 = vmatprep.subr.bf16.mxu0 0
    %6346 = vmatpush1.bf16.xpose.msra.mxu0 0
    %6347 = vmatprep.subr.bf16.mxu0 0
    %6348 = vmatpush1.bf16.xpose.msra.mxu0 0
    %6349 = vmatprep.subr.bf16.mxu0 0
    %6350 = vmatpush1.bf16.xpose.msra.mxu0 0
    %6351 = vmatprep.subr.bf16.mxu0 0
    %6352 = vmatpush1.bf16.xpose.msra.mxu0 0
    %6353 = vmatprep.subr.bf16.mxu0 0
    %6354 = vmatpush1.bf16.xpose.msra.mxu0 0
    %6355 = vmatprep.subr.bf16.mxu0 0
    %6356 = vmatpush1.bf16.xpose.msra.mxu0 0
    %6357 = vmatprep.subr.bf16.mxu0 0
    %6358 = vmatpush1.bf16.xpose.msra.mxu0 0
    %6359 = vmatprep.subr.bf16.mxu0 0
    %6360 = vmatpush1.bf16.xpose.msra.mxu0 0
    %6361 = vmatprep.subr.bf16.mxu0 0
    %6362 = vmatpush1.bf16.xpose.msra.mxu0 0
    %6363 = vmatprep.mubr.bf16.mxu0 0
    %6364 = vmatmul.mubr.bf16.gmra.mrb[0].mxu0 %v6308
    %v6365 = vpop.f32.mrb[0].mxu0
    %v6366 = vadd.f32 0.0, %v6365
    %v6367 = vpop.f32.mrb[0].mxu0
    %v6368 = vpop.f32.mrb[0].mxu0
    %v6369 = vadd.f32 0.0, %v6368
    %v6370 = vpop.f32.mrb[0].mxu0
    %6371 = vmatprep.mubr.bf16.mxu0 0
    %6372 = vmatmul.mubr.bf16.gmra.mrb[0].mxu0 %v6311
    %v6373 = vpop.f32.mrb[0].mxu0
    %v6374 = vadd.f32 0.0, %v6373
    %v6375 = vpop.f32.mrb[0].mxu0
    %v6376 = vpop.f32.mrb[0].mxu0
    %v6377 = vadd.f32 0.0, %v6376
    %v6378 = vpop.f32.mrb[0].mxu0
    %6379 = vmatprep.mubr.bf16.mxu0 0
    %6380 = vmatmul.mubr.bf16.gmra.mrb[0].mxu0 %v6314
    %v6381 = vpop.f32.mrb[0].mxu0
    %v6382 = vadd.f32 0.0, %v6381
    %v6383 = vpop.f32.mrb[0].mxu0
    %v6384 = vpop.f32.mrb[0].mxu0
    %v6385 = vadd.f32 0.0, %v6384
    %v6386 = vpop.f32.mrb[0].mxu0
    %6387 = vmatprep.mubr.bf16.mxu0 0
    %6388 = vmatmul.mubr.bf16.gmra.mrb[0].mxu0 %v6317
    %v6389 = vpop.f32.mrb[0].mxu0
    %v6390 = vadd.f32 0.0, %v6389
    %v6391 = vpop.f32.mrb[0].mxu0
    %v6392 = vpop.f32.mrb[0].mxu0
    %v6393 = vadd.f32 0.0, %v6392
    %v6394 = vpop.f32.mrb[0].mxu0
    %6395 = vdwg.mxu0
    %v6396 = vmul.f32 %v6277, 0.17677669
    %v6397 = vmul.f32 %v6280, 0.17677669
    %v6398 = vmul.f32 %v6285, 0.17677669
    %v6399 = vmul.f32 %v6288, 0.17677669
    %v6400 = vmul.f32 %v6293, 0.17677669
    %v6401 = vmul.f32 %v6296, 0.17677669
    %v6402 = vmul.f32 %v6301, 0.17677669
    %v6403 = vmul.f32 %v6304, 0.17677669
    %v6404 = vmul.f32 %v6366, 0.17677669
    %v6405 = vmul.f32 %v6369, 0.17677669
    %v6406 = vmul.f32 %v6374, 0.17677669
    %v6407 = vmul.f32 %v6377, 0.17677669
    %v6408 = vmul.f32 %v6382, 0.17677669
    %v6409 = vmul.f32 %v6385, 0.17677669
    %v6410 = vmul.f32 %v6390, 0.17677669
    %v6411 = vmul.f32 %v6393, 0.17677669
    %v6412 = vsel %vm427, %v6396, -inf
    %6413 = vmax.xlane.f32.xlu0 %v6412
    %v6414 = vpop.xlane.xlu0 %6413
    %v6415 = vsel %vm427, %v6397, -inf
    %6416 = vmax.xlane.f32.xlu0 %v6415
    %v6417 = vpop.xlane.xlu0 %6416
    %v6418 = vsel %vm427, %v6398, -inf
    %6419 = vmax.xlane.f32.xlu0 %v6418
    %v6420 = vpop.xlane.xlu0 %6419
    %v6421 = vsel %vm427, %v6399, -inf
    %6422 = vmax.xlane.f32.xlu0 %v6421
    %v6423 = vpop.xlane.xlu0 %6422
    %v6424 = vsel %vm427, %v6400, -inf
    %6425 = vmax.xlane.f32.xlu0 %v6424
    %v6426 = vpop.xlane.xlu0 %6425
    %v6427 = vsel %vm427, %v6401, -inf
    %6428 = vmax.xlane.f32.xlu0 %v6427
    %v6429 = vpop.xlane.xlu0 %6428
    %v6430 = vsel %vm427, %v6402, -inf
    %6431 = vmax.xlane.f32.xlu0 %v6430
    %v6432 = vpop.xlane.xlu0 %6431
    %v6433 = vsel %vm427, %v6403, -inf
    %6434 = vmax.xlane.f32.xlu0 %v6433
    %v6435 = vpop.xlane.xlu0 %6434
    %v6436 = vsel %vm427, %v6404, -inf
    %6437 = vmax.xlane.f32.xlu0 %v6436
    %v6438 = vpop.xlane.xlu0 %6437
    %v6439 = vsel %vm427, %v6405, -inf
    %6440 = vmax.xlane.f32.xlu0 %v6439
    %v6441 = vpop.xlane.xlu0 %6440
    %v6442 = vsel %vm427, %v6406, -inf
    %6443 = vmax.xlane.f32.xlu0 %v6442
    %v6444 = vpop.xlane.xlu0 %6443
    %v6445 = vsel %vm427, %v6407, -inf
    %6446 = vmax.xlane.f32.xlu0 %v6445
    %v6447 = vpop.xlane.xlu0 %6446
    %v6448 = vsel %vm427, %v6408, -inf
    %6449 = vmax.xlane.f32.xlu0 %v6448
    %v6450 = vpop.xlane.xlu0 %6449
    %v6451 = vsel %vm427, %v6409, -inf
    %6452 = vmax.xlane.f32.xlu0 %v6451
    %v6453 = vpop.xlane.xlu0 %6452
    %v6454 = vsel %vm427, %v6410, -inf
    %6455 = vmax.xlane.f32.xlu0 %v6454
    %v6456 = vpop.xlane.xlu0 %6455
    %v6457 = vsel %vm427, %v6411, -inf
    %6458 = vmax.xlane.f32.xlu0 %v6457
    %v6459 = vpop.xlane.xlu0 %6458
    %v6460 = vsub.f32 %v6396, %v6414
    %v6461 = vsub.f32 %v6397, %v6417
    %v6462 = vsub.f32 %v6398, %v6420
    %v6463 = vsub.f32 %v6399, %v6423
    %v6464 = vsub.f32 %v6400, %v6426
    %v6465 = vsub.f32 %v6401, %v6429
    %v6466 = vsub.f32 %v6402, %v6432
    %v6467 = vsub.f32 %v6403, %v6435
    %v6468 = vsub.f32 %v6404, %v6438
    %v6469 = vsub.f32 %v6405, %v6441
    %v6470 = vsub.f32 %v6406, %v6444
    %v6471 = vsub.f32 %v6407, %v6447
    %v6472 = vsub.f32 %v6408, %v6450
    %v6473 = vsub.f32 %v6409, %v6453
    %v6474 = vsub.f32 %v6410, %v6456
    %v6475 = vsub.f32 %v6411, %v6459
    %v6476 = vmul.f32 %v6460, 1.442695
    %v6477 = vpow.pop %v6476
    %v6478 = vmul.f32 %v6461, 1.442695
    %v6479 = vpow.pop %v6478
    %v6480 = vmul.f32 %v6462, 1.442695
    %v6481 = vpow.pop %v6480
    %v6482 = vmul.f32 %v6463, 1.442695
    %v6483 = vpow.pop %v6482
    %v6484 = vmul.f32 %v6464, 1.442695
    %v6485 = vpow.pop %v6484
    %v6486 = vmul.f32 %v6465, 1.442695
    %v6487 = vpow.pop %v6486
    %v6488 = vmul.f32 %v6466, 1.442695
    %v6489 = vpow.pop %v6488
    %v6490 = vmul.f32 %v6467, 1.442695
    %v6491 = vpow.pop %v6490
    %v6492 = vmul.f32 %v6468, 1.442695
    %v6493 = vpow.pop %v6492
    %v6494 = vmul.f32 %v6469, 1.442695
    %v6495 = vpow.pop %v6494
    %v6496 = vmul.f32 %v6470, 1.442695
    %v6497 = vpow.pop %v6496
    %v6498 = vmul.f32 %v6471, 1.442695
    %v6499 = vpow.pop %v6498
    %v6500 = vmul.f32 %v6472, 1.442695
    %v6501 = vpow.pop %v6500
    %v6502 = vmul.f32 %v6473, 1.442695
    %v6503 = vpow.pop %v6502
    %v6504 = vmul.f32 %v6474, 1.442695
    %v6505 = vpow.pop %v6504
    %v6506 = vmul.f32 %v6475, 1.442695
    %v6507 = vpow.pop %v6506
    %v6508 = vsel %vm427, %v6477, 0.0
    %6509 = vadd.xlane.f32.xlu0 %v6508
    %v6510 = vpop.xlane.xlu0 %6509
    %v6511 = vsel %vm427, %v6479, 0.0
    %6512 = vadd.xlane.f32.xlu0 %v6511
    %v6513 = vpop.xlane.xlu0 %6512
    %v6514 = vsel %vm427, %v6481, 0.0
    %6515 = vadd.xlane.f32.xlu0 %v6514
    %v6516 = vpop.xlane.xlu0 %6515
    %v6517 = vsel %vm427, %v6483, 0.0
    %6518 = vadd.xlane.f32.xlu0 %v6517
    %v6519 = vpop.xlane.xlu0 %6518
    %v6520 = vsel %vm427, %v6485, 0.0
    %6521 = vadd.xlane.f32.xlu0 %v6520
    %v6522 = vpop.xlane.xlu0 %6521
    %v6523 = vsel %vm427, %v6487, 0.0
    %6524 = vadd.xlane.f32.xlu0 %v6523
    %v6525 = vpop.xlane.xlu0 %6524
    %v6526 = vsel %vm427, %v6489, 0.0
    %6527 = vadd.xlane.f32.xlu0 %v6526
    %v6528 = vpop.xlane.xlu0 %6527
    %v6529 = vsel %vm427, %v6491, 0.0
    %6530 = vadd.xlane.f32.xlu0 %v6529
    %v6531 = vpop.xlane.xlu0 %6530
    %v6532 = vsel %vm427, %v6493, 0.0
    %6533 = vadd.xlane.f32.xlu0 %v6532
    %v6534 = vpop.xlane.xlu0 %6533
    %v6535 = vsel %vm427, %v6495, 0.0
    %6536 = vadd.xlane.f32.xlu0 %v6535
    %v6537 = vpop.xlane.xlu0 %6536
    %v6538 = vsel %vm427, %v6497, 0.0
    %6539 = vadd.xlane.f32.xlu0 %v6538
    %v6540 = vpop.xlane.xlu0 %6539
    %v6541 = vsel %vm427, %v6499, 0.0
    %6542 = vadd.xlane.f32.xlu0 %v6541
    %v6543 = vpop.xlane.xlu0 %6542
    %v6544 = vsel %vm427, %v6501, 0.0
    %6545 = vadd.xlane.f32.xlu0 %v6544
    %v6546 = vpop.xlane.xlu0 %6545
    %v6547 = vsel %vm427, %v6503, 0.0
    %6548 = vadd.xlane.f32.xlu0 %v6547
    %v6549 = vpop.xlane.xlu0 %6548
    %v6550 = vsel %vm427, %v6505, 0.0
    %6551 = vadd.xlane.f32.xlu0 %v6550
    %v6552 = vpop.xlane.xlu0 %6551
    %v6553 = vsel %vm427, %v6507, 0.0
    %6554 = vadd.xlane.f32.xlu0 %v6553
    %v6555 = vpop.xlane.xlu0 %6554
    %v6556 = vrcp.pop %v6510
    %v6557 = vrcp.pop %v6513
    %v6558 = vrcp.pop %v6516
    %v6559 = vrcp.pop %v6519
    %v6560 = vrcp.pop %v6522
    %v6561 = vrcp.pop %v6525
    %v6562 = vrcp.pop %v6528
    %v6563 = vrcp.pop %v6531
    %v6564 = vrcp.pop %v6534
    %v6565 = vrcp.pop %v6537
    %v6566 = vrcp.pop %v6540
    %v6567 = vrcp.pop %v6543
    %v6568 = vrcp.pop %v6546
    %v6569 = vrcp.pop %v6549
    %v6570 = vrcp.pop %v6552
    %v6571 = vrcp.pop %v6555
    %v6572 = vmul.f32 %v6477, %v6556
    %v6573 = vmul.f32 %v6479, %v6557
    %v6574 = vmul.f32 %v6481, %v6558
    %v6575 = vmul.f32 %v6483, %v6559
    %v6576 = vmul.f32 %v6485, %v6560
    %v6577 = vmul.f32 %v6487, %v6561
    %v6578 = vmul.f32 %v6489, %v6562
    %v6579 = vmul.f32 %v6491, %v6563
    %v6580 = vmul.f32 %v6493, %v6564
    %v6581 = vmul.f32 %v6495, %v6565
    %v6582 = vmul.f32 %v6497, %v6566
    %v6583 = vmul.f32 %v6499, %v6567
    %v6584 = vmul.f32 %v6501, %v6568
    %v6585 = vmul.f32 %v6503, %v6569
    %v6586 = vmul.f32 %v6505, %v6570
    %v6587 = vmul.f32 %v6507, %v6571
    %v6588 = vpack.c.bf16 %v6573, %v6572
    %v6589 = vpack.c.bf16 %v6575, %v6574
    %v6590 = vpack.c.bf16 %v6577, %v6576
    %v6591 = vpack.c.bf16 %v6579, %v6578
    %v6592 = vpack.c.bf16 %v6581, %v6580
    %v6593 = vpack.c.bf16 %v6583, %v6582
    %v6594 = vpack.c.bf16 %v6585, %v6584
    %v6595 = vpack.c.bf16 %v6587, %v6586
    %v6596 = vpack.c.bf16 %v6143, %v6140
    %v6597 = vpack.c.bf16 %v6151, %v6148
    %v6598 = vpack.c.bf16 %v6159, %v6156
    %v6599 = vpack.c.bf16 %v6167, %v6164
    %v6600 = vpack.c.bf16 %v6175, %v6172
    %v6601 = vpack.c.bf16 %v6183, %v6180
    %v6602 = vpack.c.bf16 %v6191, %v6188
    %v6603 = vpack.c.bf16 %v6199, %v6196
    %v6605 = vsel %vm427, %v6588, 0
    %v6608 = vsel %vm427, %v6589, 0
    %v6611 = vsel %vm427, %v6590, 0
    %v6614 = vsel %vm427, %v6591, 0
    %6616 = vmatprep.subr.bf16.mxu0 0
    %6617 = vmatpush1.bf16.msra.mxu0 %v6596
    %6618 = vmatprep.subr.bf16.mxu0 0
    %6619 = vmatpush1.bf16.msra.mxu0 %v6597
    %6620 = vmatprep.subr.bf16.mxu0 0
    %6621 = vmatpush1.bf16.msra.mxu0 %v6598
    %6622 = vmatprep.subr.bf16.mxu0 0
    %6623 = vmatpush1.bf16.msra.mxu0 %v6599
    %6624 = vmatprep.subr.bf16.mxu0 0
    %6625 = vmatpush1.bf16.msra.mxu0 0
    %6626 = vmatprep.subr.bf16.mxu0 0
    %6627 = vmatpush1.bf16.msra.mxu0 0
    %6628 = vmatprep.subr.bf16.mxu0 0
    %6629 = vmatpush1.bf16.msra.mxu0 0
    %6630 = vmatprep.subr.bf16.mxu0 0
    %6631 = vmatpush1.bf16.msra.mxu0 0
    %6632 = vmatprep.subr.bf16.mxu0 0
    %6633 = vmatpush1.bf16.msra.mxu0 0
    %6634 = vmatprep.subr.bf16.mxu0 0
    %6635 = vmatpush1.bf16.msra.mxu0 0
    %6636 = vmatprep.subr.bf16.mxu0 0
    %6637 = vmatpush1.bf16.msra.mxu0 0
    %6638 = vmatprep.subr.bf16.mxu0 0
    %6639 = vmatpush1.bf16.msra.mxu0 0
    %6640 = vmatprep.subr.bf16.mxu0 0
    %6641 = vmatpush1.bf16.msra.mxu0 0
    %6642 = vmatprep.subr.bf16.mxu0 0
    %6643 = vmatpush1.bf16.msra.mxu0 0
    %6644 = vmatprep.subr.bf16.mxu0 0
    %6645 = vmatpush1.bf16.msra.mxu0 0
    %6646 = vmatprep.subr.bf16.mxu0 0
    %6647 = vmatpush1.bf16.msra.mxu0 0
    %6648 = vmatprep.mubr.bf16.mxu0 0
    %6649 = vmatmul.mubr.bf16.gmra.mrb[0].mxu0 %v6605
    %v6650 = vpop.f32.mrb[0].mxu0
    %v6651 = vadd.f32 0.0, %v6650
    %v6652 = vpop.f32.mrb[0].mxu0
    %v6653 = vpop.f32.mrb[0].mxu0
    %v6654 = vadd.f32 0.0, %v6653
    %v6655 = vpop.f32.mrb[0].mxu0
    %6656 = vmatprep.mubr.bf16.mxu0 0
    %6657 = vmatmul.mubr.bf16.gmra.mrb[0].mxu0 %v6608
    %v6658 = vpop.f32.mrb[0].mxu0
    %v6659 = vadd.f32 0.0, %v6658
    %v6660 = vpop.f32.mrb[0].mxu0
    %v6661 = vpop.f32.mrb[0].mxu0
    %v6662 = vadd.f32 0.0, %v6661
    %v6663 = vpop.f32.mrb[0].mxu0
    %6664 = vmatprep.mubr.bf16.mxu0 0
    %6665 = vmatmul.mubr.bf16.gmra.mrb[0].mxu0 %v6611
    %v6666 = vpop.f32.mrb[0].mxu0
    %v6667 = vadd.f32 0.0, %v6666
    %v6668 = vpop.f32.mrb[0].mxu0
    %v6669 = vpop.f32.mrb[0].mxu0
    %v6670 = vadd.f32 0.0, %v6669
    %v6671 = vpop.f32.mrb[0].mxu0
    %6672 = vmatprep.mubr.bf16.mxu0 0
    %6673 = vmatmul.mubr.bf16.gmra.mrb[0].mxu0 %v6614
    %v6674 = vpop.f32.mrb[0].mxu0
    %v6675 = vadd.f32 0.0, %v6674
    %v6676 = vpop.f32.mrb[0].mxu0
    %v6677 = vpop.f32.mrb[0].mxu0
    %v6678 = vadd.f32 0.0, %v6677
    %v6679 = vpop.f32.mrb[0].mxu0
    %6680 = vdwg.mxu0
    %v6682 = vsel %vm427, %v6592, 0
    %v6685 = vsel %vm427, %v6593, 0
    %v6688 = vsel %vm427, %v6594, 0
    %v6691 = vsel %vm427, %v6595, 0
    %6693 = vmatprep.subr.bf16.mxu0 0
    %6694 = vmatpush1.bf16.msra.mxu0 %v6600
    %6695 = vmatprep.subr.bf16.mxu0 0
    %6696 = vmatpush1.bf16.msra.mxu0 %v6601
    %6697 = vmatprep.subr.bf16.mxu0 0
    %6698 = vmatpush1.bf16.msra.mxu0 %v6602
    %6699 = vmatprep.subr.bf16.mxu0 0
    %6700 = vmatpush1.bf16.msra.mxu0 %v6603
    %6701 = vmatprep.subr.bf16.mxu0 0
    %6702 = vmatpush1.bf16.msra.mxu0 0
    %6703 = vmatprep.subr.bf16.mxu0 0
    %6704 = vmatpush1.bf16.msra.mxu0 0
    %6705 = vmatprep.subr.bf16.mxu0 0
    %6706 = vmatpush1.bf16.msra.mxu0 0
    %6707 = vmatprep.subr.bf16.mxu0 0
    %6708 = vmatpush1.bf16.msra.mxu0 0
    %6709 = vmatprep.subr.bf16.mxu0 0
    %6710 = vmatpush1.bf16.msra.mxu0 0
    %6711 = vmatprep.subr.bf16.mxu0 0
    %6712 = vmatpush1.bf16.msra.mxu0 0
    %6713 = vmatprep.subr.bf16.mxu0 0
    %6714 = vmatpush1.bf16.msra.mxu0 0
    %6715 = vmatprep.subr.bf16.mxu0 0
    %6716 = vmatpush1.bf16.msra.mxu0 0
    %6717 = vmatprep.subr.bf16.mxu0 0
    %6718 = vmatpush1.bf16.msra.mxu0 0
    %6719 = vmatprep.subr.bf16.mxu0 0
    %6720 = vmatpush1.bf16.msra.mxu0 0
    %6721 = vmatprep.subr.bf16.mxu0 0
    %6722 = vmatpush1.bf16.msra.mxu0 0
    %6723 = vmatprep.subr.bf16.mxu0 0
    %6724 = vmatpush1.bf16.msra.mxu0 0
    %6725 = vmatprep.mubr.bf16.mxu0 0
    %6726 = vmatmul.mubr.bf16.gmra.mrb[0].mxu0 %v6682
    %v6727 = vpop.f32.mrb[0].mxu0
    %v6728 = vadd.f32 0.0, %v6727
    %v6729 = vpop.f32.mrb[0].mxu0
    %v6730 = vpop.f32.mrb[0].mxu0
    %v6731 = vadd.f32 0.0, %v6730
    %v6732 = vpop.f32.mrb[0].mxu0
    %6733 = vmatprep.mubr.bf16.mxu0 0
    %6734 = vmatmul.mubr.bf16.gmra.mrb[0].mxu0 %v6685
    %v6735 = vpop.f32.mrb[0].mxu0
    %v6736 = vadd.f32 0.0, %v6735
    %v6737 = vpop.f32.mrb[0].mxu0
    %v6738 = vpop.f32.mrb[0].mxu0
    %v6739 = vadd.f32 0.0, %v6738
    %v6740 = vpop.f32.mrb[0].mxu0
    %6741 = vmatprep.mubr.bf16.mxu0 0
    %6742 = vmatmul.mubr.bf16.gmra.mrb[0].mxu0 %v6688
    %v6743 = vpop.f32.mrb[0].mxu0
    %v6744 = vadd.f32 0.0, %v6743
    %v6745 = vpop.f32.mrb[0].mxu0
    %v6746 = vpop.f32.mrb[0].mxu0
    %v6747 = vadd.f32 0.0, %v6746
    %v6748 = vpop.f32.mrb[0].mxu0
    %6749 = vmatprep.mubr.bf16.mxu0 0
    %6750 = vmatmul.mubr.bf16.gmra.mrb[0].mxu0 %v6691
    %v6751 = vpop.f32.mrb[0].mxu0
    %v6752 = vadd.f32 0.0, %v6751
    %v6753 = vpop.f32.mrb[0].mxu0
    %v6754 = vpop.f32.mrb[0].mxu0
    %v6755 = vadd.f32 0.0, %v6754
    %v6756 = vpop.f32.mrb[0].mxu0
    %6757 = vdwg.mxu0
    %v6758 = vpack.c.bf16 %v6654, %v6651
    %v6759 = vpack.c.bf16 %v6662, %v6659
    %v6760 = vpack.c.bf16 %v6670, %v6667
    %v6761 = vpack.c.bf16 %v6678, %v6675
    %v6762 = vpack.c.bf16 %v6731, %v6728
    %v6763 = vpack.c.bf16 %v6739, %v6736
    %v6764 = vpack.c.bf16 %v6747, %v6744
    %v6765 = vpack.c.bf16 %v6755, %v6752
    %v6766 = vld [vmem:[%s55] sm:$0xf]
    %v6767 = vld [vmem:[%s55 + $0x4] sm:$0xf]
    %v6768 = vld [vmem:[%s55 + $0x8] sm:$0xf]
    %v6769 = vld [vmem:[%s55 + $0xc] sm:$0xf]
    %v6770 = vld [vmem:[%s57] sm:$0x1]
    %v6772 = vlaneseq
    %v6773 = vshrl.u32 %v6772, 7
    %v6774 = vsub.s32 0, %v6773
    %v6775 = vrot.slane %v6770, %v6774
    %v6781 = vunpack.c.l.b16 %v6766
    %v6782 = vunpack.c.l.b16 %v6767
    %v6783 = vunpack.c.l.b16 %v6768
    %v6784 = vunpack.c.l.b16 %v6769
    %v6785 = vpack.c.b16 %v6782, %v6781
    %v6786 = vpack.c.b16 %v6784, %v6783
    %v6790 = vsel %vm4139, %v6758, 0
    %v6793 = vsel %vm4139, %v6759, 0
    %v6796 = vsel %vm4139, %v6760, 0
    %v6799 = vsel %vm4139, %v6761, 0
    %v6802 = vsel %vm4139, %v6762, 0
    %v6805 = vsel %vm4139, %v6763, 0
    %v6808 = vsel %vm4139, %v6764, 0
    %v6811 = vsel %vm4139, %v6765, 0
    %6813 = vmatprep.subr.bf16.mxu0 0
    %6814 = vmatpush1.bf16.msra.mxu0 %v6785
    %6815 = vmatprep.subr.bf16.mxu0 0
    %6816 = vmatpush1.bf16.msra.mxu0 %v6786
    %6817 = vmatprep.subr.bf16.mxu0 0
    %6818 = vmatpush1.bf16.msra.mxu0 0
    %6819 = vmatprep.subr.bf16.mxu0 0
    %6820 = vmatpush1.bf16.msra.mxu0 0
    %6821 = vmatprep.subr.bf16.mxu0 0
    %6822 = vmatpush1.bf16.msra.mxu0 0
    %6823 = vmatprep.subr.bf16.mxu0 0
    %6824 = vmatpush1.bf16.msra.mxu0 0
    %6825 = vmatprep.subr.bf16.mxu0 0
    %6826 = vmatpush1.bf16.msra.mxu0 0
    %6827 = vmatprep.subr.bf16.mxu0 0
    %6828 = vmatpush1.bf16.msra.mxu0 0
    %6829 = vmatprep.subr.bf16.mxu0 0
    %6830 = vmatpush1.bf16.msra.mxu0 0
    %6831 = vmatprep.subr.bf16.mxu0 0
    %6832 = vmatpush1.bf16.msra.mxu0 0
    %6833 = vmatprep.subr.bf16.mxu0 0
    %6834 = vmatpush1.bf16.msra.mxu0 0
    %6835 = vmatprep.subr.bf16.mxu0 0
    %6836 = vmatpush1.bf16.msra.mxu0 0
    %6837 = vmatprep.subr.bf16.mxu0 0
    %6838 = vmatpush1.bf16.msra.mxu0 0
    %6839 = vmatprep.subr.bf16.mxu0 0
    %6840 = vmatpush1.bf16.msra.mxu0 0
    %6841 = vmatprep.subr.bf16.mxu0 0
    %6842 = vmatpush1.bf16.msra.mxu0 0
    %6843 = vmatprep.subr.bf16.mxu0 0
    %6844 = vmatpush1.bf16.msra.mxu0 0
    %6845 = vmatprep.mubr.bf16.mxu0 0
    %6846 = vmatmul.mubr.bf16.gmra.mrb[0].mxu0 %v6790
    %v6847 = vpop.f32.mrb[0].mxu0
    %v6848 = vadd.f32 %v6775, %v6847
    %v6849 = vpop.f32.mrb[0].mxu0
    %v6850 = vpop.f32.mrb[0].mxu0
    %v6851 = vadd.f32 %v6775, %v6850
    %v6852 = vpop.f32.mrb[0].mxu0
    %6853 = vmatprep.mubr.bf16.mxu0 0
    %6854 = vmatmul.mubr.bf16.gmra.mrb[0].mxu0 %v6793
    %v6855 = vpop.f32.mrb[0].mxu0
    %v6856 = vadd.f32 %v6775, %v6855
    %v6857 = vpop.f32.mrb[0].mxu0
    %v6858 = vpop.f32.mrb[0].mxu0
    %v6859 = vadd.f32 %v6775, %v6858
    %v6860 = vpop.f32.mrb[0].mxu0
    %6861 = vmatprep.mubr.bf16.mxu0 0
    %6862 = vmatmul.mubr.bf16.gmra.mrb[0].mxu0 %v6796
    %v6863 = vpop.f32.mrb[0].mxu0
    %v6864 = vadd.f32 %v6775, %v6863
    %v6865 = vpop.f32.mrb[0].mxu0
    %v6866 = vpop.f32.mrb[0].mxu0
    %v6867 = vadd.f32 %v6775, %v6866
    %v6868 = vpop.f32.mrb[0].mxu0
    %6869 = vmatprep.mubr.bf16.mxu0 0
    %6870 = vmatmul.mubr.bf16.gmra.mrb[0].mxu0 %v6799
    %v6871 = vpop.f32.mrb[0].mxu0
    %v6872 = vadd.f32 %v6775, %v6871
    %v6873 = vpop.f32.mrb[0].mxu0
    %v6874 = vpop.f32.mrb[0].mxu0
    %v6875 = vadd.f32 %v6775, %v6874
    %v6876 = vpop.f32.mrb[0].mxu0
    %6877 = vmatprep.mubr.bf16.mxu0 0
    %6878 = vmatmul.mubr.bf16.gmra.mrb[0].mxu0 %v6802
    %v6879 = vpop.f32.mrb[0].mxu0
    %v6880 = vadd.f32 %v6775, %v6879
    %v6881 = vpop.f32.mrb[0].mxu0
    %v6882 = vpop.f32.mrb[0].mxu0
    %v6883 = vadd.f32 %v6775, %v6882
    %v6884 = vpop.f32.mrb[0].mxu0
    %6885 = vmatprep.mubr.bf16.mxu0 0
    %6886 = vmatmul.mubr.bf16.gmra.mrb[0].mxu0 %v6805
    %v6887 = vpop.f32.mrb[0].mxu0
    %v6888 = vadd.f32 %v6775, %v6887
    %v6889 = vpop.f32.mrb[0].mxu0
    %v6890 = vpop.f32.mrb[0].mxu0
    %v6891 = vadd.f32 %v6775, %v6890
    %v6892 = vpop.f32.mrb[0].mxu0
    %6893 = vmatprep.mubr.bf16.mxu0 0
    %6894 = vmatmul.mubr.bf16.gmra.mrb[0].mxu0 %v6808
    %v6895 = vpop.f32.mrb[0].mxu0
    %v6896 = vadd.f32 %v6775, %v6895
    %v6897 = vpop.f32.mrb[0].mxu0
    %v6898 = vpop.f32.mrb[0].mxu0
    %v6899 = vadd.f32 %v6775, %v6898
    %v6900 = vpop.f32.mrb[0].mxu0
    %6901 = vmatprep.mubr.bf16.mxu0 0
    %6902 = vmatmul.mubr.bf16.gmra.mrb[0].mxu0 %v6811
    %v6903 = vpop.f32.mrb[0].mxu0
    %v6904 = vadd.f32 %v6775, %v6903
    %v6905 = vpop.f32.mrb[0].mxu0
    %v6906 = vpop.f32.mrb[0].mxu0
    %v6907 = vadd.f32 %v6775, %v6906
    %v6908 = vpop.f32.mrb[0].mxu0
    %6909 = vdwg.mxu0
    %v6910 = vadd.f32 %v6848, %v5794
    %v6911 = vadd.f32 %v6851, %v5795
    %v6912 = vadd.f32 %v6856, %v5796
    %v6913 = vadd.f32 %v6859, %v5797
    %v6914 = vadd.f32 %v6864, %v5798
    %v6915 = vadd.f32 %v6867, %v5799
    %v6916 = vadd.f32 %v6872, %v5800
    %v6917 = vadd.f32 %v6875, %v5801
    %v6918 = vadd.f32 %v6880, %v5802
    %v6919 = vadd.f32 %v6883, %v5803
    %v6920 = vadd.f32 %v6888, %v5804
    %v6921 = vadd.f32 %v6891, %v5805
    %v6922 = vadd.f32 %v6896, %v5806
    %v6923 = vadd.f32 %v6899, %v5807
    %v6924 = vadd.f32 %v6904, %v5808
    %v6925 = vadd.f32 %v6907, %v5809
    %6926 = vst.msk [vmem:[#allocation4] sm:$0xff] %vm4139, %v6910
    %6927 = vst.msk [vmem:[#allocation4 + $0x8] sm:$0xff] %vm4139, %v6911
    %6928 = vst.msk [vmem:[#allocation4 + $0x10] sm:$0xff] %vm4139, %v6912
    %6929 = vst.msk [vmem:[#allocation4 + $0x18] sm:$0xff] %vm4139, %v6913
    %6930 = vst.msk [vmem:[#allocation4 + $0x20] sm:$0xff] %vm4139, %v6914
    %6931 = vst.msk [vmem:[#allocation4 + $0x28] sm:$0xff] %vm4139, %v6915
    %6932 = vst.msk [vmem:[#allocation4 + $0x30] sm:$0xff] %vm4139, %v6916
    %6933 = vst.msk [vmem:[#allocation4 + $0x38] sm:$0xff] %vm4139, %v6917
    %6934 = vst.msk [vmem:[#allocation4 + $0x40] sm:$0xff] %vm4139, %v6918
    %6935 = vst.msk [vmem:[#allocation4 + $0x48] sm:$0xff] %vm4139, %v6919
    %6936 = vst.msk [vmem:[#allocation4 + $0x50] sm:$0xff] %vm4139, %v6920
    %6937 = vst.msk [vmem:[#allocation4 + $0x58] sm:$0xff] %vm4139, %v6921
    %6938 = vst.msk [vmem:[#allocation4 + $0x60] sm:$0xff] %vm4139, %v6922
    %6939 = vst.msk [vmem:[#allocation4 + $0x68] sm:$0xff] %vm4139, %v6923
    %6940 = vst.msk [vmem:[#allocation4 + $0x70] sm:$0xff] %vm4139, %v6924
    %6941 = vst.msk [vmem:[#allocation4 + $0x78] sm:$0xff] %vm4139, %v6925
    %v6942 = vld [vmem:[%s59] sm:$0xf]
    %v6943 = vld [vmem:[%s59 + $0x4] sm:$0xf]
    %v6944 = vld [vmem:[%s59 + $0x8] sm:$0xf]
    %v6945 = vld [vmem:[%s59 + $0xc] sm:$0xf]
    %v6946 = vld [vmem:[%s59 + $0x10] sm:$0xf]
    %v6947 = vld [vmem:[%s59 + $0x14] sm:$0xf]
    %v6948 = vld [vmem:[%s59 + $0x18] sm:$0xf]
    %v6949 = vld [vmem:[%s59 + $0x1c] sm:$0xf]
    %v6950 = vld [vmem:[%s61] sm:$0x1]
    %v6952 = vlaneseq
    %v6953 = vshrl.u32 %v6952, 7
    %v6954 = vsub.s32 0, %v6953
    %v6955 = vrot.slane %v6950, %v6954
    %v6973 = vunpack.c.l.b16 %v395
    %v6974 = vunpack.c.l.b16 %v396
    %v6975 = vunpack.c.l.b16 %v397
    %v6976 = vunpack.c.l.b16 %v398
    %v6977 = vunpack.c.l.b16 %v399
    %v6978 = vunpack.c.l.b16 %v400
    %v6979 = vunpack.c.l.b16 %v401
    %v6980 = vunpack.c.l.b16 %v402
    %v6981 = vunpack.c.l.b16 %v403
    %v6982 = vunpack.c.l.b16 %v404
    %v6983 = vunpack.c.l.b16 %v405
    %v6984 = vunpack.c.l.b16 %v406
    %v6985 = vunpack.c.l.b16 %v407
    %v6986 = vunpack.c.l.b16 %v408
    %v6987 = vunpack.c.l.b16 %v409
    %v6988 = vunpack.c.l.b16 %v410
    %v6989 = vpack.c.b16 %v6974, %v6973
    %v6990 = vpack.c.b16 %v6976, %v6975
    %v6991 = vpack.c.b16 %v6978, %v6977
    %v6992 = vpack.c.b16 %v6980, %v6979
    %v6993 = vpack.c.b16 %v6982, %v6981
    %v6994 = vpack.c.b16 %v6984, %v6983
    %v6995 = vpack.c.b16 %v6986, %v6985
    %v6996 = vpack.c.b16 %v6988, %v6987
    %v7005 = vunpack.c.l.b16 %v6942
    %v7006 = vunpack.c.l.b16 %v6943
    %v7007 = vunpack.c.l.b16 %v6944
    %v7008 = vunpack.c.l.b16 %v6945
    %v7009 = vunpack.c.l.b16 %v6946
    %v7010 = vunpack.c.l.b16 %v6947
    %v7011 = vunpack.c.l.b16 %v6948
    %v7012 = vunpack.c.l.b16 %v6949
    %v7013 = vpack.c.b16 %v7006, %v7005
    %v7014 = vpack.c.b16 %v7008, %v7007
    %v7015 = vpack.c.b16 %v7010, %v7009
    %v7016 = vpack.c.b16 %v7012, %v7011
    %v7022 = vsel %vm427, %v6989, 0
    %v7025 = vsel %vm427, %v6990, 0
    %v7028 = vsel %vm427, %v6991, 0
    %v7031 = vsel %vm427, %v6992, 0
    %v7034 = vsel %vm427, %v6993, 0
    %v7037 = vsel %vm427, %v6994, 0
    %v7040 = vsel %vm427, %v6995, 0
    %v7043 = vsel %vm427, %v6996, 0
    %7045 = vmatprep.subr.bf16.mxu0 0
    %7046 = vmatpush1.bf16.msra.mxu0 %v7013
    %7047 = vmatprep.subr.bf16.mxu0 0
    %7048 = vmatpush1.bf16.msra.mxu0 %v7014
    %7049 = vmatprep.subr.bf16.mxu0 0
    %7050 = vmatpush1.bf16.msra.mxu0 %v7015
    %7051 = vmatprep.subr.bf16.mxu0 0
    %7052 = vmatpush1.bf16.msra.mxu0 %v7016
    %7053 = vmatprep.subr.bf16.mxu0 0
    %7054 = vmatpush1.bf16.msra.mxu0 0
    %7055 = vmatprep.subr.bf16.mxu0 0
    %7056 = vmatpush1.bf16.msra.mxu0 0
    %7057 = vmatprep.subr.bf16.mxu0 0
    %7058 = vmatpush1.bf16.msra.mxu0 0
    %7059 = vmatprep.subr.bf16.mxu0 0
    %7060 = vmatpush1.bf16.msra.mxu0 0
    %7061 = vmatprep.subr.bf16.mxu0 0
    %7062 = vmatpush1.bf16.msra.mxu0 0
    %7063 = vmatprep.subr.bf16.mxu0 0
    %7064 = vmatpush1.bf16.msra.mxu0 0
    %7065 = vmatprep.subr.bf16.mxu0 0
    %7066 = vmatpush1.bf16.msra.mxu0 0
    %7067 = vmatprep.subr.bf16.mxu0 0
    %7068 = vmatpush1.bf16.msra.mxu0 0
    %7069 = vmatprep.subr.bf16.mxu0 0
    %7070 = vmatpush1.bf16.msra.mxu0 0
    %7071 = vmatprep.subr.bf16.mxu0 0
    %7072 = vmatpush1.bf16.msra.mxu0 0
    %7073 = vmatprep.subr.bf16.mxu0 0
    %7074 = vmatpush1.bf16.msra.mxu0 0
    %7075 = vmatprep.subr.bf16.mxu0 0
    %7076 = vmatpush1.bf16.msra.mxu0 0
    %7077 = vmatprep.mubr.bf16.mxu0 0
    %7078 = vmatmul.mubr.bf16.gmra.mrb[0].mxu0 %v7022
    %v7079 = vpop.f32.mrb[0].mxu0
    %v7080 = vadd.f32 %v6955, %v7079
    %v7081 = vpop.f32.mrb[0].mxu0
    %v7082 = vpop.f32.mrb[0].mxu0
    %v7083 = vadd.f32 %v6955, %v7082
    %v7084 = vpop.f32.mrb[0].mxu0
    %7085 = vmatprep.mubr.bf16.mxu0 0
    %7086 = vmatmul.mubr.bf16.gmra.mrb[0].mxu0 %v7025
    %v7087 = vpop.f32.mrb[0].mxu0
    %v7088 = vadd.f32 %v6955, %v7087
    %v7089 = vpop.f32.mrb[0].mxu0
    %v7090 = vpop.f32.mrb[0].mxu0
    %v7091 = vadd.f32 %v6955, %v7090
    %v7092 = vpop.f32.mrb[0].mxu0
    %7093 = vmatprep.mubr.bf16.mxu0 0
    %7094 = vmatmul.mubr.bf16.gmra.mrb[0].mxu0 %v7028
    %v7095 = vpop.f32.mrb[0].mxu0
    %v7096 = vadd.f32 %v6955, %v7095
    %v7097 = vpop.f32.mrb[0].mxu0
    %v7098 = vpop.f32.mrb[0].mxu0
    %v7099 = vadd.f32 %v6955, %v7098
    %v7100 = vpop.f32.mrb[0].mxu0
    %7101 = vmatprep.mubr.bf16.mxu0 0
    %7102 = vmatmul.mubr.bf16.gmra.mrb[0].mxu0 %v7031
    %v7103 = vpop.f32.mrb[0].mxu0
    %v7104 = vadd.f32 %v6955, %v7103
    %v7105 = vpop.f32.mrb[0].mxu0
    %v7106 = vpop.f32.mrb[0].mxu0
    %v7107 = vadd.f32 %v6955, %v7106
    %v7108 = vpop.f32.mrb[0].mxu0
    %7109 = vmatprep.mubr.bf16.mxu0 0
    %7110 = vmatmul.mubr.bf16.gmra.mrb[0].mxu0 %v7034
    %v7111 = vpop.f32.mrb[0].mxu0
    %v7112 = vadd.f32 %v6955, %v7111
    %v7113 = vpop.f32.mrb[0].mxu0
    %v7114 = vpop.f32.mrb[0].mxu0
    %v7115 = vadd.f32 %v6955, %v7114
    %v7116 = vpop.f32.mrb[0].mxu0
    %7117 = vmatprep.mubr.bf16.mxu0 0
    %7118 = vmatmul.mubr.bf16.gmra.mrb[0].mxu0 %v7037
    %v7119 = vpop.f32.mrb[0].mxu0
    %v7120 = vadd.f32 %v6955, %v7119
    %v7121 = vpop.f32.mrb[0].mxu0
    %v7122 = vpop.f32.mrb[0].mxu0
    %v7123 = vadd.f32 %v6955, %v7122
    %v7124 = vpop.f32.mrb[0].mxu0
    %7125 = vmatprep.mubr.bf16.mxu0 0
    %7126 = vmatmul.mubr.bf16.gmra.mrb[0].mxu0 %v7040
    %v7127 = vpop.f32.mrb[0].mxu0
    %v7128 = vadd.f32 %v6955, %v7127
    %v7129 = vpop.f32.mrb[0].mxu0
    %v7130 = vpop.f32.mrb[0].mxu0
    %v7131 = vadd.f32 %v6955, %v7130
    %v7132 = vpop.f32.mrb[0].mxu0
    %7133 = vmatprep.mubr.bf16.mxu0 0
    %7134 = vmatmul.mubr.bf16.gmra.mrb[0].mxu0 %v7043
    %v7135 = vpop.f32.mrb[0].mxu0
    %v7136 = vadd.f32 %v6955, %v7135
    %v7137 = vpop.f32.mrb[0].mxu0
    %v7138 = vpop.f32.mrb[0].mxu0
    %v7139 = vadd.f32 %v6955, %v7138
    %v7140 = vpop.f32.mrb[0].mxu0
    %7141 = vdwg.mxu0
    %7142 = vst.msk [vmem:[#allocation6] sm:$0xff] %vm4139, %v7080
    %7143 = vst.msk [vmem:[#allocation6 + $0x8] sm:$0xff] %vm4139, %v7083
    %7144 = vst.msk [vmem:[#allocation6 + $0x10] sm:$0xff] %vm4139, %v7088
    %7145 = vst.msk [vmem:[#allocation6 + $0x18] sm:$0xff] %vm4139, %v7091
    %7146 = vst.msk [vmem:[#allocation6 + $0x20] sm:$0xff] %vm4139, %v7096
    %7147 = vst.msk [vmem:[#allocation6 + $0x28] sm:$0xff] %vm4139, %v7099
    %7148 = vst.msk [vmem:[#allocation6 + $0x30] sm:$0xff] %vm4139, %v7104
    %7149 = vst.msk [vmem:[#allocation6 + $0x38] sm:$0xff] %vm4139, %v7107
    %7150 = vst.msk [vmem:[#allocation6 + $0x40] sm:$0xff] %vm4139, %v7112
    %7151 = vst.msk [vmem:[#allocation6 + $0x48] sm:$0xff] %vm4139, %v7115
    %7152 = vst.msk [vmem:[#allocation6 + $0x50] sm:$0xff] %vm4139, %v7120
    %7153 = vst.msk [vmem:[#allocation6 + $0x58] sm:$0xff] %vm4139, %v7123
    %7154 = vst.msk [vmem:[#allocation6 + $0x60] sm:$0xff] %vm4139, %v7128
    %7155 = vst.msk [vmem:[#allocation6 + $0x68] sm:$0xff] %vm4139, %v7131
    %7156 = vst.msk [vmem:[#allocation6 + $0x70] sm:$0xff] %vm4139, %v7136
    %7157 = vst.msk [vmem:[#allocation6 + $0x78] sm:$0xff] %vm4139, %v7139
    // Predicated region
    $region126: #{up_block_forward.1} parent=1 // pred_check
      _
    $region127: #{up_block_forward.1} parent=1 // pred_check_branch
      %7159 = sbr.rel (0) target = $region129
    $region128: #{up_block_forward.1} parent=1 // pred_region
      %s7161 = ssub.s32 2048, 2048
      %7162 = vsyncadd [#allocation5], %s7161
      %s7163 = sshll.u32 [#allocation4], 4
      %s7164 = int_to_ptr.vmem [resolvable:$true] %s7163
      %7169 = dma.vmem_to_hbm [thread:$0]  %s7164, 2048, %s63, [#allocation5], 128, 128, 8
    $region129: #{up_block_forward.1} parent=1 // pred_fallthru
      _
    // Predicated region
    $region130: #{up_block_forward.1} parent=1 // pred_check
      _
    $region131: #{up_block_forward.1} parent=1 // pred_check_branch
      %7171 = sbr.rel (0) target = $region133
    $region132: #{up_block_forward.1} parent=1 // pred_region
      %s7173 = ssub.s32 2048, 2048
      %7174 = vsyncadd [#allocation7], %s7173
      %s7175 = sshll.u32 [#allocation6], 4
      %s7176 = int_to_ptr.vmem [resolvable:$true] %s7175
      %7181 = dma.vmem_to_hbm [thread:$0]  %s7176, 2048, %s65, [#allocation7], 128, 128, 8
    $region133: #{up_block_forward.1} parent=1 // pred_fallthru
      _
    // Predicated region
    $region134: #{up_block_forward.1} parent=1 // pred_check
      _
    $region135: #{up_block_forward.1} parent=1 // pred_check_branch
      %7183 = sbr.rel (0) target = $region137
    $region136: #{up_block_forward.1} parent=1 // pred_region
      %7184 = dma.done [#allocation5], 2048
    $region137: #{up_block_forward.1} parent=1 // pred_fallthru
      _
    // Predicated region
    $region138: #{up_block_forward.1} parent=1 // pred_check
      _
    $region139: #{up_block_forward.1} parent=1 // pred_check_branch
      %7186 = sbr.rel (0) target = $region141
    $region140: #{up_block_forward.1} parent=1 // pred_region
      %7187 = dma.done [#allocation7], 2048
    $region141: #{up_block_forward.1} parent=1 // pred_fallthru
      _
    %7188 = vsyncpa [#allocation5], 1
    %7189 = vsyncpa [#allocation7], 1

</llo_original>
